<compile_context>
chip_gen: v7x
topology: tpu7x:2x2x1
jax: 0.10.0
libtpu: 0.0.40
codegen_flags: <defaults>
</compile_context>

<pallas_src>
import jax
import jax.numpy as jnp
from jax.experimental import pallas as pl
from jax.experimental.pallas import tpu as pltpu


def _round_up(a, b):
    return (a + b - 1) // b * b


# ----------------------------------------------------------------------------
# Pallas kernel: AdderNet "conv" (neg-L1) + folded BN + optional residual + ReLU
# ----------------------------------------------------------------------------
def _make_adder_kernel(tk, with_residual):
    def kernel(x_ref, wt_ref, scale_ref, bias_ref, *rest):
        if with_residual:
            res_ref, o_ref, acc_ref = rest
        else:
            o_ref, acc_ref = rest

        k = pl.program_id(1)

        @pl.when(k == 0)
        def _():
            acc_ref[...] = jnp.zeros_like(acc_ref)

        x = x_ref[...]        # (tm, tk)     float32
        wt = wt_ref[...]      # (tk, F_pad)  float32
        acc = acc_ref[...]    # (tm, F_pad)  float32
        # Per-K-element VPU accumulate; static slices, no 3-D broadcast temp.
        for t in range(tk):
            acc = acc + jnp.abs(x[:, t:t + 1] - wt[t:t + 1, :])
        acc_ref[...] = acc

        @pl.when(k == pl.num_programs(1) - 1)
        def _():
            y = (-acc_ref[...]) * scale_ref[...] + bias_ref[...]   # folded BN
            if with_residual:
                y = y + res_ref[...]
            o_ref[...] = jnp.maximum(y, 0.0)                        # ReLU

    return kernel


def adder_conv_bn_relu_pallas(x_col, w_colT, scale, bias, residual=None):
    """x_col [M, K], w_colT [K, F], scale/bias [F], residual [M, F] or None."""
    M, K = x_col.shape
    F = w_colT.shape[1]

    # ---- tile / pad sizes ----------------------------------------------
    F_pad = _round_up(F, 128)                 # lane-dense output
    K8 = _round_up(K, 8)
    if K8 <= 128:
        tk, K_pad = K8, K8                    # single K step; weight resident
    else:
        tk, K_pad = 128, _round_up(K, 128)    # K tiled on the reduction axis
    nk = K_pad // tk

    M8 = _round_up(M, 8)
    tm = min(256, M8)
    M_pad = _round_up(M8, tm)
    nm = M_pad // tm

    # ---- pad operands (padded K entries are zeros -> contribute 0) -------
    xp = jnp.pad(x_col.astype(jnp.float32), ((0, M_pad - M), (0, K_pad - K)))
    wp = jnp.pad(w_colT.astype(jnp.float32), ((0, K_pad - K), (0, F_pad - F)))
    sp = jnp.pad(scale.astype(jnp.float32), (0, F_pad - F)).reshape(1, F_pad)
    bp = jnp.pad(bias.astype(jnp.float32), (0, F_pad - F)).reshape(1, F_pad)

    with_res = residual is not None
    in_specs = [
        pl.BlockSpec((tm, tk), lambda i, k: (i, k)),       # x tile
        pl.BlockSpec((tk, F_pad), lambda i, k: (k, 0)),    # weight tile
        pl.BlockSpec((1, F_pad), lambda i, k: (0, 0)),     # BN scale
        pl.BlockSpec((1, F_pad), lambda i, k: (0, 0)),     # BN bias
    ]
    operands = [xp, wp, sp, bp]
    if with_res:
        rp = jnp.pad(residual.astype(jnp.float32),
                     ((0, M_pad - M), (0, F_pad - F)))
        in_specs.append(pl.BlockSpec((tm, F_pad), lambda i, k: (i, 0)))
        operands.append(rp)

    bytes_accessed = 4 * (xp.size + wp.size + M_pad * F_pad
                          + (M_pad * F_pad if with_res else 0))

    out = pl.pallas_call(
        _make_adder_kernel(tk, with_res),
        out_shape=jax.ShapeDtypeStruct((M_pad, F_pad), jnp.float32),
        grid_spec=pltpu.PrefetchScalarGridSpec(
            num_scalar_prefetch=0,
            grid=(nm, nk),
            in_specs=in_specs,
            out_specs=pl.BlockSpec((tm, F_pad), lambda i, k: (i, 0)),
            scratch_shapes=[pltpu.VMEM((tm, F_pad), jnp.float32)],
        ),
        compiler_params=pltpu.CompilerParams(
            dimension_semantics=("parallel", "arbitrary"),
            vmem_limit_bytes=32 * 1024 * 1024,
        ),
        cost_estimate=pl.CostEstimate(
            flops=3 * M_pad * F_pad * K_pad,   # sub + abs + add per element
            transcendentals=0,
            bytes_accessed=bytes_accessed,
        ),
    )(*operands)
    return out[:M, :F]


# ----------------------------------------------------------------------------
# Glue: im2col (NHWC), BN folding, bottleneck forward
# ----------------------------------------------------------------------------
def im2col_nhwc(x_nhwc, kh, kw, stride, padding):
    N, H, W, C = x_nhwc.shape
    xp = jnp.pad(x_nhwc, ((0, 0), (padding, padding), (padding, padding), (0, 0)))
    Ho = (H + 2 * padding - kh) // stride + 1
    Wo = (W + 2 * padding - kw) // stride + 1
    patches = []
    for i in range(kh):
        for j in range(kw):
            patches.append(xp[:, i:i + stride * Ho:stride, j:j + stride * Wo:stride, :])
    # stack -> (N, Ho, Wo, C, kh*kw); flatten to K ordered (c, kh, kw)
    p = jnp.stack(patches, axis=-1)
    x_col = p.reshape(N * Ho * Wo, C * kh * kw)
    return x_col, (N, Ho, Wo)


def fold_bn(gamma, beta, mean, var, eps=1e-5):
    scale = gamma / jnp.sqrt(var + eps)
    bias = beta - mean * scale
    return scale.astype(jnp.float32), bias.astype(jnp.float32)


def adder_stage(x_nhwc, w, bn, stride, padding, residual=None):
    F, C, kh, kw = w.shape
    x_col, (N, Ho, Wo) = im2col_nhwc(x_nhwc, kh, kw, stride, padding)
    w_colT = w.reshape(F, C * kh * kw).T.astype(jnp.float32)   # [K, F]
    scale, bias = fold_bn(*bn)
    res = None if residual is None else residual.reshape(N * Ho * Wo, F)
    out = adder_conv_bn_relu_pallas(x_col.astype(jnp.float32), w_colT,
                                    scale, bias, res)
    return out.reshape(N, Ho, Wo, F)


def bottleneck_forward(x_nchw, params):
    """AdderNet Bottleneck (expansion=4, stride=1, downsample=None). NCHW in/out."""
    x_nhwc = jnp.transpose(x_nchw, (0, 2, 3, 1)).astype(jnp.float32)

    out = adder_stage(x_nhwc, params["w1"], params["bn1"], stride=1, padding=0)
    out = adder_stage(out, params["w2"], params["bn2"], stride=1, padding=1)
    # conv3 + bn3 + residual add + ReLU fused into the last kernel call
    out = adder_stage(out, params["w3"], params["bn3"], stride=1, padding=0,
                      residual=x_nhwc)
    return jnp.transpose(out, (0, 3, 1, 2))


# ----------------------------------------------------------------------------
# Pure-JAX reference (same math, no Pallas) for validation
# ----------------------------------------------------------------------------
def adder_stage_ref(x_nhwc, w, bn, stride, padding, residual=None):
    F, C, kh, kw = w.shape
    x_col, (N, Ho, Wo) = im2col_nhwc(x_nhwc, kh, kw, stride, padding)
    w_col = w.reshape(F, C * kh * kw)
    d = -jnp.sum(jnp.abs(x_col[:, None, :] - w_col[None, :, :]), axis=-1)
    scale, bias = fold_bn(*bn)
    y = d * scale[None, :] + bias[None, :]
    if residual is not None:
        y = y + residual.reshape(-1, F)
    return jnp.maximum(y, 0.0).reshape(N, Ho, Wo, F)


def bottleneck_ref(x_nchw, params):
    x_nhwc = jnp.transpose(x_nchw, (0, 2, 3, 1)).astype(jnp.float32)
    out = adder_stage_ref(x_nhwc, params["w1"], params["bn1"], 1, 0)
    out = adder_stage_ref(out, params["w2"], params["bn2"], 1, 1)
    out = adder_stage_ref(out, params["w3"], params["bn3"], 1, 0, residual=x_nhwc)
    return jnp.transpose(out, (0, 3, 1, 2))


# ----------------------------------------------------------------------------
if __name__ == "__main__":
    key = jax.random.PRNGKey(0)
    # Small shapes: inplanes = planes * expansion so downsample=None is valid.
    N, inplanes, H, W = 2, 16, 8, 8
    planes, expansion = 4, 4
    outplanes = planes * expansion  # == inplanes

    ks = jax.random.split(key, 16)
    x = jax.random.normal(ks[0], (N, inplanes, H, W), jnp.float32)

    def bn_params(kg, kb, km, kv, c):
        gamma = 1.0 + 0.1 * jax.random.normal(kg, (c,), jnp.float32)
        beta = 0.1 * jax.random.normal(kb, (c,), jnp.float32)
        mean = 0.1 * jax.random.normal(km, (c,), jnp.float32)
        var = 0.5 + jnp.abs(jax.random.normal(kv, (c,), jnp.float32))
        return (gamma, beta, mean, var)

    params = {
        "w1": 0.2 * jax.random.normal(ks[1], (planes, inplanes, 1, 1), jnp.float32),
        "w2": 0.2 * jax.random.normal(ks[2], (planes, planes, 3, 3), jnp.float32),
        "w3": 0.2 * jax.random.normal(ks[3], (outplanes, planes, 1, 1), jnp.float32),
        "bn1": bn_params(ks[4], ks[5], ks[6], ks[7], planes),
        "bn2": bn_params(ks[8], ks[9], ks[10], ks[11], planes),
        "bn3": bn_params(ks[12], ks[13], ks[14], ks[15], outplanes),
    }

    out = jax.jit(bottleneck_forward)(x, params)
    out = jax.block_until_ready(out)

    ref = bottleneck_ref(x, params)
    assert out.shape == (N, outplanes, H, W), out.shape
    assert jnp.allclose(out, ref, atol=1e-4, rtol=1e-4), float(jnp.max(jnp.abs(out - ref)))

    print("KERNEL_OK")
</pallas_src>

<mosaic_0001>
module attributes {stable_mosaic.version = 11 : i64} {
  func.func @kernel(%arg0: i32, %arg1: i32, %arg2: memref<128x16xf32, #tpu.memory_space<vmem>>, %arg3: memref<16x128xf32, #tpu.memory_space<vmem>>, %arg4: memref<1x128xf32, #tpu.memory_space<vmem>>, %arg5: memref<1x128xf32, #tpu.memory_space<vmem>>, %arg6: memref<128x128xf32, #tpu.memory_space<vmem>>, %arg7: memref<128x128xf32, #tpu.memory_space<vmem>>) attributes {dimension_semantics = [#tpu.dimension_semantics<parallel>, #tpu.dimension_semantics<arbitrary>], iteration_bounds = array<i64: 1, 1>, scalar_prefetch = 0 : i64, scratch_operands = 1 : i64, tpu.core_type = #tpu.core_type<tc>, window_params = [{transform_indices = @transform_0, window_bounds = array<i64: 128, 16>}, {transform_indices = @transform_1, window_bounds = array<i64: 16, 128>}, {pipeline_mode = #tpu.pipeline_mode<synchronous>, transform_indices = @transform_2, window_bounds = array<i64: 1, 128>}, {pipeline_mode = #tpu.pipeline_mode<synchronous>, transform_indices = @transform_3, window_bounds = array<i64: 1, 128>}, {transform_indices = @transform_4, window_bounds = array<i64: 128, 128>}]} {
    %c0_i32 = arith.constant 0 : i32
    %0 = arith.cmpi eq, %arg1, %c0_i32 : i32
    %1 = arith.extui %0 : i1 to i32
    %c0_i32_0 = arith.constant 0 : i32
    %2 = arith.cmpi ne, %1, %c0_i32_0 : i32
    scf.if %2 {
      %cst = arith.constant 0.000000e+00 : f32
      %122 = vector.broadcast %cst : f32 to vector<128x128xf32>
      %c0_10 = arith.constant 0 : index
      %c0_11 = arith.constant 0 : index
      %123 = vector.load %arg7[%c0_10, %c0_11] : memref<128x128xf32, #tpu.memory_space<vmem>>, vector<128x128xf32>
      tpu.vector_store %arg7[%c0_10, %c0_11], %122 {strides = array<i32>} : memref<128x128xf32, #tpu.memory_space<vmem>>, vector<128x128xf32>,
    } else {
    }
    %c0 = arith.constant 0 : index
    %c0_1 = arith.constant 0 : index
    %3 = vector.load %arg2[%c0, %c0_1] : memref<128x16xf32, #tpu.memory_space<vmem>>, vector<128x16xf32>
    %c0_2 = arith.constant 0 : index
    %c0_3 = arith.constant 0 : index
    %4 = vector.load %arg3[%c0_2, %c0_3] : memref<16x128xf32, #tpu.memory_space<vmem>>, vector<16x128xf32>
    %c0_4 = arith.constant 0 : index
    %c0_5 = arith.constant 0 : index
    %5 = vector.load %arg7[%c0_4, %c0_5] : memref<128x128xf32, #tpu.memory_space<vmem>>, vector<128x128xf32>
    %6 = vector.extract_strided_slice %3 {offsets = [0, 0], sizes = [128, 1], strides = [1, 1]} : vector<128x16xf32> to vector<128x1xf32>
    %7 = vector.extract_strided_slice %4 {offsets = [0, 0], sizes = [1, 128], strides = [1, 1]} : vector<16x128xf32> to vector<1x128xf32>
    %8 = vector.broadcast %6 : vector<128x1xf32> to vector<128x128xf32>
    %9 = vector.broadcast %7 : vector<1x128xf32> to vector<128x128xf32>
    %10 = arith.subf %8, %9 : vector<128x128xf32>
    %11 = math.absf %10 : vector<128x128xf32>
    %12 = arith.addf %5, %11 : vector<128x128xf32>
    %13 = vector.extract_strided_slice %3 {offsets = [0, 1], sizes = [128, 1], strides = [1, 1]} : vector<128x16xf32> to vector<128x1xf32>
    %14 = vector.extract_strided_slice %4 {offsets = [1, 0], sizes = [1, 128], strides = [1, 1]} : vector<16x128xf32> to vector<1x128xf32>
    %15 = vector.broadcast %13 : vector<128x1xf32> to vector<128x128xf32>
    %16 = vector.broadcast %14 : vector<1x128xf32> to vector<128x128xf32>
    %17 = arith.subf %15, %16 : vector<128x128xf32>
    %18 = math.absf %17 : vector<128x128xf32>
    %19 = arith.addf %12, %18 : vector<128x128xf32>
    %20 = vector.extract_strided_slice %3 {offsets = [0, 2], sizes = [128, 1], strides = [1, 1]} : vector<128x16xf32> to vector<128x1xf32>
    %21 = vector.extract_strided_slice %4 {offsets = [2, 0], sizes = [1, 128], strides = [1, 1]} : vector<16x128xf32> to vector<1x128xf32>
    %22 = vector.broadcast %20 : vector<128x1xf32> to vector<128x128xf32>
    %23 = vector.broadcast %21 : vector<1x128xf32> to vector<128x128xf32>
    %24 = arith.subf %22, %23 : vector<128x128xf32>
    %25 = math.absf %24 : vector<128x128xf32>
    %26 = arith.addf %19, %25 : vector<128x128xf32>
    %27 = vector.extract_strided_slice %3 {offsets = [0, 3], sizes = [128, 1], strides = [1, 1]} : vector<128x16xf32> to vector<128x1xf32>
    %28 = vector.extract_strided_slice %4 {offsets = [3, 0], sizes = [1, 128], strides = [1, 1]} : vector<16x128xf32> to vector<1x128xf32>
    %29 = vector.broadcast %27 : vector<128x1xf32> to vector<128x128xf32>
    %30 = vector.broadcast %28 : vector<1x128xf32> to vector<128x128xf32>
    %31 = arith.subf %29, %30 : vector<128x128xf32>
    %32 = math.absf %31 : vector<128x128xf32>
    %33 = arith.addf %26, %32 : vector<128x128xf32>
    %34 = vector.extract_strided_slice %3 {offsets = [0, 4], sizes = [128, 1], strides = [1, 1]} : vector<128x16xf32> to vector<128x1xf32>
    %35 = vector.extract_strided_slice %4 {offsets = [4, 0], sizes = [1, 128], strides = [1, 1]} : vector<16x128xf32> to vector<1x128xf32>
    %36 = vector.broadcast %34 : vector<128x1xf32> to vector<128x128xf32>
    %37 = vector.broadcast %35 : vector<1x128xf32> to vector<128x128xf32>
    %38 = arith.subf %36, %37 : vector<128x128xf32>
    %39 = math.absf %38 : vector<128x128xf32>
    %40 = arith.addf %33, %39 : vector<128x128xf32>
    %41 = vector.extract_strided_slice %3 {offsets = [0, 5], sizes = [128, 1], strides = [1, 1]} : vector<128x16xf32> to vector<128x1xf32>
    %42 = vector.extract_strided_slice %4 {offsets = [5, 0], sizes = [1, 128], strides = [1, 1]} : vector<16x128xf32> to vector<1x128xf32>
    %43 = vector.broadcast %41 : vector<128x1xf32> to vector<128x128xf32>
    %44 = vector.broadcast %42 : vector<1x128xf32> to vector<128x128xf32>
    %45 = arith.subf %43, %44 : vector<128x128xf32>
    %46 = math.absf %45 : vector<128x128xf32>
    %47 = arith.addf %40, %46 : vector<128x128xf32>
    %48 = vector.extract_strided_slice %3 {offsets = [0, 6], sizes = [128, 1], strides = [1, 1]} : vector<128x16xf32> to vector<128x1xf32>
    %49 = vector.extract_strided_slice %4 {offsets = [6, 0], sizes = [1, 128], strides = [1, 1]} : vector<16x128xf32> to vector<1x128xf32>
    %50 = vector.broadcast %48 : vector<128x1xf32> to vector<128x128xf32>
    %51 = vector.broadcast %49 : vector<1x128xf32> to vector<128x128xf32>
    %52 = arith.subf %50, %51 : vector<128x128xf32>
    %53 = math.absf %52 : vector<128x128xf32>
    %54 = arith.addf %47, %53 : vector<128x128xf32>
    %55 = vector.extract_strided_slice %3 {offsets = [0, 7], sizes = [128, 1], strides = [1, 1]} : vector<128x16xf32> to vector<128x1xf32>
    %56 = vector.extract_strided_slice %4 {offsets = [7, 0], sizes = [1, 128], strides = [1, 1]} : vector<16x128xf32> to vector<1x128xf32>
    %57 = vector.broadcast %55 : vector<128x1xf32> to vector<128x128xf32>
    %58 = vector.broadcast %56 : vector<1x128xf32> to vector<128x128xf32>
    %59 = arith.subf %57, %58 : vector<128x128xf32>
    %60 = math.absf %59 : vector<128x128xf32>
    %61 = arith.addf %54, %60 : vector<128x128xf32>
    %62 = vector.extract_strided_slice %3 {offsets = [0, 8], sizes = [128, 1], strides = [1, 1]} : vector<128x16xf32> to vector<128x1xf32>
    %63 = vector.extract_strided_slice %4 {offsets = [8, 0], sizes = [1, 128], strides = [1, 1]} : vector<16x128xf32> to vector<1x128xf32>
    %64 = vector.broadcast %62 : vector<128x1xf32> to vector<128x128xf32>
    %65 = vector.broadcast %63 : vector<1x128xf32> to vector<128x128xf32>
    %66 = arith.subf %64, %65 : vector<128x128xf32>
    %67 = math.absf %66 : vector<128x128xf32>
    %68 = arith.addf %61, %67 : vector<128x128xf32>
    %69 = vector.extract_strided_slice %3 {offsets = [0, 9], sizes = [128, 1], strides = [1, 1]} : vector<128x16xf32> to vector<128x1xf32>
    %70 = vector.extract_strided_slice %4 {offsets = [9, 0], sizes = [1, 128], strides = [1, 1]} : vector<16x128xf32> to vector<1x128xf32>
    %71 = vector.broadcast %69 : vector<128x1xf32> to vector<128x128xf32>
    %72 = vector.broadcast %70 : vector<1x128xf32> to vector<128x128xf32>
    %73 = arith.subf %71, %72 : vector<128x128xf32>
    %74 = math.absf %73 : vector<128x128xf32>
    %75 = arith.addf %68, %74 : vector<128x128xf32>
    %76 = vector.extract_strided_slice %3 {offsets = [0, 10], sizes = [128, 1], strides = [1, 1]} : vector<128x16xf32> to vector<128x1xf32>
    %77 = vector.extract_strided_slice %4 {offsets = [10, 0], sizes = [1, 128], strides = [1, 1]} : vector<16x128xf32> to vector<1x128xf32>
    %78 = vector.broadcast %76 : vector<128x1xf32> to vector<128x128xf32>
    %79 = vector.broadcast %77 : vector<1x128xf32> to vector<128x128xf32>
    %80 = arith.subf %78, %79 : vector<128x128xf32>
    %81 = math.absf %80 : vector<128x128xf32>
    %82 = arith.addf %75, %81 : vector<128x128xf32>
    %83 = vector.extract_strided_slice %3 {offsets = [0, 11], sizes = [128, 1], strides = [1, 1]} : vector<128x16xf32> to vector<128x1xf32>
    %84 = vector.extract_strided_slice %4 {offsets = [11, 0], sizes = [1, 128], strides = [1, 1]} : vector<16x128xf32> to vector<1x128xf32>
    %85 = vector.broadcast %83 : vector<128x1xf32> to vector<128x128xf32>
    %86 = vector.broadcast %84 : vector<1x128xf32> to vector<128x128xf32>
    %87 = arith.subf %85, %86 : vector<128x128xf32>
    %88 = math.absf %87 : vector<128x128xf32>
    %89 = arith.addf %82, %88 : vector<128x128xf32>
    %90 = vector.extract_strided_slice %3 {offsets = [0, 12], sizes = [128, 1], strides = [1, 1]} : vector<128x16xf32> to vector<128x1xf32>
    %91 = vector.extract_strided_slice %4 {offsets = [12, 0], sizes = [1, 128], strides = [1, 1]} : vector<16x128xf32> to vector<1x128xf32>
    %92 = vector.broadcast %90 : vector<128x1xf32> to vector<128x128xf32>
    %93 = vector.broadcast %91 : vector<1x128xf32> to vector<128x128xf32>
    %94 = arith.subf %92, %93 : vector<128x128xf32>
    %95 = math.absf %94 : vector<128x128xf32>
    %96 = arith.addf %89, %95 : vector<128x128xf32>
    %97 = vector.extract_strided_slice %3 {offsets = [0, 13], sizes = [128, 1], strides = [1, 1]} : vector<128x16xf32> to vector<128x1xf32>
    %98 = vector.extract_strided_slice %4 {offsets = [13, 0], sizes = [1, 128], strides = [1, 1]} : vector<16x128xf32> to vector<1x128xf32>
    %99 = vector.broadcast %97 : vector<128x1xf32> to vector<128x128xf32>
    %100 = vector.broadcast %98 : vector<1x128xf32> to vector<128x128xf32>
    %101 = arith.subf %99, %100 : vector<128x128xf32>
    %102 = math.absf %101 : vector<128x128xf32>
    %103 = arith.addf %96, %102 : vector<128x128xf32>
    %104 = vector.extract_strided_slice %3 {offsets = [0, 14], sizes = [128, 1], strides = [1, 1]} : vector<128x16xf32> to vector<128x1xf32>
    %105 = vector.extract_strided_slice %4 {offsets = [14, 0], sizes = [1, 128], strides = [1, 1]} : vector<16x128xf32> to vector<1x128xf32>
    %106 = vector.broadcast %104 : vector<128x1xf32> to vector<128x128xf32>
    %107 = vector.broadcast %105 : vector<1x128xf32> to vector<128x128xf32>
    %108 = arith.subf %106, %107 : vector<128x128xf32>
    %109 = math.absf %108 : vector<128x128xf32>
    %110 = arith.addf %103, %109 : vector<128x128xf32>
    %111 = vector.extract_strided_slice %3 {offsets = [0, 15], sizes = [128, 1], strides = [1, 1]} : vector<128x16xf32> to vector<128x1xf32>
    %112 = vector.extract_strided_slice %4 {offsets = [15, 0], sizes = [1, 128], strides = [1, 1]} : vector<16x128xf32> to vector<1x128xf32>
    %113 = vector.broadcast %111 : vector<128x1xf32> to vector<128x128xf32>
    %114 = vector.broadcast %112 : vector<1x128xf32> to vector<128x128xf32>
    %115 = arith.subf %113, %114 : vector<128x128xf32>
    %116 = math.absf %115 : vector<128x128xf32>
    %117 = arith.addf %110, %116 : vector<128x128xf32>
    %c0_6 = arith.constant 0 : index
    %c0_7 = arith.constant 0 : index
    %118 = vector.load %arg7[%c0_6, %c0_7] : memref<128x128xf32, #tpu.memory_space<vmem>>, vector<128x128xf32>
    tpu.vector_store %arg7[%c0_6, %c0_7], %117 {strides = array<i32>} : memref<128x128xf32, #tpu.memory_space<vmem>>, vector<128x128xf32>,
    %c0_i32_8 = arith.constant 0 : i32
    %119 = arith.cmpi eq, %arg1, %c0_i32_8 : i32
    %120 = arith.extui %119 : i1 to i32
    %c0_i32_9 = arith.constant 0 : i32
    %121 = arith.cmpi ne, %120, %c0_i32_9 : i32
    scf.if %121 {
      %c0_10 = arith.constant 0 : index
      %c0_11 = arith.constant 0 : index
      %122 = vector.load %arg7[%c0_10, %c0_11] : memref<128x128xf32, #tpu.memory_space<vmem>>, vector<128x128xf32>
      %cst = arith.constant 0.000000e+00 : f32
      %123 = vector.broadcast %cst : f32 to vector<128x128xf32>
      %124 = arith.subf %123, %122 : vector<128x128xf32>
      %c0_12 = arith.constant 0 : index
      %c0_13 = arith.constant 0 : index
      %125 = vector.load %arg4[%c0_12, %c0_13] : memref<1x128xf32, #tpu.memory_space<vmem>>, vector<1x128xf32>
      %126 = vector.broadcast %125 : vector<1x128xf32> to vector<128x128xf32>
      %127 = arith.mulf %124, %126 : vector<128x128xf32>
      %c0_14 = arith.constant 0 : index
      %c0_15 = arith.constant 0 : index
      %128 = vector.load %arg5[%c0_14, %c0_15] : memref<1x128xf32, #tpu.memory_space<vmem>>, vector<1x128xf32>
      %129 = vector.broadcast %128 : vector<1x128xf32> to vector<128x128xf32>
      %130 = arith.addf %127, %129 : vector<128x128xf32>
      %cst_16 = arith.constant 0.000000e+00 : f32
      %131 = vector.broadcast %cst_16 : f32 to vector<128x128xf32>
      %132 = arith.maximumf %130, %131 : vector<128x128xf32>
      %c0_17 = arith.constant 0 : index
      %c0_18 = arith.constant 0 : index
      %133 = vector.load %arg6[%c0_17, %c0_18] : memref<128x128xf32, #tpu.memory_space<vmem>>, vector<128x128xf32>
      tpu.vector_store %arg6[%c0_17, %c0_18], %132 {strides = array<i32>} : memref<128x128xf32, #tpu.memory_space<vmem>>, vector<128x128xf32>,
    } else {
    }
    return
  }
  func.func @transform_0(%arg0: i32, %arg1: i32) -> (i32, i32) {
    %c0_i32 = arith.constant 0 : i32
    return %arg0, %arg1 : i32, i32
  }
  func.func @transform_1(%arg0: i32, %arg1: i32) -> (i32, i32) {
    %c0_i32 = arith.constant 0 : i32
    %c0_i32_0 = arith.constant 0 : i32
    return %arg1, %c0_i32 : i32, i32
  }
  func.func @transform_2(%arg0: i32, %arg1: i32) -> (i32, i32) {
    %c0_i32 = arith.constant 0 : i32
    %c0_i32_0 = arith.constant 0 : i32
    %c0_i32_1 = arith.constant 0 : i32
    return %c0_i32, %c0_i32_0 : i32, i32
  }
  func.func @transform_3(%arg0: i32, %arg1: i32) -> (i32, i32) {
    %c0_i32 = arith.constant 0 : i32
    %c0_i32_0 = arith.constant 0 : i32
    %c0_i32_1 = arith.constant 0 : i32
    return %c0_i32, %c0_i32_0 : i32, i32
  }
  func.func @transform_4(%arg0: i32, %arg1: i32) -> (i32, i32) {
    %c0_i32 = arith.constant 0 : i32
    %c0_i32_0 = arith.constant 0 : i32
    return %arg0, %c0_i32 : i32, i32
  }
}

module attributes {stable_mosaic.version = 11 : i64} {
  func.func @kernel(%arg0: i32, %arg1: i32, %arg2: memref<128x40xf32, #tpu.memory_space<vmem>>, %arg3: memref<40x128xf32, #tpu.memory_space<vmem>>, %arg4: memref<1x128xf32, #tpu.memory_space<vmem>>, %arg5: memref<1x128xf32, #tpu.memory_space<vmem>>, %arg6: memref<128x128xf32, #tpu.memory_space<vmem>>, %arg7: memref<128x128xf32, #tpu.memory_space<vmem>>) attributes {dimension_semantics = [#tpu.dimension_semantics<parallel>, #tpu.dimension_semantics<arbitrary>], iteration_bounds = array<i64: 1, 1>, scalar_prefetch = 0 : i64, scratch_operands = 1 : i64, tpu.core_type = #tpu.core_type<tc>, window_params = [{transform_indices = @transform_0, window_bounds = array<i64: 128, 40>}, {transform_indices = @transform_1, window_bounds = array<i64: 40, 128>}, {pipeline_mode = #tpu.pipeline_mode<synchronous>, transform_indices = @transform_2, window_bounds = array<i64: 1, 128>}, {pipeline_mode = #tpu.pipeline_mode<synchronous>, transform_indices = @transform_3, window_bounds = array<i64: 1, 128>}, {transform_indices = @transform_4, window_bounds = array<i64: 128, 128>}]} {
    %c0_i32 = arith.constant 0 : i32
    %0 = arith.cmpi eq, %arg1, %c0_i32 : i32
    %1 = arith.extui %0 : i1 to i32
    %c0_i32_0 = arith.constant 0 : i32
    %2 = arith.cmpi ne, %1, %c0_i32_0 : i32
    scf.if %2 {
      %cst = arith.constant 0.000000e+00 : f32
      %290 = vector.broadcast %cst : f32 to vector<128x128xf32>
      %c0_10 = arith.constant 0 : index
      %c0_11 = arith.constant 0 : index
      %291 = vector.load %arg7[%c0_10, %c0_11] : memref<128x128xf32, #tpu.memory_space<vmem>>, vector<128x128xf32>
      tpu.vector_store %arg7[%c0_10, %c0_11], %290 {strides = array<i32>} : memref<128x128xf32, #tpu.memory_space<vmem>>, vector<128x128xf32>,
    } else {
    }
    %c0 = arith.constant 0 : index
    %c0_1 = arith.constant 0 : index
    %3 = vector.load %arg2[%c0, %c0_1] : memref<128x40xf32, #tpu.memory_space<vmem>>, vector<128x40xf32>
    %c0_2 = arith.constant 0 : index
    %c0_3 = arith.constant 0 : index
    %4 = vector.load %arg3[%c0_2, %c0_3] : memref<40x128xf32, #tpu.memory_space<vmem>>, vector<40x128xf32>
    %c0_4 = arith.constant 0 : index
    %c0_5 = arith.constant 0 : index
    %5 = vector.load %arg7[%c0_4, %c0_5] : memref<128x128xf32, #tpu.memory_space<vmem>>, vector<128x128xf32>
    %6 = vector.extract_strided_slice %3 {offsets = [0, 0], sizes = [128, 1], strides = [1, 1]} : vector<128x40xf32> to vector<128x1xf32>
    %7 = vector.extract_strided_slice %4 {offsets = [0, 0], sizes = [1, 128], strides = [1, 1]} : vector<40x128xf32> to vector<1x128xf32>
    %8 = vector.broadcast %6 : vector<128x1xf32> to vector<128x128xf32>
    %9 = vector.broadcast %7 : vector<1x128xf32> to vector<128x128xf32>
    %10 = arith.subf %8, %9 : vector<128x128xf32>
    %11 = math.absf %10 : vector<128x128xf32>
    %12 = arith.addf %5, %11 : vector<128x128xf32>
    %13 = vector.extract_strided_slice %3 {offsets = [0, 1], sizes = [128, 1], strides = [1, 1]} : vector<128x40xf32> to vector<128x1xf32>
    %14 = vector.extract_strided_slice %4 {offsets = [1, 0], sizes = [1, 128], strides = [1, 1]} : vector<40x128xf32> to vector<1x128xf32>
    %15 = vector.broadcast %13 : vector<128x1xf32> to vector<128x128xf32>
    %16 = vector.broadcast %14 : vector<1x128xf32> to vector<128x128xf32>
    %17 = arith.subf %15, %16 : vector<128x128xf32>
    %18 = math.absf %17 : vector<128x128xf32>
    %19 = arith.addf %12, %18 : vector<128x128xf32>
    %20 = vector.extract_strided_slice %3 {offsets = [0, 2], sizes = [128, 1], strides = [1, 1]} : vector<128x40xf32> to vector<128x1xf32>
    %21 = vector.extract_strided_slice %4 {offsets = [2, 0], sizes = [1, 128], strides = [1, 1]} : vector<40x128xf32> to vector<1x128xf32>
    %22 = vector.broadcast %20 : vector<128x1xf32> to vector<128x128xf32>
    %23 = vector.broadcast %21 : vector<1x128xf32> to vector<128x128xf32>
    %24 = arith.subf %22, %23 : vector<128x128xf32>
    %25 = math.absf %24 : vector<128x128xf32>
    %26 = arith.addf %19, %25 : vector<128x128xf32>
    %27 = vector.extract_strided_slice %3 {offsets = [0, 3], sizes = [128, 1], strides = [1, 1]} : vector<128x40xf32> to vector<128x1xf32>
    %28 = vector.extract_strided_slice %4 {offsets = [3, 0], sizes = [1, 128], strides = [1, 1]} : vector<40x128xf32> to vector<1x128xf32>
    %29 = vector.broadcast %27 : vector<128x1xf32> to vector<128x128xf32>
    %30 = vector.broadcast %28 : vector<1x128xf32> to vector<128x128xf32>
    %31 = arith.subf %29, %30 : vector<128x128xf32>
    %32 = math.absf %31 : vector<128x128xf32>
    %33 = arith.addf %26, %32 : vector<128x128xf32>
    %34 = vector.extract_strided_slice %3 {offsets = [0, 4], sizes = [128, 1], strides = [1, 1]} : vector<128x40xf32> to vector<128x1xf32>
    %35 = vector.extract_strided_slice %4 {offsets = [4, 0], sizes = [1, 128], strides = [1, 1]} : vector<40x128xf32> to vector<1x128xf32>
    %36 = vector.broadcast %34 : vector<128x1xf32> to vector<128x128xf32>
    %37 = vector.broadcast %35 : vector<1x128xf32> to vector<128x128xf32>
    %38 = arith.subf %36, %37 : vector<128x128xf32>
    %39 = math.absf %38 : vector<128x128xf32>
    %40 = arith.addf %33, %39 : vector<128x128xf32>
    %41 = vector.extract_strided_slice %3 {offsets = [0, 5], sizes = [128, 1], strides = [1, 1]} : vector<128x40xf32> to vector<128x1xf32>
    %42 = vector.extract_strided_slice %4 {offsets = [5, 0], sizes = [1, 128], strides = [1, 1]} : vector<40x128xf32> to vector<1x128xf32>
    %43 = vector.broadcast %41 : vector<128x1xf32> to vector<128x128xf32>
    %44 = vector.broadcast %42 : vector<1x128xf32> to vector<128x128xf32>
    %45 = arith.subf %43, %44 : vector<128x128xf32>
    %46 = math.absf %45 : vector<128x128xf32>
    %47 = arith.addf %40, %46 : vector<128x128xf32>
    %48 = vector.extract_strided_slice %3 {offsets = [0, 6], sizes = [128, 1], strides = [1, 1]} : vector<128x40xf32> to vector<128x1xf32>
    %49 = vector.extract_strided_slice %4 {offsets = [6, 0], sizes = [1, 128], strides = [1, 1]} : vector<40x128xf32> to vector<1x128xf32>
    %50 = vector.broadcast %48 : vector<128x1xf32> to vector<128x128xf32>
    %51 = vector.broadcast %49 : vector<1x128xf32> to vector<128x128xf32>
    %52 = arith.subf %50, %51 : vector<128x128xf32>
    %53 = math.absf %52 : vector<128x128xf32>
    %54 = arith.addf %47, %53 : vector<128x128xf32>
    %55 = vector.extract_strided_slice %3 {offsets = [0, 7], sizes = [128, 1], strides = [1, 1]} : vector<128x40xf32> to vector<128x1xf32>
    %56 = vector.extract_strided_slice %4 {offsets = [7, 0], sizes = [1, 128], strides = [1, 1]} : vector<40x128xf32> to vector<1x128xf32>
    %57 = vector.broadcast %55 : vector<128x1xf32> to vector<128x128xf32>
    %58 = vector.broadcast %56 : vector<1x128xf32> to vector<128x128xf32>
    %59 = arith.subf %57, %58 : vector<128x128xf32>
    %60 = math.absf %59 : vector<128x128xf32>
    %61 = arith.addf %54, %60 : vector<128x128xf32>
    %62 = vector.extract_strided_slice %3 {offsets = [0, 8], sizes = [128, 1], strides = [1, 1]} : vector<128x40xf32> to vector<128x1xf32>
    %63 = vector.extract_strided_slice %4 {offsets = [8, 0], sizes = [1, 128], strides = [1, 1]} : vector<40x128xf32> to vector<1x128xf32>
    %64 = vector.broadcast %62 : vector<128x1xf32> to vector<128x128xf32>
    %65 = vector.broadcast %63 : vector<1x128xf32> to vector<128x128xf32>
    %66 = arith.subf %64, %65 : vector<128x128xf32>
    %67 = math.absf %66 : vector<128x128xf32>
    %68 = arith.addf %61, %67 : vector<128x128xf32>
    %69 = vector.extract_strided_slice %3 {offsets = [0, 9], sizes = [128, 1], strides = [1, 1]} : vector<128x40xf32> to vector<128x1xf32>
    %70 = vector.extract_strided_slice %4 {offsets = [9, 0], sizes = [1, 128], strides = [1, 1]} : vector<40x128xf32> to vector<1x128xf32>
    %71 = vector.broadcast %69 : vector<128x1xf32> to vector<128x128xf32>
    %72 = vector.broadcast %70 : vector<1x128xf32> to vector<128x128xf32>
    %73 = arith.subf %71, %72 : vector<128x128xf32>
    %74 = math.absf %73 : vector<128x128xf32>
    %75 = arith.addf %68, %74 : vector<128x128xf32>
    %76 = vector.extract_strided_slice %3 {offsets = [0, 10], sizes = [128, 1], strides = [1, 1]} : vector<128x40xf32> to vector<128x1xf32>
    %77 = vector.extract_strided_slice %4 {offsets = [10, 0], sizes = [1, 128], strides = [1, 1]} : vector<40x128xf32> to vector<1x128xf32>
    %78 = vector.broadcast %76 : vector<128x1xf32> to vector<128x128xf32>
    %79 = vector.broadcast %77 : vector<1x128xf32> to vector<128x128xf32>
    %80 = arith.subf %78, %79 : vector<128x128xf32>
    %81 = math.absf %80 : vector<128x128xf32>
    %82 = arith.addf %75, %81 : vector<128x128xf32>
    %83 = vector.extract_strided_slice %3 {offsets = [0, 11], sizes = [128, 1], strides = [1, 1]} : vector<128x40xf32> to vector<128x1xf32>
    %84 = vector.extract_strided_slice %4 {offsets = [11, 0], sizes = [1, 128], strides = [1, 1]} : vector<40x128xf32> to vector<1x128xf32>
    %85 = vector.broadcast %83 : vector<128x1xf32> to vector<128x128xf32>
    %86 = vector.broadcast %84 : vector<1x128xf32> to vector<128x128xf32>
    %87 = arith.subf %85, %86 : vector<128x128xf32>
    %88 = math.absf %87 : vector<128x128xf32>
    %89 = arith.addf %82, %88 : vector<128x128xf32>
    %90 = vector.extract_strided_slice %3 {offsets = [0, 12], sizes = [128, 1], strides = [1, 1]} : vector<128x40xf32> to vector<128x1xf32>
    %91 = vector.extract_strided_slice %4 {offsets = [12, 0], sizes = [1, 128], strides = [1, 1]} : vector<40x128xf32> to vector<1x128xf32>
    %92 = vector.broadcast %90 : vector<128x1xf32> to vector<128x128xf32>
    %93 = vector.broadcast %91 : vector<1x128xf32> to vector<128x128xf32>
    %94 = arith.subf %92, %93 : vector<128x128xf32>
    %95 = math.absf %94 : vector<128x128xf32>
    %96 = arith.addf %89, %95 : vector<128x128xf32>
    %97 = vector.extract_strided_slice %3 {offsets = [0, 13], sizes = [128, 1], strides = [1, 1]} : vector<128x40xf32> to vector<128x1xf32>
    %98 = vector.extract_strided_slice %4 {offsets = [13, 0], sizes = [1, 128], strides = [1, 1]} : vector<40x128xf32> to vector<1x128xf32>
    %99 = vector.broadcast %97 : vector<128x1xf32> to vector<128x128xf32>
    %100 = vector.broadcast %98 : vector<1x128xf32> to vector<128x128xf32>
    %101 = arith.subf %99, %100 : vector<128x128xf32>
    %102 = math.absf %101 : vector<128x128xf32>
    %103 = arith.addf %96, %102 : vector<128x128xf32>
    %104 = vector.extract_strided_slice %3 {offsets = [0, 14], sizes = [128, 1], strides = [1, 1]} : vector<128x40xf32> to vector<128x1xf32>
    %105 = vector.extract_strided_slice %4 {offsets = [14, 0], sizes = [1, 128], strides = [1, 1]} : vector<40x128xf32> to vector<1x128xf32>
    %106 = vector.broadcast %104 : vector<128x1xf32> to vector<128x128xf32>
    %107 = vector.broadcast %105 : vector<1x128xf32> to vector<128x128xf32>
    %108 = arith.subf %106, %107 : vector<128x128xf32>
    %109 = math.absf %108 : vector<128x128xf32>
    %110 = arith.addf %103, %109 : vector<128x128xf32>
    %111 = vector.extract_strided_slice %3 {offsets = [0, 15], sizes = [128, 1], strides = [1, 1]} : vector<128x40xf32> to vector<128x1xf32>
    %112 = vector.extract_strided_slice %4 {offsets = [15, 0], sizes = [1, 128], strides = [1, 1]} : vector<40x128xf32> to vector<1x128xf32>
    %113 = vector.broadcast %111 : vector<128x1xf32> to vector<128x128xf32>
    %114 = vector.broadcast %112 : vector<1x128xf32> to vector<128x128xf32>
    %115 = arith.subf %113, %114 : vector<128x128xf32>
    %116 = math.absf %115 : vector<128x128xf32>
    %117 = arith.addf %110, %116 : vector<128x128xf32>
    %118 = vector.extract_strided_slice %3 {offsets = [0, 16], sizes = [128, 1], strides = [1, 1]} : vector<128x40xf32> to vector<128x1xf32>
    %119 = vector.extract_strided_slice %4 {offsets = [16, 0], sizes = [1, 128], strides = [1, 1]} : vector<40x128xf32> to vector<1x128xf32>
    %120 = vector.broadcast %118 : vector<128x1xf32> to vector<128x128xf32>
    %121 = vector.broadcast %119 : vector<1x128xf32> to vector<128x128xf32>
    %122 = arith.subf %120, %121 : vector<128x128xf32>
    %123 = math.absf %122 : vector<128x128xf32>
    %124 = arith.addf %117, %123 : vector<128x128xf32>
    %125 = vector.extract_strided_slice %3 {offsets = [0, 17], sizes = [128, 1], strides = [1, 1]} : vector<128x40xf32> to vector<128x1xf32>
    %126 = vector.extract_strided_slice %4 {offsets = [17, 0], sizes = [1, 128], strides = [1, 1]} : vector<40x128xf32> to vector<1x128xf32>
    %127 = vector.broadcast %125 : vector<128x1xf32> to vector<128x128xf32>
    %128 = vector.broadcast %126 : vector<1x128xf32> to vector<128x128xf32>
    %129 = arith.subf %127, %128 : vector<128x128xf32>
    %130 = math.absf %129 : vector<128x128xf32>
    %131 = arith.addf %124, %130 : vector<128x128xf32>
    %132 = vector.extract_strided_slice %3 {offsets = [0, 18], sizes = [128, 1], strides = [1, 1]} : vector<128x40xf32> to vector<128x1xf32>
    %133 = vector.extract_strided_slice %4 {offsets = [18, 0], sizes = [1, 128], strides = [1, 1]} : vector<40x128xf32> to vector<1x128xf32>
    %134 = vector.broadcast %132 : vector<128x1xf32> to vector<128x128xf32>
    %135 = vector.broadcast %133 : vector<1x128xf32> to vector<128x128xf32>
    %136 = arith.subf %134, %135 : vector<128x128xf32>
    %137 = math.absf %136 : vector<128x128xf32>
    %138 = arith.addf %131, %137 : vector<128x128xf32>
    %139 = vector.extract_strided_slice %3 {offsets = [0, 19], sizes = [128, 1], strides = [1, 1]} : vector<128x40xf32> to vector<128x1xf32>
    %140 = vector.extract_strided_slice %4 {offsets = [19, 0], sizes = [1, 128], strides = [1, 1]} : vector<40x128xf32> to vector<1x128xf32>
    %141 = vector.broadcast %139 : vector<128x1xf32> to vector<128x128xf32>
    %142 = vector.broadcast %140 : vector<1x128xf32> to vector<128x128xf32>
    %143 = arith.subf %141, %142 : vector<128x128xf32>
    %144 = math.absf %143 : vector<128x128xf32>
    %145 = arith.addf %138, %144 : vector<128x128xf32>
    %146 = vector.extract_strided_slice %3 {offsets = [0, 20], sizes = [128, 1], strides = [1, 1]} : vector<128x40xf32> to vector<128x1xf32>
    %147 = vector.extract_strided_slice %4 {offsets = [20, 0], sizes = [1, 128], strides = [1, 1]} : vector<40x128xf32> to vector<1x128xf32>
    %148 = vector.broadcast %146 : vector<128x1xf32> to vector<128x128xf32>
    %149 = vector.broadcast %147 : vector<1x128xf32> to vector<128x128xf32>
    %150 = arith.subf %148, %149 : vector<128x128xf32>
    %151 = math.absf %150 : vector<128x128xf32>
    %152 = arith.addf %145, %151 : vector<128x128xf32>
    %153 = vector.extract_strided_slice %3 {offsets = [0, 21], sizes = [128, 1], strides = [1, 1]} : vector<128x40xf32> to vector<128x1xf32>
    %154 = vector.extract_strided_slice %4 {offsets = [21, 0], sizes = [1, 128], strides = [1, 1]} : vector<40x128xf32> to vector<1x128xf32>
    %155 = vector.broadcast %153 : vector<128x1xf32> to vector<128x128xf32>
    %156 = vector.broadcast %154 : vector<1x128xf32> to vector<128x128xf32>
    %157 = arith.subf %155, %156 : vector<128x128xf32>
    %158 = math.absf %157 : vector<128x128xf32>
    %159 = arith.addf %152, %158 : vector<128x128xf32>
    %160 = vector.extract_strided_slice %3 {offsets = [0, 22], sizes = [128, 1], strides = [1, 1]} : vector<128x40xf32> to vector<128x1xf32>
    %161 = vector.extract_strided_slice %4 {offsets = [22, 0], sizes = [1, 128], strides = [1, 1]} : vector<40x128xf32> to vector<1x128xf32>
    %162 = vector.broadcast %160 : vector<128x1xf32> to vector<128x128xf32>
    %163 = vector.broadcast %161 : vector<1x128xf32> to vector<128x128xf32>
    %164 = arith.subf %162, %163 : vector<128x128xf32>
    %165 = math.absf %164 : vector<128x128xf32>
    %166 = arith.addf %159, %165 : vector<128x128xf32>
    %167 = vector.extract_strided_slice %3 {offsets = [0, 23], sizes = [128, 1], strides = [1, 1]} : vector<128x40xf32> to vector<128x1xf32>
    %168 = vector.extract_strided_slice %4 {offsets = [23, 0], sizes = [1, 128], strides = [1, 1]} : vector<40x128xf32> to vector<1x128xf32>
    %169 = vector.broadcast %167 : vector<128x1xf32> to vector<128x128xf32>
    %170 = vector.broadcast %168 : vector<1x128xf32> to vector<128x128xf32>
    %171 = arith.subf %169, %170 : vector<128x128xf32>
    %172 = math.absf %171 : vector<128x128xf32>
    %173 = arith.addf %166, %172 : vector<128x128xf32>
    %174 = vector.extract_strided_slice %3 {offsets = [0, 24], sizes = [128, 1], strides = [1, 1]} : vector<128x40xf32> to vector<128x1xf32>
    %175 = vector.extract_strided_slice %4 {offsets = [24, 0], sizes = [1, 128], strides = [1, 1]} : vector<40x128xf32> to vector<1x128xf32>
    %176 = vector.broadcast %174 : vector<128x1xf32> to vector<128x128xf32>
    %177 = vector.broadcast %175 : vector<1x128xf32> to vector<128x128xf32>
    %178 = arith.subf %176, %177 : vector<128x128xf32>
    %179 = math.absf %178 : vector<128x128xf32>
    %180 = arith.addf %173, %179 : vector<128x128xf32>
    %181 = vector.extract_strided_slice %3 {offsets = [0, 25], sizes = [128, 1], strides = [1, 1]} : vector<128x40xf32> to vector<128x1xf32>
    %182 = vector.extract_strided_slice %4 {offsets = [25, 0], sizes = [1, 128], strides = [1, 1]} : vector<40x128xf32> to vector<1x128xf32>
    %183 = vector.broadcast %181 : vector<128x1xf32> to vector<128x128xf32>
    %184 = vector.broadcast %182 : vector<1x128xf32> to vector<128x128xf32>
    %185 = arith.subf %183, %184 : vector<128x128xf32>
    %186 = math.absf %185 : vector<128x128xf32>
    %187 = arith.addf %180, %186 : vector<128x128xf32>
    %188 = vector.extract_strided_slice %3 {offsets = [0, 26], sizes = [128, 1], strides = [1, 1]} : vector<128x40xf32> to vector<128x1xf32>
    %189 = vector.extract_strided_slice %4 {offsets = [26, 0], sizes = [1, 128], strides = [1, 1]} : vector<40x128xf32> to vector<1x128xf32>
    %190 = vector.broadcast %188 : vector<128x1xf32> to vector<128x128xf32>
    %191 = vector.broadcast %189 : vector<1x128xf32> to vector<128x128xf32>
    %192 = arith.subf %190, %191 : vector<128x128xf32>
    %193 = math.absf %192 : vector<128x128xf32>
    %194 = arith.addf %187, %193 : vector<128x128xf32>
    %195 = vector.extract_strided_slice %3 {offsets = [0, 27], sizes = [128, 1], strides = [1, 1]} : vector<128x40xf32> to vector<128x1xf32>
    %196 = vector.extract_strided_slice %4 {offsets = [27, 0], sizes = [1, 128], strides = [1, 1]} : vector<40x128xf32> to vector<1x128xf32>
    %197 = vector.broadcast %195 : vector<128x1xf32> to vector<128x128xf32>
    %198 = vector.broadcast %196 : vector<1x128xf32> to vector<128x128xf32>
    %199 = arith.subf %197, %198 : vector<128x128xf32>
    %200 = math.absf %199 : vector<128x128xf32>
    %201 = arith.addf %194, %200 : vector<128x128xf32>
    %202 = vector.extract_strided_slice %3 {offsets = [0, 28], sizes = [128, 1], strides = [1, 1]} : vector<128x40xf32> to vector<128x1xf32>
    %203 = vector.extract_strided_slice %4 {offsets = [28, 0], sizes = [1, 128], strides = [1, 1]} : vector<40x128xf32> to vector<1x128xf32>
    %204 = vector.broadcast %202 : vector<128x1xf32> to vector<128x128xf32>
    %205 = vector.broadcast %203 : vector<1x128xf32> to vector<128x128xf32>
    %206 = arith.subf %204, %205 : vector<128x128xf32>
    %207 = math.absf %206 : vector<128x128xf32>
    %208 = arith.addf %201, %207 : vector<128x128xf32>
    %209 = vector.extract_strided_slice %3 {offsets = [0, 29], sizes = [128, 1], strides = [1, 1]} : vector<128x40xf32> to vector<128x1xf32>
    %210 = vector.extract_strided_slice %4 {offsets = [29, 0], sizes = [1, 128], strides = [1, 1]} : vector<40x128xf32> to vector<1x128xf32>
    %211 = vector.broadcast %209 : vector<128x1xf32> to vector<128x128xf32>
    %212 = vector.broadcast %210 : vector<1x128xf32> to vector<128x128xf32>
    %213 = arith.subf %211, %212 : vector<128x128xf32>
    %214 = math.absf %213 : vector<128x128xf32>
    %215 = arith.addf %208, %214 : vector<128x128xf32>
    %216 = vector.extract_strided_slice %3 {offsets = [0, 30], sizes = [128, 1], strides = [1, 1]} : vector<128x40xf32> to vector<128x1xf32>
    %217 = vector.extract_strided_slice %4 {offsets = [30, 0], sizes = [1, 128], strides = [1, 1]} : vector<40x128xf32> to vector<1x128xf32>
    %218 = vector.broadcast %216 : vector<128x1xf32> to vector<128x128xf32>
    %219 = vector.broadcast %217 : vector<1x128xf32> to vector<128x128xf32>
    %220 = arith.subf %218, %219 : vector<128x128xf32>
    %221 = math.absf %220 : vector<128x128xf32>
    %222 = arith.addf %215, %221 : vector<128x128xf32>
    %223 = vector.extract_strided_slice %3 {offsets = [0, 31], sizes = [128, 1], strides = [1, 1]} : vector<128x40xf32> to vector<128x1xf32>
    %224 = vector.extract_strided_slice %4 {offsets = [31, 0], sizes = [1, 128], strides = [1, 1]} : vector<40x128xf32> to vector<1x128xf32>
    %225 = vector.broadcast %223 : vector<128x1xf32> to vector<128x128xf32>
    %226 = vector.broadcast %224 : vector<1x128xf32> to vector<128x128xf32>
    %227 = arith.subf %225, %226 : vector<128x128xf32>
    %228 = math.absf %227 : vector<128x128xf32>
    %229 = arith.addf %222, %228 : vector<128x128xf32>
    %230 = vector.extract_strided_slice %3 {offsets = [0, 32], sizes = [128, 1], strides = [1, 1]} : vector<128x40xf32> to vector<128x1xf32>
    %231 = vector.extract_strided_slice %4 {offsets = [32, 0], sizes = [1, 128], strides = [1, 1]} : vector<40x128xf32> to vector<1x128xf32>
    %232 = vector.broadcast %230 : vector<128x1xf32> to vector<128x128xf32>
    %233 = vector.broadcast %231 : vector<1x128xf32> to vector<128x128xf32>
    %234 = arith.subf %232, %233 : vector<128x128xf32>
    %235 = math.absf %234 : vector<128x128xf32>
    %236 = arith.addf %229, %235 : vector<128x128xf32>
    %237 = vector.extract_strided_slice %3 {offsets = [0, 33], sizes = [128, 1], strides = [1, 1]} : vector<128x40xf32> to vector<128x1xf32>
    %238 = vector.extract_strided_slice %4 {offsets = [33, 0], sizes = [1, 128], strides = [1, 1]} : vector<40x128xf32> to vector<1x128xf32>
    %239 = vector.broadcast %237 : vector<128x1xf32> to vector<128x128xf32>
    %240 = vector.broadcast %238 : vector<1x128xf32> to vector<128x128xf32>
    %241 = arith.subf %239, %240 : vector<128x128xf32>
    %242 = math.absf %241 : vector<128x128xf32>
    %243 = arith.addf %236, %242 : vector<128x128xf32>
    %244 = vector.extract_strided_slice %3 {offsets = [0, 34], sizes = [128, 1], strides = [1, 1]} : vector<128x40xf32> to vector<128x1xf32>
    %245 = vector.extract_strided_slice %4 {offsets = [34, 0], sizes = [1, 128], strides = [1, 1]} : vector<40x128xf32> to vector<1x128xf32>
    %246 = vector.broadcast %244 : vector<128x1xf32> to vector<128x128xf32>
    %247 = vector.broadcast %245 : vector<1x128xf32> to vector<128x128xf32>
    %248 = arith.subf %246, %247 : vector<128x128xf32>
    %249 = math.absf %248 : vector<128x128xf32>
    %250 = arith.addf %243, %249 : vector<128x128xf32>
    %251 = vector.extract_strided_slice %3 {offsets = [0, 35], sizes = [128, 1], strides = [1, 1]} : vector<128x40xf32> to vector<128x1xf32>
    %252 = vector.extract_strided_slice %4 {offsets = [35, 0], sizes = [1, 128], strides = [1, 1]} : vector<40x128xf32> to vector<1x128xf32>
    %253 = vector.broadcast %251 : vector<128x1xf32> to vector<128x128xf32>
    %254 = vector.broadcast %252 : vector<1x128xf32> to vector<128x128xf32>
    %255 = arith.subf %253, %254 : vector<128x128xf32>
    %256 = math.absf %255 : vector<128x128xf32>
    %257 = arith.addf %250, %256 : vector<128x128xf32>
    %258 = vector.extract_strided_slice %3 {offsets = [0, 36], sizes = [128, 1], strides = [1, 1]} : vector<128x40xf32> to vector<128x1xf32>
    %259 = vector.extract_strided_slice %4 {offsets = [36, 0], sizes = [1, 128], strides = [1, 1]} : vector<40x128xf32> to vector<1x128xf32>
    %260 = vector.broadcast %258 : vector<128x1xf32> to vector<128x128xf32>
    %261 = vector.broadcast %259 : vector<1x128xf32> to vector<128x128xf32>
    %262 = arith.subf %260, %261 : vector<128x128xf32>
    %263 = math.absf %262 : vector<128x128xf32>
    %264 = arith.addf %257, %263 : vector<128x128xf32>
    %265 = vector.extract_strided_slice %3 {offsets = [0, 37], sizes = [128, 1], strides = [1, 1]} : vector<128x40xf32> to vector<128x1xf32>
    %266 = vector.extract_strided_slice %4 {offsets = [37, 0], sizes = [1, 128], strides = [1, 1]} : vector<40x128xf32> to vector<1x128xf32>
    %267 = vector.broadcast %265 : vector<128x1xf32> to vector<128x128xf32>
    %268 = vector.broadcast %266 : vector<1x128xf32> to vector<128x128xf32>
    %269 = arith.subf %267, %268 : vector<128x128xf32>
    %270 = math.absf %269 : vector<128x128xf32>
    %271 = arith.addf %264, %270 : vector<128x128xf32>
    %272 = vector.extract_strided_slice %3 {offsets = [0, 38], sizes = [128, 1], strides = [1, 1]} : vector<128x40xf32> to vector<128x1xf32>
    %273 = vector.extract_strided_slice %4 {offsets = [38, 0], sizes = [1, 128], strides = [1, 1]} : vector<40x128xf32> to vector<1x128xf32>
    %274 = vector.broadcast %272 : vector<128x1xf32> to vector<128x128xf32>
    %275 = vector.broadcast %273 : vector<1x128xf32> to vector<128x128xf32>
    %276 = arith.subf %274, %275 : vector<128x128xf32>
    %277 = math.absf %276 : vector<128x128xf32>
    %278 = arith.addf %271, %277 : vector<128x128xf32>
    %279 = vector.extract_strided_slice %3 {offsets = [0, 39], sizes = [128, 1], strides = [1, 1]} : vector<128x40xf32> to vector<128x1xf32>
    %280 = vector.extract_strided_slice %4 {offsets = [39, 0], sizes = [1, 128], strides = [1, 1]} : vector<40x128xf32> to vector<1x128xf32>
    %281 = vector.broadcast %279 : vector<128x1xf32> to vector<128x128xf32>
    %282 = vector.broadcast %280 : vector<1x128xf32> to vector<128x128xf32>
    %283 = arith.subf %281, %282 : vector<128x128xf32>
    %284 = math.absf %283 : vector<128x128xf32>
    %285 = arith.addf %278, %284 : vector<128x128xf32>
    %c0_6 = arith.constant 0 : index
    %c0_7 = arith.constant 0 : index
    %286 = vector.load %arg7[%c0_6, %c0_7] : memref<128x128xf32, #tpu.memory_space<vmem>>, vector<128x128xf32>
    tpu.vector_store %arg7[%c0_6, %c0_7], %285 {strides = array<i32>} : memref<128x128xf32, #tpu.memory_space<vmem>>, vector<128x128xf32>,
    %c0_i32_8 = arith.constant 0 : i32
    %287 = arith.cmpi eq, %arg1, %c0_i32_8 : i32
    %288 = arith.extui %287 : i1 to i32
    %c0_i32_9 = arith.constant 0 : i32
    %289 = arith.cmpi ne, %288, %c0_i32_9 : i32
    scf.if %289 {
      %c0_10 = arith.constant 0 : index
      %c0_11 = arith.constant 0 : index
      %290 = vector.load %arg7[%c0_10, %c0_11] : memref<128x128xf32, #tpu.memory_space<vmem>>, vector<128x128xf32>
      %cst = arith.constant 0.000000e+00 : f32
      %291 = vector.broadcast %cst : f32 to vector<128x128xf32>
      %292 = arith.subf %291, %290 : vector<128x128xf32>
      %c0_12 = arith.constant 0 : index
      %c0_13 = arith.constant 0 : index
      %293 = vector.load %arg4[%c0_12, %c0_13] : memref<1x128xf32, #tpu.memory_space<vmem>>, vector<1x128xf32>
      %294 = vector.broadcast %293 : vector<1x128xf32> to vector<128x128xf32>
      %295 = arith.mulf %292, %294 : vector<128x128xf32>
      %c0_14 = arith.constant 0 : index
      %c0_15 = arith.constant 0 : index
      %296 = vector.load %arg5[%c0_14, %c0_15] : memref<1x128xf32, #tpu.memory_space<vmem>>, vector<1x128xf32>
      %297 = vector.broadcast %296 : vector<1x128xf32> to vector<128x128xf32>
      %298 = arith.addf %295, %297 : vector<128x128xf32>
      %cst_16 = arith.constant 0.000000e+00 : f32
      %299 = vector.broadcast %cst_16 : f32 to vector<128x128xf32>
      %300 = arith.maximumf %298, %299 : vector<128x128xf32>
      %c0_17 = arith.constant 0 : index
      %c0_18 = arith.constant 0 : index
      %301 = vector.load %arg6[%c0_17, %c0_18] : memref<128x128xf32, #tpu.memory_space<vmem>>, vector<128x128xf32>
      tpu.vector_store %arg6[%c0_17, %c0_18], %300 {strides = array<i32>} : memref<128x128xf32, #tpu.memory_space<vmem>>, vector<128x128xf32>,
    } else {
    }
    return
  }
  func.func @transform_0(%arg0: i32, %arg1: i32) -> (i32, i32) {
    %c0_i32 = arith.constant 0 : i32
    return %arg0, %arg1 : i32, i32
  }
  func.func @transform_1(%arg0: i32, %arg1: i32) -> (i32, i32) {
    %c0_i32 = arith.constant 0 : i32
    %c0_i32_0 = arith.constant 0 : i32
    return %arg1, %c0_i32 : i32, i32
  }
  func.func @transform_2(%arg0: i32, %arg1: i32) -> (i32, i32) {
    %c0_i32 = arith.constant 0 : i32
    %c0_i32_0 = arith.constant 0 : i32
    %c0_i32_1 = arith.constant 0 : i32
    return %c0_i32, %c0_i32_0 : i32, i32
  }
  func.func @transform_3(%arg0: i32, %arg1: i32) -> (i32, i32) {
    %c0_i32 = arith.constant 0 : i32
    %c0_i32_0 = arith.constant 0 : i32
    %c0_i32_1 = arith.constant 0 : i32
    return %c0_i32, %c0_i32_0 : i32, i32
  }
  func.func @transform_4(%arg0: i32, %arg1: i32) -> (i32, i32) {
    %c0_i32 = arith.constant 0 : i32
    %c0_i32_0 = arith.constant 0 : i32
    return %arg0, %c0_i32 : i32, i32
  }
}

module attributes {stable_mosaic.version = 11 : i64} {
  func.func @kernel(%arg0: i32, %arg1: i32, %arg2: memref<128x8xf32, #tpu.memory_space<vmem>>, %arg3: memref<8x128xf32, #tpu.memory_space<vmem>>, %arg4: memref<1x128xf32, #tpu.memory_space<vmem>>, %arg5: memref<1x128xf32, #tpu.memory_space<vmem>>, %arg6: memref<128x128xf32, #tpu.memory_space<vmem>>, %arg7: memref<128x128xf32, #tpu.memory_space<vmem>>, %arg8: memref<128x128xf32, #tpu.memory_space<vmem>>) attributes {dimension_semantics = [#tpu.dimension_semantics<parallel>, #tpu.dimension_semantics<arbitrary>], iteration_bounds = array<i64: 1, 1>, scalar_prefetch = 0 : i64, scratch_operands = 1 : i64, tpu.core_type = #tpu.core_type<tc>, window_params = [{transform_indices = @transform_0, window_bounds = array<i64: 128, 8>}, {transform_indices = @transform_1, window_bounds = array<i64: 8, 128>}, {pipeline_mode = #tpu.pipeline_mode<synchronous>, transform_indices = @transform_2, window_bounds = array<i64: 1, 128>}, {pipeline_mode = #tpu.pipeline_mode<synchronous>, transform_indices = @transform_3, window_bounds = array<i64: 1, 128>}, {transform_indices = @transform_4, window_bounds = array<i64: 128, 128>}, {transform_indices = @transform_5, window_bounds = array<i64: 128, 128>}]} {
    %c0_i32 = arith.constant 0 : i32
    %0 = arith.cmpi eq, %arg1, %c0_i32 : i32
    %1 = arith.extui %0 : i1 to i32
    %c0_i32_0 = arith.constant 0 : i32
    %2 = arith.cmpi ne, %1, %c0_i32_0 : i32
    scf.if %2 {
      %cst = arith.constant 0.000000e+00 : f32
      %66 = vector.broadcast %cst : f32 to vector<128x128xf32>
      %c0_10 = arith.constant 0 : index
      %c0_11 = arith.constant 0 : index
      %67 = vector.load %arg8[%c0_10, %c0_11] : memref<128x128xf32, #tpu.memory_space<vmem>>, vector<128x128xf32>
      tpu.vector_store %arg8[%c0_10, %c0_11], %66 {strides = array<i32>} : memref<128x128xf32, #tpu.memory_space<vmem>>, vector<128x128xf32>,
    } else {
    }
    %c0 = arith.constant 0 : index
    %c0_1 = arith.constant 0 : index
    %3 = vector.load %arg2[%c0, %c0_1] : memref<128x8xf32, #tpu.memory_space<vmem>>, vector<128x8xf32>
    %c0_2 = arith.constant 0 : index
    %c0_3 = arith.constant 0 : index
    %4 = vector.load %arg3[%c0_2, %c0_3] : memref<8x128xf32, #tpu.memory_space<vmem>>, vector<8x128xf32>
    %c0_4 = arith.constant 0 : index
    %c0_5 = arith.constant 0 : index
    %5 = vector.load %arg8[%c0_4, %c0_5] : memref<128x128xf32, #tpu.memory_space<vmem>>, vector<128x128xf32>
    %6 = vector.extract_strided_slice %3 {offsets = [0, 0], sizes = [128, 1], strides = [1, 1]} : vector<128x8xf32> to vector<128x1xf32>
    %7 = vector.extract_strided_slice %4 {offsets = [0, 0], sizes = [1, 128], strides = [1, 1]} : vector<8x128xf32> to vector<1x128xf32>
    %8 = vector.broadcast %6 : vector<128x1xf32> to vector<128x128xf32>
    %9 = vector.broadcast %7 : vector<1x128xf32> to vector<128x128xf32>
    %10 = arith.subf %8, %9 : vector<128x128xf32>
    %11 = math.absf %10 : vector<128x128xf32>
    %12 = arith.addf %5, %11 : vector<128x128xf32>
    %13 = vector.extract_strided_slice %3 {offsets = [0, 1], sizes = [128, 1], strides = [1, 1]} : vector<128x8xf32> to vector<128x1xf32>
    %14 = vector.extract_strided_slice %4 {offsets = [1, 0], sizes = [1, 128], strides = [1, 1]} : vector<8x128xf32> to vector<1x128xf32>
    %15 = vector.broadcast %13 : vector<128x1xf32> to vector<128x128xf32>
    %16 = vector.broadcast %14 : vector<1x128xf32> to vector<128x128xf32>
    %17 = arith.subf %15, %16 : vector<128x128xf32>
    %18 = math.absf %17 : vector<128x128xf32>
    %19 = arith.addf %12, %18 : vector<128x128xf32>
    %20 = vector.extract_strided_slice %3 {offsets = [0, 2], sizes = [128, 1], strides = [1, 1]} : vector<128x8xf32> to vector<128x1xf32>
    %21 = vector.extract_strided_slice %4 {offsets = [2, 0], sizes = [1, 128], strides = [1, 1]} : vector<8x128xf32> to vector<1x128xf32>
    %22 = vector.broadcast %20 : vector<128x1xf32> to vector<128x128xf32>
    %23 = vector.broadcast %21 : vector<1x128xf32> to vector<128x128xf32>
    %24 = arith.subf %22, %23 : vector<128x128xf32>
    %25 = math.absf %24 : vector<128x128xf32>
    %26 = arith.addf %19, %25 : vector<128x128xf32>
    %27 = vector.extract_strided_slice %3 {offsets = [0, 3], sizes = [128, 1], strides = [1, 1]} : vector<128x8xf32> to vector<128x1xf32>
    %28 = vector.extract_strided_slice %4 {offsets = [3, 0], sizes = [1, 128], strides = [1, 1]} : vector<8x128xf32> to vector<1x128xf32>
    %29 = vector.broadcast %27 : vector<128x1xf32> to vector<128x128xf32>
    %30 = vector.broadcast %28 : vector<1x128xf32> to vector<128x128xf32>
    %31 = arith.subf %29, %30 : vector<128x128xf32>
    %32 = math.absf %31 : vector<128x128xf32>
    %33 = arith.addf %26, %32 : vector<128x128xf32>
    %34 = vector.extract_strided_slice %3 {offsets = [0, 4], sizes = [128, 1], strides = [1, 1]} : vector<128x8xf32> to vector<128x1xf32>
    %35 = vector.extract_strided_slice %4 {offsets = [4, 0], sizes = [1, 128], strides = [1, 1]} : vector<8x128xf32> to vector<1x128xf32>
    %36 = vector.broadcast %34 : vector<128x1xf32> to vector<128x128xf32>
    %37 = vector.broadcast %35 : vector<1x128xf32> to vector<128x128xf32>
    %38 = arith.subf %36, %37 : vector<128x128xf32>
    %39 = math.absf %38 : vector<128x128xf32>
    %40 = arith.addf %33, %39 : vector<128x128xf32>
    %41 = vector.extract_strided_slice %3 {offsets = [0, 5], sizes = [128, 1], strides = [1, 1]} : vector<128x8xf32> to vector<128x1xf32>
    %42 = vector.extract_strided_slice %4 {offsets = [5, 0], sizes = [1, 128], strides = [1, 1]} : vector<8x128xf32> to vector<1x128xf32>
    %43 = vector.broadcast %41 : vector<128x1xf32> to vector<128x128xf32>
    %44 = vector.broadcast %42 : vector<1x128xf32> to vector<128x128xf32>
    %45 = arith.subf %43, %44 : vector<128x128xf32>
    %46 = math.absf %45 : vector<128x128xf32>
    %47 = arith.addf %40, %46 : vector<128x128xf32>
    %48 = vector.extract_strided_slice %3 {offsets = [0, 6], sizes = [128, 1], strides = [1, 1]} : vector<128x8xf32> to vector<128x1xf32>
    %49 = vector.extract_strided_slice %4 {offsets = [6, 0], sizes = [1, 128], strides = [1, 1]} : vector<8x128xf32> to vector<1x128xf32>
    %50 = vector.broadcast %48 : vector<128x1xf32> to vector<128x128xf32>
    %51 = vector.broadcast %49 : vector<1x128xf32> to vector<128x128xf32>
    %52 = arith.subf %50, %51 : vector<128x128xf32>
    %53 = math.absf %52 : vector<128x128xf32>
    %54 = arith.addf %47, %53 : vector<128x128xf32>
    %55 = vector.extract_strided_slice %3 {offsets = [0, 7], sizes = [128, 1], strides = [1, 1]} : vector<128x8xf32> to vector<128x1xf32>
    %56 = vector.extract_strided_slice %4 {offsets = [7, 0], sizes = [1, 128], strides = [1, 1]} : vector<8x128xf32> to vector<1x128xf32>
    %57 = vector.broadcast %55 : vector<128x1xf32> to vector<128x128xf32>
    %58 = vector.broadcast %56 : vector<1x128xf32> to vector<128x128xf32>
    %59 = arith.subf %57, %58 : vector<128x128xf32>
    %60 = math.absf %59 : vector<128x128xf32>
    %61 = arith.addf %54, %60 : vector<128x128xf32>
    %c0_6 = arith.constant 0 : index
    %c0_7 = arith.constant 0 : index
    %62 = vector.load %arg8[%c0_6, %c0_7] : memref<128x128xf32, #tpu.memory_space<vmem>>, vector<128x128xf32>
    tpu.vector_store %arg8[%c0_6, %c0_7], %61 {strides = array<i32>} : memref<128x128xf32, #tpu.memory_space<vmem>>, vector<128x128xf32>,
    %c0_i32_8 = arith.constant 0 : i32
    %63 = arith.cmpi eq, %arg1, %c0_i32_8 : i32
    %64 = arith.extui %63 : i1 to i32
    %c0_i32_9 = arith.constant 0 : i32
    %65 = arith.cmpi ne, %64, %c0_i32_9 : i32
    scf.if %65 {
      %c0_10 = arith.constant 0 : index
      %c0_11 = arith.constant 0 : index
      %66 = vector.load %arg8[%c0_10, %c0_11] : memref<128x128xf32, #tpu.memory_space<vmem>>, vector<128x128xf32>
      %cst = arith.constant 0.000000e+00 : f32
      %67 = vector.broadcast %cst : f32 to vector<128x128xf32>
      %68 = arith.subf %67, %66 : vector<128x128xf32>
      %c0_12 = arith.constant 0 : index
      %c0_13 = arith.constant 0 : index
      %69 = vector.load %arg4[%c0_12, %c0_13] : memref<1x128xf32, #tpu.memory_space<vmem>>, vector<1x128xf32>
      %70 = vector.broadcast %69 : vector<1x128xf32> to vector<128x128xf32>
      %71 = arith.mulf %68, %70 : vector<128x128xf32>
      %c0_14 = arith.constant 0 : index
      %c0_15 = arith.constant 0 : index
      %72 = vector.load %arg5[%c0_14, %c0_15] : memref<1x128xf32, #tpu.memory_space<vmem>>, vector<1x128xf32>
      %73 = vector.broadcast %72 : vector<1x128xf32> to vector<128x128xf32>
      %74 = arith.addf %71, %73 : vector<128x128xf32>
      %c0_16 = arith.constant 0 : index
      %c0_17 = arith.constant 0 : index
      %75 = vector.load %arg6[%c0_16, %c0_17] : memref<128x128xf32, #tpu.memory_space<vmem>>, vector<128x128xf32>
      %76 = arith.addf %74, %75 : vector<128x128xf32>
      %cst_18 = arith.constant 0.000000e+00 : f32
      %77 = vector.broadcast %cst_18 : f32 to vector<128x128xf32>
      %78 = arith.maximumf %76, %77 : vector<128x128xf32>
      %c0_19 = arith.constant 0 : index
      %c0_20 = arith.constant 0 : index
      %79 = vector.load %arg7[%c0_19, %c0_20] : memref<128x128xf32, #tpu.memory_space<vmem>>, vector<128x128xf32>
      tpu.vector_store %arg7[%c0_19, %c0_20], %78 {strides = array<i32>} : memref<128x128xf32, #tpu.memory_space<vmem>>, vector<128x128xf32>,
    } else {
    }
    return
  }
  func.func @transform_0(%arg0: i32, %arg1: i32) -> (i32, i32) {
    %c0_i32 = arith.constant 0 : i32
    return %arg0, %arg1 : i32, i32
  }
  func.func @transform_1(%arg0: i32, %arg1: i32) -> (i32, i32) {
    %c0_i32 = arith.constant 0 : i32
    %c0_i32_0 = arith.constant 0 : i32
    return %arg1, %c0_i32 : i32, i32
  }
  func.func @transform_2(%arg0: i32, %arg1: i32) -> (i32, i32) {
    %c0_i32 = arith.constant 0 : i32
    %c0_i32_0 = arith.constant 0 : i32
    %c0_i32_1 = arith.constant 0 : i32
    return %c0_i32, %c0_i32_0 : i32, i32
  }
  func.func @transform_3(%arg0: i32, %arg1: i32) -> (i32, i32) {
    %c0_i32 = arith.constant 0 : i32
    %c0_i32_0 = arith.constant 0 : i32
    %c0_i32_1 = arith.constant 0 : i32
    return %c0_i32, %c0_i32_0 : i32, i32
  }
  func.func @transform_4(%arg0: i32, %arg1: i32) -> (i32, i32) {
    %c0_i32 = arith.constant 0 : i32
    %c0_i32_0 = arith.constant 0 : i32
    return %arg0, %c0_i32 : i32, i32
  }
  func.func @transform_5(%arg0: i32, %arg1: i32) -> (i32, i32) {
    %c0_i32 = arith.constant 0 : i32
    %c0_i32_0 = arith.constant 0 : i32
    return %arg0, %c0_i32 : i32, i32
  }
}

</mosaic_0001>

<llo_original>
// kernel: bottleneck_forward.3
$region0: #{bottleneck_forward.3}
  #allocation0 [shape = 'u32[]', space=smem, size = 0x4, offset = 0x4, fixed_abs, tag = 'smem constant byte address 0x4 - core index']
  #allocation1 [shape = 'u32[144,128]{1,0:T(1,128)}', space=vmem, size = 0x12000, scoped, tag = 'internal scratch']
  #allocation2 [shape = 'f32[128,128]{1,0:T(8,128)}', space=vmem, size = 0x10000, scoped, tag = 'scratch operand']
  %s0 = inlined_call_operand.vmem [shape: f32[128,16], index: 0, kind: input, shape index: {}]
  %s1 = inlined_call_operand.vmem [shape: f32[16,128], index: 1, kind: input, shape index: {}]
  %s2 = inlined_call_operand.vmem [shape: f32[1,128], index: 2, kind: input, shape index: {}]
  %s3 = inlined_call_operand.vmem [shape: f32[1,128], index: 3, kind: input, shape index: {}]
  %s4 = inlined_call_operand.vmem [shape: f32[128,128], index: 4, kind: output, shape index: {}]
  %s5 = sld [smem:[#allocation0]]
  $region34: #{bottleneck_forward.3} parent=0
    _
  %s7 = ssub.s32 1, %s5
  %s8 = scalar_select 0, %s7, %s5
  // Predicated region
  $region2: #{bottleneck_forward.3} parent=0 // pred_check
    _
  $region3: #{bottleneck_forward.3} parent=0 // pred_check_branch
    %10 = sbr.rel (0) target = $region5
  $region4: #{bottleneck_forward.3} parent=0 // pred_region
    _
  $region5: #{bottleneck_forward.3} parent=0 // pred_fallthru
    _
  // Predicated region
  $region6: #{bottleneck_forward.3} parent=0 // pred_check
    _
  $region7: #{bottleneck_forward.3} parent=0 // pred_check_branch
    %12 = sbr.rel (0) target = $region9
  $region8: #{bottleneck_forward.3} parent=0 // pred_region
    _
  $region9: #{bottleneck_forward.3} parent=0 // pred_fallthru
    _
  // Predicated region
  $region10: #{bottleneck_forward.3} parent=0 // pred_check
    _
  $region11: #{bottleneck_forward.3} parent=0 // pred_check_branch
    %14 = sbr.rel (0) target = $region13
  $region12: #{bottleneck_forward.3} parent=0 // pred_region
    _
  $region13: #{bottleneck_forward.3} parent=0 // pred_fallthru
    _
  // Predicated region
  $region14: #{bottleneck_forward.3} parent=0 // pred_check
    _
  $region15: #{bottleneck_forward.3} parent=0 // pred_check_branch
    %16 = sbr.rel (0) target = $region17
  $region16: #{bottleneck_forward.3} parent=0 // pred_region
    _
  $region17: #{bottleneck_forward.3} parent=0 // pred_fallthru
    _
  %p17 = scmp.eq.s32.totalorder 0, 0
  // Predicated region
  $region18: #{bottleneck_forward.3} parent=0 // pred_check
    %p18 = pneg %p17
  $region19: #{bottleneck_forward.3} parent=0 // pred_check_branch
    %20 = sbr.rel (%p18) target = $region21
  $region20: #{bottleneck_forward.3} parent=0 // pred_region
    %21 = vst [vmem:[#allocation2] sm:$0xff] 0.0
    %22 = vst [vmem:[#allocation2 + $0x8] sm:$0xff] 0.0
    %23 = vst [vmem:[#allocation2 + $0x10] sm:$0xff] 0.0
    %24 = vst [vmem:[#allocation2 + $0x18] sm:$0xff] 0.0
    %25 = vst [vmem:[#allocation2 + $0x20] sm:$0xff] 0.0
    %26 = vst [vmem:[#allocation2 + $0x28] sm:$0xff] 0.0
    %27 = vst [vmem:[#allocation2 + $0x30] sm:$0xff] 0.0
    %28 = vst [vmem:[#allocation2 + $0x38] sm:$0xff] 0.0
    %29 = vst [vmem:[#allocation2 + $0x40] sm:$0xff] 0.0
    %30 = vst [vmem:[#allocation2 + $0x48] sm:$0xff] 0.0
    %31 = vst [vmem:[#allocation2 + $0x50] sm:$0xff] 0.0
    %32 = vst [vmem:[#allocation2 + $0x58] sm:$0xff] 0.0
    %33 = vst [vmem:[#allocation2 + $0x60] sm:$0xff] 0.0
    %34 = vst [vmem:[#allocation2 + $0x68] sm:$0xff] 0.0
    %35 = vst [vmem:[#allocation2 + $0x70] sm:$0xff] 0.0
    %36 = vst [vmem:[#allocation2 + $0x78] sm:$0xff] 0.0
  $region21: #{bottleneck_forward.3} parent=0 // pred_fallthru
    _
  %v37 = vld [vmem:[%s0] sm:$0xff]
  %v38 = vld [vmem:[%s0 + $0x8] sm:$0xff]
  %v39 = vld [vmem:[%s0 + $0x10] sm:$0xff]
  %v40 = vld [vmem:[%s0 + $0x18] sm:$0xff]
  %v41 = vld [vmem:[%s0 + $0x20] sm:$0xff]
  %v42 = vld [vmem:[%s0 + $0x28] sm:$0xff]
  %v43 = vld [vmem:[%s0 + $0x30] sm:$0xff]
  %v44 = vld [vmem:[%s0 + $0x38] sm:$0xff]
  %v45 = vld [vmem:[%s0 + $0x40] sm:$0xff]
  %v46 = vld [vmem:[%s0 + $0x48] sm:$0xff]
  %v47 = vld [vmem:[%s0 + $0x50] sm:$0xff]
  %v48 = vld [vmem:[%s0 + $0x58] sm:$0xff]
  %v49 = vld [vmem:[%s0 + $0x60] sm:$0xff]
  %v50 = vld [vmem:[%s0 + $0x68] sm:$0xff]
  %v51 = vld [vmem:[%s0 + $0x70] sm:$0xff]
  %v52 = vld [vmem:[%s0 + $0x78] sm:$0xff]
  %v53 = vld [vmem:[%s1] sm:$0xff]
  %v54 = vld [vmem:[%s1 + $0x8] sm:$0xff]
  %v55 = vld [vmem:[#allocation2] sm:$0xff]
  %v56 = vld [vmem:[#allocation2 + $0x8] sm:$0xff]
  %v57 = vld [vmem:[#allocation2 + $0x10] sm:$0xff]
  %v58 = vld [vmem:[#allocation2 + $0x18] sm:$0xff]
  %v59 = vld [vmem:[#allocation2 + $0x20] sm:$0xff]
  %v60 = vld [vmem:[#allocation2 + $0x28] sm:$0xff]
  %v61 = vld [vmem:[#allocation2 + $0x30] sm:$0xff]
  %v62 = vld [vmem:[#allocation2 + $0x38] sm:$0xff]
  %v63 = vld [vmem:[#allocation2 + $0x40] sm:$0xff]
  %v64 = vld [vmem:[#allocation2 + $0x48] sm:$0xff]
  %v65 = vld [vmem:[#allocation2 + $0x50] sm:$0xff]
  %v66 = vld [vmem:[#allocation2 + $0x58] sm:$0xff]
  %v67 = vld [vmem:[#allocation2 + $0x60] sm:$0xff]
  %v68 = vld [vmem:[#allocation2 + $0x68] sm:$0xff]
  %v69 = vld [vmem:[#allocation2 + $0x70] sm:$0xff]
  %v70 = vld [vmem:[#allocation2 + $0x78] sm:$0xff]
  %72 = vset.pattern.permute.xlu0 0
  %73 = vperm.xlu0 %72, %v37
  %v74 = vpop.permute.xlu0 %73
  %77 = vset.pattern.permute.xlu0 0
  %78 = vperm.xlu0 %77, %v38
  %v79 = vpop.permute.xlu0 %78
  %82 = vset.pattern.permute.xlu0 0
  %83 = vperm.xlu0 %82, %v39
  %v84 = vpop.permute.xlu0 %83
  %87 = vset.pattern.permute.xlu0 0
  %88 = vperm.xlu0 %87, %v40
  %v89 = vpop.permute.xlu0 %88
  %92 = vset.pattern.permute.xlu0 0
  %93 = vperm.xlu0 %92, %v41
  %v94 = vpop.permute.xlu0 %93
  %97 = vset.pattern.permute.xlu0 0
  %98 = vperm.xlu0 %97, %v42
  %v99 = vpop.permute.xlu0 %98
  %102 = vset.pattern.permute.xlu0 0
  %103 = vperm.xlu0 %102, %v43
  %v104 = vpop.permute.xlu0 %103
  %107 = vset.pattern.permute.xlu0 0
  %108 = vperm.xlu0 %107, %v44
  %v109 = vpop.permute.xlu0 %108
  %112 = vset.pattern.permute.xlu0 0
  %113 = vperm.xlu0 %112, %v45
  %v114 = vpop.permute.xlu0 %113
  %117 = vset.pattern.permute.xlu0 0
  %118 = vperm.xlu0 %117, %v46
  %v119 = vpop.permute.xlu0 %118
  %122 = vset.pattern.permute.xlu0 0
  %123 = vperm.xlu0 %122, %v47
  %v124 = vpop.permute.xlu0 %123
  %127 = vset.pattern.permute.xlu0 0
  %128 = vperm.xlu0 %127, %v48
  %v129 = vpop.permute.xlu0 %128
  %132 = vset.pattern.permute.xlu0 0
  %133 = vperm.xlu0 %132, %v49
  %v134 = vpop.permute.xlu0 %133
  %137 = vset.pattern.permute.xlu0 0
  %138 = vperm.xlu0 %137, %v50
  %v139 = vpop.permute.xlu0 %138
  %142 = vset.pattern.permute.xlu0 0
  %143 = vperm.xlu0 %142, %v51
  %v144 = vpop.permute.xlu0 %143
  %147 = vset.pattern.permute.xlu0 0
  %148 = vperm.xlu0 %147, %v52
  %v149 = vpop.permute.xlu0 %148
  %v151 = vlaneseq
  %v152 = vshrl.u32 %v151, 7
  %v153 = vsub.s32 0, %v152
  %v154 = vrot.slane %v53, %v153
  %v155 = vsub.f32 %v74, %v154
  %v156 = vsub.f32 %v79, %v154
  %v157 = vsub.f32 %v84, %v154
  %v158 = vsub.f32 %v89, %v154
  %v159 = vsub.f32 %v94, %v154
  %v160 = vsub.f32 %v99, %v154
  %v161 = vsub.f32 %v104, %v154
  %v162 = vsub.f32 %v109, %v154
  %v163 = vsub.f32 %v114, %v154
  %v164 = vsub.f32 %v119, %v154
  %v165 = vsub.f32 %v124, %v154
  %v166 = vsub.f32 %v129, %v154
  %v167 = vsub.f32 %v134, %v154
  %v168 = vsub.f32 %v139, %v154
  %v169 = vsub.f32 %v144, %v154
  %v170 = vsub.f32 %v149, %v154
  %v171 = vand.u32 2147483647, %v155
  %v172 = vand.u32 2147483647, %v156
  %v173 = vand.u32 2147483647, %v157
  %v174 = vand.u32 2147483647, %v158
  %v175 = vand.u32 2147483647, %v159
  %v176 = vand.u32 2147483647, %v160
  %v177 = vand.u32 2147483647, %v161
  %v178 = vand.u32 2147483647, %v162
  %v179 = vand.u32 2147483647, %v163
  %v180 = vand.u32 2147483647, %v164
  %v181 = vand.u32 2147483647, %v165
  %v182 = vand.u32 2147483647, %v166
  %v183 = vand.u32 2147483647, %v167
  %v184 = vand.u32 2147483647, %v168
  %v185 = vand.u32 2147483647, %v169
  %v186 = vand.u32 2147483647, %v170
  %v187 = vadd.f32 %v55, %v171
  %v188 = vadd.f32 %v56, %v172
  %v189 = vadd.f32 %v57, %v173
  %v190 = vadd.f32 %v58, %v174
  %v191 = vadd.f32 %v59, %v175
  %v192 = vadd.f32 %v60, %v176
  %v193 = vadd.f32 %v61, %v177
  %v194 = vadd.f32 %v62, %v178
  %v195 = vadd.f32 %v63, %v179
  %v196 = vadd.f32 %v64, %v180
  %v197 = vadd.f32 %v65, %v181
  %v198 = vadd.f32 %v66, %v182
  %v199 = vadd.f32 %v67, %v183
  %v200 = vadd.f32 %v68, %v184
  %v201 = vadd.f32 %v69, %v185
  %v202 = vadd.f32 %v70, %v186
  %203 = vset.pattern.permute.xlu0 1
  %204 = vperm.xlu0 %203, %v37
  %v205 = vpop.permute.xlu0 %204
  %207 = vset.pattern.permute.xlu0 1
  %208 = vperm.xlu0 %207, %v38
  %v209 = vpop.permute.xlu0 %208
  %211 = vset.pattern.permute.xlu0 1
  %212 = vperm.xlu0 %211, %v39
  %v213 = vpop.permute.xlu0 %212
  %215 = vset.pattern.permute.xlu0 1
  %216 = vperm.xlu0 %215, %v40
  %v217 = vpop.permute.xlu0 %216
  %219 = vset.pattern.permute.xlu0 1
  %220 = vperm.xlu0 %219, %v41
  %v221 = vpop.permute.xlu0 %220
  %223 = vset.pattern.permute.xlu0 1
  %224 = vperm.xlu0 %223, %v42
  %v225 = vpop.permute.xlu0 %224
  %227 = vset.pattern.permute.xlu0 1
  %228 = vperm.xlu0 %227, %v43
  %v229 = vpop.permute.xlu0 %228
  %231 = vset.pattern.permute.xlu0 1
  %232 = vperm.xlu0 %231, %v44
  %v233 = vpop.permute.xlu0 %232
  %235 = vset.pattern.permute.xlu0 1
  %236 = vperm.xlu0 %235, %v45
  %v237 = vpop.permute.xlu0 %236
  %239 = vset.pattern.permute.xlu0 1
  %240 = vperm.xlu0 %239, %v46
  %v241 = vpop.permute.xlu0 %240
  %243 = vset.pattern.permute.xlu0 1
  %244 = vperm.xlu0 %243, %v47
  %v245 = vpop.permute.xlu0 %244
  %247 = vset.pattern.permute.xlu0 1
  %248 = vperm.xlu0 %247, %v48
  %v249 = vpop.permute.xlu0 %248
  %251 = vset.pattern.permute.xlu0 1
  %252 = vperm.xlu0 %251, %v49
  %v253 = vpop.permute.xlu0 %252
  %255 = vset.pattern.permute.xlu0 1
  %256 = vperm.xlu0 %255, %v50
  %v257 = vpop.permute.xlu0 %256
  %259 = vset.pattern.permute.xlu0 1
  %260 = vperm.xlu0 %259, %v51
  %v261 = vpop.permute.xlu0 %260
  %263 = vset.pattern.permute.xlu0 1
  %264 = vperm.xlu0 %263, %v52
  %v265 = vpop.permute.xlu0 %264
  %v267 = vlaneseq
  %v268 = vshrl.u32 %v267, 7
  %v269 = vsub.s32 1, %v268
  %v270 = vrot.slane %v53, %v269
  %v271 = vsub.f32 %v205, %v270
  %v272 = vsub.f32 %v209, %v270
  %v273 = vsub.f32 %v213, %v270
  %v274 = vsub.f32 %v217, %v270
  %v275 = vsub.f32 %v221, %v270
  %v276 = vsub.f32 %v225, %v270
  %v277 = vsub.f32 %v229, %v270
  %v278 = vsub.f32 %v233, %v270
  %v279 = vsub.f32 %v237, %v270
  %v280 = vsub.f32 %v241, %v270
  %v281 = vsub.f32 %v245, %v270
  %v282 = vsub.f32 %v249, %v270
  %v283 = vsub.f32 %v253, %v270
  %v284 = vsub.f32 %v257, %v270
  %v285 = vsub.f32 %v261, %v270
  %v286 = vsub.f32 %v265, %v270
  %v287 = vand.u32 2147483647, %v271
  %v288 = vand.u32 2147483647, %v272
  %v289 = vand.u32 2147483647, %v273
  %v290 = vand.u32 2147483647, %v274
  %v291 = vand.u32 2147483647, %v275
  %v292 = vand.u32 2147483647, %v276
  %v293 = vand.u32 2147483647, %v277
  %v294 = vand.u32 2147483647, %v278
  %v295 = vand.u32 2147483647, %v279
  %v296 = vand.u32 2147483647, %v280
  %v297 = vand.u32 2147483647, %v281
  %v298 = vand.u32 2147483647, %v282
  %v299 = vand.u32 2147483647, %v283
  %v300 = vand.u32 2147483647, %v284
  %v301 = vand.u32 2147483647, %v285
  %v302 = vand.u32 2147483647, %v286
  %v303 = vadd.f32 %v187, %v287
  %v304 = vadd.f32 %v188, %v288
  %v305 = vadd.f32 %v189, %v289
  %v306 = vadd.f32 %v190, %v290
  %v307 = vadd.f32 %v191, %v291
  %v308 = vadd.f32 %v192, %v292
  %v309 = vadd.f32 %v193, %v293
  %v310 = vadd.f32 %v194, %v294
  %v311 = vadd.f32 %v195, %v295
  %v312 = vadd.f32 %v196, %v296
  %v313 = vadd.f32 %v197, %v297
  %v314 = vadd.f32 %v198, %v298
  %v315 = vadd.f32 %v199, %v299
  %v316 = vadd.f32 %v200, %v300
  %v317 = vadd.f32 %v201, %v301
  %v318 = vadd.f32 %v202, %v302
  %319 = vset.pattern.permute.xlu0 2
  %320 = vperm.xlu0 %319, %v37
  %v321 = vpop.permute.xlu0 %320
  %323 = vset.pattern.permute.xlu0 2
  %324 = vperm.xlu0 %323, %v38
  %v325 = vpop.permute.xlu0 %324
  %327 = vset.pattern.permute.xlu0 2
  %328 = vperm.xlu0 %327, %v39
  %v329 = vpop.permute.xlu0 %328
  %331 = vset.pattern.permute.xlu0 2
  %332 = vperm.xlu0 %331, %v40
  %v333 = vpop.permute.xlu0 %332
  %335 = vset.pattern.permute.xlu0 2
  %336 = vperm.xlu0 %335, %v41
  %v337 = vpop.permute.xlu0 %336
  %339 = vset.pattern.permute.xlu0 2
  %340 = vperm.xlu0 %339, %v42
  %v341 = vpop.permute.xlu0 %340
  %343 = vset.pattern.permute.xlu0 2
  %344 = vperm.xlu0 %343, %v43
  %v345 = vpop.permute.xlu0 %344
  %347 = vset.pattern.permute.xlu0 2
  %348 = vperm.xlu0 %347, %v44
  %v349 = vpop.permute.xlu0 %348
  %351 = vset.pattern.permute.xlu0 2
  %352 = vperm.xlu0 %351, %v45
  %v353 = vpop.permute.xlu0 %352
  %355 = vset.pattern.permute.xlu0 2
  %356 = vperm.xlu0 %355, %v46
  %v357 = vpop.permute.xlu0 %356
  %359 = vset.pattern.permute.xlu0 2
  %360 = vperm.xlu0 %359, %v47
  %v361 = vpop.permute.xlu0 %360
  %363 = vset.pattern.permute.xlu0 2
  %364 = vperm.xlu0 %363, %v48
  %v365 = vpop.permute.xlu0 %364
  %367 = vset.pattern.permute.xlu0 2
  %368 = vperm.xlu0 %367, %v49
  %v369 = vpop.permute.xlu0 %368
  %371 = vset.pattern.permute.xlu0 2
  %372 = vperm.xlu0 %371, %v50
  %v373 = vpop.permute.xlu0 %372
  %375 = vset.pattern.permute.xlu0 2
  %376 = vperm.xlu0 %375, %v51
  %v377 = vpop.permute.xlu0 %376
  %379 = vset.pattern.permute.xlu0 2
  %380 = vperm.xlu0 %379, %v52
  %v381 = vpop.permute.xlu0 %380
  %v383 = vlaneseq
  %v384 = vshrl.u32 %v383, 7
  %v385 = vsub.s32 2, %v384
  %v386 = vrot.slane %v53, %v385
  %v387 = vsub.f32 %v321, %v386
  %v388 = vsub.f32 %v325, %v386
  %v389 = vsub.f32 %v329, %v386
  %v390 = vsub.f32 %v333, %v386
  %v391 = vsub.f32 %v337, %v386
  %v392 = vsub.f32 %v341, %v386
  %v393 = vsub.f32 %v345, %v386
  %v394 = vsub.f32 %v349, %v386
  %v395 = vsub.f32 %v353, %v386
  %v396 = vsub.f32 %v357, %v386
  %v397 = vsub.f32 %v361, %v386
  %v398 = vsub.f32 %v365, %v386
  %v399 = vsub.f32 %v369, %v386
  %v400 = vsub.f32 %v373, %v386
  %v401 = vsub.f32 %v377, %v386
  %v402 = vsub.f32 %v381, %v386
  %v403 = vand.u32 2147483647, %v387
  %v404 = vand.u32 2147483647, %v388
  %v405 = vand.u32 2147483647, %v389
  %v406 = vand.u32 2147483647, %v390
  %v407 = vand.u32 2147483647, %v391
  %v408 = vand.u32 2147483647, %v392
  %v409 = vand.u32 2147483647, %v393
  %v410 = vand.u32 2147483647, %v394
  %v411 = vand.u32 2147483647, %v395
  %v412 = vand.u32 2147483647, %v396
  %v413 = vand.u32 2147483647, %v397
  %v414 = vand.u32 2147483647, %v398
  %v415 = vand.u32 2147483647, %v399
  %v416 = vand.u32 2147483647, %v400
  %v417 = vand.u32 2147483647, %v401
  %v418 = vand.u32 2147483647, %v402
  %v419 = vadd.f32 %v303, %v403
  %v420 = vadd.f32 %v304, %v404
  %v421 = vadd.f32 %v305, %v405
  %v422 = vadd.f32 %v306, %v406
  %v423 = vadd.f32 %v307, %v407
  %v424 = vadd.f32 %v308, %v408
  %v425 = vadd.f32 %v309, %v409
  %v426 = vadd.f32 %v310, %v410
  %v427 = vadd.f32 %v311, %v411
  %v428 = vadd.f32 %v312, %v412
  %v429 = vadd.f32 %v313, %v413
  %v430 = vadd.f32 %v314, %v414
  %v431 = vadd.f32 %v315, %v415
  %v432 = vadd.f32 %v316, %v416
  %v433 = vadd.f32 %v317, %v417
  %v434 = vadd.f32 %v318, %v418
  %435 = vset.pattern.permute.xlu0 3
  %436 = vperm.xlu0 %435, %v37
  %v437 = vpop.permute.xlu0 %436
  %439 = vset.pattern.permute.xlu0 3
  %440 = vperm.xlu0 %439, %v38
  %v441 = vpop.permute.xlu0 %440
  %443 = vset.pattern.permute.xlu0 3
  %444 = vperm.xlu0 %443, %v39
  %v445 = vpop.permute.xlu0 %444
  %447 = vset.pattern.permute.xlu0 3
  %448 = vperm.xlu0 %447, %v40
  %v449 = vpop.permute.xlu0 %448
  %451 = vset.pattern.permute.xlu0 3
  %452 = vperm.xlu0 %451, %v41
  %v453 = vpop.permute.xlu0 %452
  %455 = vset.pattern.permute.xlu0 3
  %456 = vperm.xlu0 %455, %v42
  %v457 = vpop.permute.xlu0 %456
  %459 = vset.pattern.permute.xlu0 3
  %460 = vperm.xlu0 %459, %v43
  %v461 = vpop.permute.xlu0 %460
  %463 = vset.pattern.permute.xlu0 3
  %464 = vperm.xlu0 %463, %v44
  %v465 = vpop.permute.xlu0 %464
  %467 = vset.pattern.permute.xlu0 3
  %468 = vperm.xlu0 %467, %v45
  %v469 = vpop.permute.xlu0 %468
  %471 = vset.pattern.permute.xlu0 3
  %472 = vperm.xlu0 %471, %v46
  %v473 = vpop.permute.xlu0 %472
  %475 = vset.pattern.permute.xlu0 3
  %476 = vperm.xlu0 %475, %v47
  %v477 = vpop.permute.xlu0 %476
  %479 = vset.pattern.permute.xlu0 3
  %480 = vperm.xlu0 %479, %v48
  %v481 = vpop.permute.xlu0 %480
  %483 = vset.pattern.permute.xlu0 3
  %484 = vperm.xlu0 %483, %v49
  %v485 = vpop.permute.xlu0 %484
  %487 = vset.pattern.permute.xlu0 3
  %488 = vperm.xlu0 %487, %v50
  %v489 = vpop.permute.xlu0 %488
  %491 = vset.pattern.permute.xlu0 3
  %492 = vperm.xlu0 %491, %v51
  %v493 = vpop.permute.xlu0 %492
  %495 = vset.pattern.permute.xlu0 3
  %496 = vperm.xlu0 %495, %v52
  %v497 = vpop.permute.xlu0 %496
  %v499 = vlaneseq
  %v500 = vshrl.u32 %v499, 7
  %v501 = vsub.s32 3, %v500
  %v502 = vrot.slane %v53, %v501
  %v503 = vsub.f32 %v437, %v502
  %v504 = vsub.f32 %v441, %v502
  %v505 = vsub.f32 %v445, %v502
  %v506 = vsub.f32 %v449, %v502
  %v507 = vsub.f32 %v453, %v502
  %v508 = vsub.f32 %v457, %v502
  %v509 = vsub.f32 %v461, %v502
  %v510 = vsub.f32 %v465, %v502
  %v511 = vsub.f32 %v469, %v502
  %v512 = vsub.f32 %v473, %v502
  %v513 = vsub.f32 %v477, %v502
  %v514 = vsub.f32 %v481, %v502
  %v515 = vsub.f32 %v485, %v502
  %v516 = vsub.f32 %v489, %v502
  %v517 = vsub.f32 %v493, %v502
  %v518 = vsub.f32 %v497, %v502
  %v519 = vand.u32 2147483647, %v503
  %v520 = vand.u32 2147483647, %v504
  %v521 = vand.u32 2147483647, %v505
  %v522 = vand.u32 2147483647, %v506
  %v523 = vand.u32 2147483647, %v507
  %v524 = vand.u32 2147483647, %v508
  %v525 = vand.u32 2147483647, %v509
  %v526 = vand.u32 2147483647, %v510
  %v527 = vand.u32 2147483647, %v511
  %v528 = vand.u32 2147483647, %v512
  %v529 = vand.u32 2147483647, %v513
  %v530 = vand.u32 2147483647, %v514
  %v531 = vand.u32 2147483647, %v515
  %v532 = vand.u32 2147483647, %v516
  %v533 = vand.u32 2147483647, %v517
  %v534 = vand.u32 2147483647, %v518
  %v535 = vadd.f32 %v419, %v519
  %v536 = vadd.f32 %v420, %v520
  %v537 = vadd.f32 %v421, %v521
  %v538 = vadd.f32 %v422, %v522
  %v539 = vadd.f32 %v423, %v523
  %v540 = vadd.f32 %v424, %v524
  %v541 = vadd.f32 %v425, %v525
  %v542 = vadd.f32 %v426, %v526
  %v543 = vadd.f32 %v427, %v527
  %v544 = vadd.f32 %v428, %v528
  %v545 = vadd.f32 %v429, %v529
  %v546 = vadd.f32 %v430, %v530
  %v547 = vadd.f32 %v431, %v531
  %v548 = vadd.f32 %v432, %v532
  %v549 = vadd.f32 %v433, %v533
  %v550 = vadd.f32 %v434, %v534
  %551 = vset.pattern.permute.xlu0 4
  %552 = vperm.xlu0 %551, %v37
  %v553 = vpop.permute.xlu0 %552
  %555 = vset.pattern.permute.xlu0 4
  %556 = vperm.xlu0 %555, %v38
  %v557 = vpop.permute.xlu0 %556
  %559 = vset.pattern.permute.xlu0 4
  %560 = vperm.xlu0 %559, %v39
  %v561 = vpop.permute.xlu0 %560
  %563 = vset.pattern.permute.xlu0 4
  %564 = vperm.xlu0 %563, %v40
  %v565 = vpop.permute.xlu0 %564
  %567 = vset.pattern.permute.xlu0 4
  %568 = vperm.xlu0 %567, %v41
  %v569 = vpop.permute.xlu0 %568
  %571 = vset.pattern.permute.xlu0 4
  %572 = vperm.xlu0 %571, %v42
  %v573 = vpop.permute.xlu0 %572
  %575 = vset.pattern.permute.xlu0 4
  %576 = vperm.xlu0 %575, %v43
  %v577 = vpop.permute.xlu0 %576
  %579 = vset.pattern.permute.xlu0 4
  %580 = vperm.xlu0 %579, %v44
  %v581 = vpop.permute.xlu0 %580
  %583 = vset.pattern.permute.xlu0 4
  %584 = vperm.xlu0 %583, %v45
  %v585 = vpop.permute.xlu0 %584
  %587 = vset.pattern.permute.xlu0 4
  %588 = vperm.xlu0 %587, %v46
  %v589 = vpop.permute.xlu0 %588
  %591 = vset.pattern.permute.xlu0 4
  %592 = vperm.xlu0 %591, %v47
  %v593 = vpop.permute.xlu0 %592
  %595 = vset.pattern.permute.xlu0 4
  %596 = vperm.xlu0 %595, %v48
  %v597 = vpop.permute.xlu0 %596
  %599 = vset.pattern.permute.xlu0 4
  %600 = vperm.xlu0 %599, %v49
  %v601 = vpop.permute.xlu0 %600
  %603 = vset.pattern.permute.xlu0 4
  %604 = vperm.xlu0 %603, %v50
  %v605 = vpop.permute.xlu0 %604
  %607 = vset.pattern.permute.xlu0 4
  %608 = vperm.xlu0 %607, %v51
  %v609 = vpop.permute.xlu0 %608
  %611 = vset.pattern.permute.xlu0 4
  %612 = vperm.xlu0 %611, %v52
  %v613 = vpop.permute.xlu0 %612
  %v615 = vlaneseq
  %v616 = vshrl.u32 %v615, 7
  %v617 = vsub.s32 4, %v616
  %v618 = vrot.slane %v53, %v617
  %v619 = vsub.f32 %v553, %v618
  %v620 = vsub.f32 %v557, %v618
  %v621 = vsub.f32 %v561, %v618
  %v622 = vsub.f32 %v565, %v618
  %v623 = vsub.f32 %v569, %v618
  %v624 = vsub.f32 %v573, %v618
  %v625 = vsub.f32 %v577, %v618
  %v626 = vsub.f32 %v581, %v618
  %v627 = vsub.f32 %v585, %v618
  %v628 = vsub.f32 %v589, %v618
  %v629 = vsub.f32 %v593, %v618
  %v630 = vsub.f32 %v597, %v618
  %v631 = vsub.f32 %v601, %v618
  %v632 = vsub.f32 %v605, %v618
  %v633 = vsub.f32 %v609, %v618
  %v634 = vsub.f32 %v613, %v618
  %v635 = vand.u32 2147483647, %v619
  %v636 = vand.u32 2147483647, %v620
  %v637 = vand.u32 2147483647, %v621
  %v638 = vand.u32 2147483647, %v622
  %v639 = vand.u32 2147483647, %v623
  %v640 = vand.u32 2147483647, %v624
  %v641 = vand.u32 2147483647, %v625
  %v642 = vand.u32 2147483647, %v626
  %v643 = vand.u32 2147483647, %v627
  %v644 = vand.u32 2147483647, %v628
  %v645 = vand.u32 2147483647, %v629
  %v646 = vand.u32 2147483647, %v630
  %v647 = vand.u32 2147483647, %v631
  %v648 = vand.u32 2147483647, %v632
  %v649 = vand.u32 2147483647, %v633
  %v650 = vand.u32 2147483647, %v634
  %v651 = vadd.f32 %v535, %v635
  %v652 = vadd.f32 %v536, %v636
  %v653 = vadd.f32 %v537, %v637
  %v654 = vadd.f32 %v538, %v638
  %v655 = vadd.f32 %v539, %v639
  %v656 = vadd.f32 %v540, %v640
  %v657 = vadd.f32 %v541, %v641
  %v658 = vadd.f32 %v542, %v642
  %v659 = vadd.f32 %v543, %v643
  %v660 = vadd.f32 %v544, %v644
  %v661 = vadd.f32 %v545, %v645
  %v662 = vadd.f32 %v546, %v646
  %v663 = vadd.f32 %v547, %v647
  %v664 = vadd.f32 %v548, %v648
  %v665 = vadd.f32 %v549, %v649
  %v666 = vadd.f32 %v550, %v650
  %667 = vset.pattern.permute.xlu0 5
  %668 = vperm.xlu0 %667, %v37
  %v669 = vpop.permute.xlu0 %668
  %671 = vset.pattern.permute.xlu0 5
  %672 = vperm.xlu0 %671, %v38
  %v673 = vpop.permute.xlu0 %672
  %675 = vset.pattern.permute.xlu0 5
  %676 = vperm.xlu0 %675, %v39
  %v677 = vpop.permute.xlu0 %676
  %679 = vset.pattern.permute.xlu0 5
  %680 = vperm.xlu0 %679, %v40
  %v681 = vpop.permute.xlu0 %680
  %683 = vset.pattern.permute.xlu0 5
  %684 = vperm.xlu0 %683, %v41
  %v685 = vpop.permute.xlu0 %684
  %687 = vset.pattern.permute.xlu0 5
  %688 = vperm.xlu0 %687, %v42
  %v689 = vpop.permute.xlu0 %688
  %691 = vset.pattern.permute.xlu0 5
  %692 = vperm.xlu0 %691, %v43
  %v693 = vpop.permute.xlu0 %692
  %695 = vset.pattern.permute.xlu0 5
  %696 = vperm.xlu0 %695, %v44
  %v697 = vpop.permute.xlu0 %696
  %699 = vset.pattern.permute.xlu0 5
  %700 = vperm.xlu0 %699, %v45
  %v701 = vpop.permute.xlu0 %700
  %703 = vset.pattern.permute.xlu0 5
  %704 = vperm.xlu0 %703, %v46
  %v705 = vpop.permute.xlu0 %704
  %707 = vset.pattern.permute.xlu0 5
  %708 = vperm.xlu0 %707, %v47
  %v709 = vpop.permute.xlu0 %708
  %711 = vset.pattern.permute.xlu0 5
  %712 = vperm.xlu0 %711, %v48
  %v713 = vpop.permute.xlu0 %712
  %715 = vset.pattern.permute.xlu0 5
  %716 = vperm.xlu0 %715, %v49
  %v717 = vpop.permute.xlu0 %716
  %719 = vset.pattern.permute.xlu0 5
  %720 = vperm.xlu0 %719, %v50
  %v721 = vpop.permute.xlu0 %720
  %723 = vset.pattern.permute.xlu0 5
  %724 = vperm.xlu0 %723, %v51
  %v725 = vpop.permute.xlu0 %724
  %727 = vset.pattern.permute.xlu0 5
  %728 = vperm.xlu0 %727, %v52
  %v729 = vpop.permute.xlu0 %728
  %v731 = vlaneseq
  %v732 = vshrl.u32 %v731, 7
  %v733 = vsub.s32 5, %v732
  %v734 = vrot.slane %v53, %v733
  %v735 = vsub.f32 %v669, %v734
  %v736 = vsub.f32 %v673, %v734
  %v737 = vsub.f32 %v677, %v734
  %v738 = vsub.f32 %v681, %v734
  %v739 = vsub.f32 %v685, %v734
  %v740 = vsub.f32 %v689, %v734
  %v741 = vsub.f32 %v693, %v734
  %v742 = vsub.f32 %v697, %v734
  %v743 = vsub.f32 %v701, %v734
  %v744 = vsub.f32 %v705, %v734
  %v745 = vsub.f32 %v709, %v734
  %v746 = vsub.f32 %v713, %v734
  %v747 = vsub.f32 %v717, %v734
  %v748 = vsub.f32 %v721, %v734
  %v749 = vsub.f32 %v725, %v734
  %v750 = vsub.f32 %v729, %v734
  %v751 = vand.u32 2147483647, %v735
  %v752 = vand.u32 2147483647, %v736
  %v753 = vand.u32 2147483647, %v737
  %v754 = vand.u32 2147483647, %v738
  %v755 = vand.u32 2147483647, %v739
  %v756 = vand.u32 2147483647, %v740
  %v757 = vand.u32 2147483647, %v741
  %v758 = vand.u32 2147483647, %v742
  %v759 = vand.u32 2147483647, %v743
  %v760 = vand.u32 2147483647, %v744
  %v761 = vand.u32 2147483647, %v745
  %v762 = vand.u32 2147483647, %v746
  %v763 = vand.u32 2147483647, %v747
  %v764 = vand.u32 2147483647, %v748
  %v765 = vand.u32 2147483647, %v749
  %v766 = vand.u32 2147483647, %v750
  %v767 = vadd.f32 %v651, %v751
  %v768 = vadd.f32 %v652, %v752
  %v769 = vadd.f32 %v653, %v753
  %v770 = vadd.f32 %v654, %v754
  %v771 = vadd.f32 %v655, %v755
  %v772 = vadd.f32 %v656, %v756
  %v773 = vadd.f32 %v657, %v757
  %v774 = vadd.f32 %v658, %v758
  %v775 = vadd.f32 %v659, %v759
  %v776 = vadd.f32 %v660, %v760
  %v777 = vadd.f32 %v661, %v761
  %v778 = vadd.f32 %v662, %v762
  %v779 = vadd.f32 %v663, %v763
  %v780 = vadd.f32 %v664, %v764
  %v781 = vadd.f32 %v665, %v765
  %v782 = vadd.f32 %v666, %v766
  %783 = vset.pattern.permute.xlu0 6
  %784 = vperm.xlu0 %783, %v37
  %v785 = vpop.permute.xlu0 %784
  %787 = vset.pattern.permute.xlu0 6
  %788 = vperm.xlu0 %787, %v38
  %v789 = vpop.permute.xlu0 %788
  %791 = vset.pattern.permute.xlu0 6
  %792 = vperm.xlu0 %791, %v39
  %v793 = vpop.permute.xlu0 %792
  %795 = vset.pattern.permute.xlu0 6
  %796 = vperm.xlu0 %795, %v40
  %v797 = vpop.permute.xlu0 %796
  %799 = vset.pattern.permute.xlu0 6
  %800 = vperm.xlu0 %799, %v41
  %v801 = vpop.permute.xlu0 %800
  %803 = vset.pattern.permute.xlu0 6
  %804 = vperm.xlu0 %803, %v42
  %v805 = vpop.permute.xlu0 %804
  %807 = vset.pattern.permute.xlu0 6
  %808 = vperm.xlu0 %807, %v43
  %v809 = vpop.permute.xlu0 %808
  %811 = vset.pattern.permute.xlu0 6
  %812 = vperm.xlu0 %811, %v44
  %v813 = vpop.permute.xlu0 %812
  %815 = vset.pattern.permute.xlu0 6
  %816 = vperm.xlu0 %815, %v45
  %v817 = vpop.permute.xlu0 %816
  %819 = vset.pattern.permute.xlu0 6
  %820 = vperm.xlu0 %819, %v46
  %v821 = vpop.permute.xlu0 %820
  %823 = vset.pattern.permute.xlu0 6
  %824 = vperm.xlu0 %823, %v47
  %v825 = vpop.permute.xlu0 %824
  %827 = vset.pattern.permute.xlu0 6
  %828 = vperm.xlu0 %827, %v48
  %v829 = vpop.permute.xlu0 %828
  %831 = vset.pattern.permute.xlu0 6
  %832 = vperm.xlu0 %831, %v49
  %v833 = vpop.permute.xlu0 %832
  %835 = vset.pattern.permute.xlu0 6
  %836 = vperm.xlu0 %835, %v50
  %v837 = vpop.permute.xlu0 %836
  %839 = vset.pattern.permute.xlu0 6
  %840 = vperm.xlu0 %839, %v51
  %v841 = vpop.permute.xlu0 %840
  %843 = vset.pattern.permute.xlu0 6
  %844 = vperm.xlu0 %843, %v52
  %v845 = vpop.permute.xlu0 %844
  %v847 = vlaneseq
  %v848 = vshrl.u32 %v847, 7
  %v849 = vsub.s32 6, %v848
  %v850 = vrot.slane %v53, %v849
  %v851 = vsub.f32 %v785, %v850
  %v852 = vsub.f32 %v789, %v850
  %v853 = vsub.f32 %v793, %v850
  %v854 = vsub.f32 %v797, %v850
  %v855 = vsub.f32 %v801, %v850
  %v856 = vsub.f32 %v805, %v850
  %v857 = vsub.f32 %v809, %v850
  %v858 = vsub.f32 %v813, %v850
  %v859 = vsub.f32 %v817, %v850
  %v860 = vsub.f32 %v821, %v850
  %v861 = vsub.f32 %v825, %v850
  %v862 = vsub.f32 %v829, %v850
  %v863 = vsub.f32 %v833, %v850
  %v864 = vsub.f32 %v837, %v850
  %v865 = vsub.f32 %v841, %v850
  %v866 = vsub.f32 %v845, %v850
  %v867 = vand.u32 2147483647, %v851
  %v868 = vand.u32 2147483647, %v852
  %v869 = vand.u32 2147483647, %v853
  %v870 = vand.u32 2147483647, %v854
  %v871 = vand.u32 2147483647, %v855
  %v872 = vand.u32 2147483647, %v856
  %v873 = vand.u32 2147483647, %v857
  %v874 = vand.u32 2147483647, %v858
  %v875 = vand.u32 2147483647, %v859
  %v876 = vand.u32 2147483647, %v860
  %v877 = vand.u32 2147483647, %v861
  %v878 = vand.u32 2147483647, %v862
  %v879 = vand.u32 2147483647, %v863
  %v880 = vand.u32 2147483647, %v864
  %v881 = vand.u32 2147483647, %v865
  %v882 = vand.u32 2147483647, %v866
  %v883 = vadd.f32 %v767, %v867
  %v884 = vadd.f32 %v768, %v868
  %v885 = vadd.f32 %v769, %v869
  %v886 = vadd.f32 %v770, %v870
  %v887 = vadd.f32 %v771, %v871
  %v888 = vadd.f32 %v772, %v872
  %v889 = vadd.f32 %v773, %v873
  %v890 = vadd.f32 %v774, %v874
  %v891 = vadd.f32 %v775, %v875
  %v892 = vadd.f32 %v776, %v876
  %v893 = vadd.f32 %v777, %v877
  %v894 = vadd.f32 %v778, %v878
  %v895 = vadd.f32 %v779, %v879
  %v896 = vadd.f32 %v780, %v880
  %v897 = vadd.f32 %v781, %v881
  %v898 = vadd.f32 %v782, %v882
  %899 = vset.pattern.permute.xlu0 7
  %900 = vperm.xlu0 %899, %v37
  %v901 = vpop.permute.xlu0 %900
  %903 = vset.pattern.permute.xlu0 7
  %904 = vperm.xlu0 %903, %v38
  %v905 = vpop.permute.xlu0 %904
  %907 = vset.pattern.permute.xlu0 7
  %908 = vperm.xlu0 %907, %v39
  %v909 = vpop.permute.xlu0 %908
  %911 = vset.pattern.permute.xlu0 7
  %912 = vperm.xlu0 %911, %v40
  %v913 = vpop.permute.xlu0 %912
  %915 = vset.pattern.permute.xlu0 7
  %916 = vperm.xlu0 %915, %v41
  %v917 = vpop.permute.xlu0 %916
  %919 = vset.pattern.permute.xlu0 7
  %920 = vperm.xlu0 %919, %v42
  %v921 = vpop.permute.xlu0 %920
  %923 = vset.pattern.permute.xlu0 7
  %924 = vperm.xlu0 %923, %v43
  %v925 = vpop.permute.xlu0 %924
  %927 = vset.pattern.permute.xlu0 7
  %928 = vperm.xlu0 %927, %v44
  %v929 = vpop.permute.xlu0 %928
  %931 = vset.pattern.permute.xlu0 7
  %932 = vperm.xlu0 %931, %v45
  %v933 = vpop.permute.xlu0 %932
  %935 = vset.pattern.permute.xlu0 7
  %936 = vperm.xlu0 %935, %v46
  %v937 = vpop.permute.xlu0 %936
  %939 = vset.pattern.permute.xlu0 7
  %940 = vperm.xlu0 %939, %v47
  %v941 = vpop.permute.xlu0 %940
  %943 = vset.pattern.permute.xlu0 7
  %944 = vperm.xlu0 %943, %v48
  %v945 = vpop.permute.xlu0 %944
  %947 = vset.pattern.permute.xlu0 7
  %948 = vperm.xlu0 %947, %v49
  %v949 = vpop.permute.xlu0 %948
  %951 = vset.pattern.permute.xlu0 7
  %952 = vperm.xlu0 %951, %v50
  %v953 = vpop.permute.xlu0 %952
  %955 = vset.pattern.permute.xlu0 7
  %956 = vperm.xlu0 %955, %v51
  %v957 = vpop.permute.xlu0 %956
  %959 = vset.pattern.permute.xlu0 7
  %960 = vperm.xlu0 %959, %v52
  %v961 = vpop.permute.xlu0 %960
  %v963 = vlaneseq
  %v964 = vshrl.u32 %v963, 7
  %v965 = vsub.s32 7, %v964
  %v966 = vrot.slane %v53, %v965
  %v967 = vsub.f32 %v901, %v966
  %v968 = vsub.f32 %v905, %v966
  %v969 = vsub.f32 %v909, %v966
  %v970 = vsub.f32 %v913, %v966
  %v971 = vsub.f32 %v917, %v966
  %v972 = vsub.f32 %v921, %v966
  %v973 = vsub.f32 %v925, %v966
  %v974 = vsub.f32 %v929, %v966
  %v975 = vsub.f32 %v933, %v966
  %v976 = vsub.f32 %v937, %v966
  %v977 = vsub.f32 %v941, %v966
  %v978 = vsub.f32 %v945, %v966
  %v979 = vsub.f32 %v949, %v966
  %v980 = vsub.f32 %v953, %v966
  %v981 = vsub.f32 %v957, %v966
  %v982 = vsub.f32 %v961, %v966
  %v983 = vand.u32 2147483647, %v967
  %v984 = vand.u32 2147483647, %v968
  %v985 = vand.u32 2147483647, %v969
  %v986 = vand.u32 2147483647, %v970
  %v987 = vand.u32 2147483647, %v971
  %v988 = vand.u32 2147483647, %v972
  %v989 = vand.u32 2147483647, %v973
  %v990 = vand.u32 2147483647, %v974
  %v991 = vand.u32 2147483647, %v975
  %v992 = vand.u32 2147483647, %v976
  %v993 = vand.u32 2147483647, %v977
  %v994 = vand.u32 2147483647, %v978
  %v995 = vand.u32 2147483647, %v979
  %v996 = vand.u32 2147483647, %v980
  %v997 = vand.u32 2147483647, %v981
  %v998 = vand.u32 2147483647, %v982
  %v999 = vadd.f32 %v883, %v983
  %v1000 = vadd.f32 %v884, %v984
  %v1001 = vadd.f32 %v885, %v985
  %v1002 = vadd.f32 %v886, %v986
  %v1003 = vadd.f32 %v887, %v987
  %v1004 = vadd.f32 %v888, %v988
  %v1005 = vadd.f32 %v889, %v989
  %v1006 = vadd.f32 %v890, %v990
  %v1007 = vadd.f32 %v891, %v991
  %v1008 = vadd.f32 %v892, %v992
  %v1009 = vadd.f32 %v893, %v993
  %v1010 = vadd.f32 %v894, %v994
  %v1011 = vadd.f32 %v895, %v995
  %v1012 = vadd.f32 %v896, %v996
  %v1013 = vadd.f32 %v897, %v997
  %v1014 = vadd.f32 %v898, %v998
  %1015 = vset.pattern.permute.xlu0 8
  %1016 = vperm.xlu0 %1015, %v37
  %v1017 = vpop.permute.xlu0 %1016
  %1019 = vset.pattern.permute.xlu0 8
  %1020 = vperm.xlu0 %1019, %v38
  %v1021 = vpop.permute.xlu0 %1020
  %1023 = vset.pattern.permute.xlu0 8
  %1024 = vperm.xlu0 %1023, %v39
  %v1025 = vpop.permute.xlu0 %1024
  %1027 = vset.pattern.permute.xlu0 8
  %1028 = vperm.xlu0 %1027, %v40
  %v1029 = vpop.permute.xlu0 %1028
  %1031 = vset.pattern.permute.xlu0 8
  %1032 = vperm.xlu0 %1031, %v41
  %v1033 = vpop.permute.xlu0 %1032
  %1035 = vset.pattern.permute.xlu0 8
  %1036 = vperm.xlu0 %1035, %v42
  %v1037 = vpop.permute.xlu0 %1036
  %1039 = vset.pattern.permute.xlu0 8
  %1040 = vperm.xlu0 %1039, %v43
  %v1041 = vpop.permute.xlu0 %1040
  %1043 = vset.pattern.permute.xlu0 8
  %1044 = vperm.xlu0 %1043, %v44
  %v1045 = vpop.permute.xlu0 %1044
  %1047 = vset.pattern.permute.xlu0 8
  %1048 = vperm.xlu0 %1047, %v45
  %v1049 = vpop.permute.xlu0 %1048
  %1051 = vset.pattern.permute.xlu0 8
  %1052 = vperm.xlu0 %1051, %v46
  %v1053 = vpop.permute.xlu0 %1052
  %1055 = vset.pattern.permute.xlu0 8
  %1056 = vperm.xlu0 %1055, %v47
  %v1057 = vpop.permute.xlu0 %1056
  %1059 = vset.pattern.permute.xlu0 8
  %1060 = vperm.xlu0 %1059, %v48
  %v1061 = vpop.permute.xlu0 %1060
  %1063 = vset.pattern.permute.xlu0 8
  %1064 = vperm.xlu0 %1063, %v49
  %v1065 = vpop.permute.xlu0 %1064
  %1067 = vset.pattern.permute.xlu0 8
  %1068 = vperm.xlu0 %1067, %v50
  %v1069 = vpop.permute.xlu0 %1068
  %1071 = vset.pattern.permute.xlu0 8
  %1072 = vperm.xlu0 %1071, %v51
  %v1073 = vpop.permute.xlu0 %1072
  %1075 = vset.pattern.permute.xlu0 8
  %1076 = vperm.xlu0 %1075, %v52
  %v1077 = vpop.permute.xlu0 %1076
  %v1079 = vlaneseq
  %v1080 = vshrl.u32 %v1079, 7
  %v1081 = vsub.s32 0, %v1080
  %v1082 = vrot.slane %v54, %v1081
  %v1083 = vsub.f32 %v1017, %v1082
  %v1084 = vsub.f32 %v1021, %v1082
  %v1085 = vsub.f32 %v1025, %v1082
  %v1086 = vsub.f32 %v1029, %v1082
  %v1087 = vsub.f32 %v1033, %v1082
  %v1088 = vsub.f32 %v1037, %v1082
  %v1089 = vsub.f32 %v1041, %v1082
  %v1090 = vsub.f32 %v1045, %v1082
  %v1091 = vsub.f32 %v1049, %v1082
  %v1092 = vsub.f32 %v1053, %v1082
  %v1093 = vsub.f32 %v1057, %v1082
  %v1094 = vsub.f32 %v1061, %v1082
  %v1095 = vsub.f32 %v1065, %v1082
  %v1096 = vsub.f32 %v1069, %v1082
  %v1097 = vsub.f32 %v1073, %v1082
  %v1098 = vsub.f32 %v1077, %v1082
  %v1099 = vand.u32 2147483647, %v1083
  %v1100 = vand.u32 2147483647, %v1084
  %v1101 = vand.u32 2147483647, %v1085
  %v1102 = vand.u32 2147483647, %v1086
  %v1103 = vand.u32 2147483647, %v1087
  %v1104 = vand.u32 2147483647, %v1088
  %v1105 = vand.u32 2147483647, %v1089
  %v1106 = vand.u32 2147483647, %v1090
  %v1107 = vand.u32 2147483647, %v1091
  %v1108 = vand.u32 2147483647, %v1092
  %v1109 = vand.u32 2147483647, %v1093
  %v1110 = vand.u32 2147483647, %v1094
  %v1111 = vand.u32 2147483647, %v1095
  %v1112 = vand.u32 2147483647, %v1096
  %v1113 = vand.u32 2147483647, %v1097
  %v1114 = vand.u32 2147483647, %v1098
  %v1115 = vadd.f32 %v999, %v1099
  %v1116 = vadd.f32 %v1000, %v1100
  %v1117 = vadd.f32 %v1001, %v1101
  %v1118 = vadd.f32 %v1002, %v1102
  %v1119 = vadd.f32 %v1003, %v1103
  %v1120 = vadd.f32 %v1004, %v1104
  %v1121 = vadd.f32 %v1005, %v1105
  %v1122 = vadd.f32 %v1006, %v1106
  %v1123 = vadd.f32 %v1007, %v1107
  %v1124 = vadd.f32 %v1008, %v1108
  %v1125 = vadd.f32 %v1009, %v1109
  %v1126 = vadd.f32 %v1010, %v1110
  %v1127 = vadd.f32 %v1011, %v1111
  %v1128 = vadd.f32 %v1012, %v1112
  %v1129 = vadd.f32 %v1013, %v1113
  %v1130 = vadd.f32 %v1014, %v1114
  %1131 = vset.pattern.permute.xlu0 9
  %1132 = vperm.xlu0 %1131, %v37
  %v1133 = vpop.permute.xlu0 %1132
  %1135 = vset.pattern.permute.xlu0 9
  %1136 = vperm.xlu0 %1135, %v38
  %v1137 = vpop.permute.xlu0 %1136
  %1139 = vset.pattern.permute.xlu0 9
  %1140 = vperm.xlu0 %1139, %v39
  %v1141 = vpop.permute.xlu0 %1140
  %1143 = vset.pattern.permute.xlu0 9
  %1144 = vperm.xlu0 %1143, %v40
  %v1145 = vpop.permute.xlu0 %1144
  %1147 = vset.pattern.permute.xlu0 9
  %1148 = vperm.xlu0 %1147, %v41
  %v1149 = vpop.permute.xlu0 %1148
  %1151 = vset.pattern.permute.xlu0 9
  %1152 = vperm.xlu0 %1151, %v42
  %v1153 = vpop.permute.xlu0 %1152
  %1155 = vset.pattern.permute.xlu0 9
  %1156 = vperm.xlu0 %1155, %v43
  %v1157 = vpop.permute.xlu0 %1156
  %1159 = vset.pattern.permute.xlu0 9
  %1160 = vperm.xlu0 %1159, %v44
  %v1161 = vpop.permute.xlu0 %1160
  %1163 = vset.pattern.permute.xlu0 9
  %1164 = vperm.xlu0 %1163, %v45
  %v1165 = vpop.permute.xlu0 %1164
  %1167 = vset.pattern.permute.xlu0 9
  %1168 = vperm.xlu0 %1167, %v46
  %v1169 = vpop.permute.xlu0 %1168
  %1171 = vset.pattern.permute.xlu0 9
  %1172 = vperm.xlu0 %1171, %v47
  %v1173 = vpop.permute.xlu0 %1172
  %1175 = vset.pattern.permute.xlu0 9
  %1176 = vperm.xlu0 %1175, %v48
  %v1177 = vpop.permute.xlu0 %1176
  %1179 = vset.pattern.permute.xlu0 9
  %1180 = vperm.xlu0 %1179, %v49
  %v1181 = vpop.permute.xlu0 %1180
  %1183 = vset.pattern.permute.xlu0 9
  %1184 = vperm.xlu0 %1183, %v50
  %v1185 = vpop.permute.xlu0 %1184
  %1187 = vset.pattern.permute.xlu0 9
  %1188 = vperm.xlu0 %1187, %v51
  %v1189 = vpop.permute.xlu0 %1188
  %1191 = vset.pattern.permute.xlu0 9
  %1192 = vperm.xlu0 %1191, %v52
  %v1193 = vpop.permute.xlu0 %1192
  %v1195 = vlaneseq
  %v1196 = vshrl.u32 %v1195, 7
  %v1197 = vsub.s32 1, %v1196
  %v1198 = vrot.slane %v54, %v1197
  %v1199 = vsub.f32 %v1133, %v1198
  %v1200 = vsub.f32 %v1137, %v1198
  %v1201 = vsub.f32 %v1141, %v1198
  %v1202 = vsub.f32 %v1145, %v1198
  %v1203 = vsub.f32 %v1149, %v1198
  %v1204 = vsub.f32 %v1153, %v1198
  %v1205 = vsub.f32 %v1157, %v1198
  %v1206 = vsub.f32 %v1161, %v1198
  %v1207 = vsub.f32 %v1165, %v1198
  %v1208 = vsub.f32 %v1169, %v1198
  %v1209 = vsub.f32 %v1173, %v1198
  %v1210 = vsub.f32 %v1177, %v1198
  %v1211 = vsub.f32 %v1181, %v1198
  %v1212 = vsub.f32 %v1185, %v1198
  %v1213 = vsub.f32 %v1189, %v1198
  %v1214 = vsub.f32 %v1193, %v1198
  %v1215 = vand.u32 2147483647, %v1199
  %v1216 = vand.u32 2147483647, %v1200
  %v1217 = vand.u32 2147483647, %v1201
  %v1218 = vand.u32 2147483647, %v1202
  %v1219 = vand.u32 2147483647, %v1203
  %v1220 = vand.u32 2147483647, %v1204
  %v1221 = vand.u32 2147483647, %v1205
  %v1222 = vand.u32 2147483647, %v1206
  %v1223 = vand.u32 2147483647, %v1207
  %v1224 = vand.u32 2147483647, %v1208
  %v1225 = vand.u32 2147483647, %v1209
  %v1226 = vand.u32 2147483647, %v1210
  %v1227 = vand.u32 2147483647, %v1211
  %v1228 = vand.u32 2147483647, %v1212
  %v1229 = vand.u32 2147483647, %v1213
  %v1230 = vand.u32 2147483647, %v1214
  %v1231 = vadd.f32 %v1115, %v1215
  %v1232 = vadd.f32 %v1116, %v1216
  %v1233 = vadd.f32 %v1117, %v1217
  %v1234 = vadd.f32 %v1118, %v1218
  %v1235 = vadd.f32 %v1119, %v1219
  %v1236 = vadd.f32 %v1120, %v1220
  %v1237 = vadd.f32 %v1121, %v1221
  %v1238 = vadd.f32 %v1122, %v1222
  %v1239 = vadd.f32 %v1123, %v1223
  %v1240 = vadd.f32 %v1124, %v1224
  %v1241 = vadd.f32 %v1125, %v1225
  %v1242 = vadd.f32 %v1126, %v1226
  %v1243 = vadd.f32 %v1127, %v1227
  %v1244 = vadd.f32 %v1128, %v1228
  %v1245 = vadd.f32 %v1129, %v1229
  %v1246 = vadd.f32 %v1130, %v1230
  %1247 = vset.pattern.permute.xlu0 10
  %1248 = vperm.xlu0 %1247, %v37
  %v1249 = vpop.permute.xlu0 %1248
  %1251 = vset.pattern.permute.xlu0 10
  %1252 = vperm.xlu0 %1251, %v38
  %v1253 = vpop.permute.xlu0 %1252
  %1255 = vset.pattern.permute.xlu0 10
  %1256 = vperm.xlu0 %1255, %v39
  %v1257 = vpop.permute.xlu0 %1256
  %1259 = vset.pattern.permute.xlu0 10
  %1260 = vperm.xlu0 %1259, %v40
  %v1261 = vpop.permute.xlu0 %1260
  %1263 = vset.pattern.permute.xlu0 10
  %1264 = vperm.xlu0 %1263, %v41
  %v1265 = vpop.permute.xlu0 %1264
  %1267 = vset.pattern.permute.xlu0 10
  %1268 = vperm.xlu0 %1267, %v42
  %v1269 = vpop.permute.xlu0 %1268
  %1271 = vset.pattern.permute.xlu0 10
  %1272 = vperm.xlu0 %1271, %v43
  %v1273 = vpop.permute.xlu0 %1272
  %1275 = vset.pattern.permute.xlu0 10
  %1276 = vperm.xlu0 %1275, %v44
  %v1277 = vpop.permute.xlu0 %1276
  %1279 = vset.pattern.permute.xlu0 10
  %1280 = vperm.xlu0 %1279, %v45
  %v1281 = vpop.permute.xlu0 %1280
  %1283 = vset.pattern.permute.xlu0 10
  %1284 = vperm.xlu0 %1283, %v46
  %v1285 = vpop.permute.xlu0 %1284
  %1287 = vset.pattern.permute.xlu0 10
  %1288 = vperm.xlu0 %1287, %v47
  %v1289 = vpop.permute.xlu0 %1288
  %1291 = vset.pattern.permute.xlu0 10
  %1292 = vperm.xlu0 %1291, %v48
  %v1293 = vpop.permute.xlu0 %1292
  %1295 = vset.pattern.permute.xlu0 10
  %1296 = vperm.xlu0 %1295, %v49
  %v1297 = vpop.permute.xlu0 %1296
  %1299 = vset.pattern.permute.xlu0 10
  %1300 = vperm.xlu0 %1299, %v50
  %v1301 = vpop.permute.xlu0 %1300
  %1303 = vset.pattern.permute.xlu0 10
  %1304 = vperm.xlu0 %1303, %v51
  %v1305 = vpop.permute.xlu0 %1304
  %1307 = vset.pattern.permute.xlu0 10
  %1308 = vperm.xlu0 %1307, %v52
  %v1309 = vpop.permute.xlu0 %1308
  %v1311 = vlaneseq
  %v1312 = vshrl.u32 %v1311, 7
  %v1313 = vsub.s32 2, %v1312
  %v1314 = vrot.slane %v54, %v1313
  %v1315 = vsub.f32 %v1249, %v1314
  %v1316 = vsub.f32 %v1253, %v1314
  %v1317 = vsub.f32 %v1257, %v1314
  %v1318 = vsub.f32 %v1261, %v1314
  %v1319 = vsub.f32 %v1265, %v1314
  %v1320 = vsub.f32 %v1269, %v1314
  %v1321 = vsub.f32 %v1273, %v1314
  %v1322 = vsub.f32 %v1277, %v1314
  %v1323 = vsub.f32 %v1281, %v1314
  %v1324 = vsub.f32 %v1285, %v1314
  %v1325 = vsub.f32 %v1289, %v1314
  %v1326 = vsub.f32 %v1293, %v1314
  %v1327 = vsub.f32 %v1297, %v1314
  %v1328 = vsub.f32 %v1301, %v1314
  %v1329 = vsub.f32 %v1305, %v1314
  %v1330 = vsub.f32 %v1309, %v1314
  %v1331 = vand.u32 2147483647, %v1315
  %v1332 = vand.u32 2147483647, %v1316
  %v1333 = vand.u32 2147483647, %v1317
  %v1334 = vand.u32 2147483647, %v1318
  %v1335 = vand.u32 2147483647, %v1319
  %v1336 = vand.u32 2147483647, %v1320
  %v1337 = vand.u32 2147483647, %v1321
  %v1338 = vand.u32 2147483647, %v1322
  %v1339 = vand.u32 2147483647, %v1323
  %v1340 = vand.u32 2147483647, %v1324
  %v1341 = vand.u32 2147483647, %v1325
  %v1342 = vand.u32 2147483647, %v1326
  %v1343 = vand.u32 2147483647, %v1327
  %v1344 = vand.u32 2147483647, %v1328
  %v1345 = vand.u32 2147483647, %v1329
  %v1346 = vand.u32 2147483647, %v1330
  %v1347 = vadd.f32 %v1231, %v1331
  %v1348 = vadd.f32 %v1232, %v1332
  %v1349 = vadd.f32 %v1233, %v1333
  %v1350 = vadd.f32 %v1234, %v1334
  %v1351 = vadd.f32 %v1235, %v1335
  %v1352 = vadd.f32 %v1236, %v1336
  %v1353 = vadd.f32 %v1237, %v1337
  %v1354 = vadd.f32 %v1238, %v1338
  %v1355 = vadd.f32 %v1239, %v1339
  %v1356 = vadd.f32 %v1240, %v1340
  %v1357 = vadd.f32 %v1241, %v1341
  %v1358 = vadd.f32 %v1242, %v1342
  %v1359 = vadd.f32 %v1243, %v1343
  %v1360 = vadd.f32 %v1244, %v1344
  %v1361 = vadd.f32 %v1245, %v1345
  %v1362 = vadd.f32 %v1246, %v1346
  %1363 = vset.pattern.permute.xlu0 11
  %1364 = vperm.xlu0 %1363, %v37
  %v1365 = vpop.permute.xlu0 %1364
  %1367 = vset.pattern.permute.xlu0 11
  %1368 = vperm.xlu0 %1367, %v38
  %v1369 = vpop.permute.xlu0 %1368
  %1371 = vset.pattern.permute.xlu0 11
  %1372 = vperm.xlu0 %1371, %v39
  %v1373 = vpop.permute.xlu0 %1372
  %1375 = vset.pattern.permute.xlu0 11
  %1376 = vperm.xlu0 %1375, %v40
  %v1377 = vpop.permute.xlu0 %1376
  %1379 = vset.pattern.permute.xlu0 11
  %1380 = vperm.xlu0 %1379, %v41
  %v1381 = vpop.permute.xlu0 %1380
  %1383 = vset.pattern.permute.xlu0 11
  %1384 = vperm.xlu0 %1383, %v42
  %v1385 = vpop.permute.xlu0 %1384
  %1387 = vset.pattern.permute.xlu0 11
  %1388 = vperm.xlu0 %1387, %v43
  %v1389 = vpop.permute.xlu0 %1388
  %1391 = vset.pattern.permute.xlu0 11
  %1392 = vperm.xlu0 %1391, %v44
  %v1393 = vpop.permute.xlu0 %1392
  %1395 = vset.pattern.permute.xlu0 11
  %1396 = vperm.xlu0 %1395, %v45
  %v1397 = vpop.permute.xlu0 %1396
  %1399 = vset.pattern.permute.xlu0 11
  %1400 = vperm.xlu0 %1399, %v46
  %v1401 = vpop.permute.xlu0 %1400
  %1403 = vset.pattern.permute.xlu0 11
  %1404 = vperm.xlu0 %1403, %v47
  %v1405 = vpop.permute.xlu0 %1404
  %1407 = vset.pattern.permute.xlu0 11
  %1408 = vperm.xlu0 %1407, %v48
  %v1409 = vpop.permute.xlu0 %1408
  %1411 = vset.pattern.permute.xlu0 11
  %1412 = vperm.xlu0 %1411, %v49
  %v1413 = vpop.permute.xlu0 %1412
  %1415 = vset.pattern.permute.xlu0 11
  %1416 = vperm.xlu0 %1415, %v50
  %v1417 = vpop.permute.xlu0 %1416
  %1419 = vset.pattern.permute.xlu0 11
  %1420 = vperm.xlu0 %1419, %v51
  %v1421 = vpop.permute.xlu0 %1420
  %1423 = vset.pattern.permute.xlu0 11
  %1424 = vperm.xlu0 %1423, %v52
  %v1425 = vpop.permute.xlu0 %1424
  %v1427 = vlaneseq
  %v1428 = vshrl.u32 %v1427, 7
  %v1429 = vsub.s32 3, %v1428
  %v1430 = vrot.slane %v54, %v1429
  %v1431 = vsub.f32 %v1365, %v1430
  %v1432 = vsub.f32 %v1369, %v1430
  %v1433 = vsub.f32 %v1373, %v1430
  %v1434 = vsub.f32 %v1377, %v1430
  %v1435 = vsub.f32 %v1381, %v1430
  %v1436 = vsub.f32 %v1385, %v1430
  %v1437 = vsub.f32 %v1389, %v1430
  %v1438 = vsub.f32 %v1393, %v1430
  %v1439 = vsub.f32 %v1397, %v1430
  %v1440 = vsub.f32 %v1401, %v1430
  %v1441 = vsub.f32 %v1405, %v1430
  %v1442 = vsub.f32 %v1409, %v1430
  %v1443 = vsub.f32 %v1413, %v1430
  %v1444 = vsub.f32 %v1417, %v1430
  %v1445 = vsub.f32 %v1421, %v1430
  %v1446 = vsub.f32 %v1425, %v1430
  %v1447 = vand.u32 2147483647, %v1431
  %v1448 = vand.u32 2147483647, %v1432
  %v1449 = vand.u32 2147483647, %v1433
  %v1450 = vand.u32 2147483647, %v1434
  %v1451 = vand.u32 2147483647, %v1435
  %v1452 = vand.u32 2147483647, %v1436
  %v1453 = vand.u32 2147483647, %v1437
  %v1454 = vand.u32 2147483647, %v1438
  %v1455 = vand.u32 2147483647, %v1439
  %v1456 = vand.u32 2147483647, %v1440
  %v1457 = vand.u32 2147483647, %v1441
  %v1458 = vand.u32 2147483647, %v1442
  %v1459 = vand.u32 2147483647, %v1443
  %v1460 = vand.u32 2147483647, %v1444
  %v1461 = vand.u32 2147483647, %v1445
  %v1462 = vand.u32 2147483647, %v1446
  %v1463 = vadd.f32 %v1347, %v1447
  %v1464 = vadd.f32 %v1348, %v1448
  %v1465 = vadd.f32 %v1349, %v1449
  %v1466 = vadd.f32 %v1350, %v1450
  %v1467 = vadd.f32 %v1351, %v1451
  %v1468 = vadd.f32 %v1352, %v1452
  %v1469 = vadd.f32 %v1353, %v1453
  %v1470 = vadd.f32 %v1354, %v1454
  %v1471 = vadd.f32 %v1355, %v1455
  %v1472 = vadd.f32 %v1356, %v1456
  %v1473 = vadd.f32 %v1357, %v1457
  %v1474 = vadd.f32 %v1358, %v1458
  %v1475 = vadd.f32 %v1359, %v1459
  %v1476 = vadd.f32 %v1360, %v1460
  %v1477 = vadd.f32 %v1361, %v1461
  %v1478 = vadd.f32 %v1362, %v1462
  %1479 = vset.pattern.permute.xlu0 12
  %1480 = vperm.xlu0 %1479, %v37
  %v1481 = vpop.permute.xlu0 %1480
  %1483 = vset.pattern.permute.xlu0 12
  %1484 = vperm.xlu0 %1483, %v38
  %v1485 = vpop.permute.xlu0 %1484
  %1487 = vset.pattern.permute.xlu0 12
  %1488 = vperm.xlu0 %1487, %v39
  %v1489 = vpop.permute.xlu0 %1488
  %1491 = vset.pattern.permute.xlu0 12
  %1492 = vperm.xlu0 %1491, %v40
  %v1493 = vpop.permute.xlu0 %1492
  %1495 = vset.pattern.permute.xlu0 12
  %1496 = vperm.xlu0 %1495, %v41
  %v1497 = vpop.permute.xlu0 %1496
  %1499 = vset.pattern.permute.xlu0 12
  %1500 = vperm.xlu0 %1499, %v42
  %v1501 = vpop.permute.xlu0 %1500
  %1503 = vset.pattern.permute.xlu0 12
  %1504 = vperm.xlu0 %1503, %v43
  %v1505 = vpop.permute.xlu0 %1504
  %1507 = vset.pattern.permute.xlu0 12
  %1508 = vperm.xlu0 %1507, %v44
  %v1509 = vpop.permute.xlu0 %1508
  %1511 = vset.pattern.permute.xlu0 12
  %1512 = vperm.xlu0 %1511, %v45
  %v1513 = vpop.permute.xlu0 %1512
  %1515 = vset.pattern.permute.xlu0 12
  %1516 = vperm.xlu0 %1515, %v46
  %v1517 = vpop.permute.xlu0 %1516
  %1519 = vset.pattern.permute.xlu0 12
  %1520 = vperm.xlu0 %1519, %v47
  %v1521 = vpop.permute.xlu0 %1520
  %1523 = vset.pattern.permute.xlu0 12
  %1524 = vperm.xlu0 %1523, %v48
  %v1525 = vpop.permute.xlu0 %1524
  %1527 = vset.pattern.permute.xlu0 12
  %1528 = vperm.xlu0 %1527, %v49
  %v1529 = vpop.permute.xlu0 %1528
  %1531 = vset.pattern.permute.xlu0 12
  %1532 = vperm.xlu0 %1531, %v50
  %v1533 = vpop.permute.xlu0 %1532
  %1535 = vset.pattern.permute.xlu0 12
  %1536 = vperm.xlu0 %1535, %v51
  %v1537 = vpop.permute.xlu0 %1536
  %1539 = vset.pattern.permute.xlu0 12
  %1540 = vperm.xlu0 %1539, %v52
  %v1541 = vpop.permute.xlu0 %1540
  %v1543 = vlaneseq
  %v1544 = vshrl.u32 %v1543, 7
  %v1545 = vsub.s32 4, %v1544
  %v1546 = vrot.slane %v54, %v1545
  %v1547 = vsub.f32 %v1481, %v1546
  %v1548 = vsub.f32 %v1485, %v1546
  %v1549 = vsub.f32 %v1489, %v1546
  %v1550 = vsub.f32 %v1493, %v1546
  %v1551 = vsub.f32 %v1497, %v1546
  %v1552 = vsub.f32 %v1501, %v1546
  %v1553 = vsub.f32 %v1505, %v1546
  %v1554 = vsub.f32 %v1509, %v1546
  %v1555 = vsub.f32 %v1513, %v1546
  %v1556 = vsub.f32 %v1517, %v1546
  %v1557 = vsub.f32 %v1521, %v1546
  %v1558 = vsub.f32 %v1525, %v1546
  %v1559 = vsub.f32 %v1529, %v1546
  %v1560 = vsub.f32 %v1533, %v1546
  %v1561 = vsub.f32 %v1537, %v1546
  %v1562 = vsub.f32 %v1541, %v1546
  %v1563 = vand.u32 2147483647, %v1547
  %v1564 = vand.u32 2147483647, %v1548
  %v1565 = vand.u32 2147483647, %v1549
  %v1566 = vand.u32 2147483647, %v1550
  %v1567 = vand.u32 2147483647, %v1551
  %v1568 = vand.u32 2147483647, %v1552
  %v1569 = vand.u32 2147483647, %v1553
  %v1570 = vand.u32 2147483647, %v1554
  %v1571 = vand.u32 2147483647, %v1555
  %v1572 = vand.u32 2147483647, %v1556
  %v1573 = vand.u32 2147483647, %v1557
  %v1574 = vand.u32 2147483647, %v1558
  %v1575 = vand.u32 2147483647, %v1559
  %v1576 = vand.u32 2147483647, %v1560
  %v1577 = vand.u32 2147483647, %v1561
  %v1578 = vand.u32 2147483647, %v1562
  %v1579 = vadd.f32 %v1463, %v1563
  %v1580 = vadd.f32 %v1464, %v1564
  %v1581 = vadd.f32 %v1465, %v1565
  %v1582 = vadd.f32 %v1466, %v1566
  %v1583 = vadd.f32 %v1467, %v1567
  %v1584 = vadd.f32 %v1468, %v1568
  %v1585 = vadd.f32 %v1469, %v1569
  %v1586 = vadd.f32 %v1470, %v1570
  %v1587 = vadd.f32 %v1471, %v1571
  %v1588 = vadd.f32 %v1472, %v1572
  %v1589 = vadd.f32 %v1473, %v1573
  %v1590 = vadd.f32 %v1474, %v1574
  %v1591 = vadd.f32 %v1475, %v1575
  %v1592 = vadd.f32 %v1476, %v1576
  %v1593 = vadd.f32 %v1477, %v1577
  %v1594 = vadd.f32 %v1478, %v1578
  %1595 = vset.pattern.permute.xlu0 13
  %1596 = vperm.xlu0 %1595, %v37
  %v1597 = vpop.permute.xlu0 %1596
  %1599 = vset.pattern.permute.xlu0 13
  %1600 = vperm.xlu0 %1599, %v38
  %v1601 = vpop.permute.xlu0 %1600
  %1603 = vset.pattern.permute.xlu0 13
  %1604 = vperm.xlu0 %1603, %v39
  %v1605 = vpop.permute.xlu0 %1604
  %1607 = vset.pattern.permute.xlu0 13
  %1608 = vperm.xlu0 %1607, %v40
  %v1609 = vpop.permute.xlu0 %1608
  %1611 = vset.pattern.permute.xlu0 13
  %1612 = vperm.xlu0 %1611, %v41
  %v1613 = vpop.permute.xlu0 %1612
  %1615 = vset.pattern.permute.xlu0 13
  %1616 = vperm.xlu0 %1615, %v42
  %v1617 = vpop.permute.xlu0 %1616
  %1619 = vset.pattern.permute.xlu0 13
  %1620 = vperm.xlu0 %1619, %v43
  %v1621 = vpop.permute.xlu0 %1620
  %1623 = vset.pattern.permute.xlu0 13
  %1624 = vperm.xlu0 %1623, %v44
  %v1625 = vpop.permute.xlu0 %1624
  %1627 = vset.pattern.permute.xlu0 13
  %1628 = vperm.xlu0 %1627, %v45
  %v1629 = vpop.permute.xlu0 %1628
  %1631 = vset.pattern.permute.xlu0 13
  %1632 = vperm.xlu0 %1631, %v46
  %v1633 = vpop.permute.xlu0 %1632
  %1635 = vset.pattern.permute.xlu0 13
  %1636 = vperm.xlu0 %1635, %v47
  %v1637 = vpop.permute.xlu0 %1636
  %1639 = vset.pattern.permute.xlu0 13
  %1640 = vperm.xlu0 %1639, %v48
  %v1641 = vpop.permute.xlu0 %1640
  %1643 = vset.pattern.permute.xlu0 13
  %1644 = vperm.xlu0 %1643, %v49
  %v1645 = vpop.permute.xlu0 %1644
  %1647 = vset.pattern.permute.xlu0 13
  %1648 = vperm.xlu0 %1647, %v50
  %v1649 = vpop.permute.xlu0 %1648
  %1651 = vset.pattern.permute.xlu0 13
  %1652 = vperm.xlu0 %1651, %v51
  %v1653 = vpop.permute.xlu0 %1652
  %1655 = vset.pattern.permute.xlu0 13
  %1656 = vperm.xlu0 %1655, %v52
  %v1657 = vpop.permute.xlu0 %1656
  %v1659 = vlaneseq
  %v1660 = vshrl.u32 %v1659, 7
  %v1661 = vsub.s32 5, %v1660
  %v1662 = vrot.slane %v54, %v1661
  %v1663 = vsub.f32 %v1597, %v1662
  %v1664 = vsub.f32 %v1601, %v1662
  %v1665 = vsub.f32 %v1605, %v1662
  %v1666 = vsub.f32 %v1609, %v1662
  %v1667 = vsub.f32 %v1613, %v1662
  %v1668 = vsub.f32 %v1617, %v1662
  %v1669 = vsub.f32 %v1621, %v1662
  %v1670 = vsub.f32 %v1625, %v1662
  %v1671 = vsub.f32 %v1629, %v1662
  %v1672 = vsub.f32 %v1633, %v1662
  %v1673 = vsub.f32 %v1637, %v1662
  %v1674 = vsub.f32 %v1641, %v1662
  %v1675 = vsub.f32 %v1645, %v1662
  %v1676 = vsub.f32 %v1649, %v1662
  %v1677 = vsub.f32 %v1653, %v1662
  %v1678 = vsub.f32 %v1657, %v1662
  %v1679 = vand.u32 2147483647, %v1663
  %v1680 = vand.u32 2147483647, %v1664
  %v1681 = vand.u32 2147483647, %v1665
  %v1682 = vand.u32 2147483647, %v1666
  %v1683 = vand.u32 2147483647, %v1667
  %v1684 = vand.u32 2147483647, %v1668
  %v1685 = vand.u32 2147483647, %v1669
  %v1686 = vand.u32 2147483647, %v1670
  %v1687 = vand.u32 2147483647, %v1671
  %v1688 = vand.u32 2147483647, %v1672
  %v1689 = vand.u32 2147483647, %v1673
  %v1690 = vand.u32 2147483647, %v1674
  %v1691 = vand.u32 2147483647, %v1675
  %v1692 = vand.u32 2147483647, %v1676
  %v1693 = vand.u32 2147483647, %v1677
  %v1694 = vand.u32 2147483647, %v1678
  %v1695 = vadd.f32 %v1579, %v1679
  %v1696 = vadd.f32 %v1580, %v1680
  %v1697 = vadd.f32 %v1581, %v1681
  %v1698 = vadd.f32 %v1582, %v1682
  %v1699 = vadd.f32 %v1583, %v1683
  %v1700 = vadd.f32 %v1584, %v1684
  %v1701 = vadd.f32 %v1585, %v1685
  %v1702 = vadd.f32 %v1586, %v1686
  %v1703 = vadd.f32 %v1587, %v1687
  %v1704 = vadd.f32 %v1588, %v1688
  %v1705 = vadd.f32 %v1589, %v1689
  %v1706 = vadd.f32 %v1590, %v1690
  %v1707 = vadd.f32 %v1591, %v1691
  %v1708 = vadd.f32 %v1592, %v1692
  %v1709 = vadd.f32 %v1593, %v1693
  %v1710 = vadd.f32 %v1594, %v1694
  %1711 = vset.pattern.permute.xlu0 14
  %1712 = vperm.xlu0 %1711, %v37
  %v1713 = vpop.permute.xlu0 %1712
  %1715 = vset.pattern.permute.xlu0 14
  %1716 = vperm.xlu0 %1715, %v38
  %v1717 = vpop.permute.xlu0 %1716
  %1719 = vset.pattern.permute.xlu0 14
  %1720 = vperm.xlu0 %1719, %v39
  %v1721 = vpop.permute.xlu0 %1720
  %1723 = vset.pattern.permute.xlu0 14
  %1724 = vperm.xlu0 %1723, %v40
  %v1725 = vpop.permute.xlu0 %1724
  %1727 = vset.pattern.permute.xlu0 14
  %1728 = vperm.xlu0 %1727, %v41
  %v1729 = vpop.permute.xlu0 %1728
  %1731 = vset.pattern.permute.xlu0 14
  %1732 = vperm.xlu0 %1731, %v42
  %v1733 = vpop.permute.xlu0 %1732
  %1735 = vset.pattern.permute.xlu0 14
  %1736 = vperm.xlu0 %1735, %v43
  %v1737 = vpop.permute.xlu0 %1736
  %1739 = vset.pattern.permute.xlu0 14
  %1740 = vperm.xlu0 %1739, %v44
  %v1741 = vpop.permute.xlu0 %1740
  %1743 = vset.pattern.permute.xlu0 14
  %1744 = vperm.xlu0 %1743, %v45
  %v1745 = vpop.permute.xlu0 %1744
  %1747 = vset.pattern.permute.xlu0 14
  %1748 = vperm.xlu0 %1747, %v46
  %v1749 = vpop.permute.xlu0 %1748
  %1751 = vset.pattern.permute.xlu0 14
  %1752 = vperm.xlu0 %1751, %v47
  %v1753 = vpop.permute.xlu0 %1752
  %1755 = vset.pattern.permute.xlu0 14
  %1756 = vperm.xlu0 %1755, %v48
  %v1757 = vpop.permute.xlu0 %1756
  %1759 = vset.pattern.permute.xlu0 14
  %1760 = vperm.xlu0 %1759, %v49
  %v1761 = vpop.permute.xlu0 %1760
  %1763 = vset.pattern.permute.xlu0 14
  %1764 = vperm.xlu0 %1763, %v50
  %v1765 = vpop.permute.xlu0 %1764
  %1767 = vset.pattern.permute.xlu0 14
  %1768 = vperm.xlu0 %1767, %v51
  %v1769 = vpop.permute.xlu0 %1768
  %1771 = vset.pattern.permute.xlu0 14
  %1772 = vperm.xlu0 %1771, %v52
  %v1773 = vpop.permute.xlu0 %1772
  %v1775 = vlaneseq
  %v1776 = vshrl.u32 %v1775, 7
  %v1777 = vsub.s32 6, %v1776
  %v1778 = vrot.slane %v54, %v1777
  %v1779 = vsub.f32 %v1713, %v1778
  %v1780 = vsub.f32 %v1717, %v1778
  %v1781 = vsub.f32 %v1721, %v1778
  %v1782 = vsub.f32 %v1725, %v1778
  %v1783 = vsub.f32 %v1729, %v1778
  %v1784 = vsub.f32 %v1733, %v1778
  %v1785 = vsub.f32 %v1737, %v1778
  %v1786 = vsub.f32 %v1741, %v1778
  %v1787 = vsub.f32 %v1745, %v1778
  %v1788 = vsub.f32 %v1749, %v1778
  %v1789 = vsub.f32 %v1753, %v1778
  %v1790 = vsub.f32 %v1757, %v1778
  %v1791 = vsub.f32 %v1761, %v1778
  %v1792 = vsub.f32 %v1765, %v1778
  %v1793 = vsub.f32 %v1769, %v1778
  %v1794 = vsub.f32 %v1773, %v1778
  %v1795 = vand.u32 2147483647, %v1779
  %v1796 = vand.u32 2147483647, %v1780
  %v1797 = vand.u32 2147483647, %v1781
  %v1798 = vand.u32 2147483647, %v1782
  %v1799 = vand.u32 2147483647, %v1783
  %v1800 = vand.u32 2147483647, %v1784
  %v1801 = vand.u32 2147483647, %v1785
  %v1802 = vand.u32 2147483647, %v1786
  %v1803 = vand.u32 2147483647, %v1787
  %v1804 = vand.u32 2147483647, %v1788
  %v1805 = vand.u32 2147483647, %v1789
  %v1806 = vand.u32 2147483647, %v1790
  %v1807 = vand.u32 2147483647, %v1791
  %v1808 = vand.u32 2147483647, %v1792
  %v1809 = vand.u32 2147483647, %v1793
  %v1810 = vand.u32 2147483647, %v1794
  %v1811 = vadd.f32 %v1695, %v1795
  %v1812 = vadd.f32 %v1696, %v1796
  %v1813 = vadd.f32 %v1697, %v1797
  %v1814 = vadd.f32 %v1698, %v1798
  %v1815 = vadd.f32 %v1699, %v1799
  %v1816 = vadd.f32 %v1700, %v1800
  %v1817 = vadd.f32 %v1701, %v1801
  %v1818 = vadd.f32 %v1702, %v1802
  %v1819 = vadd.f32 %v1703, %v1803
  %v1820 = vadd.f32 %v1704, %v1804
  %v1821 = vadd.f32 %v1705, %v1805
  %v1822 = vadd.f32 %v1706, %v1806
  %v1823 = vadd.f32 %v1707, %v1807
  %v1824 = vadd.f32 %v1708, %v1808
  %v1825 = vadd.f32 %v1709, %v1809
  %v1826 = vadd.f32 %v1710, %v1810
  %1827 = vset.pattern.permute.xlu0 15
  %1828 = vperm.xlu0 %1827, %v37
  %v1829 = vpop.permute.xlu0 %1828
  %1831 = vset.pattern.permute.xlu0 15
  %1832 = vperm.xlu0 %1831, %v38
  %v1833 = vpop.permute.xlu0 %1832
  %1835 = vset.pattern.permute.xlu0 15
  %1836 = vperm.xlu0 %1835, %v39
  %v1837 = vpop.permute.xlu0 %1836
  %1839 = vset.pattern.permute.xlu0 15
  %1840 = vperm.xlu0 %1839, %v40
  %v1841 = vpop.permute.xlu0 %1840
  %1843 = vset.pattern.permute.xlu0 15
  %1844 = vperm.xlu0 %1843, %v41
  %v1845 = vpop.permute.xlu0 %1844
  %1847 = vset.pattern.permute.xlu0 15
  %1848 = vperm.xlu0 %1847, %v42
  %v1849 = vpop.permute.xlu0 %1848
  %1851 = vset.pattern.permute.xlu0 15
  %1852 = vperm.xlu0 %1851, %v43
  %v1853 = vpop.permute.xlu0 %1852
  %1855 = vset.pattern.permute.xlu0 15
  %1856 = vperm.xlu0 %1855, %v44
  %v1857 = vpop.permute.xlu0 %1856
  %1859 = vset.pattern.permute.xlu0 15
  %1860 = vperm.xlu0 %1859, %v45
  %v1861 = vpop.permute.xlu0 %1860
  %1863 = vset.pattern.permute.xlu0 15
  %1864 = vperm.xlu0 %1863, %v46
  %v1865 = vpop.permute.xlu0 %1864
  %1867 = vset.pattern.permute.xlu0 15
  %1868 = vperm.xlu0 %1867, %v47
  %v1869 = vpop.permute.xlu0 %1868
  %1871 = vset.pattern.permute.xlu0 15
  %1872 = vperm.xlu0 %1871, %v48
  %v1873 = vpop.permute.xlu0 %1872
  %1875 = vset.pattern.permute.xlu0 15
  %1876 = vperm.xlu0 %1875, %v49
  %v1877 = vpop.permute.xlu0 %1876
  %1879 = vset.pattern.permute.xlu0 15
  %1880 = vperm.xlu0 %1879, %v50
  %v1881 = vpop.permute.xlu0 %1880
  %1883 = vset.pattern.permute.xlu0 15
  %1884 = vperm.xlu0 %1883, %v51
  %v1885 = vpop.permute.xlu0 %1884
  %1887 = vset.pattern.permute.xlu0 15
  %1888 = vperm.xlu0 %1887, %v52
  %v1889 = vpop.permute.xlu0 %1888
  %v1891 = vlaneseq
  %v1892 = vshrl.u32 %v1891, 7
  %v1893 = vsub.s32 7, %v1892
  %v1894 = vrot.slane %v54, %v1893
  %v1895 = vsub.f32 %v1829, %v1894
  %v1896 = vsub.f32 %v1833, %v1894
  %v1897 = vsub.f32 %v1837, %v1894
  %v1898 = vsub.f32 %v1841, %v1894
  %v1899 = vsub.f32 %v1845, %v1894
  %v1900 = vsub.f32 %v1849, %v1894
  %v1901 = vsub.f32 %v1853, %v1894
  %v1902 = vsub.f32 %v1857, %v1894
  %v1903 = vsub.f32 %v1861, %v1894
  %v1904 = vsub.f32 %v1865, %v1894
  %v1905 = vsub.f32 %v1869, %v1894
  %v1906 = vsub.f32 %v1873, %v1894
  %v1907 = vsub.f32 %v1877, %v1894
  %v1908 = vsub.f32 %v1881, %v1894
  %v1909 = vsub.f32 %v1885, %v1894
  %v1910 = vsub.f32 %v1889, %v1894
  %v1911 = vand.u32 2147483647, %v1895
  %v1912 = vand.u32 2147483647, %v1896
  %v1913 = vand.u32 2147483647, %v1897
  %v1914 = vand.u32 2147483647, %v1898
  %v1915 = vand.u32 2147483647, %v1899
  %v1916 = vand.u32 2147483647, %v1900
  %v1917 = vand.u32 2147483647, %v1901
  %v1918 = vand.u32 2147483647, %v1902
  %v1919 = vand.u32 2147483647, %v1903
  %v1920 = vand.u32 2147483647, %v1904
  %v1921 = vand.u32 2147483647, %v1905
  %v1922 = vand.u32 2147483647, %v1906
  %v1923 = vand.u32 2147483647, %v1907
  %v1924 = vand.u32 2147483647, %v1908
  %v1925 = vand.u32 2147483647, %v1909
  %v1926 = vand.u32 2147483647, %v1910
  %v1927 = vadd.f32 %v1811, %v1911
  %v1928 = vadd.f32 %v1812, %v1912
  %v1929 = vadd.f32 %v1813, %v1913
  %v1930 = vadd.f32 %v1814, %v1914
  %v1931 = vadd.f32 %v1815, %v1915
  %v1932 = vadd.f32 %v1816, %v1916
  %v1933 = vadd.f32 %v1817, %v1917
  %v1934 = vadd.f32 %v1818, %v1918
  %v1935 = vadd.f32 %v1819, %v1919
  %v1936 = vadd.f32 %v1820, %v1920
  %v1937 = vadd.f32 %v1821, %v1921
  %v1938 = vadd.f32 %v1822, %v1922
  %v1939 = vadd.f32 %v1823, %v1923
  %v1940 = vadd.f32 %v1824, %v1924
  %v1941 = vadd.f32 %v1825, %v1925
  %v1942 = vadd.f32 %v1826, %v1926
  %1943 = vst [vmem:[#allocation2] sm:$0xff] %v1927
  %1944 = vst [vmem:[#allocation2 + $0x8] sm:$0xff] %v1928
  %1945 = vst [vmem:[#allocation2 + $0x10] sm:$0xff] %v1929
  %1946 = vst [vmem:[#allocation2 + $0x18] sm:$0xff] %v1930
  %1947 = vst [vmem:[#allocation2 + $0x20] sm:$0xff] %v1931
  %1948 = vst [vmem:[#allocation2 + $0x28] sm:$0xff] %v1932
  %1949 = vst [vmem:[#allocation2 + $0x30] sm:$0xff] %v1933
  %1950 = vst [vmem:[#allocation2 + $0x38] sm:$0xff] %v1934
  %1951 = vst [vmem:[#allocation2 + $0x40] sm:$0xff] %v1935
  %1952 = vst [vmem:[#allocation2 + $0x48] sm:$0xff] %v1936
  %1953 = vst [vmem:[#allocation2 + $0x50] sm:$0xff] %v1937
  %1954 = vst [vmem:[#allocation2 + $0x58] sm:$0xff] %v1938
  %1955 = vst [vmem:[#allocation2 + $0x60] sm:$0xff] %v1939
  %1956 = vst [vmem:[#allocation2 + $0x68] sm:$0xff] %v1940
  %1957 = vst [vmem:[#allocation2 + $0x70] sm:$0xff] %v1941
  %1958 = vst [vmem:[#allocation2 + $0x78] sm:$0xff] %v1942
  // Predicated region
  $region22: #{bottleneck_forward.3} parent=0 // pred_check
    %p1959 = pneg %p17
  $region23: #{bottleneck_forward.3} parent=0 // pred_check_branch
    %1961 = sbr.rel (%p1959) target = $region25
  $region24: #{bottleneck_forward.3} parent=0 // pred_region
    %v1962 = vld [vmem:[#allocation2] sm:$0xff]
    %v1963 = vld [vmem:[#allocation2 + $0x8] sm:$0xff]
    %v1964 = vld [vmem:[#allocation2 + $0x10] sm:$0xff]
    %v1965 = vld [vmem:[#allocation2 + $0x18] sm:$0xff]
    %v1966 = vld [vmem:[#allocation2 + $0x20] sm:$0xff]
    %v1967 = vld [vmem:[#allocation2 + $0x28] sm:$0xff]
    %v1968 = vld [vmem:[#allocation2 + $0x30] sm:$0xff]
    %v1969 = vld [vmem:[#allocation2 + $0x38] sm:$0xff]
    %v1970 = vld [vmem:[#allocation2 + $0x40] sm:$0xff]
    %v1971 = vld [vmem:[#allocation2 + $0x48] sm:$0xff]
    %v1972 = vld [vmem:[#allocation2 + $0x50] sm:$0xff]
    %v1973 = vld [vmem:[#allocation2 + $0x58] sm:$0xff]
    %v1974 = vld [vmem:[#allocation2 + $0x60] sm:$0xff]
    %v1975 = vld [vmem:[#allocation2 + $0x68] sm:$0xff]
    %v1976 = vld [vmem:[#allocation2 + $0x70] sm:$0xff]
    %v1977 = vld [vmem:[#allocation2 + $0x78] sm:$0xff]
    %v1978 = vsub.f32 0.0, %v1962
    %v1979 = vsub.f32 0.0, %v1963
    %v1980 = vsub.f32 0.0, %v1964
    %v1981 = vsub.f32 0.0, %v1965
    %v1982 = vsub.f32 0.0, %v1966
    %v1983 = vsub.f32 0.0, %v1967
    %v1984 = vsub.f32 0.0, %v1968
    %v1985 = vsub.f32 0.0, %v1969
    %v1986 = vsub.f32 0.0, %v1970
    %v1987 = vsub.f32 0.0, %v1971
    %v1988 = vsub.f32 0.0, %v1972
    %v1989 = vsub.f32 0.0, %v1973
    %v1990 = vsub.f32 0.0, %v1974
    %v1991 = vsub.f32 0.0, %v1975
    %v1992 = vsub.f32 0.0, %v1976
    %v1993 = vsub.f32 0.0, %v1977
    %v1994 = vld [vmem:[%s2] sm:$0x1]
    %v1996 = vlaneseq
    %v1997 = vshrl.u32 %v1996, 7
    %v1998 = vsub.s32 0, %v1997
    %v1999 = vrot.slane %v1994, %v1998
    %v2001 = vmul.f32 %v1978, %v1999
    %v2002 = vmul.f32 %v1979, %v1999
    %v2003 = vmul.f32 %v1980, %v1999
    %v2004 = vmul.f32 %v1981, %v1999
    %v2005 = vmul.f32 %v1982, %v1999
    %v2006 = vmul.f32 %v1983, %v1999
    %v2007 = vmul.f32 %v1984, %v1999
    %v2008 = vmul.f32 %v1985, %v1999
    %v2009 = vmul.f32 %v1986, %v1999
    %v2010 = vmul.f32 %v1987, %v1999
    %v2011 = vmul.f32 %v1988, %v1999
    %v2012 = vmul.f32 %v1989, %v1999
    %v2013 = vmul.f32 %v1990, %v1999
    %v2014 = vmul.f32 %v1991, %v1999
    %v2015 = vmul.f32 %v1992, %v1999
    %v2016 = vmul.f32 %v1993, %v1999
    %v2017 = vld [vmem:[%s3] sm:$0x1]
    %v2019 = vlaneseq
    %v2020 = vshrl.u32 %v2019, 7
    %v2021 = vsub.s32 0, %v2020
    %v2022 = vrot.slane %v2017, %v2021
    %v2024 = vadd.f32 %v2001, %v2022
    %v2025 = vadd.f32 %v2002, %v2022
    %v2026 = vadd.f32 %v2003, %v2022
    %v2027 = vadd.f32 %v2004, %v2022
    %v2028 = vadd.f32 %v2005, %v2022
    %v2029 = vadd.f32 %v2006, %v2022
    %v2030 = vadd.f32 %v2007, %v2022
    %v2031 = vadd.f32 %v2008, %v2022
    %v2032 = vadd.f32 %v2009, %v2022
    %v2033 = vadd.f32 %v2010, %v2022
    %v2034 = vadd.f32 %v2011, %v2022
    %v2035 = vadd.f32 %v2012, %v2022
    %v2036 = vadd.f32 %v2013, %v2022
    %v2037 = vadd.f32 %v2014, %v2022
    %v2038 = vadd.f32 %v2015, %v2022
    %v2039 = vadd.f32 %v2016, %v2022
    %v2040 = vmax.f32 %v2024, 0.0
    %v2041 = vmax.f32 %v2025, 0.0
    %v2042 = vmax.f32 %v2026, 0.0
    %v2043 = vmax.f32 %v2027, 0.0
    %v2044 = vmax.f32 %v2028, 0.0
    %v2045 = vmax.f32 %v2029, 0.0
    %v2046 = vmax.f32 %v2030, 0.0
    %v2047 = vmax.f32 %v2031, 0.0
    %v2048 = vmax.f32 %v2032, 0.0
    %v2049 = vmax.f32 %v2033, 0.0
    %v2050 = vmax.f32 %v2034, 0.0
    %v2051 = vmax.f32 %v2035, 0.0
    %v2052 = vmax.f32 %v2036, 0.0
    %v2053 = vmax.f32 %v2037, 0.0
    %v2054 = vmax.f32 %v2038, 0.0
    %v2055 = vmax.f32 %v2039, 0.0
    %2056 = vst [vmem:[%s4] sm:$0xff] %v2040
    %2057 = vst [vmem:[%s4 + $0x8] sm:$0xff] %v2041
    %2058 = vst [vmem:[%s4 + $0x10] sm:$0xff] %v2042
    %2059 = vst [vmem:[%s4 + $0x18] sm:$0xff] %v2043
    %2060 = vst [vmem:[%s4 + $0x20] sm:$0xff] %v2044
    %2061 = vst [vmem:[%s4 + $0x28] sm:$0xff] %v2045
    %2062 = vst [vmem:[%s4 + $0x30] sm:$0xff] %v2046
    %2063 = vst [vmem:[%s4 + $0x38] sm:$0xff] %v2047
    %2064 = vst [vmem:[%s4 + $0x40] sm:$0xff] %v2048
    %2065 = vst [vmem:[%s4 + $0x48] sm:$0xff] %v2049
    %2066 = vst [vmem:[%s4 + $0x50] sm:$0xff] %v2050
    %2067 = vst [vmem:[%s4 + $0x58] sm:$0xff] %v2051
    %2068 = vst [vmem:[%s4 + $0x60] sm:$0xff] %v2052
    %2069 = vst [vmem:[%s4 + $0x68] sm:$0xff] %v2053
    %2070 = vst [vmem:[%s4 + $0x70] sm:$0xff] %v2054
    %2071 = vst [vmem:[%s4 + $0x78] sm:$0xff] %v2055
  $region25: #{bottleneck_forward.3} parent=0 // pred_fallthru
    _
  // Predicated region
  $region26: #{bottleneck_forward.3} parent=0 // pred_check
    _
  $region27: #{bottleneck_forward.3} parent=0 // pred_check_branch
    %2073 = sbr.rel (0) target = $region29
  $region28: #{bottleneck_forward.3} parent=0 // pred_region
    _
  $region29: #{bottleneck_forward.3} parent=0 // pred_fallthru
    _
  // Predicated region
  $region30: #{bottleneck_forward.3} parent=0 // pred_check
    _
  $region31: #{bottleneck_forward.3} parent=0 // pred_check_branch
    %2075 = sbr.rel (0) target = $region33
  $region32: #{bottleneck_forward.3} parent=0 // pred_region
    _
  $region33: #{bottleneck_forward.3} parent=0 // pred_fallthru
    _

// kernel: bottleneck_forward.5
$region0: #{bottleneck_forward.5}
  #allocation0 [shape = 'u32[]', space=smem, size = 0x4, offset = 0x4, fixed_abs, tag = 'smem constant byte address 0x4 - core index']
  #allocation1 [shape = 'u32[144,128]{1,0:T(1,128)}', space=vmem, size = 0x12000, scoped, tag = 'internal scratch']
  #allocation2 [shape = 'f32[128,128]{1,0:T(8,128)}', space=vmem, size = 0x10000, scoped, tag = 'scratch operand']
  %s0 = inlined_call_operand.vmem [shape: f32[128,8], index: 0, kind: input, shape index: {}]
  %s1 = inlined_call_operand.vmem [shape: f32[8,128], index: 1, kind: input, shape index: {}]
  %s2 = inlined_call_operand.vmem [shape: f32[1,128], index: 2, kind: input, shape index: {}]
  %s3 = inlined_call_operand.vmem [shape: f32[1,128], index: 3, kind: input, shape index: {}]
  %s4 = inlined_call_operand.vmem [shape: f32[128,128], index: 4, kind: input, shape index: {}]
  %s5 = inlined_call_operand.hbm [shape: f32[128,128], index: 5, kind: output, shape index: {}]
  %s6 = sld [smem:[#allocation0]]
  $region38: #{bottleneck_forward.5} parent=0
    _
  %s8 = ssub.s32 1, %s6
  %s9 = scalar_select 0, %s8, %s6
  $region1: #{bottleneck_forward.5} parent=0
    #allocation3 [shape = 'u8[65536]{0}', space=vmem, size = 0x10000, scoped, tag = 'output window, operand 0, single buffered']
    #allocation4 [shape = 's32[1]{0}', space=sflag, size = 0x4, scoped, tag = 'scoped memory for bottleneck_forward.5']
    %10 = vsyncpa [#allocation4], 0
    // Predicated region
    $region2: #{bottleneck_forward.5} parent=1 // pred_check
      _
    $region3: #{bottleneck_forward.5} parent=1 // pred_check_branch
      %12 = sbr.rel (0) target = $region5
    $region4: #{bottleneck_forward.5} parent=1 // pred_region
      _
    $region5: #{bottleneck_forward.5} parent=1 // pred_fallthru
      _
    // Predicated region
    $region6: #{bottleneck_forward.5} parent=1 // pred_check
      _
    $region7: #{bottleneck_forward.5} parent=1 // pred_check_branch
      %14 = sbr.rel (0) target = $region9
    $region8: #{bottleneck_forward.5} parent=1 // pred_region
      _
    $region9: #{bottleneck_forward.5} parent=1 // pred_fallthru
      _
    // Predicated region
    $region10: #{bottleneck_forward.5} parent=1 // pred_check
      _
    $region11: #{bottleneck_forward.5} parent=1 // pred_check_branch
      %16 = sbr.rel (0) target = $region13
    $region12: #{bottleneck_forward.5} parent=1 // pred_region
      _
    $region13: #{bottleneck_forward.5} parent=1 // pred_fallthru
      _
    // Predicated region
    $region14: #{bottleneck_forward.5} parent=1 // pred_check
      _
    $region15: #{bottleneck_forward.5} parent=1 // pred_check_branch
      %18 = sbr.rel (0) target = $region17
    $region16: #{bottleneck_forward.5} parent=1 // pred_region
      _
    $region17: #{bottleneck_forward.5} parent=1 // pred_fallthru
      _
    // Predicated region
    $region18: #{bottleneck_forward.5} parent=1 // pred_check
      _
    $region19: #{bottleneck_forward.5} parent=1 // pred_check_branch
      %20 = sbr.rel (0) target = $region21
    $region20: #{bottleneck_forward.5} parent=1 // pred_region
      _
    $region21: #{bottleneck_forward.5} parent=1 // pred_fallthru
      _
    %p21 = scmp.eq.s32.totalorder 0, 0
    // Predicated region
    $region22: #{bottleneck_forward.5} parent=1 // pred_check
      %p22 = pneg %p21
    $region23: #{bottleneck_forward.5} parent=1 // pred_check_branch
      %24 = sbr.rel (%p22) target = $region25
    $region24: #{bottleneck_forward.5} parent=1 // pred_region
      %25 = vst [vmem:[#allocation2] sm:$0xff] 0.0
      %26 = vst [vmem:[#allocation2 + $0x8] sm:$0xff] 0.0
      %27 = vst [vmem:[#allocation2 + $0x10] sm:$0xff] 0.0
      %28 = vst [vmem:[#allocation2 + $0x18] sm:$0xff] 0.0
      %29 = vst [vmem:[#allocation2 + $0x20] sm:$0xff] 0.0
      %30 = vst [vmem:[#allocation2 + $0x28] sm:$0xff] 0.0
      %31 = vst [vmem:[#allocation2 + $0x30] sm:$0xff] 0.0
      %32 = vst [vmem:[#allocation2 + $0x38] sm:$0xff] 0.0
      %33 = vst [vmem:[#allocation2 + $0x40] sm:$0xff] 0.0
      %34 = vst [vmem:[#allocation2 + $0x48] sm:$0xff] 0.0
      %35 = vst [vmem:[#allocation2 + $0x50] sm:$0xff] 0.0
      %36 = vst [vmem:[#allocation2 + $0x58] sm:$0xff] 0.0
      %37 = vst [vmem:[#allocation2 + $0x60] sm:$0xff] 0.0
      %38 = vst [vmem:[#allocation2 + $0x68] sm:$0xff] 0.0
      %39 = vst [vmem:[#allocation2 + $0x70] sm:$0xff] 0.0
      %40 = vst [vmem:[#allocation2 + $0x78] sm:$0xff] 0.0
    $region25: #{bottleneck_forward.5} parent=1 // pred_fallthru
      _
    %v41 = vld [vmem:[%s0] sm:$0xff]
    %v42 = vld [vmem:[%s0 + $0x8] sm:$0xff]
    %v43 = vld [vmem:[%s0 + $0x10] sm:$0xff]
    %v44 = vld [vmem:[%s0 + $0x18] sm:$0xff]
    %v45 = vld [vmem:[%s0 + $0x20] sm:$0xff]
    %v46 = vld [vmem:[%s0 + $0x28] sm:$0xff]
    %v47 = vld [vmem:[%s0 + $0x30] sm:$0xff]
    %v48 = vld [vmem:[%s0 + $0x38] sm:$0xff]
    %v49 = vld [vmem:[%s0 + $0x40] sm:$0xff]
    %v50 = vld [vmem:[%s0 + $0x48] sm:$0xff]
    %v51 = vld [vmem:[%s0 + $0x50] sm:$0xff]
    %v52 = vld [vmem:[%s0 + $0x58] sm:$0xff]
    %v53 = vld [vmem:[%s0 + $0x60] sm:$0xff]
    %v54 = vld [vmem:[%s0 + $0x68] sm:$0xff]
    %v55 = vld [vmem:[%s0 + $0x70] sm:$0xff]
    %v56 = vld [vmem:[%s0 + $0x78] sm:$0xff]
    %v57 = vld [vmem:[%s1] sm:$0xff]
    %v58 = vld [vmem:[#allocation2] sm:$0xff]
    %v59 = vld [vmem:[#allocation2 + $0x8] sm:$0xff]
    %v60 = vld [vmem:[#allocation2 + $0x10] sm:$0xff]
    %v61 = vld [vmem:[#allocation2 + $0x18] sm:$0xff]
    %v62 = vld [vmem:[#allocation2 + $0x20] sm:$0xff]
    %v63 = vld [vmem:[#allocation2 + $0x28] sm:$0xff]
    %v64 = vld [vmem:[#allocation2 + $0x30] sm:$0xff]
    %v65 = vld [vmem:[#allocation2 + $0x38] sm:$0xff]
    %v66 = vld [vmem:[#allocation2 + $0x40] sm:$0xff]
    %v67 = vld [vmem:[#allocation2 + $0x48] sm:$0xff]
    %v68 = vld [vmem:[#allocation2 + $0x50] sm:$0xff]
    %v69 = vld [vmem:[#allocation2 + $0x58] sm:$0xff]
    %v70 = vld [vmem:[#allocation2 + $0x60] sm:$0xff]
    %v71 = vld [vmem:[#allocation2 + $0x68] sm:$0xff]
    %v72 = vld [vmem:[#allocation2 + $0x70] sm:$0xff]
    %v73 = vld [vmem:[#allocation2 + $0x78] sm:$0xff]
    %75 = vset.pattern.permute.xlu0 0
    %76 = vperm.xlu0 %75, %v41
    %v77 = vpop.permute.xlu0 %76
    %80 = vset.pattern.permute.xlu0 0
    %81 = vperm.xlu0 %80, %v42
    %v82 = vpop.permute.xlu0 %81
    %85 = vset.pattern.permute.xlu0 0
    %86 = vperm.xlu0 %85, %v43
    %v87 = vpop.permute.xlu0 %86
    %90 = vset.pattern.permute.xlu0 0
    %91 = vperm.xlu0 %90, %v44
    %v92 = vpop.permute.xlu0 %91
    %95 = vset.pattern.permute.xlu0 0
    %96 = vperm.xlu0 %95, %v45
    %v97 = vpop.permute.xlu0 %96
    %100 = vset.pattern.permute.xlu0 0
    %101 = vperm.xlu0 %100, %v46
    %v102 = vpop.permute.xlu0 %101
    %105 = vset.pattern.permute.xlu0 0
    %106 = vperm.xlu0 %105, %v47
    %v107 = vpop.permute.xlu0 %106
    %110 = vset.pattern.permute.xlu0 0
    %111 = vperm.xlu0 %110, %v48
    %v112 = vpop.permute.xlu0 %111
    %115 = vset.pattern.permute.xlu0 0
    %116 = vperm.xlu0 %115, %v49
    %v117 = vpop.permute.xlu0 %116
    %120 = vset.pattern.permute.xlu0 0
    %121 = vperm.xlu0 %120, %v50
    %v122 = vpop.permute.xlu0 %121
    %125 = vset.pattern.permute.xlu0 0
    %126 = vperm.xlu0 %125, %v51
    %v127 = vpop.permute.xlu0 %126
    %130 = vset.pattern.permute.xlu0 0
    %131 = vperm.xlu0 %130, %v52
    %v132 = vpop.permute.xlu0 %131
    %135 = vset.pattern.permute.xlu0 0
    %136 = vperm.xlu0 %135, %v53
    %v137 = vpop.permute.xlu0 %136
    %140 = vset.pattern.permute.xlu0 0
    %141 = vperm.xlu0 %140, %v54
    %v142 = vpop.permute.xlu0 %141
    %145 = vset.pattern.permute.xlu0 0
    %146 = vperm.xlu0 %145, %v55
    %v147 = vpop.permute.xlu0 %146
    %150 = vset.pattern.permute.xlu0 0
    %151 = vperm.xlu0 %150, %v56
    %v152 = vpop.permute.xlu0 %151
    %v154 = vlaneseq
    %v155 = vshrl.u32 %v154, 7
    %v156 = vsub.s32 0, %v155
    %v157 = vrot.slane %v57, %v156
    %v158 = vsub.f32 %v77, %v157
    %v159 = vsub.f32 %v82, %v157
    %v160 = vsub.f32 %v87, %v157
    %v161 = vsub.f32 %v92, %v157
    %v162 = vsub.f32 %v97, %v157
    %v163 = vsub.f32 %v102, %v157
    %v164 = vsub.f32 %v107, %v157
    %v165 = vsub.f32 %v112, %v157
    %v166 = vsub.f32 %v117, %v157
    %v167 = vsub.f32 %v122, %v157
    %v168 = vsub.f32 %v127, %v157
    %v169 = vsub.f32 %v132, %v157
    %v170 = vsub.f32 %v137, %v157
    %v171 = vsub.f32 %v142, %v157
    %v172 = vsub.f32 %v147, %v157
    %v173 = vsub.f32 %v152, %v157
    %v174 = vand.u32 2147483647, %v158
    %v175 = vand.u32 2147483647, %v159
    %v176 = vand.u32 2147483647, %v160
    %v177 = vand.u32 2147483647, %v161
    %v178 = vand.u32 2147483647, %v162
    %v179 = vand.u32 2147483647, %v163
    %v180 = vand.u32 2147483647, %v164
    %v181 = vand.u32 2147483647, %v165
    %v182 = vand.u32 2147483647, %v166
    %v183 = vand.u32 2147483647, %v167
    %v184 = vand.u32 2147483647, %v168
    %v185 = vand.u32 2147483647, %v169
    %v186 = vand.u32 2147483647, %v170
    %v187 = vand.u32 2147483647, %v171
    %v188 = vand.u32 2147483647, %v172
    %v189 = vand.u32 2147483647, %v173
    %v190 = vadd.f32 %v58, %v174
    %v191 = vadd.f32 %v59, %v175
    %v192 = vadd.f32 %v60, %v176
    %v193 = vadd.f32 %v61, %v177
    %v194 = vadd.f32 %v62, %v178
    %v195 = vadd.f32 %v63, %v179
    %v196 = vadd.f32 %v64, %v180
    %v197 = vadd.f32 %v65, %v181
    %v198 = vadd.f32 %v66, %v182
    %v199 = vadd.f32 %v67, %v183
    %v200 = vadd.f32 %v68, %v184
    %v201 = vadd.f32 %v69, %v185
    %v202 = vadd.f32 %v70, %v186
    %v203 = vadd.f32 %v71, %v187
    %v204 = vadd.f32 %v72, %v188
    %v205 = vadd.f32 %v73, %v189
    %206 = vset.pattern.permute.xlu0 1
    %207 = vperm.xlu0 %206, %v41
    %v208 = vpop.permute.xlu0 %207
    %210 = vset.pattern.permute.xlu0 1
    %211 = vperm.xlu0 %210, %v42
    %v212 = vpop.permute.xlu0 %211
    %214 = vset.pattern.permute.xlu0 1
    %215 = vperm.xlu0 %214, %v43
    %v216 = vpop.permute.xlu0 %215
    %218 = vset.pattern.permute.xlu0 1
    %219 = vperm.xlu0 %218, %v44
    %v220 = vpop.permute.xlu0 %219
    %222 = vset.pattern.permute.xlu0 1
    %223 = vperm.xlu0 %222, %v45
    %v224 = vpop.permute.xlu0 %223
    %226 = vset.pattern.permute.xlu0 1
    %227 = vperm.xlu0 %226, %v46
    %v228 = vpop.permute.xlu0 %227
    %230 = vset.pattern.permute.xlu0 1
    %231 = vperm.xlu0 %230, %v47
    %v232 = vpop.permute.xlu0 %231
    %234 = vset.pattern.permute.xlu0 1
    %235 = vperm.xlu0 %234, %v48
    %v236 = vpop.permute.xlu0 %235
    %238 = vset.pattern.permute.xlu0 1
    %239 = vperm.xlu0 %238, %v49
    %v240 = vpop.permute.xlu0 %239
    %242 = vset.pattern.permute.xlu0 1
    %243 = vperm.xlu0 %242, %v50
    %v244 = vpop.permute.xlu0 %243
    %246 = vset.pattern.permute.xlu0 1
    %247 = vperm.xlu0 %246, %v51
    %v248 = vpop.permute.xlu0 %247
    %250 = vset.pattern.permute.xlu0 1
    %251 = vperm.xlu0 %250, %v52
    %v252 = vpop.permute.xlu0 %251
    %254 = vset.pattern.permute.xlu0 1
    %255 = vperm.xlu0 %254, %v53
    %v256 = vpop.permute.xlu0 %255
    %258 = vset.pattern.permute.xlu0 1
    %259 = vperm.xlu0 %258, %v54
    %v260 = vpop.permute.xlu0 %259
    %262 = vset.pattern.permute.xlu0 1
    %263 = vperm.xlu0 %262, %v55
    %v264 = vpop.permute.xlu0 %263
    %266 = vset.pattern.permute.xlu0 1
    %267 = vperm.xlu0 %266, %v56
    %v268 = vpop.permute.xlu0 %267
    %v270 = vlaneseq
    %v271 = vshrl.u32 %v270, 7
    %v272 = vsub.s32 1, %v271
    %v273 = vrot.slane %v57, %v272
    %v274 = vsub.f32 %v208, %v273
    %v275 = vsub.f32 %v212, %v273
    %v276 = vsub.f32 %v216, %v273
    %v277 = vsub.f32 %v220, %v273
    %v278 = vsub.f32 %v224, %v273
    %v279 = vsub.f32 %v228, %v273
    %v280 = vsub.f32 %v232, %v273
    %v281 = vsub.f32 %v236, %v273
    %v282 = vsub.f32 %v240, %v273
    %v283 = vsub.f32 %v244, %v273
    %v284 = vsub.f32 %v248, %v273
    %v285 = vsub.f32 %v252, %v273
    %v286 = vsub.f32 %v256, %v273
    %v287 = vsub.f32 %v260, %v273
    %v288 = vsub.f32 %v264, %v273
    %v289 = vsub.f32 %v268, %v273
    %v290 = vand.u32 2147483647, %v274
    %v291 = vand.u32 2147483647, %v275
    %v292 = vand.u32 2147483647, %v276
    %v293 = vand.u32 2147483647, %v277
    %v294 = vand.u32 2147483647, %v278
    %v295 = vand.u32 2147483647, %v279
    %v296 = vand.u32 2147483647, %v280
    %v297 = vand.u32 2147483647, %v281
    %v298 = vand.u32 2147483647, %v282
    %v299 = vand.u32 2147483647, %v283
    %v300 = vand.u32 2147483647, %v284
    %v301 = vand.u32 2147483647, %v285
    %v302 = vand.u32 2147483647, %v286
    %v303 = vand.u32 2147483647, %v287
    %v304 = vand.u32 2147483647, %v288
    %v305 = vand.u32 2147483647, %v289
    %v306 = vadd.f32 %v190, %v290
    %v307 = vadd.f32 %v191, %v291
    %v308 = vadd.f32 %v192, %v292
    %v309 = vadd.f32 %v193, %v293
    %v310 = vadd.f32 %v194, %v294
    %v311 = vadd.f32 %v195, %v295
    %v312 = vadd.f32 %v196, %v296
    %v313 = vadd.f32 %v197, %v297
    %v314 = vadd.f32 %v198, %v298
    %v315 = vadd.f32 %v199, %v299
    %v316 = vadd.f32 %v200, %v300
    %v317 = vadd.f32 %v201, %v301
    %v318 = vadd.f32 %v202, %v302
    %v319 = vadd.f32 %v203, %v303
    %v320 = vadd.f32 %v204, %v304
    %v321 = vadd.f32 %v205, %v305
    %322 = vset.pattern.permute.xlu0 2
    %323 = vperm.xlu0 %322, %v41
    %v324 = vpop.permute.xlu0 %323
    %326 = vset.pattern.permute.xlu0 2
    %327 = vperm.xlu0 %326, %v42
    %v328 = vpop.permute.xlu0 %327
    %330 = vset.pattern.permute.xlu0 2
    %331 = vperm.xlu0 %330, %v43
    %v332 = vpop.permute.xlu0 %331
    %334 = vset.pattern.permute.xlu0 2
    %335 = vperm.xlu0 %334, %v44
    %v336 = vpop.permute.xlu0 %335
    %338 = vset.pattern.permute.xlu0 2
    %339 = vperm.xlu0 %338, %v45
    %v340 = vpop.permute.xlu0 %339
    %342 = vset.pattern.permute.xlu0 2
    %343 = vperm.xlu0 %342, %v46
    %v344 = vpop.permute.xlu0 %343
    %346 = vset.pattern.permute.xlu0 2
    %347 = vperm.xlu0 %346, %v47
    %v348 = vpop.permute.xlu0 %347
    %350 = vset.pattern.permute.xlu0 2
    %351 = vperm.xlu0 %350, %v48
    %v352 = vpop.permute.xlu0 %351
    %354 = vset.pattern.permute.xlu0 2
    %355 = vperm.xlu0 %354, %v49
    %v356 = vpop.permute.xlu0 %355
    %358 = vset.pattern.permute.xlu0 2
    %359 = vperm.xlu0 %358, %v50
    %v360 = vpop.permute.xlu0 %359
    %362 = vset.pattern.permute.xlu0 2
    %363 = vperm.xlu0 %362, %v51
    %v364 = vpop.permute.xlu0 %363
    %366 = vset.pattern.permute.xlu0 2
    %367 = vperm.xlu0 %366, %v52
    %v368 = vpop.permute.xlu0 %367
    %370 = vset.pattern.permute.xlu0 2
    %371 = vperm.xlu0 %370, %v53
    %v372 = vpop.permute.xlu0 %371
    %374 = vset.pattern.permute.xlu0 2
    %375 = vperm.xlu0 %374, %v54
    %v376 = vpop.permute.xlu0 %375
    %378 = vset.pattern.permute.xlu0 2
    %379 = vperm.xlu0 %378, %v55
    %v380 = vpop.permute.xlu0 %379
    %382 = vset.pattern.permute.xlu0 2
    %383 = vperm.xlu0 %382, %v56
    %v384 = vpop.permute.xlu0 %383
    %v386 = vlaneseq
    %v387 = vshrl.u32 %v386, 7
    %v388 = vsub.s32 2, %v387
    %v389 = vrot.slane %v57, %v388
    %v390 = vsub.f32 %v324, %v389
    %v391 = vsub.f32 %v328, %v389
    %v392 = vsub.f32 %v332, %v389
    %v393 = vsub.f32 %v336, %v389
    %v394 = vsub.f32 %v340, %v389
    %v395 = vsub.f32 %v344, %v389
    %v396 = vsub.f32 %v348, %v389
    %v397 = vsub.f32 %v352, %v389
    %v398 = vsub.f32 %v356, %v389
    %v399 = vsub.f32 %v360, %v389
    %v400 = vsub.f32 %v364, %v389
    %v401 = vsub.f32 %v368, %v389
    %v402 = vsub.f32 %v372, %v389
    %v403 = vsub.f32 %v376, %v389
    %v404 = vsub.f32 %v380, %v389
    %v405 = vsub.f32 %v384, %v389
    %v406 = vand.u32 2147483647, %v390
    %v407 = vand.u32 2147483647, %v391
    %v408 = vand.u32 2147483647, %v392
    %v409 = vand.u32 2147483647, %v393
    %v410 = vand.u32 2147483647, %v394
    %v411 = vand.u32 2147483647, %v395
    %v412 = vand.u32 2147483647, %v396
    %v413 = vand.u32 2147483647, %v397
    %v414 = vand.u32 2147483647, %v398
    %v415 = vand.u32 2147483647, %v399
    %v416 = vand.u32 2147483647, %v400
    %v417 = vand.u32 2147483647, %v401
    %v418 = vand.u32 2147483647, %v402
    %v419 = vand.u32 2147483647, %v403
    %v420 = vand.u32 2147483647, %v404
    %v421 = vand.u32 2147483647, %v405
    %v422 = vadd.f32 %v306, %v406
    %v423 = vadd.f32 %v307, %v407
    %v424 = vadd.f32 %v308, %v408
    %v425 = vadd.f32 %v309, %v409
    %v426 = vadd.f32 %v310, %v410
    %v427 = vadd.f32 %v311, %v411
    %v428 = vadd.f32 %v312, %v412
    %v429 = vadd.f32 %v313, %v413
    %v430 = vadd.f32 %v314, %v414
    %v431 = vadd.f32 %v315, %v415
    %v432 = vadd.f32 %v316, %v416
    %v433 = vadd.f32 %v317, %v417
    %v434 = vadd.f32 %v318, %v418
    %v435 = vadd.f32 %v319, %v419
    %v436 = vadd.f32 %v320, %v420
    %v437 = vadd.f32 %v321, %v421
    %438 = vset.pattern.permute.xlu0 3
    %439 = vperm.xlu0 %438, %v41
    %v440 = vpop.permute.xlu0 %439
    %442 = vset.pattern.permute.xlu0 3
    %443 = vperm.xlu0 %442, %v42
    %v444 = vpop.permute.xlu0 %443
    %446 = vset.pattern.permute.xlu0 3
    %447 = vperm.xlu0 %446, %v43
    %v448 = vpop.permute.xlu0 %447
    %450 = vset.pattern.permute.xlu0 3
    %451 = vperm.xlu0 %450, %v44
    %v452 = vpop.permute.xlu0 %451
    %454 = vset.pattern.permute.xlu0 3
    %455 = vperm.xlu0 %454, %v45
    %v456 = vpop.permute.xlu0 %455
    %458 = vset.pattern.permute.xlu0 3
    %459 = vperm.xlu0 %458, %v46
    %v460 = vpop.permute.xlu0 %459
    %462 = vset.pattern.permute.xlu0 3
    %463 = vperm.xlu0 %462, %v47
    %v464 = vpop.permute.xlu0 %463
    %466 = vset.pattern.permute.xlu0 3
    %467 = vperm.xlu0 %466, %v48
    %v468 = vpop.permute.xlu0 %467
    %470 = vset.pattern.permute.xlu0 3
    %471 = vperm.xlu0 %470, %v49
    %v472 = vpop.permute.xlu0 %471
    %474 = vset.pattern.permute.xlu0 3
    %475 = vperm.xlu0 %474, %v50
    %v476 = vpop.permute.xlu0 %475
    %478 = vset.pattern.permute.xlu0 3
    %479 = vperm.xlu0 %478, %v51
    %v480 = vpop.permute.xlu0 %479
    %482 = vset.pattern.permute.xlu0 3
    %483 = vperm.xlu0 %482, %v52
    %v484 = vpop.permute.xlu0 %483
    %486 = vset.pattern.permute.xlu0 3
    %487 = vperm.xlu0 %486, %v53
    %v488 = vpop.permute.xlu0 %487
    %490 = vset.pattern.permute.xlu0 3
    %491 = vperm.xlu0 %490, %v54
    %v492 = vpop.permute.xlu0 %491
    %494 = vset.pattern.permute.xlu0 3
    %495 = vperm.xlu0 %494, %v55
    %v496 = vpop.permute.xlu0 %495
    %498 = vset.pattern.permute.xlu0 3
    %499 = vperm.xlu0 %498, %v56
    %v500 = vpop.permute.xlu0 %499
    %v502 = vlaneseq
    %v503 = vshrl.u32 %v502, 7
    %v504 = vsub.s32 3, %v503
    %v505 = vrot.slane %v57, %v504
    %v506 = vsub.f32 %v440, %v505
    %v507 = vsub.f32 %v444, %v505
    %v508 = vsub.f32 %v448, %v505
    %v509 = vsub.f32 %v452, %v505
    %v510 = vsub.f32 %v456, %v505
    %v511 = vsub.f32 %v460, %v505
    %v512 = vsub.f32 %v464, %v505
    %v513 = vsub.f32 %v468, %v505
    %v514 = vsub.f32 %v472, %v505
    %v515 = vsub.f32 %v476, %v505
    %v516 = vsub.f32 %v480, %v505
    %v517 = vsub.f32 %v484, %v505
    %v518 = vsub.f32 %v488, %v505
    %v519 = vsub.f32 %v492, %v505
    %v520 = vsub.f32 %v496, %v505
    %v521 = vsub.f32 %v500, %v505
    %v522 = vand.u32 2147483647, %v506
    %v523 = vand.u32 2147483647, %v507
    %v524 = vand.u32 2147483647, %v508
    %v525 = vand.u32 2147483647, %v509
    %v526 = vand.u32 2147483647, %v510
    %v527 = vand.u32 2147483647, %v511
    %v528 = vand.u32 2147483647, %v512
    %v529 = vand.u32 2147483647, %v513
    %v530 = vand.u32 2147483647, %v514
    %v531 = vand.u32 2147483647, %v515
    %v532 = vand.u32 2147483647, %v516
    %v533 = vand.u32 2147483647, %v517
    %v534 = vand.u32 2147483647, %v518
    %v535 = vand.u32 2147483647, %v519
    %v536 = vand.u32 2147483647, %v520
    %v537 = vand.u32 2147483647, %v521
    %v538 = vadd.f32 %v422, %v522
    %v539 = vadd.f32 %v423, %v523
    %v540 = vadd.f32 %v424, %v524
    %v541 = vadd.f32 %v425, %v525
    %v542 = vadd.f32 %v426, %v526
    %v543 = vadd.f32 %v427, %v527
    %v544 = vadd.f32 %v428, %v528
    %v545 = vadd.f32 %v429, %v529
    %v546 = vadd.f32 %v430, %v530
    %v547 = vadd.f32 %v431, %v531
    %v548 = vadd.f32 %v432, %v532
    %v549 = vadd.f32 %v433, %v533
    %v550 = vadd.f32 %v434, %v534
    %v551 = vadd.f32 %v435, %v535
    %v552 = vadd.f32 %v436, %v536
    %v553 = vadd.f32 %v437, %v537
    %554 = vset.pattern.permute.xlu0 4
    %555 = vperm.xlu0 %554, %v41
    %v556 = vpop.permute.xlu0 %555
    %558 = vset.pattern.permute.xlu0 4
    %559 = vperm.xlu0 %558, %v42
    %v560 = vpop.permute.xlu0 %559
    %562 = vset.pattern.permute.xlu0 4
    %563 = vperm.xlu0 %562, %v43
    %v564 = vpop.permute.xlu0 %563
    %566 = vset.pattern.permute.xlu0 4
    %567 = vperm.xlu0 %566, %v44
    %v568 = vpop.permute.xlu0 %567
    %570 = vset.pattern.permute.xlu0 4
    %571 = vperm.xlu0 %570, %v45
    %v572 = vpop.permute.xlu0 %571
    %574 = vset.pattern.permute.xlu0 4
    %575 = vperm.xlu0 %574, %v46
    %v576 = vpop.permute.xlu0 %575
    %578 = vset.pattern.permute.xlu0 4
    %579 = vperm.xlu0 %578, %v47
    %v580 = vpop.permute.xlu0 %579
    %582 = vset.pattern.permute.xlu0 4
    %583 = vperm.xlu0 %582, %v48
    %v584 = vpop.permute.xlu0 %583
    %586 = vset.pattern.permute.xlu0 4
    %587 = vperm.xlu0 %586, %v49
    %v588 = vpop.permute.xlu0 %587
    %590 = vset.pattern.permute.xlu0 4
    %591 = vperm.xlu0 %590, %v50
    %v592 = vpop.permute.xlu0 %591
    %594 = vset.pattern.permute.xlu0 4
    %595 = vperm.xlu0 %594, %v51
    %v596 = vpop.permute.xlu0 %595
    %598 = vset.pattern.permute.xlu0 4
    %599 = vperm.xlu0 %598, %v52
    %v600 = vpop.permute.xlu0 %599
    %602 = vset.pattern.permute.xlu0 4
    %603 = vperm.xlu0 %602, %v53
    %v604 = vpop.permute.xlu0 %603
    %606 = vset.pattern.permute.xlu0 4
    %607 = vperm.xlu0 %606, %v54
    %v608 = vpop.permute.xlu0 %607
    %610 = vset.pattern.permute.xlu0 4
    %611 = vperm.xlu0 %610, %v55
    %v612 = vpop.permute.xlu0 %611
    %614 = vset.pattern.permute.xlu0 4
    %615 = vperm.xlu0 %614, %v56
    %v616 = vpop.permute.xlu0 %615
    %v618 = vlaneseq
    %v619 = vshrl.u32 %v618, 7
    %v620 = vsub.s32 4, %v619
    %v621 = vrot.slane %v57, %v620
    %v622 = vsub.f32 %v556, %v621
    %v623 = vsub.f32 %v560, %v621
    %v624 = vsub.f32 %v564, %v621
    %v625 = vsub.f32 %v568, %v621
    %v626 = vsub.f32 %v572, %v621
    %v627 = vsub.f32 %v576, %v621
    %v628 = vsub.f32 %v580, %v621
    %v629 = vsub.f32 %v584, %v621
    %v630 = vsub.f32 %v588, %v621
    %v631 = vsub.f32 %v592, %v621
    %v632 = vsub.f32 %v596, %v621
    %v633 = vsub.f32 %v600, %v621
    %v634 = vsub.f32 %v604, %v621
    %v635 = vsub.f32 %v608, %v621
    %v636 = vsub.f32 %v612, %v621
    %v637 = vsub.f32 %v616, %v621
    %v638 = vand.u32 2147483647, %v622
    %v639 = vand.u32 2147483647, %v623
    %v640 = vand.u32 2147483647, %v624
    %v641 = vand.u32 2147483647, %v625
    %v642 = vand.u32 2147483647, %v626
    %v643 = vand.u32 2147483647, %v627
    %v644 = vand.u32 2147483647, %v628
    %v645 = vand.u32 2147483647, %v629
    %v646 = vand.u32 2147483647, %v630
    %v647 = vand.u32 2147483647, %v631
    %v648 = vand.u32 2147483647, %v632
    %v649 = vand.u32 2147483647, %v633
    %v650 = vand.u32 2147483647, %v634
    %v651 = vand.u32 2147483647, %v635
    %v652 = vand.u32 2147483647, %v636
    %v653 = vand.u32 2147483647, %v637
    %v654 = vadd.f32 %v538, %v638
    %v655 = vadd.f32 %v539, %v639
    %v656 = vadd.f32 %v540, %v640
    %v657 = vadd.f32 %v541, %v641
    %v658 = vadd.f32 %v542, %v642
    %v659 = vadd.f32 %v543, %v643
    %v660 = vadd.f32 %v544, %v644
    %v661 = vadd.f32 %v545, %v645
    %v662 = vadd.f32 %v546, %v646
    %v663 = vadd.f32 %v547, %v647
    %v664 = vadd.f32 %v548, %v648
    %v665 = vadd.f32 %v549, %v649
    %v666 = vadd.f32 %v550, %v650
    %v667 = vadd.f32 %v551, %v651
    %v668 = vadd.f32 %v552, %v652
    %v669 = vadd.f32 %v553, %v653
    %670 = vset.pattern.permute.xlu0 5
    %671 = vperm.xlu0 %670, %v41
    %v672 = vpop.permute.xlu0 %671
    %674 = vset.pattern.permute.xlu0 5
    %675 = vperm.xlu0 %674, %v42
    %v676 = vpop.permute.xlu0 %675
    %678 = vset.pattern.permute.xlu0 5
    %679 = vperm.xlu0 %678, %v43
    %v680 = vpop.permute.xlu0 %679
    %682 = vset.pattern.permute.xlu0 5
    %683 = vperm.xlu0 %682, %v44
    %v684 = vpop.permute.xlu0 %683
    %686 = vset.pattern.permute.xlu0 5
    %687 = vperm.xlu0 %686, %v45
    %v688 = vpop.permute.xlu0 %687
    %690 = vset.pattern.permute.xlu0 5
    %691 = vperm.xlu0 %690, %v46
    %v692 = vpop.permute.xlu0 %691
    %694 = vset.pattern.permute.xlu0 5
    %695 = vperm.xlu0 %694, %v47
    %v696 = vpop.permute.xlu0 %695
    %698 = vset.pattern.permute.xlu0 5
    %699 = vperm.xlu0 %698, %v48
    %v700 = vpop.permute.xlu0 %699
    %702 = vset.pattern.permute.xlu0 5
    %703 = vperm.xlu0 %702, %v49
    %v704 = vpop.permute.xlu0 %703
    %706 = vset.pattern.permute.xlu0 5
    %707 = vperm.xlu0 %706, %v50
    %v708 = vpop.permute.xlu0 %707
    %710 = vset.pattern.permute.xlu0 5
    %711 = vperm.xlu0 %710, %v51
    %v712 = vpop.permute.xlu0 %711
    %714 = vset.pattern.permute.xlu0 5
    %715 = vperm.xlu0 %714, %v52
    %v716 = vpop.permute.xlu0 %715
    %718 = vset.pattern.permute.xlu0 5
    %719 = vperm.xlu0 %718, %v53
    %v720 = vpop.permute.xlu0 %719
    %722 = vset.pattern.permute.xlu0 5
    %723 = vperm.xlu0 %722, %v54
    %v724 = vpop.permute.xlu0 %723
    %726 = vset.pattern.permute.xlu0 5
    %727 = vperm.xlu0 %726, %v55
    %v728 = vpop.permute.xlu0 %727
    %730 = vset.pattern.permute.xlu0 5
    %731 = vperm.xlu0 %730, %v56
    %v732 = vpop.permute.xlu0 %731
    %v734 = vlaneseq
    %v735 = vshrl.u32 %v734, 7
    %v736 = vsub.s32 5, %v735
    %v737 = vrot.slane %v57, %v736
    %v738 = vsub.f32 %v672, %v737
    %v739 = vsub.f32 %v676, %v737
    %v740 = vsub.f32 %v680, %v737
    %v741 = vsub.f32 %v684, %v737
    %v742 = vsub.f32 %v688, %v737
    %v743 = vsub.f32 %v692, %v737
    %v744 = vsub.f32 %v696, %v737
    %v745 = vsub.f32 %v700, %v737
    %v746 = vsub.f32 %v704, %v737
    %v747 = vsub.f32 %v708, %v737
    %v748 = vsub.f32 %v712, %v737
    %v749 = vsub.f32 %v716, %v737
    %v750 = vsub.f32 %v720, %v737
    %v751 = vsub.f32 %v724, %v737
    %v752 = vsub.f32 %v728, %v737
    %v753 = vsub.f32 %v732, %v737
    %v754 = vand.u32 2147483647, %v738
    %v755 = vand.u32 2147483647, %v739
    %v756 = vand.u32 2147483647, %v740
    %v757 = vand.u32 2147483647, %v741
    %v758 = vand.u32 2147483647, %v742
    %v759 = vand.u32 2147483647, %v743
    %v760 = vand.u32 2147483647, %v744
    %v761 = vand.u32 2147483647, %v745
    %v762 = vand.u32 2147483647, %v746
    %v763 = vand.u32 2147483647, %v747
    %v764 = vand.u32 2147483647, %v748
    %v765 = vand.u32 2147483647, %v749
    %v766 = vand.u32 2147483647, %v750
    %v767 = vand.u32 2147483647, %v751
    %v768 = vand.u32 2147483647, %v752
    %v769 = vand.u32 2147483647, %v753
    %v770 = vadd.f32 %v654, %v754
    %v771 = vadd.f32 %v655, %v755
    %v772 = vadd.f32 %v656, %v756
    %v773 = vadd.f32 %v657, %v757
    %v774 = vadd.f32 %v658, %v758
    %v775 = vadd.f32 %v659, %v759
    %v776 = vadd.f32 %v660, %v760
    %v777 = vadd.f32 %v661, %v761
    %v778 = vadd.f32 %v662, %v762
    %v779 = vadd.f32 %v663, %v763
    %v780 = vadd.f32 %v664, %v764
    %v781 = vadd.f32 %v665, %v765
    %v782 = vadd.f32 %v666, %v766
    %v783 = vadd.f32 %v667, %v767
    %v784 = vadd.f32 %v668, %v768
    %v785 = vadd.f32 %v669, %v769
    %786 = vset.pattern.permute.xlu0 6
    %787 = vperm.xlu0 %786, %v41
    %v788 = vpop.permute.xlu0 %787
    %790 = vset.pattern.permute.xlu0 6
    %791 = vperm.xlu0 %790, %v42
    %v792 = vpop.permute.xlu0 %791
    %794 = vset.pattern.permute.xlu0 6
    %795 = vperm.xlu0 %794, %v43
    %v796 = vpop.permute.xlu0 %795
    %798 = vset.pattern.permute.xlu0 6
    %799 = vperm.xlu0 %798, %v44
    %v800 = vpop.permute.xlu0 %799
    %802 = vset.pattern.permute.xlu0 6
    %803 = vperm.xlu0 %802, %v45
    %v804 = vpop.permute.xlu0 %803
    %806 = vset.pattern.permute.xlu0 6
    %807 = vperm.xlu0 %806, %v46
    %v808 = vpop.permute.xlu0 %807
    %810 = vset.pattern.permute.xlu0 6
    %811 = vperm.xlu0 %810, %v47
    %v812 = vpop.permute.xlu0 %811
    %814 = vset.pattern.permute.xlu0 6
    %815 = vperm.xlu0 %814, %v48
    %v816 = vpop.permute.xlu0 %815
    %818 = vset.pattern.permute.xlu0 6
    %819 = vperm.xlu0 %818, %v49
    %v820 = vpop.permute.xlu0 %819
    %822 = vset.pattern.permute.xlu0 6
    %823 = vperm.xlu0 %822, %v50
    %v824 = vpop.permute.xlu0 %823
    %826 = vset.pattern.permute.xlu0 6
    %827 = vperm.xlu0 %826, %v51
    %v828 = vpop.permute.xlu0 %827
    %830 = vset.pattern.permute.xlu0 6
    %831 = vperm.xlu0 %830, %v52
    %v832 = vpop.permute.xlu0 %831
    %834 = vset.pattern.permute.xlu0 6
    %835 = vperm.xlu0 %834, %v53
    %v836 = vpop.permute.xlu0 %835
    %838 = vset.pattern.permute.xlu0 6
    %839 = vperm.xlu0 %838, %v54
    %v840 = vpop.permute.xlu0 %839
    %842 = vset.pattern.permute.xlu0 6
    %843 = vperm.xlu0 %842, %v55
    %v844 = vpop.permute.xlu0 %843
    %846 = vset.pattern.permute.xlu0 6
    %847 = vperm.xlu0 %846, %v56
    %v848 = vpop.permute.xlu0 %847
    %v850 = vlaneseq
    %v851 = vshrl.u32 %v850, 7
    %v852 = vsub.s32 6, %v851
    %v853 = vrot.slane %v57, %v852
    %v854 = vsub.f32 %v788, %v853
    %v855 = vsub.f32 %v792, %v853
    %v856 = vsub.f32 %v796, %v853
    %v857 = vsub.f32 %v800, %v853
    %v858 = vsub.f32 %v804, %v853
    %v859 = vsub.f32 %v808, %v853
    %v860 = vsub.f32 %v812, %v853
    %v861 = vsub.f32 %v816, %v853
    %v862 = vsub.f32 %v820, %v853
    %v863 = vsub.f32 %v824, %v853
    %v864 = vsub.f32 %v828, %v853
    %v865 = vsub.f32 %v832, %v853
    %v866 = vsub.f32 %v836, %v853
    %v867 = vsub.f32 %v840, %v853
    %v868 = vsub.f32 %v844, %v853
    %v869 = vsub.f32 %v848, %v853
    %v870 = vand.u32 2147483647, %v854
    %v871 = vand.u32 2147483647, %v855
    %v872 = vand.u32 2147483647, %v856
    %v873 = vand.u32 2147483647, %v857
    %v874 = vand.u32 2147483647, %v858
    %v875 = vand.u32 2147483647, %v859
    %v876 = vand.u32 2147483647, %v860
    %v877 = vand.u32 2147483647, %v861
    %v878 = vand.u32 2147483647, %v862
    %v879 = vand.u32 2147483647, %v863
    %v880 = vand.u32 2147483647, %v864
    %v881 = vand.u32 2147483647, %v865
    %v882 = vand.u32 2147483647, %v866
    %v883 = vand.u32 2147483647, %v867
    %v884 = vand.u32 2147483647, %v868
    %v885 = vand.u32 2147483647, %v869
    %v886 = vadd.f32 %v770, %v870
    %v887 = vadd.f32 %v771, %v871
    %v888 = vadd.f32 %v772, %v872
    %v889 = vadd.f32 %v773, %v873
    %v890 = vadd.f32 %v774, %v874
    %v891 = vadd.f32 %v775, %v875
    %v892 = vadd.f32 %v776, %v876
    %v893 = vadd.f32 %v777, %v877
    %v894 = vadd.f32 %v778, %v878
    %v895 = vadd.f32 %v779, %v879
    %v896 = vadd.f32 %v780, %v880
    %v897 = vadd.f32 %v781, %v881
    %v898 = vadd.f32 %v782, %v882
    %v899 = vadd.f32 %v783, %v883
    %v900 = vadd.f32 %v784, %v884
    %v901 = vadd.f32 %v785, %v885
    %902 = vset.pattern.permute.xlu0 7
    %903 = vperm.xlu0 %902, %v41
    %v904 = vpop.permute.xlu0 %903
    %906 = vset.pattern.permute.xlu0 7
    %907 = vperm.xlu0 %906, %v42
    %v908 = vpop.permute.xlu0 %907
    %910 = vset.pattern.permute.xlu0 7
    %911 = vperm.xlu0 %910, %v43
    %v912 = vpop.permute.xlu0 %911
    %914 = vset.pattern.permute.xlu0 7
    %915 = vperm.xlu0 %914, %v44
    %v916 = vpop.permute.xlu0 %915
    %918 = vset.pattern.permute.xlu0 7
    %919 = vperm.xlu0 %918, %v45
    %v920 = vpop.permute.xlu0 %919
    %922 = vset.pattern.permute.xlu0 7
    %923 = vperm.xlu0 %922, %v46
    %v924 = vpop.permute.xlu0 %923
    %926 = vset.pattern.permute.xlu0 7
    %927 = vperm.xlu0 %926, %v47
    %v928 = vpop.permute.xlu0 %927
    %930 = vset.pattern.permute.xlu0 7
    %931 = vperm.xlu0 %930, %v48
    %v932 = vpop.permute.xlu0 %931
    %934 = vset.pattern.permute.xlu0 7
    %935 = vperm.xlu0 %934, %v49
    %v936 = vpop.permute.xlu0 %935
    %938 = vset.pattern.permute.xlu0 7
    %939 = vperm.xlu0 %938, %v50
    %v940 = vpop.permute.xlu0 %939
    %942 = vset.pattern.permute.xlu0 7
    %943 = vperm.xlu0 %942, %v51
    %v944 = vpop.permute.xlu0 %943
    %946 = vset.pattern.permute.xlu0 7
    %947 = vperm.xlu0 %946, %v52
    %v948 = vpop.permute.xlu0 %947
    %950 = vset.pattern.permute.xlu0 7
    %951 = vperm.xlu0 %950, %v53
    %v952 = vpop.permute.xlu0 %951
    %954 = vset.pattern.permute.xlu0 7
    %955 = vperm.xlu0 %954, %v54
    %v956 = vpop.permute.xlu0 %955
    %958 = vset.pattern.permute.xlu0 7
    %959 = vperm.xlu0 %958, %v55
    %v960 = vpop.permute.xlu0 %959
    %962 = vset.pattern.permute.xlu0 7
    %963 = vperm.xlu0 %962, %v56
    %v964 = vpop.permute.xlu0 %963
    %v966 = vlaneseq
    %v967 = vshrl.u32 %v966, 7
    %v968 = vsub.s32 7, %v967
    %v969 = vrot.slane %v57, %v968
    %v970 = vsub.f32 %v904, %v969
    %v971 = vsub.f32 %v908, %v969
    %v972 = vsub.f32 %v912, %v969
    %v973 = vsub.f32 %v916, %v969
    %v974 = vsub.f32 %v920, %v969
    %v975 = vsub.f32 %v924, %v969
    %v976 = vsub.f32 %v928, %v969
    %v977 = vsub.f32 %v932, %v969
    %v978 = vsub.f32 %v936, %v969
    %v979 = vsub.f32 %v940, %v969
    %v980 = vsub.f32 %v944, %v969
    %v981 = vsub.f32 %v948, %v969
    %v982 = vsub.f32 %v952, %v969
    %v983 = vsub.f32 %v956, %v969
    %v984 = vsub.f32 %v960, %v969
    %v985 = vsub.f32 %v964, %v969
    %v986 = vand.u32 2147483647, %v970
    %v987 = vand.u32 2147483647, %v971
    %v988 = vand.u32 2147483647, %v972
    %v989 = vand.u32 2147483647, %v973
    %v990 = vand.u32 2147483647, %v974
    %v991 = vand.u32 2147483647, %v975
    %v992 = vand.u32 2147483647, %v976
    %v993 = vand.u32 2147483647, %v977
    %v994 = vand.u32 2147483647, %v978
    %v995 = vand.u32 2147483647, %v979
    %v996 = vand.u32 2147483647, %v980
    %v997 = vand.u32 2147483647, %v981
    %v998 = vand.u32 2147483647, %v982
    %v999 = vand.u32 2147483647, %v983
    %v1000 = vand.u32 2147483647, %v984
    %v1001 = vand.u32 2147483647, %v985
    %v1002 = vadd.f32 %v886, %v986
    %v1003 = vadd.f32 %v887, %v987
    %v1004 = vadd.f32 %v888, %v988
    %v1005 = vadd.f32 %v889, %v989
    %v1006 = vadd.f32 %v890, %v990
    %v1007 = vadd.f32 %v891, %v991
    %v1008 = vadd.f32 %v892, %v992
    %v1009 = vadd.f32 %v893, %v993
    %v1010 = vadd.f32 %v894, %v994
    %v1011 = vadd.f32 %v895, %v995
    %v1012 = vadd.f32 %v896, %v996
    %v1013 = vadd.f32 %v897, %v997
    %v1014 = vadd.f32 %v898, %v998
    %v1015 = vadd.f32 %v899, %v999
    %v1016 = vadd.f32 %v900, %v1000
    %v1017 = vadd.f32 %v901, %v1001
    %1018 = vst [vmem:[#allocation2] sm:$0xff] %v1002
    %1019 = vst [vmem:[#allocation2 + $0x8] sm:$0xff] %v1003
    %1020 = vst [vmem:[#allocation2 + $0x10] sm:$0xff] %v1004
    %1021 = vst [vmem:[#allocation2 + $0x18] sm:$0xff] %v1005
    %1022 = vst [vmem:[#allocation2 + $0x20] sm:$0xff] %v1006
    %1023 = vst [vmem:[#allocation2 + $0x28] sm:$0xff] %v1007
    %1024 = vst [vmem:[#allocation2 + $0x30] sm:$0xff] %v1008
    %1025 = vst [vmem:[#allocation2 + $0x38] sm:$0xff] %v1009
    %1026 = vst [vmem:[#allocation2 + $0x40] sm:$0xff] %v1010
    %1027 = vst [vmem:[#allocation2 + $0x48] sm:$0xff] %v1011
    %1028 = vst [vmem:[#allocation2 + $0x50] sm:$0xff] %v1012
    %1029 = vst [vmem:[#allocation2 + $0x58] sm:$0xff] %v1013
    %1030 = vst [vmem:[#allocation2 + $0x60] sm:$0xff] %v1014
    %1031 = vst [vmem:[#allocation2 + $0x68] sm:$0xff] %v1015
    %1032 = vst [vmem:[#allocation2 + $0x70] sm:$0xff] %v1016
    %1033 = vst [vmem:[#allocation2 + $0x78] sm:$0xff] %v1017
    // Predicated region
    $region26: #{bottleneck_forward.5} parent=1 // pred_check
      %p1034 = pneg %p21
    $region27: #{bottleneck_forward.5} parent=1 // pred_check_branch
      %1036 = sbr.rel (%p1034) target = $region29
    $region28: #{bottleneck_forward.5} parent=1 // pred_region
      %v1037 = vld [vmem:[#allocation2] sm:$0xff]
      %v1038 = vld [vmem:[#allocation2 + $0x8] sm:$0xff]
      %v1039 = vld [vmem:[#allocation2 + $0x10] sm:$0xff]
      %v1040 = vld [vmem:[#allocation2 + $0x18] sm:$0xff]
      %v1041 = vld [vmem:[#allocation2 + $0x20] sm:$0xff]
      %v1042 = vld [vmem:[#allocation2 + $0x28] sm:$0xff]
      %v1043 = vld [vmem:[#allocation2 + $0x30] sm:$0xff]
      %v1044 = vld [vmem:[#allocation2 + $0x38] sm:$0xff]
      %v1045 = vld [vmem:[#allocation2 + $0x40] sm:$0xff]
      %v1046 = vld [vmem:[#allocation2 + $0x48] sm:$0xff]
      %v1047 = vld [vmem:[#allocation2 + $0x50] sm:$0xff]
      %v1048 = vld [vmem:[#allocation2 + $0x58] sm:$0xff]
      %v1049 = vld [vmem:[#allocation2 + $0x60] sm:$0xff]
      %v1050 = vld [vmem:[#allocation2 + $0x68] sm:$0xff]
      %v1051 = vld [vmem:[#allocation2 + $0x70] sm:$0xff]
      %v1052 = vld [vmem:[#allocation2 + $0x78] sm:$0xff]
      %v1053 = vsub.f32 0.0, %v1037
      %v1054 = vsub.f32 0.0, %v1038
      %v1055 = vsub.f32 0.0, %v1039
      %v1056 = vsub.f32 0.0, %v1040
      %v1057 = vsub.f32 0.0, %v1041
      %v1058 = vsub.f32 0.0, %v1042
      %v1059 = vsub.f32 0.0, %v1043
      %v1060 = vsub.f32 0.0, %v1044
      %v1061 = vsub.f32 0.0, %v1045
      %v1062 = vsub.f32 0.0, %v1046
      %v1063 = vsub.f32 0.0, %v1047
      %v1064 = vsub.f32 0.0, %v1048
      %v1065 = vsub.f32 0.0, %v1049
      %v1066 = vsub.f32 0.0, %v1050
      %v1067 = vsub.f32 0.0, %v1051
      %v1068 = vsub.f32 0.0, %v1052
      %v1069 = vld [vmem:[%s2] sm:$0x1]
      %v1071 = vlaneseq
      %v1072 = vshrl.u32 %v1071, 7
      %v1073 = vsub.s32 0, %v1072
      %v1074 = vrot.slane %v1069, %v1073
      %v1076 = vmul.f32 %v1053, %v1074
      %v1077 = vmul.f32 %v1054, %v1074
      %v1078 = vmul.f32 %v1055, %v1074
      %v1079 = vmul.f32 %v1056, %v1074
      %v1080 = vmul.f32 %v1057, %v1074
      %v1081 = vmul.f32 %v1058, %v1074
      %v1082 = vmul.f32 %v1059, %v1074
      %v1083 = vmul.f32 %v1060, %v1074
      %v1084 = vmul.f32 %v1061, %v1074
      %v1085 = vmul.f32 %v1062, %v1074
      %v1086 = vmul.f32 %v1063, %v1074
      %v1087 = vmul.f32 %v1064, %v1074
      %v1088 = vmul.f32 %v1065, %v1074
      %v1089 = vmul.f32 %v1066, %v1074
      %v1090 = vmul.f32 %v1067, %v1074
      %v1091 = vmul.f32 %v1068, %v1074
      %v1092 = vld [vmem:[%s3] sm:$0x1]
      %v1094 = vlaneseq
      %v1095 = vshrl.u32 %v1094, 7
      %v1096 = vsub.s32 0, %v1095
      %v1097 = vrot.slane %v1092, %v1096
      %v1099 = vadd.f32 %v1076, %v1097
      %v1100 = vadd.f32 %v1077, %v1097
      %v1101 = vadd.f32 %v1078, %v1097
      %v1102 = vadd.f32 %v1079, %v1097
      %v1103 = vadd.f32 %v1080, %v1097
      %v1104 = vadd.f32 %v1081, %v1097
      %v1105 = vadd.f32 %v1082, %v1097
      %v1106 = vadd.f32 %v1083, %v1097
      %v1107 = vadd.f32 %v1084, %v1097
      %v1108 = vadd.f32 %v1085, %v1097
      %v1109 = vadd.f32 %v1086, %v1097
      %v1110 = vadd.f32 %v1087, %v1097
      %v1111 = vadd.f32 %v1088, %v1097
      %v1112 = vadd.f32 %v1089, %v1097
      %v1113 = vadd.f32 %v1090, %v1097
      %v1114 = vadd.f32 %v1091, %v1097
      %v1115 = vld [vmem:[%s4] sm:$0xff]
      %v1116 = vld [vmem:[%s4 + $0x8] sm:$0xff]
      %v1117 = vld [vmem:[%s4 + $0x10] sm:$0xff]
      %v1118 = vld [vmem:[%s4 + $0x18] sm:$0xff]
      %v1119 = vld [vmem:[%s4 + $0x20] sm:$0xff]
      %v1120 = vld [vmem:[%s4 + $0x28] sm:$0xff]
      %v1121 = vld [vmem:[%s4 + $0x30] sm:$0xff]
      %v1122 = vld [vmem:[%s4 + $0x38] sm:$0xff]
      %v1123 = vld [vmem:[%s4 + $0x40] sm:$0xff]
      %v1124 = vld [vmem:[%s4 + $0x48] sm:$0xff]
      %v1125 = vld [vmem:[%s4 + $0x50] sm:$0xff]
      %v1126 = vld [vmem:[%s4 + $0x58] sm:$0xff]
      %v1127 = vld [vmem:[%s4 + $0x60] sm:$0xff]
      %v1128 = vld [vmem:[%s4 + $0x68] sm:$0xff]
      %v1129 = vld [vmem:[%s4 + $0x70] sm:$0xff]
      %v1130 = vld [vmem:[%s4 + $0x78] sm:$0xff]
      %v1131 = vadd.f32 %v1099, %v1115
      %v1132 = vadd.f32 %v1100, %v1116
      %v1133 = vadd.f32 %v1101, %v1117
      %v1134 = vadd.f32 %v1102, %v1118
      %v1135 = vadd.f32 %v1103, %v1119
      %v1136 = vadd.f32 %v1104, %v1120
      %v1137 = vadd.f32 %v1105, %v1121
      %v1138 = vadd.f32 %v1106, %v1122
      %v1139 = vadd.f32 %v1107, %v1123
      %v1140 = vadd.f32 %v1108, %v1124
      %v1141 = vadd.f32 %v1109, %v1125
      %v1142 = vadd.f32 %v1110, %v1126
      %v1143 = vadd.f32 %v1111, %v1127
      %v1144 = vadd.f32 %v1112, %v1128
      %v1145 = vadd.f32 %v1113, %v1129
      %v1146 = vadd.f32 %v1114, %v1130
      %v1147 = vmax.f32 %v1131, 0.0
      %v1148 = vmax.f32 %v1132, 0.0
      %v1149 = vmax.f32 %v1133, 0.0
      %v1150 = vmax.f32 %v1134, 0.0
      %v1151 = vmax.f32 %v1135, 0.0
      %v1152 = vmax.f32 %v1136, 0.0
      %v1153 = vmax.f32 %v1137, 0.0
      %v1154 = vmax.f32 %v1138, 0.0
      %v1155 = vmax.f32 %v1139, 0.0
      %v1156 = vmax.f32 %v1140, 0.0
      %v1157 = vmax.f32 %v1141, 0.0
      %v1158 = vmax.f32 %v1142, 0.0
      %v1159 = vmax.f32 %v1143, 0.0
      %v1160 = vmax.f32 %v1144, 0.0
      %v1161 = vmax.f32 %v1145, 0.0
      %v1162 = vmax.f32 %v1146, 0.0
      %1163 = vst [vmem:[#allocation3] sm:$0xff] %v1147
      %1164 = vst [vmem:[#allocation3 + $0x8] sm:$0xff] %v1148
      %1165 = vst [vmem:[#allocation3 + $0x10] sm:$0xff] %v1149
      %1166 = vst [vmem:[#allocation3 + $0x18] sm:$0xff] %v1150
      %1167 = vst [vmem:[#allocation3 + $0x20] sm:$0xff] %v1151
      %1168 = vst [vmem:[#allocation3 + $0x28] sm:$0xff] %v1152
      %1169 = vst [vmem:[#allocation3 + $0x30] sm:$0xff] %v1153
      %1170 = vst [vmem:[#allocation3 + $0x38] sm:$0xff] %v1154
      %1171 = vst [vmem:[#allocation3 + $0x40] sm:$0xff] %v1155
      %1172 = vst [vmem:[#allocation3 + $0x48] sm:$0xff] %v1156
      %1173 = vst [vmem:[#allocation3 + $0x50] sm:$0xff] %v1157
      %1174 = vst [vmem:[#allocation3 + $0x58] sm:$0xff] %v1158
      %1175 = vst [vmem:[#allocation3 + $0x60] sm:$0xff] %v1159
      %1176 = vst [vmem:[#allocation3 + $0x68] sm:$0xff] %v1160
      %1177 = vst [vmem:[#allocation3 + $0x70] sm:$0xff] %v1161
      %1178 = vst [vmem:[#allocation3 + $0x78] sm:$0xff] %v1162
    $region29: #{bottleneck_forward.5} parent=1 // pred_fallthru
      _
    // Predicated region
    $region30: #{bottleneck_forward.5} parent=1 // pred_check
      _
    $region31: #{bottleneck_forward.5} parent=1 // pred_check_branch
      %1180 = sbr.rel (0) target = $region33
    $region32: #{bottleneck_forward.5} parent=1 // pred_region
      %s1182 = ssub.s32 2048, 2048
      %1183 = vsyncadd [#allocation4], %s1182
      %s1184 = sshll.u32 [#allocation3], 4
      %s1185 = int_to_ptr.vmem [resolvable:$true] %s1184
      %1190 = dma.vmem_to_hbm [thread:$0]  %s1185, 2048, %s5, [#allocation4], 128, 128, 8
    $region33: #{bottleneck_forward.5} parent=1 // pred_fallthru
      _
    // Predicated region
    $region34: #{bottleneck_forward.5} parent=1 // pred_check
      _
    $region35: #{bottleneck_forward.5} parent=1 // pred_check_branch
      %1192 = sbr.rel (0) target = $region37
    $region36: #{bottleneck_forward.5} parent=1 // pred_region
      %1193 = dma.done [#allocation4], 2048
    $region37: #{bottleneck_forward.5} parent=1 // pred_fallthru
      _
    %1194 = vsyncpa [#allocation4], 1

// kernel: bottleneck_forward.4
$region0: #{bottleneck_forward.4}
  #allocation0 [shape = 'u32[]', space=smem, size = 0x4, offset = 0x4, fixed_abs, tag = 'smem constant byte address 0x4 - core index']
  #allocation1 [shape = 'u32[144,128]{1,0:T(1,128)}', space=vmem, size = 0x12000, scoped, tag = 'internal scratch']
  #allocation2 [shape = 'f32[128,128]{1,0:T(8,128)}', space=vmem, size = 0x10000, scoped, tag = 'scratch operand']
  %s0 = inlined_call_operand.vmem [shape: f32[128,40], index: 0, kind: input, shape index: {}]
  %s1 = inlined_call_operand.vmem [shape: f32[40,128], index: 1, kind: input, shape index: {}]
  %s2 = inlined_call_operand.vmem [shape: f32[1,128], index: 2, kind: input, shape index: {}]
  %s3 = inlined_call_operand.vmem [shape: f32[1,128], index: 3, kind: input, shape index: {}]
  %s4 = inlined_call_operand.vmem [shape: f32[128,128], index: 4, kind: output, shape index: {}]
  %s5 = sld [smem:[#allocation0]]
  $region34: #{bottleneck_forward.4} parent=0
    _
  %s7 = ssub.s32 1, %s5
  %s8 = scalar_select 0, %s7, %s5
  // Predicated region
  $region2: #{bottleneck_forward.4} parent=0 // pred_check
    _
  $region3: #{bottleneck_forward.4} parent=0 // pred_check_branch
    %10 = sbr.rel (0) target = $region5
  $region4: #{bottleneck_forward.4} parent=0 // pred_region
    _
  $region5: #{bottleneck_forward.4} parent=0 // pred_fallthru
    _
  // Predicated region
  $region6: #{bottleneck_forward.4} parent=0 // pred_check
    _
  $region7: #{bottleneck_forward.4} parent=0 // pred_check_branch
    %12 = sbr.rel (0) target = $region9
  $region8: #{bottleneck_forward.4} parent=0 // pred_region
    _
  $region9: #{bottleneck_forward.4} parent=0 // pred_fallthru
    _
  // Predicated region
  $region10: #{bottleneck_forward.4} parent=0 // pred_check
    _
  $region11: #{bottleneck_forward.4} parent=0 // pred_check_branch
    %14 = sbr.rel (0) target = $region13
  $region12: #{bottleneck_forward.4} parent=0 // pred_region
    _
  $region13: #{bottleneck_forward.4} parent=0 // pred_fallthru
    _
  // Predicated region
  $region14: #{bottleneck_forward.4} parent=0 // pred_check
    _
  $region15: #{bottleneck_forward.4} parent=0 // pred_check_branch
    %16 = sbr.rel (0) target = $region17
  $region16: #{bottleneck_forward.4} parent=0 // pred_region
    _
  $region17: #{bottleneck_forward.4} parent=0 // pred_fallthru
    _
  %p17 = scmp.eq.s32.totalorder 0, 0
  // Predicated region
  $region18: #{bottleneck_forward.4} parent=0 // pred_check
    %p18 = pneg %p17
  $region19: #{bottleneck_forward.4} parent=0 // pred_check_branch
    %20 = sbr.rel (%p18) target = $region21
  $region20: #{bottleneck_forward.4} parent=0 // pred_region
    %21 = vst [vmem:[#allocation2] sm:$0xff] 0.0
    %22 = vst [vmem:[#allocation2 + $0x8] sm:$0xff] 0.0
    %23 = vst [vmem:[#allocation2 + $0x10] sm:$0xff] 0.0
    %24 = vst [vmem:[#allocation2 + $0x18] sm:$0xff] 0.0
    %25 = vst [vmem:[#allocation2 + $0x20] sm:$0xff] 0.0
    %26 = vst [vmem:[#allocation2 + $0x28] sm:$0xff] 0.0
    %27 = vst [vmem:[#allocation2 + $0x30] sm:$0xff] 0.0
    %28 = vst [vmem:[#allocation2 + $0x38] sm:$0xff] 0.0
    %29 = vst [vmem:[#allocation2 + $0x40] sm:$0xff] 0.0
    %30 = vst [vmem:[#allocation2 + $0x48] sm:$0xff] 0.0
    %31 = vst [vmem:[#allocation2 + $0x50] sm:$0xff] 0.0
    %32 = vst [vmem:[#allocation2 + $0x58] sm:$0xff] 0.0
    %33 = vst [vmem:[#allocation2 + $0x60] sm:$0xff] 0.0
    %34 = vst [vmem:[#allocation2 + $0x68] sm:$0xff] 0.0
    %35 = vst [vmem:[#allocation2 + $0x70] sm:$0xff] 0.0
    %36 = vst [vmem:[#allocation2 + $0x78] sm:$0xff] 0.0
  $region21: #{bottleneck_forward.4} parent=0 // pred_fallthru
    _
  %v37 = vld [vmem:[%s0] sm:$0xff]
  %v38 = vld [vmem:[%s0 + $0x8] sm:$0xff]
  %v39 = vld [vmem:[%s0 + $0x10] sm:$0xff]
  %v40 = vld [vmem:[%s0 + $0x18] sm:$0xff]
  %v41 = vld [vmem:[%s0 + $0x20] sm:$0xff]
  %v42 = vld [vmem:[%s0 + $0x28] sm:$0xff]
  %v43 = vld [vmem:[%s0 + $0x30] sm:$0xff]
  %v44 = vld [vmem:[%s0 + $0x38] sm:$0xff]
  %v45 = vld [vmem:[%s0 + $0x40] sm:$0xff]
  %v46 = vld [vmem:[%s0 + $0x48] sm:$0xff]
  %v47 = vld [vmem:[%s0 + $0x50] sm:$0xff]
  %v48 = vld [vmem:[%s0 + $0x58] sm:$0xff]
  %v49 = vld [vmem:[%s0 + $0x60] sm:$0xff]
  %v50 = vld [vmem:[%s0 + $0x68] sm:$0xff]
  %v51 = vld [vmem:[%s0 + $0x70] sm:$0xff]
  %v52 = vld [vmem:[%s0 + $0x78] sm:$0xff]
  %v53 = vld [vmem:[%s1] sm:$0xff]
  %v54 = vld [vmem:[%s1 + $0x8] sm:$0xff]
  %v55 = vld [vmem:[%s1 + $0x10] sm:$0xff]
  %v56 = vld [vmem:[%s1 + $0x18] sm:$0xff]
  %v57 = vld [vmem:[%s1 + $0x20] sm:$0xff]
  %v58 = vld [vmem:[#allocation2] sm:$0xff]
  %v59 = vld [vmem:[#allocation2 + $0x8] sm:$0xff]
  %v60 = vld [vmem:[#allocation2 + $0x10] sm:$0xff]
  %v61 = vld [vmem:[#allocation2 + $0x18] sm:$0xff]
  %v62 = vld [vmem:[#allocation2 + $0x20] sm:$0xff]
  %v63 = vld [vmem:[#allocation2 + $0x28] sm:$0xff]
  %v64 = vld [vmem:[#allocation2 + $0x30] sm:$0xff]
  %v65 = vld [vmem:[#allocation2 + $0x38] sm:$0xff]
  %v66 = vld [vmem:[#allocation2 + $0x40] sm:$0xff]
  %v67 = vld [vmem:[#allocation2 + $0x48] sm:$0xff]
  %v68 = vld [vmem:[#allocation2 + $0x50] sm:$0xff]
  %v69 = vld [vmem:[#allocation2 + $0x58] sm:$0xff]
  %v70 = vld [vmem:[#allocation2 + $0x60] sm:$0xff]
  %v71 = vld [vmem:[#allocation2 + $0x68] sm:$0xff]
  %v72 = vld [vmem:[#allocation2 + $0x70] sm:$0xff]
  %v73 = vld [vmem:[#allocation2 + $0x78] sm:$0xff]
  %75 = vset.pattern.permute.xlu0 0
  %76 = vperm.xlu0 %75, %v37
  %v77 = vpop.permute.xlu0 %76
  %80 = vset.pattern.permute.xlu0 0
  %81 = vperm.xlu0 %80, %v38
  %v82 = vpop.permute.xlu0 %81
  %85 = vset.pattern.permute.xlu0 0
  %86 = vperm.xlu0 %85, %v39
  %v87 = vpop.permute.xlu0 %86
  %90 = vset.pattern.permute.xlu0 0
  %91 = vperm.xlu0 %90, %v40
  %v92 = vpop.permute.xlu0 %91
  %95 = vset.pattern.permute.xlu0 0
  %96 = vperm.xlu0 %95, %v41
  %v97 = vpop.permute.xlu0 %96
  %100 = vset.pattern.permute.xlu0 0
  %101 = vperm.xlu0 %100, %v42
  %v102 = vpop.permute.xlu0 %101
  %105 = vset.pattern.permute.xlu0 0
  %106 = vperm.xlu0 %105, %v43
  %v107 = vpop.permute.xlu0 %106
  %110 = vset.pattern.permute.xlu0 0
  %111 = vperm.xlu0 %110, %v44
  %v112 = vpop.permute.xlu0 %111
  %115 = vset.pattern.permute.xlu0 0
  %116 = vperm.xlu0 %115, %v45
  %v117 = vpop.permute.xlu0 %116
  %120 = vset.pattern.permute.xlu0 0
  %121 = vperm.xlu0 %120, %v46
  %v122 = vpop.permute.xlu0 %121
  %125 = vset.pattern.permute.xlu0 0
  %126 = vperm.xlu0 %125, %v47
  %v127 = vpop.permute.xlu0 %126
  %130 = vset.pattern.permute.xlu0 0
  %131 = vperm.xlu0 %130, %v48
  %v132 = vpop.permute.xlu0 %131
  %135 = vset.pattern.permute.xlu0 0
  %136 = vperm.xlu0 %135, %v49
  %v137 = vpop.permute.xlu0 %136
  %140 = vset.pattern.permute.xlu0 0
  %141 = vperm.xlu0 %140, %v50
  %v142 = vpop.permute.xlu0 %141
  %145 = vset.pattern.permute.xlu0 0
  %146 = vperm.xlu0 %145, %v51
  %v147 = vpop.permute.xlu0 %146
  %150 = vset.pattern.permute.xlu0 0
  %151 = vperm.xlu0 %150, %v52
  %v152 = vpop.permute.xlu0 %151
  %v154 = vlaneseq
  %v155 = vshrl.u32 %v154, 7
  %v156 = vsub.s32 0, %v155
  %v157 = vrot.slane %v53, %v156
  %v158 = vsub.f32 %v77, %v157
  %v159 = vsub.f32 %v82, %v157
  %v160 = vsub.f32 %v87, %v157
  %v161 = vsub.f32 %v92, %v157
  %v162 = vsub.f32 %v97, %v157
  %v163 = vsub.f32 %v102, %v157
  %v164 = vsub.f32 %v107, %v157
  %v165 = vsub.f32 %v112, %v157
  %v166 = vsub.f32 %v117, %v157
  %v167 = vsub.f32 %v122, %v157
  %v168 = vsub.f32 %v127, %v157
  %v169 = vsub.f32 %v132, %v157
  %v170 = vsub.f32 %v137, %v157
  %v171 = vsub.f32 %v142, %v157
  %v172 = vsub.f32 %v147, %v157
  %v173 = vsub.f32 %v152, %v157
  %v174 = vand.u32 2147483647, %v158
  %v175 = vand.u32 2147483647, %v159
  %v176 = vand.u32 2147483647, %v160
  %v177 = vand.u32 2147483647, %v161
  %v178 = vand.u32 2147483647, %v162
  %v179 = vand.u32 2147483647, %v163
  %v180 = vand.u32 2147483647, %v164
  %v181 = vand.u32 2147483647, %v165
  %v182 = vand.u32 2147483647, %v166
  %v183 = vand.u32 2147483647, %v167
  %v184 = vand.u32 2147483647, %v168
  %v185 = vand.u32 2147483647, %v169
  %v186 = vand.u32 2147483647, %v170
  %v187 = vand.u32 2147483647, %v171
  %v188 = vand.u32 2147483647, %v172
  %v189 = vand.u32 2147483647, %v173
  %v190 = vadd.f32 %v58, %v174
  %v191 = vadd.f32 %v59, %v175
  %v192 = vadd.f32 %v60, %v176
  %v193 = vadd.f32 %v61, %v177
  %v194 = vadd.f32 %v62, %v178
  %v195 = vadd.f32 %v63, %v179
  %v196 = vadd.f32 %v64, %v180
  %v197 = vadd.f32 %v65, %v181
  %v198 = vadd.f32 %v66, %v182
  %v199 = vadd.f32 %v67, %v183
  %v200 = vadd.f32 %v68, %v184
  %v201 = vadd.f32 %v69, %v185
  %v202 = vadd.f32 %v70, %v186
  %v203 = vadd.f32 %v71, %v187
  %v204 = vadd.f32 %v72, %v188
  %v205 = vadd.f32 %v73, %v189
  %206 = vset.pattern.permute.xlu0 1
  %207 = vperm.xlu0 %206, %v37
  %v208 = vpop.permute.xlu0 %207
  %210 = vset.pattern.permute.xlu0 1
  %211 = vperm.xlu0 %210, %v38
  %v212 = vpop.permute.xlu0 %211
  %214 = vset.pattern.permute.xlu0 1
  %215 = vperm.xlu0 %214, %v39
  %v216 = vpop.permute.xlu0 %215
  %218 = vset.pattern.permute.xlu0 1
  %219 = vperm.xlu0 %218, %v40
  %v220 = vpop.permute.xlu0 %219
  %222 = vset.pattern.permute.xlu0 1
  %223 = vperm.xlu0 %222, %v41
  %v224 = vpop.permute.xlu0 %223
  %226 = vset.pattern.permute.xlu0 1
  %227 = vperm.xlu0 %226, %v42
  %v228 = vpop.permute.xlu0 %227
  %230 = vset.pattern.permute.xlu0 1
  %231 = vperm.xlu0 %230, %v43
  %v232 = vpop.permute.xlu0 %231
  %234 = vset.pattern.permute.xlu0 1
  %235 = vperm.xlu0 %234, %v44
  %v236 = vpop.permute.xlu0 %235
  %238 = vset.pattern.permute.xlu0 1
  %239 = vperm.xlu0 %238, %v45
  %v240 = vpop.permute.xlu0 %239
  %242 = vset.pattern.permute.xlu0 1
  %243 = vperm.xlu0 %242, %v46
  %v244 = vpop.permute.xlu0 %243
  %246 = vset.pattern.permute.xlu0 1
  %247 = vperm.xlu0 %246, %v47
  %v248 = vpop.permute.xlu0 %247
  %250 = vset.pattern.permute.xlu0 1
  %251 = vperm.xlu0 %250, %v48
  %v252 = vpop.permute.xlu0 %251
  %254 = vset.pattern.permute.xlu0 1
  %255 = vperm.xlu0 %254, %v49
  %v256 = vpop.permute.xlu0 %255
  %258 = vset.pattern.permute.xlu0 1
  %259 = vperm.xlu0 %258, %v50
  %v260 = vpop.permute.xlu0 %259
  %262 = vset.pattern.permute.xlu0 1
  %263 = vperm.xlu0 %262, %v51
  %v264 = vpop.permute.xlu0 %263
  %266 = vset.pattern.permute.xlu0 1
  %267 = vperm.xlu0 %266, %v52
  %v268 = vpop.permute.xlu0 %267
  %v270 = vlaneseq
  %v271 = vshrl.u32 %v270, 7
  %v272 = vsub.s32 1, %v271
  %v273 = vrot.slane %v53, %v272
  %v274 = vsub.f32 %v208, %v273
  %v275 = vsub.f32 %v212, %v273
  %v276 = vsub.f32 %v216, %v273
  %v277 = vsub.f32 %v220, %v273
  %v278 = vsub.f32 %v224, %v273
  %v279 = vsub.f32 %v228, %v273
  %v280 = vsub.f32 %v232, %v273
  %v281 = vsub.f32 %v236, %v273
  %v282 = vsub.f32 %v240, %v273
  %v283 = vsub.f32 %v244, %v273
  %v284 = vsub.f32 %v248, %v273
  %v285 = vsub.f32 %v252, %v273
  %v286 = vsub.f32 %v256, %v273
  %v287 = vsub.f32 %v260, %v273
  %v288 = vsub.f32 %v264, %v273
  %v289 = vsub.f32 %v268, %v273
  %v290 = vand.u32 2147483647, %v274
  %v291 = vand.u32 2147483647, %v275
  %v292 = vand.u32 2147483647, %v276
  %v293 = vand.u32 2147483647, %v277
  %v294 = vand.u32 2147483647, %v278
  %v295 = vand.u32 2147483647, %v279
  %v296 = vand.u32 2147483647, %v280
  %v297 = vand.u32 2147483647, %v281
  %v298 = vand.u32 2147483647, %v282
  %v299 = vand.u32 2147483647, %v283
  %v300 = vand.u32 2147483647, %v284
  %v301 = vand.u32 2147483647, %v285
  %v302 = vand.u32 2147483647, %v286
  %v303 = vand.u32 2147483647, %v287
  %v304 = vand.u32 2147483647, %v288
  %v305 = vand.u32 2147483647, %v289
  %v306 = vadd.f32 %v190, %v290
  %v307 = vadd.f32 %v191, %v291
  %v308 = vadd.f32 %v192, %v292
  %v309 = vadd.f32 %v193, %v293
  %v310 = vadd.f32 %v194, %v294
  %v311 = vadd.f32 %v195, %v295
  %v312 = vadd.f32 %v196, %v296
  %v313 = vadd.f32 %v197, %v297
  %v314 = vadd.f32 %v198, %v298
  %v315 = vadd.f32 %v199, %v299
  %v316 = vadd.f32 %v200, %v300
  %v317 = vadd.f32 %v201, %v301
  %v318 = vadd.f32 %v202, %v302
  %v319 = vadd.f32 %v203, %v303
  %v320 = vadd.f32 %v204, %v304
  %v321 = vadd.f32 %v205, %v305
  %322 = vset.pattern.permute.xlu0 2
  %323 = vperm.xlu0 %322, %v37
  %v324 = vpop.permute.xlu0 %323
  %326 = vset.pattern.permute.xlu0 2
  %327 = vperm.xlu0 %326, %v38
  %v328 = vpop.permute.xlu0 %327
  %330 = vset.pattern.permute.xlu0 2
  %331 = vperm.xlu0 %330, %v39
  %v332 = vpop.permute.xlu0 %331
  %334 = vset.pattern.permute.xlu0 2
  %335 = vperm.xlu0 %334, %v40
  %v336 = vpop.permute.xlu0 %335
  %338 = vset.pattern.permute.xlu0 2
  %339 = vperm.xlu0 %338, %v41
  %v340 = vpop.permute.xlu0 %339
  %342 = vset.pattern.permute.xlu0 2
  %343 = vperm.xlu0 %342, %v42
  %v344 = vpop.permute.xlu0 %343
  %346 = vset.pattern.permute.xlu0 2
  %347 = vperm.xlu0 %346, %v43
  %v348 = vpop.permute.xlu0 %347
  %350 = vset.pattern.permute.xlu0 2
  %351 = vperm.xlu0 %350, %v44
  %v352 = vpop.permute.xlu0 %351
  %354 = vset.pattern.permute.xlu0 2
  %355 = vperm.xlu0 %354, %v45
  %v356 = vpop.permute.xlu0 %355
  %358 = vset.pattern.permute.xlu0 2
  %359 = vperm.xlu0 %358, %v46
  %v360 = vpop.permute.xlu0 %359
  %362 = vset.pattern.permute.xlu0 2
  %363 = vperm.xlu0 %362, %v47
  %v364 = vpop.permute.xlu0 %363
  %366 = vset.pattern.permute.xlu0 2
  %367 = vperm.xlu0 %366, %v48
  %v368 = vpop.permute.xlu0 %367
  %370 = vset.pattern.permute.xlu0 2
  %371 = vperm.xlu0 %370, %v49
  %v372 = vpop.permute.xlu0 %371
  %374 = vset.pattern.permute.xlu0 2
  %375 = vperm.xlu0 %374, %v50
  %v376 = vpop.permute.xlu0 %375
  %378 = vset.pattern.permute.xlu0 2
  %379 = vperm.xlu0 %378, %v51
  %v380 = vpop.permute.xlu0 %379
  %382 = vset.pattern.permute.xlu0 2
  %383 = vperm.xlu0 %382, %v52
  %v384 = vpop.permute.xlu0 %383
  %v386 = vlaneseq
  %v387 = vshrl.u32 %v386, 7
  %v388 = vsub.s32 2, %v387
  %v389 = vrot.slane %v53, %v388
  %v390 = vsub.f32 %v324, %v389
  %v391 = vsub.f32 %v328, %v389
  %v392 = vsub.f32 %v332, %v389
  %v393 = vsub.f32 %v336, %v389
  %v394 = vsub.f32 %v340, %v389
  %v395 = vsub.f32 %v344, %v389
  %v396 = vsub.f32 %v348, %v389
  %v397 = vsub.f32 %v352, %v389
  %v398 = vsub.f32 %v356, %v389
  %v399 = vsub.f32 %v360, %v389
  %v400 = vsub.f32 %v364, %v389
  %v401 = vsub.f32 %v368, %v389
  %v402 = vsub.f32 %v372, %v389
  %v403 = vsub.f32 %v376, %v389
  %v404 = vsub.f32 %v380, %v389
  %v405 = vsub.f32 %v384, %v389
  %v406 = vand.u32 2147483647, %v390
  %v407 = vand.u32 2147483647, %v391
  %v408 = vand.u32 2147483647, %v392
  %v409 = vand.u32 2147483647, %v393
  %v410 = vand.u32 2147483647, %v394
  %v411 = vand.u32 2147483647, %v395
  %v412 = vand.u32 2147483647, %v396
  %v413 = vand.u32 2147483647, %v397
  %v414 = vand.u32 2147483647, %v398
  %v415 = vand.u32 2147483647, %v399
  %v416 = vand.u32 2147483647, %v400
  %v417 = vand.u32 2147483647, %v401
  %v418 = vand.u32 2147483647, %v402
  %v419 = vand.u32 2147483647, %v403
  %v420 = vand.u32 2147483647, %v404
  %v421 = vand.u32 2147483647, %v405
  %v422 = vadd.f32 %v306, %v406
  %v423 = vadd.f32 %v307, %v407
  %v424 = vadd.f32 %v308, %v408
  %v425 = vadd.f32 %v309, %v409
  %v426 = vadd.f32 %v310, %v410
  %v427 = vadd.f32 %v311, %v411
  %v428 = vadd.f32 %v312, %v412
  %v429 = vadd.f32 %v313, %v413
  %v430 = vadd.f32 %v314, %v414
  %v431 = vadd.f32 %v315, %v415
  %v432 = vadd.f32 %v316, %v416
  %v433 = vadd.f32 %v317, %v417
  %v434 = vadd.f32 %v318, %v418
  %v435 = vadd.f32 %v319, %v419
  %v436 = vadd.f32 %v320, %v420
  %v437 = vadd.f32 %v321, %v421
  %438 = vset.pattern.permute.xlu0 3
  %439 = vperm.xlu0 %438, %v37
  %v440 = vpop.permute.xlu0 %439
  %442 = vset.pattern.permute.xlu0 3
  %443 = vperm.xlu0 %442, %v38
  %v444 = vpop.permute.xlu0 %443
  %446 = vset.pattern.permute.xlu0 3
  %447 = vperm.xlu0 %446, %v39
  %v448 = vpop.permute.xlu0 %447
  %450 = vset.pattern.permute.xlu0 3
  %451 = vperm.xlu0 %450, %v40
  %v452 = vpop.permute.xlu0 %451
  %454 = vset.pattern.permute.xlu0 3
  %455 = vperm.xlu0 %454, %v41
  %v456 = vpop.permute.xlu0 %455
  %458 = vset.pattern.permute.xlu0 3
  %459 = vperm.xlu0 %458, %v42
  %v460 = vpop.permute.xlu0 %459
  %462 = vset.pattern.permute.xlu0 3
  %463 = vperm.xlu0 %462, %v43
  %v464 = vpop.permute.xlu0 %463
  %466 = vset.pattern.permute.xlu0 3
  %467 = vperm.xlu0 %466, %v44
  %v468 = vpop.permute.xlu0 %467
  %470 = vset.pattern.permute.xlu0 3
  %471 = vperm.xlu0 %470, %v45
  %v472 = vpop.permute.xlu0 %471
  %474 = vset.pattern.permute.xlu0 3
  %475 = vperm.xlu0 %474, %v46
  %v476 = vpop.permute.xlu0 %475
  %478 = vset.pattern.permute.xlu0 3
  %479 = vperm.xlu0 %478, %v47
  %v480 = vpop.permute.xlu0 %479
  %482 = vset.pattern.permute.xlu0 3
  %483 = vperm.xlu0 %482, %v48
  %v484 = vpop.permute.xlu0 %483
  %486 = vset.pattern.permute.xlu0 3
  %487 = vperm.xlu0 %486, %v49
  %v488 = vpop.permute.xlu0 %487
  %490 = vset.pattern.permute.xlu0 3
  %491 = vperm.xlu0 %490, %v50
  %v492 = vpop.permute.xlu0 %491
  %494 = vset.pattern.permute.xlu0 3
  %495 = vperm.xlu0 %494, %v51
  %v496 = vpop.permute.xlu0 %495
  %498 = vset.pattern.permute.xlu0 3
  %499 = vperm.xlu0 %498, %v52
  %v500 = vpop.permute.xlu0 %499
  %v502 = vlaneseq
  %v503 = vshrl.u32 %v502, 7
  %v504 = vsub.s32 3, %v503
  %v505 = vrot.slane %v53, %v504
  %v506 = vsub.f32 %v440, %v505
  %v507 = vsub.f32 %v444, %v505
  %v508 = vsub.f32 %v448, %v505
  %v509 = vsub.f32 %v452, %v505
  %v510 = vsub.f32 %v456, %v505
  %v511 = vsub.f32 %v460, %v505
  %v512 = vsub.f32 %v464, %v505
  %v513 = vsub.f32 %v468, %v505
  %v514 = vsub.f32 %v472, %v505
  %v515 = vsub.f32 %v476, %v505
  %v516 = vsub.f32 %v480, %v505
  %v517 = vsub.f32 %v484, %v505
  %v518 = vsub.f32 %v488, %v505
  %v519 = vsub.f32 %v492, %v505
  %v520 = vsub.f32 %v496, %v505
  %v521 = vsub.f32 %v500, %v505
  %v522 = vand.u32 2147483647, %v506
  %v523 = vand.u32 2147483647, %v507
  %v524 = vand.u32 2147483647, %v508
  %v525 = vand.u32 2147483647, %v509
  %v526 = vand.u32 2147483647, %v510
  %v527 = vand.u32 2147483647, %v511
  %v528 = vand.u32 2147483647, %v512
  %v529 = vand.u32 2147483647, %v513
  %v530 = vand.u32 2147483647, %v514
  %v531 = vand.u32 2147483647, %v515
  %v532 = vand.u32 2147483647, %v516
  %v533 = vand.u32 2147483647, %v517
  %v534 = vand.u32 2147483647, %v518
  %v535 = vand.u32 2147483647, %v519
  %v536 = vand.u32 2147483647, %v520
  %v537 = vand.u32 2147483647, %v521
  %v538 = vadd.f32 %v422, %v522
  %v539 = vadd.f32 %v423, %v523
  %v540 = vadd.f32 %v424, %v524
  %v541 = vadd.f32 %v425, %v525
  %v542 = vadd.f32 %v426, %v526
  %v543 = vadd.f32 %v427, %v527
  %v544 = vadd.f32 %v428, %v528
  %v545 = vadd.f32 %v429, %v529
  %v546 = vadd.f32 %v430, %v530
  %v547 = vadd.f32 %v431, %v531
  %v548 = vadd.f32 %v432, %v532
  %v549 = vadd.f32 %v433, %v533
  %v550 = vadd.f32 %v434, %v534
  %v551 = vadd.f32 %v435, %v535
  %v552 = vadd.f32 %v436, %v536
  %v553 = vadd.f32 %v437, %v537
  %554 = vset.pattern.permute.xlu0 4
  %555 = vperm.xlu0 %554, %v37
  %v556 = vpop.permute.xlu0 %555
  %558 = vset.pattern.permute.xlu0 4
  %559 = vperm.xlu0 %558, %v38
  %v560 = vpop.permute.xlu0 %559
  %562 = vset.pattern.permute.xlu0 4
  %563 = vperm.xlu0 %562, %v39
  %v564 = vpop.permute.xlu0 %563
  %566 = vset.pattern.permute.xlu0 4
  %567 = vperm.xlu0 %566, %v40
  %v568 = vpop.permute.xlu0 %567
  %570 = vset.pattern.permute.xlu0 4
  %571 = vperm.xlu0 %570, %v41
  %v572 = vpop.permute.xlu0 %571
  %574 = vset.pattern.permute.xlu0 4
  %575 = vperm.xlu0 %574, %v42
  %v576 = vpop.permute.xlu0 %575
  %578 = vset.pattern.permute.xlu0 4
  %579 = vperm.xlu0 %578, %v43
  %v580 = vpop.permute.xlu0 %579
  %582 = vset.pattern.permute.xlu0 4
  %583 = vperm.xlu0 %582, %v44
  %v584 = vpop.permute.xlu0 %583
  %586 = vset.pattern.permute.xlu0 4
  %587 = vperm.xlu0 %586, %v45
  %v588 = vpop.permute.xlu0 %587
  %590 = vset.pattern.permute.xlu0 4
  %591 = vperm.xlu0 %590, %v46
  %v592 = vpop.permute.xlu0 %591
  %594 = vset.pattern.permute.xlu0 4
  %595 = vperm.xlu0 %594, %v47
  %v596 = vpop.permute.xlu0 %595
  %598 = vset.pattern.permute.xlu0 4
  %599 = vperm.xlu0 %598, %v48
  %v600 = vpop.permute.xlu0 %599
  %602 = vset.pattern.permute.xlu0 4
  %603 = vperm.xlu0 %602, %v49
  %v604 = vpop.permute.xlu0 %603
  %606 = vset.pattern.permute.xlu0 4
  %607 = vperm.xlu0 %606, %v50
  %v608 = vpop.permute.xlu0 %607
  %610 = vset.pattern.permute.xlu0 4
  %611 = vperm.xlu0 %610, %v51
  %v612 = vpop.permute.xlu0 %611
  %614 = vset.pattern.permute.xlu0 4
  %615 = vperm.xlu0 %614, %v52
  %v616 = vpop.permute.xlu0 %615
  %v618 = vlaneseq
  %v619 = vshrl.u32 %v618, 7
  %v620 = vsub.s32 4, %v619
  %v621 = vrot.slane %v53, %v620
  %v622 = vsub.f32 %v556, %v621
  %v623 = vsub.f32 %v560, %v621
  %v624 = vsub.f32 %v564, %v621
  %v625 = vsub.f32 %v568, %v621
  %v626 = vsub.f32 %v572, %v621
  %v627 = vsub.f32 %v576, %v621
  %v628 = vsub.f32 %v580, %v621
  %v629 = vsub.f32 %v584, %v621
  %v630 = vsub.f32 %v588, %v621
  %v631 = vsub.f32 %v592, %v621
  %v632 = vsub.f32 %v596, %v621
  %v633 = vsub.f32 %v600, %v621
  %v634 = vsub.f32 %v604, %v621
  %v635 = vsub.f32 %v608, %v621
  %v636 = vsub.f32 %v612, %v621
  %v637 = vsub.f32 %v616, %v621
  %v638 = vand.u32 2147483647, %v622
  %v639 = vand.u32 2147483647, %v623
  %v640 = vand.u32 2147483647, %v624
  %v641 = vand.u32 2147483647, %v625
  %v642 = vand.u32 2147483647, %v626
  %v643 = vand.u32 2147483647, %v627
  %v644 = vand.u32 2147483647, %v628
  %v645 = vand.u32 2147483647, %v629
  %v646 = vand.u32 2147483647, %v630
  %v647 = vand.u32 2147483647, %v631
  %v648 = vand.u32 2147483647, %v632
  %v649 = vand.u32 2147483647, %v633
  %v650 = vand.u32 2147483647, %v634
  %v651 = vand.u32 2147483647, %v635
  %v652 = vand.u32 2147483647, %v636
  %v653 = vand.u32 2147483647, %v637
  %v654 = vadd.f32 %v538, %v638
  %v655 = vadd.f32 %v539, %v639
  %v656 = vadd.f32 %v540, %v640
  %v657 = vadd.f32 %v541, %v641
  %v658 = vadd.f32 %v542, %v642
  %v659 = vadd.f32 %v543, %v643
  %v660 = vadd.f32 %v544, %v644
  %v661 = vadd.f32 %v545, %v645
  %v662 = vadd.f32 %v546, %v646
  %v663 = vadd.f32 %v547, %v647
  %v664 = vadd.f32 %v548, %v648
  %v665 = vadd.f32 %v549, %v649
  %v666 = vadd.f32 %v550, %v650
  %v667 = vadd.f32 %v551, %v651
  %v668 = vadd.f32 %v552, %v652
  %v669 = vadd.f32 %v553, %v653
  %670 = vset.pattern.permute.xlu0 5
  %671 = vperm.xlu0 %670, %v37
  %v672 = vpop.permute.xlu0 %671
  %674 = vset.pattern.permute.xlu0 5
  %675 = vperm.xlu0 %674, %v38
  %v676 = vpop.permute.xlu0 %675
  %678 = vset.pattern.permute.xlu0 5
  %679 = vperm.xlu0 %678, %v39
  %v680 = vpop.permute.xlu0 %679
  %682 = vset.pattern.permute.xlu0 5
  %683 = vperm.xlu0 %682, %v40
  %v684 = vpop.permute.xlu0 %683
  %686 = vset.pattern.permute.xlu0 5
  %687 = vperm.xlu0 %686, %v41
  %v688 = vpop.permute.xlu0 %687
  %690 = vset.pattern.permute.xlu0 5
  %691 = vperm.xlu0 %690, %v42
  %v692 = vpop.permute.xlu0 %691
  %694 = vset.pattern.permute.xlu0 5
  %695 = vperm.xlu0 %694, %v43
  %v696 = vpop.permute.xlu0 %695
  %698 = vset.pattern.permute.xlu0 5
  %699 = vperm.xlu0 %698, %v44
  %v700 = vpop.permute.xlu0 %699
  %702 = vset.pattern.permute.xlu0 5
  %703 = vperm.xlu0 %702, %v45
  %v704 = vpop.permute.xlu0 %703
  %706 = vset.pattern.permute.xlu0 5
  %707 = vperm.xlu0 %706, %v46
  %v708 = vpop.permute.xlu0 %707
  %710 = vset.pattern.permute.xlu0 5
  %711 = vperm.xlu0 %710, %v47
  %v712 = vpop.permute.xlu0 %711
  %714 = vset.pattern.permute.xlu0 5
  %715 = vperm.xlu0 %714, %v48
  %v716 = vpop.permute.xlu0 %715
  %718 = vset.pattern.permute.xlu0 5
  %719 = vperm.xlu0 %718, %v49
  %v720 = vpop.permute.xlu0 %719
  %722 = vset.pattern.permute.xlu0 5
  %723 = vperm.xlu0 %722, %v50
  %v724 = vpop.permute.xlu0 %723
  %726 = vset.pattern.permute.xlu0 5
  %727 = vperm.xlu0 %726, %v51
  %v728 = vpop.permute.xlu0 %727
  %730 = vset.pattern.permute.xlu0 5
  %731 = vperm.xlu0 %730, %v52
  %v732 = vpop.permute.xlu0 %731
  %v734 = vlaneseq
  %v735 = vshrl.u32 %v734, 7
  %v736 = vsub.s32 5, %v735
  %v737 = vrot.slane %v53, %v736
  %v738 = vsub.f32 %v672, %v737
  %v739 = vsub.f32 %v676, %v737
  %v740 = vsub.f32 %v680, %v737
  %v741 = vsub.f32 %v684, %v737
  %v742 = vsub.f32 %v688, %v737
  %v743 = vsub.f32 %v692, %v737
  %v744 = vsub.f32 %v696, %v737
  %v745 = vsub.f32 %v700, %v737
  %v746 = vsub.f32 %v704, %v737
  %v747 = vsub.f32 %v708, %v737
  %v748 = vsub.f32 %v712, %v737
  %v749 = vsub.f32 %v716, %v737
  %v750 = vsub.f32 %v720, %v737
  %v751 = vsub.f32 %v724, %v737
  %v752 = vsub.f32 %v728, %v737
  %v753 = vsub.f32 %v732, %v737
  %v754 = vand.u32 2147483647, %v738
  %v755 = vand.u32 2147483647, %v739
  %v756 = vand.u32 2147483647, %v740
  %v757 = vand.u32 2147483647, %v741
  %v758 = vand.u32 2147483647, %v742
  %v759 = vand.u32 2147483647, %v743
  %v760 = vand.u32 2147483647, %v744
  %v761 = vand.u32 2147483647, %v745
  %v762 = vand.u32 2147483647, %v746
  %v763 = vand.u32 2147483647, %v747
  %v764 = vand.u32 2147483647, %v748
  %v765 = vand.u32 2147483647, %v749
  %v766 = vand.u32 2147483647, %v750
  %v767 = vand.u32 2147483647, %v751
  %v768 = vand.u32 2147483647, %v752
  %v769 = vand.u32 2147483647, %v753
  %v770 = vadd.f32 %v654, %v754
  %v771 = vadd.f32 %v655, %v755
  %v772 = vadd.f32 %v656, %v756
  %v773 = vadd.f32 %v657, %v757
  %v774 = vadd.f32 %v658, %v758
  %v775 = vadd.f32 %v659, %v759
  %v776 = vadd.f32 %v660, %v760
  %v777 = vadd.f32 %v661, %v761
  %v778 = vadd.f32 %v662, %v762
  %v779 = vadd.f32 %v663, %v763
  %v780 = vadd.f32 %v664, %v764
  %v781 = vadd.f32 %v665, %v765
  %v782 = vadd.f32 %v666, %v766
  %v783 = vadd.f32 %v667, %v767
  %v784 = vadd.f32 %v668, %v768
  %v785 = vadd.f32 %v669, %v769
  %786 = vset.pattern.permute.xlu0 6
  %787 = vperm.xlu0 %786, %v37
  %v788 = vpop.permute.xlu0 %787
  %790 = vset.pattern.permute.xlu0 6
  %791 = vperm.xlu0 %790, %v38
  %v792 = vpop.permute.xlu0 %791
  %794 = vset.pattern.permute.xlu0 6
  %795 = vperm.xlu0 %794, %v39
  %v796 = vpop.permute.xlu0 %795
  %798 = vset.pattern.permute.xlu0 6
  %799 = vperm.xlu0 %798, %v40
  %v800 = vpop.permute.xlu0 %799
  %802 = vset.pattern.permute.xlu0 6
  %803 = vperm.xlu0 %802, %v41
  %v804 = vpop.permute.xlu0 %803
  %806 = vset.pattern.permute.xlu0 6
  %807 = vperm.xlu0 %806, %v42
  %v808 = vpop.permute.xlu0 %807
  %810 = vset.pattern.permute.xlu0 6
  %811 = vperm.xlu0 %810, %v43
  %v812 = vpop.permute.xlu0 %811
  %814 = vset.pattern.permute.xlu0 6
  %815 = vperm.xlu0 %814, %v44
  %v816 = vpop.permute.xlu0 %815
  %818 = vset.pattern.permute.xlu0 6
  %819 = vperm.xlu0 %818, %v45
  %v820 = vpop.permute.xlu0 %819
  %822 = vset.pattern.permute.xlu0 6
  %823 = vperm.xlu0 %822, %v46
  %v824 = vpop.permute.xlu0 %823
  %826 = vset.pattern.permute.xlu0 6
  %827 = vperm.xlu0 %826, %v47
  %v828 = vpop.permute.xlu0 %827
  %830 = vset.pattern.permute.xlu0 6
  %831 = vperm.xlu0 %830, %v48
  %v832 = vpop.permute.xlu0 %831
  %834 = vset.pattern.permute.xlu0 6
  %835 = vperm.xlu0 %834, %v49
  %v836 = vpop.permute.xlu0 %835
  %838 = vset.pattern.permute.xlu0 6
  %839 = vperm.xlu0 %838, %v50
  %v840 = vpop.permute.xlu0 %839
  %842 = vset.pattern.permute.xlu0 6
  %843 = vperm.xlu0 %842, %v51
  %v844 = vpop.permute.xlu0 %843
  %846 = vset.pattern.permute.xlu0 6
  %847 = vperm.xlu0 %846, %v52
  %v848 = vpop.permute.xlu0 %847
  %v850 = vlaneseq
  %v851 = vshrl.u32 %v850, 7
  %v852 = vsub.s32 6, %v851
  %v853 = vrot.slane %v53, %v852
  %v854 = vsub.f32 %v788, %v853
  %v855 = vsub.f32 %v792, %v853
  %v856 = vsub.f32 %v796, %v853
  %v857 = vsub.f32 %v800, %v853
  %v858 = vsub.f32 %v804, %v853
  %v859 = vsub.f32 %v808, %v853
  %v860 = vsub.f32 %v812, %v853
  %v861 = vsub.f32 %v816, %v853
  %v862 = vsub.f32 %v820, %v853
  %v863 = vsub.f32 %v824, %v853
  %v864 = vsub.f32 %v828, %v853
  %v865 = vsub.f32 %v832, %v853
  %v866 = vsub.f32 %v836, %v853
  %v867 = vsub.f32 %v840, %v853
  %v868 = vsub.f32 %v844, %v853
  %v869 = vsub.f32 %v848, %v853
  %v870 = vand.u32 2147483647, %v854
  %v871 = vand.u32 2147483647, %v855
  %v872 = vand.u32 2147483647, %v856
  %v873 = vand.u32 2147483647, %v857
  %v874 = vand.u32 2147483647, %v858
  %v875 = vand.u32 2147483647, %v859
  %v876 = vand.u32 2147483647, %v860
  %v877 = vand.u32 2147483647, %v861
  %v878 = vand.u32 2147483647, %v862
  %v879 = vand.u32 2147483647, %v863
  %v880 = vand.u32 2147483647, %v864
  %v881 = vand.u32 2147483647, %v865
  %v882 = vand.u32 2147483647, %v866
  %v883 = vand.u32 2147483647, %v867
  %v884 = vand.u32 2147483647, %v868
  %v885 = vand.u32 2147483647, %v869
  %v886 = vadd.f32 %v770, %v870
  %v887 = vadd.f32 %v771, %v871
  %v888 = vadd.f32 %v772, %v872
  %v889 = vadd.f32 %v773, %v873
  %v890 = vadd.f32 %v774, %v874
  %v891 = vadd.f32 %v775, %v875
  %v892 = vadd.f32 %v776, %v876
  %v893 = vadd.f32 %v777, %v877
  %v894 = vadd.f32 %v778, %v878
  %v895 = vadd.f32 %v779, %v879
  %v896 = vadd.f32 %v780, %v880
  %v897 = vadd.f32 %v781, %v881
  %v898 = vadd.f32 %v782, %v882
  %v899 = vadd.f32 %v783, %v883
  %v900 = vadd.f32 %v784, %v884
  %v901 = vadd.f32 %v785, %v885
  %902 = vset.pattern.permute.xlu0 7
  %903 = vperm.xlu0 %902, %v37
  %v904 = vpop.permute.xlu0 %903
  %906 = vset.pattern.permute.xlu0 7
  %907 = vperm.xlu0 %906, %v38
  %v908 = vpop.permute.xlu0 %907
  %910 = vset.pattern.permute.xlu0 7
  %911 = vperm.xlu0 %910, %v39
  %v912 = vpop.permute.xlu0 %911
  %914 = vset.pattern.permute.xlu0 7
  %915 = vperm.xlu0 %914, %v40
  %v916 = vpop.permute.xlu0 %915
  %918 = vset.pattern.permute.xlu0 7
  %919 = vperm.xlu0 %918, %v41
  %v920 = vpop.permute.xlu0 %919
  %922 = vset.pattern.permute.xlu0 7
  %923 = vperm.xlu0 %922, %v42
  %v924 = vpop.permute.xlu0 %923
  %926 = vset.pattern.permute.xlu0 7
  %927 = vperm.xlu0 %926, %v43
  %v928 = vpop.permute.xlu0 %927
  %930 = vset.pattern.permute.xlu0 7
  %931 = vperm.xlu0 %930, %v44
  %v932 = vpop.permute.xlu0 %931
  %934 = vset.pattern.permute.xlu0 7
  %935 = vperm.xlu0 %934, %v45
  %v936 = vpop.permute.xlu0 %935
  %938 = vset.pattern.permute.xlu0 7
  %939 = vperm.xlu0 %938, %v46
  %v940 = vpop.permute.xlu0 %939
  %942 = vset.pattern.permute.xlu0 7
  %943 = vperm.xlu0 %942, %v47
  %v944 = vpop.permute.xlu0 %943
  %946 = vset.pattern.permute.xlu0 7
  %947 = vperm.xlu0 %946, %v48
  %v948 = vpop.permute.xlu0 %947
  %950 = vset.pattern.permute.xlu0 7
  %951 = vperm.xlu0 %950, %v49
  %v952 = vpop.permute.xlu0 %951
  %954 = vset.pattern.permute.xlu0 7
  %955 = vperm.xlu0 %954, %v50
  %v956 = vpop.permute.xlu0 %955
  %958 = vset.pattern.permute.xlu0 7
  %959 = vperm.xlu0 %958, %v51
  %v960 = vpop.permute.xlu0 %959
  %962 = vset.pattern.permute.xlu0 7
  %963 = vperm.xlu0 %962, %v52
  %v964 = vpop.permute.xlu0 %963
  %v966 = vlaneseq
  %v967 = vshrl.u32 %v966, 7
  %v968 = vsub.s32 7, %v967
  %v969 = vrot.slane %v53, %v968
  %v970 = vsub.f32 %v904, %v969
  %v971 = vsub.f32 %v908, %v969
  %v972 = vsub.f32 %v912, %v969
  %v973 = vsub.f32 %v916, %v969
  %v974 = vsub.f32 %v920, %v969
  %v975 = vsub.f32 %v924, %v969
  %v976 = vsub.f32 %v928, %v969
  %v977 = vsub.f32 %v932, %v969
  %v978 = vsub.f32 %v936, %v969
  %v979 = vsub.f32 %v940, %v969
  %v980 = vsub.f32 %v944, %v969
  %v981 = vsub.f32 %v948, %v969
  %v982 = vsub.f32 %v952, %v969
  %v983 = vsub.f32 %v956, %v969
  %v984 = vsub.f32 %v960, %v969
  %v985 = vsub.f32 %v964, %v969
  %v986 = vand.u32 2147483647, %v970
  %v987 = vand.u32 2147483647, %v971
  %v988 = vand.u32 2147483647, %v972
  %v989 = vand.u32 2147483647, %v973
  %v990 = vand.u32 2147483647, %v974
  %v991 = vand.u32 2147483647, %v975
  %v992 = vand.u32 2147483647, %v976
  %v993 = vand.u32 2147483647, %v977
  %v994 = vand.u32 2147483647, %v978
  %v995 = vand.u32 2147483647, %v979
  %v996 = vand.u32 2147483647, %v980
  %v997 = vand.u32 2147483647, %v981
  %v998 = vand.u32 2147483647, %v982
  %v999 = vand.u32 2147483647, %v983
  %v1000 = vand.u32 2147483647, %v984
  %v1001 = vand.u32 2147483647, %v985
  %v1002 = vadd.f32 %v886, %v986
  %v1003 = vadd.f32 %v887, %v987
  %v1004 = vadd.f32 %v888, %v988
  %v1005 = vadd.f32 %v889, %v989
  %v1006 = vadd.f32 %v890, %v990
  %v1007 = vadd.f32 %v891, %v991
  %v1008 = vadd.f32 %v892, %v992
  %v1009 = vadd.f32 %v893, %v993
  %v1010 = vadd.f32 %v894, %v994
  %v1011 = vadd.f32 %v895, %v995
  %v1012 = vadd.f32 %v896, %v996
  %v1013 = vadd.f32 %v897, %v997
  %v1014 = vadd.f32 %v898, %v998
  %v1015 = vadd.f32 %v899, %v999
  %v1016 = vadd.f32 %v900, %v1000
  %v1017 = vadd.f32 %v901, %v1001
  %1018 = vset.pattern.permute.xlu0 8
  %1019 = vperm.xlu0 %1018, %v37
  %v1020 = vpop.permute.xlu0 %1019
  %1022 = vset.pattern.permute.xlu0 8
  %1023 = vperm.xlu0 %1022, %v38
  %v1024 = vpop.permute.xlu0 %1023
  %1026 = vset.pattern.permute.xlu0 8
  %1027 = vperm.xlu0 %1026, %v39
  %v1028 = vpop.permute.xlu0 %1027
  %1030 = vset.pattern.permute.xlu0 8
  %1031 = vperm.xlu0 %1030, %v40
  %v1032 = vpop.permute.xlu0 %1031
  %1034 = vset.pattern.permute.xlu0 8
  %1035 = vperm.xlu0 %1034, %v41
  %v1036 = vpop.permute.xlu0 %1035
  %1038 = vset.pattern.permute.xlu0 8
  %1039 = vperm.xlu0 %1038, %v42
  %v1040 = vpop.permute.xlu0 %1039
  %1042 = vset.pattern.permute.xlu0 8
  %1043 = vperm.xlu0 %1042, %v43
  %v1044 = vpop.permute.xlu0 %1043
  %1046 = vset.pattern.permute.xlu0 8
  %1047 = vperm.xlu0 %1046, %v44
  %v1048 = vpop.permute.xlu0 %1047
  %1050 = vset.pattern.permute.xlu0 8
  %1051 = vperm.xlu0 %1050, %v45
  %v1052 = vpop.permute.xlu0 %1051
  %1054 = vset.pattern.permute.xlu0 8
  %1055 = vperm.xlu0 %1054, %v46
  %v1056 = vpop.permute.xlu0 %1055
  %1058 = vset.pattern.permute.xlu0 8
  %1059 = vperm.xlu0 %1058, %v47
  %v1060 = vpop.permute.xlu0 %1059
  %1062 = vset.pattern.permute.xlu0 8
  %1063 = vperm.xlu0 %1062, %v48
  %v1064 = vpop.permute.xlu0 %1063
  %1066 = vset.pattern.permute.xlu0 8
  %1067 = vperm.xlu0 %1066, %v49
  %v1068 = vpop.permute.xlu0 %1067
  %1070 = vset.pattern.permute.xlu0 8
  %1071 = vperm.xlu0 %1070, %v50
  %v1072 = vpop.permute.xlu0 %1071
  %1074 = vset.pattern.permute.xlu0 8
  %1075 = vperm.xlu0 %1074, %v51
  %v1076 = vpop.permute.xlu0 %1075
  %1078 = vset.pattern.permute.xlu0 8
  %1079 = vperm.xlu0 %1078, %v52
  %v1080 = vpop.permute.xlu0 %1079
  %v1082 = vlaneseq
  %v1083 = vshrl.u32 %v1082, 7
  %v1084 = vsub.s32 0, %v1083
  %v1085 = vrot.slane %v54, %v1084
  %v1086 = vsub.f32 %v1020, %v1085
  %v1087 = vsub.f32 %v1024, %v1085
  %v1088 = vsub.f32 %v1028, %v1085
  %v1089 = vsub.f32 %v1032, %v1085
  %v1090 = vsub.f32 %v1036, %v1085
  %v1091 = vsub.f32 %v1040, %v1085
  %v1092 = vsub.f32 %v1044, %v1085
  %v1093 = vsub.f32 %v1048, %v1085
  %v1094 = vsub.f32 %v1052, %v1085
  %v1095 = vsub.f32 %v1056, %v1085
  %v1096 = vsub.f32 %v1060, %v1085
  %v1097 = vsub.f32 %v1064, %v1085
  %v1098 = vsub.f32 %v1068, %v1085
  %v1099 = vsub.f32 %v1072, %v1085
  %v1100 = vsub.f32 %v1076, %v1085
  %v1101 = vsub.f32 %v1080, %v1085
  %v1102 = vand.u32 2147483647, %v1086
  %v1103 = vand.u32 2147483647, %v1087
  %v1104 = vand.u32 2147483647, %v1088
  %v1105 = vand.u32 2147483647, %v1089
  %v1106 = vand.u32 2147483647, %v1090
  %v1107 = vand.u32 2147483647, %v1091
  %v1108 = vand.u32 2147483647, %v1092
  %v1109 = vand.u32 2147483647, %v1093
  %v1110 = vand.u32 2147483647, %v1094
  %v1111 = vand.u32 2147483647, %v1095
  %v1112 = vand.u32 2147483647, %v1096
  %v1113 = vand.u32 2147483647, %v1097
  %v1114 = vand.u32 2147483647, %v1098
  %v1115 = vand.u32 2147483647, %v1099
  %v1116 = vand.u32 2147483647, %v1100
  %v1117 = vand.u32 2147483647, %v1101
  %v1118 = vadd.f32 %v1002, %v1102
  %v1119 = vadd.f32 %v1003, %v1103
  %v1120 = vadd.f32 %v1004, %v1104
  %v1121 = vadd.f32 %v1005, %v1105
  %v1122 = vadd.f32 %v1006, %v1106
  %v1123 = vadd.f32 %v1007, %v1107
  %v1124 = vadd.f32 %v1008, %v1108
  %v1125 = vadd.f32 %v1009, %v1109
  %v1126 = vadd.f32 %v1010, %v1110
  %v1127 = vadd.f32 %v1011, %v1111
  %v1128 = vadd.f32 %v1012, %v1112
  %v1129 = vadd.f32 %v1013, %v1113
  %v1130 = vadd.f32 %v1014, %v1114
  %v1131 = vadd.f32 %v1015, %v1115
  %v1132 = vadd.f32 %v1016, %v1116
  %v1133 = vadd.f32 %v1017, %v1117
  %1134 = vset.pattern.permute.xlu0 9
  %1135 = vperm.xlu0 %1134, %v37
  %v1136 = vpop.permute.xlu0 %1135
  %1138 = vset.pattern.permute.xlu0 9
  %1139 = vperm.xlu0 %1138, %v38
  %v1140 = vpop.permute.xlu0 %1139
  %1142 = vset.pattern.permute.xlu0 9
  %1143 = vperm.xlu0 %1142, %v39
  %v1144 = vpop.permute.xlu0 %1143
  %1146 = vset.pattern.permute.xlu0 9
  %1147 = vperm.xlu0 %1146, %v40
  %v1148 = vpop.permute.xlu0 %1147
  %1150 = vset.pattern.permute.xlu0 9
  %1151 = vperm.xlu0 %1150, %v41
  %v1152 = vpop.permute.xlu0 %1151
  %1154 = vset.pattern.permute.xlu0 9
  %1155 = vperm.xlu0 %1154, %v42
  %v1156 = vpop.permute.xlu0 %1155
  %1158 = vset.pattern.permute.xlu0 9
  %1159 = vperm.xlu0 %1158, %v43
  %v1160 = vpop.permute.xlu0 %1159
  %1162 = vset.pattern.permute.xlu0 9
  %1163 = vperm.xlu0 %1162, %v44
  %v1164 = vpop.permute.xlu0 %1163
  %1166 = vset.pattern.permute.xlu0 9
  %1167 = vperm.xlu0 %1166, %v45
  %v1168 = vpop.permute.xlu0 %1167
  %1170 = vset.pattern.permute.xlu0 9
  %1171 = vperm.xlu0 %1170, %v46
  %v1172 = vpop.permute.xlu0 %1171
  %1174 = vset.pattern.permute.xlu0 9
  %1175 = vperm.xlu0 %1174, %v47
  %v1176 = vpop.permute.xlu0 %1175
  %1178 = vset.pattern.permute.xlu0 9
  %1179 = vperm.xlu0 %1178, %v48
  %v1180 = vpop.permute.xlu0 %1179
  %1182 = vset.pattern.permute.xlu0 9
  %1183 = vperm.xlu0 %1182, %v49
  %v1184 = vpop.permute.xlu0 %1183
  %1186 = vset.pattern.permute.xlu0 9
  %1187 = vperm.xlu0 %1186, %v50
  %v1188 = vpop.permute.xlu0 %1187
  %1190 = vset.pattern.permute.xlu0 9
  %1191 = vperm.xlu0 %1190, %v51
  %v1192 = vpop.permute.xlu0 %1191
  %1194 = vset.pattern.permute.xlu0 9
  %1195 = vperm.xlu0 %1194, %v52
  %v1196 = vpop.permute.xlu0 %1195
  %v1198 = vlaneseq
  %v1199 = vshrl.u32 %v1198, 7
  %v1200 = vsub.s32 1, %v1199
  %v1201 = vrot.slane %v54, %v1200
  %v1202 = vsub.f32 %v1136, %v1201
  %v1203 = vsub.f32 %v1140, %v1201
  %v1204 = vsub.f32 %v1144, %v1201
  %v1205 = vsub.f32 %v1148, %v1201
  %v1206 = vsub.f32 %v1152, %v1201
  %v1207 = vsub.f32 %v1156, %v1201
  %v1208 = vsub.f32 %v1160, %v1201
  %v1209 = vsub.f32 %v1164, %v1201
  %v1210 = vsub.f32 %v1168, %v1201
  %v1211 = vsub.f32 %v1172, %v1201
  %v1212 = vsub.f32 %v1176, %v1201
  %v1213 = vsub.f32 %v1180, %v1201
  %v1214 = vsub.f32 %v1184, %v1201
  %v1215 = vsub.f32 %v1188, %v1201
  %v1216 = vsub.f32 %v1192, %v1201
  %v1217 = vsub.f32 %v1196, %v1201
  %v1218 = vand.u32 2147483647, %v1202
  %v1219 = vand.u32 2147483647, %v1203
  %v1220 = vand.u32 2147483647, %v1204
  %v1221 = vand.u32 2147483647, %v1205
  %v1222 = vand.u32 2147483647, %v1206
  %v1223 = vand.u32 2147483647, %v1207
  %v1224 = vand.u32 2147483647, %v1208
  %v1225 = vand.u32 2147483647, %v1209
  %v1226 = vand.u32 2147483647, %v1210
  %v1227 = vand.u32 2147483647, %v1211
  %v1228 = vand.u32 2147483647, %v1212
  %v1229 = vand.u32 2147483647, %v1213
  %v1230 = vand.u32 2147483647, %v1214
  %v1231 = vand.u32 2147483647, %v1215
  %v1232 = vand.u32 2147483647, %v1216
  %v1233 = vand.u32 2147483647, %v1217
  %v1234 = vadd.f32 %v1118, %v1218
  %v1235 = vadd.f32 %v1119, %v1219
  %v1236 = vadd.f32 %v1120, %v1220
  %v1237 = vadd.f32 %v1121, %v1221
  %v1238 = vadd.f32 %v1122, %v1222
  %v1239 = vadd.f32 %v1123, %v1223
  %v1240 = vadd.f32 %v1124, %v1224
  %v1241 = vadd.f32 %v1125, %v1225
  %v1242 = vadd.f32 %v1126, %v1226
  %v1243 = vadd.f32 %v1127, %v1227
  %v1244 = vadd.f32 %v1128, %v1228
  %v1245 = vadd.f32 %v1129, %v1229
  %v1246 = vadd.f32 %v1130, %v1230
  %v1247 = vadd.f32 %v1131, %v1231
  %v1248 = vadd.f32 %v1132, %v1232
  %v1249 = vadd.f32 %v1133, %v1233
  %1250 = vset.pattern.permute.xlu0 10
  %1251 = vperm.xlu0 %1250, %v37
  %v1252 = vpop.permute.xlu0 %1251
  %1254 = vset.pattern.permute.xlu0 10
  %1255 = vperm.xlu0 %1254, %v38
  %v1256 = vpop.permute.xlu0 %1255
  %1258 = vset.pattern.permute.xlu0 10
  %1259 = vperm.xlu0 %1258, %v39
  %v1260 = vpop.permute.xlu0 %1259
  %1262 = vset.pattern.permute.xlu0 10
  %1263 = vperm.xlu0 %1262, %v40
  %v1264 = vpop.permute.xlu0 %1263
  %1266 = vset.pattern.permute.xlu0 10
  %1267 = vperm.xlu0 %1266, %v41
  %v1268 = vpop.permute.xlu0 %1267
  %1270 = vset.pattern.permute.xlu0 10
  %1271 = vperm.xlu0 %1270, %v42
  %v1272 = vpop.permute.xlu0 %1271
  %1274 = vset.pattern.permute.xlu0 10
  %1275 = vperm.xlu0 %1274, %v43
  %v1276 = vpop.permute.xlu0 %1275
  %1278 = vset.pattern.permute.xlu0 10
  %1279 = vperm.xlu0 %1278, %v44
  %v1280 = vpop.permute.xlu0 %1279
  %1282 = vset.pattern.permute.xlu0 10
  %1283 = vperm.xlu0 %1282, %v45
  %v1284 = vpop.permute.xlu0 %1283
  %1286 = vset.pattern.permute.xlu0 10
  %1287 = vperm.xlu0 %1286, %v46
  %v1288 = vpop.permute.xlu0 %1287
  %1290 = vset.pattern.permute.xlu0 10
  %1291 = vperm.xlu0 %1290, %v47
  %v1292 = vpop.permute.xlu0 %1291
  %1294 = vset.pattern.permute.xlu0 10
  %1295 = vperm.xlu0 %1294, %v48
  %v1296 = vpop.permute.xlu0 %1295
  %1298 = vset.pattern.permute.xlu0 10
  %1299 = vperm.xlu0 %1298, %v49
  %v1300 = vpop.permute.xlu0 %1299
  %1302 = vset.pattern.permute.xlu0 10
  %1303 = vperm.xlu0 %1302, %v50
  %v1304 = vpop.permute.xlu0 %1303
  %1306 = vset.pattern.permute.xlu0 10
  %1307 = vperm.xlu0 %1306, %v51
  %v1308 = vpop.permute.xlu0 %1307
  %1310 = vset.pattern.permute.xlu0 10
  %1311 = vperm.xlu0 %1310, %v52
  %v1312 = vpop.permute.xlu0 %1311
  %v1314 = vlaneseq
  %v1315 = vshrl.u32 %v1314, 7
  %v1316 = vsub.s32 2, %v1315
  %v1317 = vrot.slane %v54, %v1316
  %v1318 = vsub.f32 %v1252, %v1317
  %v1319 = vsub.f32 %v1256, %v1317
  %v1320 = vsub.f32 %v1260, %v1317
  %v1321 = vsub.f32 %v1264, %v1317
  %v1322 = vsub.f32 %v1268, %v1317
  %v1323 = vsub.f32 %v1272, %v1317
  %v1324 = vsub.f32 %v1276, %v1317
  %v1325 = vsub.f32 %v1280, %v1317
  %v1326 = vsub.f32 %v1284, %v1317
  %v1327 = vsub.f32 %v1288, %v1317
  %v1328 = vsub.f32 %v1292, %v1317
  %v1329 = vsub.f32 %v1296, %v1317
  %v1330 = vsub.f32 %v1300, %v1317
  %v1331 = vsub.f32 %v1304, %v1317
  %v1332 = vsub.f32 %v1308, %v1317
  %v1333 = vsub.f32 %v1312, %v1317
  %v1334 = vand.u32 2147483647, %v1318
  %v1335 = vand.u32 2147483647, %v1319
  %v1336 = vand.u32 2147483647, %v1320
  %v1337 = vand.u32 2147483647, %v1321
  %v1338 = vand.u32 2147483647, %v1322
  %v1339 = vand.u32 2147483647, %v1323
  %v1340 = vand.u32 2147483647, %v1324
  %v1341 = vand.u32 2147483647, %v1325
  %v1342 = vand.u32 2147483647, %v1326
  %v1343 = vand.u32 2147483647, %v1327
  %v1344 = vand.u32 2147483647, %v1328
  %v1345 = vand.u32 2147483647, %v1329
  %v1346 = vand.u32 2147483647, %v1330
  %v1347 = vand.u32 2147483647, %v1331
  %v1348 = vand.u32 2147483647, %v1332
  %v1349 = vand.u32 2147483647, %v1333
  %v1350 = vadd.f32 %v1234, %v1334
  %v1351 = vadd.f32 %v1235, %v1335
  %v1352 = vadd.f32 %v1236, %v1336
  %v1353 = vadd.f32 %v1237, %v1337
  %v1354 = vadd.f32 %v1238, %v1338
  %v1355 = vadd.f32 %v1239, %v1339
  %v1356 = vadd.f32 %v1240, %v1340
  %v1357 = vadd.f32 %v1241, %v1341
  %v1358 = vadd.f32 %v1242, %v1342
  %v1359 = vadd.f32 %v1243, %v1343
  %v1360 = vadd.f32 %v1244, %v1344
  %v1361 = vadd.f32 %v1245, %v1345
  %v1362 = vadd.f32 %v1246, %v1346
  %v1363 = vadd.f32 %v1247, %v1347
  %v1364 = vadd.f32 %v1248, %v1348
  %v1365 = vadd.f32 %v1249, %v1349
  %1366 = vset.pattern.permute.xlu0 11
  %1367 = vperm.xlu0 %1366, %v37
  %v1368 = vpop.permute.xlu0 %1367
  %1370 = vset.pattern.permute.xlu0 11
  %1371 = vperm.xlu0 %1370, %v38
  %v1372 = vpop.permute.xlu0 %1371
  %1374 = vset.pattern.permute.xlu0 11
  %1375 = vperm.xlu0 %1374, %v39
  %v1376 = vpop.permute.xlu0 %1375
  %1378 = vset.pattern.permute.xlu0 11
  %1379 = vperm.xlu0 %1378, %v40
  %v1380 = vpop.permute.xlu0 %1379
  %1382 = vset.pattern.permute.xlu0 11
  %1383 = vperm.xlu0 %1382, %v41
  %v1384 = vpop.permute.xlu0 %1383
  %1386 = vset.pattern.permute.xlu0 11
  %1387 = vperm.xlu0 %1386, %v42
  %v1388 = vpop.permute.xlu0 %1387
  %1390 = vset.pattern.permute.xlu0 11
  %1391 = vperm.xlu0 %1390, %v43
  %v1392 = vpop.permute.xlu0 %1391
  %1394 = vset.pattern.permute.xlu0 11
  %1395 = vperm.xlu0 %1394, %v44
  %v1396 = vpop.permute.xlu0 %1395
  %1398 = vset.pattern.permute.xlu0 11
  %1399 = vperm.xlu0 %1398, %v45
  %v1400 = vpop.permute.xlu0 %1399
  %1402 = vset.pattern.permute.xlu0 11
  %1403 = vperm.xlu0 %1402, %v46
  %v1404 = vpop.permute.xlu0 %1403
  %1406 = vset.pattern.permute.xlu0 11
  %1407 = vperm.xlu0 %1406, %v47
  %v1408 = vpop.permute.xlu0 %1407
  %1410 = vset.pattern.permute.xlu0 11
  %1411 = vperm.xlu0 %1410, %v48
  %v1412 = vpop.permute.xlu0 %1411
  %1414 = vset.pattern.permute.xlu0 11
  %1415 = vperm.xlu0 %1414, %v49
  %v1416 = vpop.permute.xlu0 %1415
  %1418 = vset.pattern.permute.xlu0 11
  %1419 = vperm.xlu0 %1418, %v50
  %v1420 = vpop.permute.xlu0 %1419
  %1422 = vset.pattern.permute.xlu0 11
  %1423 = vperm.xlu0 %1422, %v51
  %v1424 = vpop.permute.xlu0 %1423
  %1426 = vset.pattern.permute.xlu0 11
  %1427 = vperm.xlu0 %1426, %v52
  %v1428 = vpop.permute.xlu0 %1427
  %v1430 = vlaneseq
  %v1431 = vshrl.u32 %v1430, 7
  %v1432 = vsub.s32 3, %v1431
  %v1433 = vrot.slane %v54, %v1432
  %v1434 = vsub.f32 %v1368, %v1433
  %v1435 = vsub.f32 %v1372, %v1433
  %v1436 = vsub.f32 %v1376, %v1433
  %v1437 = vsub.f32 %v1380, %v1433
  %v1438 = vsub.f32 %v1384, %v1433
  %v1439 = vsub.f32 %v1388, %v1433
  %v1440 = vsub.f32 %v1392, %v1433
  %v1441 = vsub.f32 %v1396, %v1433
  %v1442 = vsub.f32 %v1400, %v1433
  %v1443 = vsub.f32 %v1404, %v1433
  %v1444 = vsub.f32 %v1408, %v1433
  %v1445 = vsub.f32 %v1412, %v1433
  %v1446 = vsub.f32 %v1416, %v1433
  %v1447 = vsub.f32 %v1420, %v1433
  %v1448 = vsub.f32 %v1424, %v1433
  %v1449 = vsub.f32 %v1428, %v1433
  %v1450 = vand.u32 2147483647, %v1434
  %v1451 = vand.u32 2147483647, %v1435
  %v1452 = vand.u32 2147483647, %v1436
  %v1453 = vand.u32 2147483647, %v1437
  %v1454 = vand.u32 2147483647, %v1438
  %v1455 = vand.u32 2147483647, %v1439
  %v1456 = vand.u32 2147483647, %v1440
  %v1457 = vand.u32 2147483647, %v1441
  %v1458 = vand.u32 2147483647, %v1442
  %v1459 = vand.u32 2147483647, %v1443
  %v1460 = vand.u32 2147483647, %v1444
  %v1461 = vand.u32 2147483647, %v1445
  %v1462 = vand.u32 2147483647, %v1446
  %v1463 = vand.u32 2147483647, %v1447
  %v1464 = vand.u32 2147483647, %v1448
  %v1465 = vand.u32 2147483647, %v1449
  %v1466 = vadd.f32 %v1350, %v1450
  %v1467 = vadd.f32 %v1351, %v1451
  %v1468 = vadd.f32 %v1352, %v1452
  %v1469 = vadd.f32 %v1353, %v1453
  %v1470 = vadd.f32 %v1354, %v1454
  %v1471 = vadd.f32 %v1355, %v1455
  %v1472 = vadd.f32 %v1356, %v1456
  %v1473 = vadd.f32 %v1357, %v1457
  %v1474 = vadd.f32 %v1358, %v1458
  %v1475 = vadd.f32 %v1359, %v1459
  %v1476 = vadd.f32 %v1360, %v1460
  %v1477 = vadd.f32 %v1361, %v1461
  %v1478 = vadd.f32 %v1362, %v1462
  %v1479 = vadd.f32 %v1363, %v1463
  %v1480 = vadd.f32 %v1364, %v1464
  %v1481 = vadd.f32 %v1365, %v1465
  %1482 = vset.pattern.permute.xlu0 12
  %1483 = vperm.xlu0 %1482, %v37
  %v1484 = vpop.permute.xlu0 %1483
  %1486 = vset.pattern.permute.xlu0 12
  %1487 = vperm.xlu0 %1486, %v38
  %v1488 = vpop.permute.xlu0 %1487
  %1490 = vset.pattern.permute.xlu0 12
  %1491 = vperm.xlu0 %1490, %v39
  %v1492 = vpop.permute.xlu0 %1491
  %1494 = vset.pattern.permute.xlu0 12
  %1495 = vperm.xlu0 %1494, %v40
  %v1496 = vpop.permute.xlu0 %1495
  %1498 = vset.pattern.permute.xlu0 12
  %1499 = vperm.xlu0 %1498, %v41
  %v1500 = vpop.permute.xlu0 %1499
  %1502 = vset.pattern.permute.xlu0 12
  %1503 = vperm.xlu0 %1502, %v42
  %v1504 = vpop.permute.xlu0 %1503
  %1506 = vset.pattern.permute.xlu0 12
  %1507 = vperm.xlu0 %1506, %v43
  %v1508 = vpop.permute.xlu0 %1507
  %1510 = vset.pattern.permute.xlu0 12
  %1511 = vperm.xlu0 %1510, %v44
  %v1512 = vpop.permute.xlu0 %1511
  %1514 = vset.pattern.permute.xlu0 12
  %1515 = vperm.xlu0 %1514, %v45
  %v1516 = vpop.permute.xlu0 %1515
  %1518 = vset.pattern.permute.xlu0 12
  %1519 = vperm.xlu0 %1518, %v46
  %v1520 = vpop.permute.xlu0 %1519
  %1522 = vset.pattern.permute.xlu0 12
  %1523 = vperm.xlu0 %1522, %v47
  %v1524 = vpop.permute.xlu0 %1523
  %1526 = vset.pattern.permute.xlu0 12
  %1527 = vperm.xlu0 %1526, %v48
  %v1528 = vpop.permute.xlu0 %1527
  %1530 = vset.pattern.permute.xlu0 12
  %1531 = vperm.xlu0 %1530, %v49
  %v1532 = vpop.permute.xlu0 %1531
  %1534 = vset.pattern.permute.xlu0 12
  %1535 = vperm.xlu0 %1534, %v50
  %v1536 = vpop.permute.xlu0 %1535
  %1538 = vset.pattern.permute.xlu0 12
  %1539 = vperm.xlu0 %1538, %v51
  %v1540 = vpop.permute.xlu0 %1539
  %1542 = vset.pattern.permute.xlu0 12
  %1543 = vperm.xlu0 %1542, %v52
  %v1544 = vpop.permute.xlu0 %1543
  %v1546 = vlaneseq
  %v1547 = vshrl.u32 %v1546, 7
  %v1548 = vsub.s32 4, %v1547
  %v1549 = vrot.slane %v54, %v1548
  %v1550 = vsub.f32 %v1484, %v1549
  %v1551 = vsub.f32 %v1488, %v1549
  %v1552 = vsub.f32 %v1492, %v1549
  %v1553 = vsub.f32 %v1496, %v1549
  %v1554 = vsub.f32 %v1500, %v1549
  %v1555 = vsub.f32 %v1504, %v1549
  %v1556 = vsub.f32 %v1508, %v1549
  %v1557 = vsub.f32 %v1512, %v1549
  %v1558 = vsub.f32 %v1516, %v1549
  %v1559 = vsub.f32 %v1520, %v1549
  %v1560 = vsub.f32 %v1524, %v1549
  %v1561 = vsub.f32 %v1528, %v1549
  %v1562 = vsub.f32 %v1532, %v1549
  %v1563 = vsub.f32 %v1536, %v1549
  %v1564 = vsub.f32 %v1540, %v1549
  %v1565 = vsub.f32 %v1544, %v1549
  %v1566 = vand.u32 2147483647, %v1550
  %v1567 = vand.u32 2147483647, %v1551
  %v1568 = vand.u32 2147483647, %v1552
  %v1569 = vand.u32 2147483647, %v1553
  %v1570 = vand.u32 2147483647, %v1554
  %v1571 = vand.u32 2147483647, %v1555
  %v1572 = vand.u32 2147483647, %v1556
  %v1573 = vand.u32 2147483647, %v1557
  %v1574 = vand.u32 2147483647, %v1558
  %v1575 = vand.u32 2147483647, %v1559
  %v1576 = vand.u32 2147483647, %v1560
  %v1577 = vand.u32 2147483647, %v1561
  %v1578 = vand.u32 2147483647, %v1562
  %v1579 = vand.u32 2147483647, %v1563
  %v1580 = vand.u32 2147483647, %v1564
  %v1581 = vand.u32 2147483647, %v1565
  %v1582 = vadd.f32 %v1466, %v1566
  %v1583 = vadd.f32 %v1467, %v1567
  %v1584 = vadd.f32 %v1468, %v1568
  %v1585 = vadd.f32 %v1469, %v1569
  %v1586 = vadd.f32 %v1470, %v1570
  %v1587 = vadd.f32 %v1471, %v1571
  %v1588 = vadd.f32 %v1472, %v1572
  %v1589 = vadd.f32 %v1473, %v1573
  %v1590 = vadd.f32 %v1474, %v1574
  %v1591 = vadd.f32 %v1475, %v1575
  %v1592 = vadd.f32 %v1476, %v1576
  %v1593 = vadd.f32 %v1477, %v1577
  %v1594 = vadd.f32 %v1478, %v1578
  %v1595 = vadd.f32 %v1479, %v1579
  %v1596 = vadd.f32 %v1480, %v1580
  %v1597 = vadd.f32 %v1481, %v1581
  %1598 = vset.pattern.permute.xlu0 13
  %1599 = vperm.xlu0 %1598, %v37
  %v1600 = vpop.permute.xlu0 %1599
  %1602 = vset.pattern.permute.xlu0 13
  %1603 = vperm.xlu0 %1602, %v38
  %v1604 = vpop.permute.xlu0 %1603
  %1606 = vset.pattern.permute.xlu0 13
  %1607 = vperm.xlu0 %1606, %v39
  %v1608 = vpop.permute.xlu0 %1607
  %1610 = vset.pattern.permute.xlu0 13
  %1611 = vperm.xlu0 %1610, %v40
  %v1612 = vpop.permute.xlu0 %1611
  %1614 = vset.pattern.permute.xlu0 13
  %1615 = vperm.xlu0 %1614, %v41
  %v1616 = vpop.permute.xlu0 %1615
  %1618 = vset.pattern.permute.xlu0 13
  %1619 = vperm.xlu0 %1618, %v42
  %v1620 = vpop.permute.xlu0 %1619
  %1622 = vset.pattern.permute.xlu0 13
  %1623 = vperm.xlu0 %1622, %v43
  %v1624 = vpop.permute.xlu0 %1623
  %1626 = vset.pattern.permute.xlu0 13
  %1627 = vperm.xlu0 %1626, %v44
  %v1628 = vpop.permute.xlu0 %1627
  %1630 = vset.pattern.permute.xlu0 13
  %1631 = vperm.xlu0 %1630, %v45
  %v1632 = vpop.permute.xlu0 %1631
  %1634 = vset.pattern.permute.xlu0 13
  %1635 = vperm.xlu0 %1634, %v46
  %v1636 = vpop.permute.xlu0 %1635
  %1638 = vset.pattern.permute.xlu0 13
  %1639 = vperm.xlu0 %1638, %v47
  %v1640 = vpop.permute.xlu0 %1639
  %1642 = vset.pattern.permute.xlu0 13
  %1643 = vperm.xlu0 %1642, %v48
  %v1644 = vpop.permute.xlu0 %1643
  %1646 = vset.pattern.permute.xlu0 13
  %1647 = vperm.xlu0 %1646, %v49
  %v1648 = vpop.permute.xlu0 %1647
  %1650 = vset.pattern.permute.xlu0 13
  %1651 = vperm.xlu0 %1650, %v50
  %v1652 = vpop.permute.xlu0 %1651
  %1654 = vset.pattern.permute.xlu0 13
  %1655 = vperm.xlu0 %1654, %v51
  %v1656 = vpop.permute.xlu0 %1655
  %1658 = vset.pattern.permute.xlu0 13
  %1659 = vperm.xlu0 %1658, %v52
  %v1660 = vpop.permute.xlu0 %1659
  %v1662 = vlaneseq
  %v1663 = vshrl.u32 %v1662, 7
  %v1664 = vsub.s32 5, %v1663
  %v1665 = vrot.slane %v54, %v1664
  %v1666 = vsub.f32 %v1600, %v1665
  %v1667 = vsub.f32 %v1604, %v1665
  %v1668 = vsub.f32 %v1608, %v1665
  %v1669 = vsub.f32 %v1612, %v1665
  %v1670 = vsub.f32 %v1616, %v1665
  %v1671 = vsub.f32 %v1620, %v1665
  %v1672 = vsub.f32 %v1624, %v1665
  %v1673 = vsub.f32 %v1628, %v1665
  %v1674 = vsub.f32 %v1632, %v1665
  %v1675 = vsub.f32 %v1636, %v1665
  %v1676 = vsub.f32 %v1640, %v1665
  %v1677 = vsub.f32 %v1644, %v1665
  %v1678 = vsub.f32 %v1648, %v1665
  %v1679 = vsub.f32 %v1652, %v1665
  %v1680 = vsub.f32 %v1656, %v1665
  %v1681 = vsub.f32 %v1660, %v1665
  %v1682 = vand.u32 2147483647, %v1666
  %v1683 = vand.u32 2147483647, %v1667
  %v1684 = vand.u32 2147483647, %v1668
  %v1685 = vand.u32 2147483647, %v1669
  %v1686 = vand.u32 2147483647, %v1670
  %v1687 = vand.u32 2147483647, %v1671
  %v1688 = vand.u32 2147483647, %v1672
  %v1689 = vand.u32 2147483647, %v1673
  %v1690 = vand.u32 2147483647, %v1674
  %v1691 = vand.u32 2147483647, %v1675
  %v1692 = vand.u32 2147483647, %v1676
  %v1693 = vand.u32 2147483647, %v1677
  %v1694 = vand.u32 2147483647, %v1678
  %v1695 = vand.u32 2147483647, %v1679
  %v1696 = vand.u32 2147483647, %v1680
  %v1697 = vand.u32 2147483647, %v1681
  %v1698 = vadd.f32 %v1582, %v1682
  %v1699 = vadd.f32 %v1583, %v1683
  %v1700 = vadd.f32 %v1584, %v1684
  %v1701 = vadd.f32 %v1585, %v1685
  %v1702 = vadd.f32 %v1586, %v1686
  %v1703 = vadd.f32 %v1587, %v1687
  %v1704 = vadd.f32 %v1588, %v1688
  %v1705 = vadd.f32 %v1589, %v1689
  %v1706 = vadd.f32 %v1590, %v1690
  %v1707 = vadd.f32 %v1591, %v1691
  %v1708 = vadd.f32 %v1592, %v1692
  %v1709 = vadd.f32 %v1593, %v1693
  %v1710 = vadd.f32 %v1594, %v1694
  %v1711 = vadd.f32 %v1595, %v1695
  %v1712 = vadd.f32 %v1596, %v1696
  %v1713 = vadd.f32 %v1597, %v1697
  %1714 = vset.pattern.permute.xlu0 14
  %1715 = vperm.xlu0 %1714, %v37
  %v1716 = vpop.permute.xlu0 %1715
  %1718 = vset.pattern.permute.xlu0 14
  %1719 = vperm.xlu0 %1718, %v38
  %v1720 = vpop.permute.xlu0 %1719
  %1722 = vset.pattern.permute.xlu0 14
  %1723 = vperm.xlu0 %1722, %v39
  %v1724 = vpop.permute.xlu0 %1723
  %1726 = vset.pattern.permute.xlu0 14
  %1727 = vperm.xlu0 %1726, %v40
  %v1728 = vpop.permute.xlu0 %1727
  %1730 = vset.pattern.permute.xlu0 14
  %1731 = vperm.xlu0 %1730, %v41
  %v1732 = vpop.permute.xlu0 %1731
  %1734 = vset.pattern.permute.xlu0 14
  %1735 = vperm.xlu0 %1734, %v42
  %v1736 = vpop.permute.xlu0 %1735
  %1738 = vset.pattern.permute.xlu0 14
  %1739 = vperm.xlu0 %1738, %v43
  %v1740 = vpop.permute.xlu0 %1739
  %1742 = vset.pattern.permute.xlu0 14
  %1743 = vperm.xlu0 %1742, %v44
  %v1744 = vpop.permute.xlu0 %1743
  %1746 = vset.pattern.permute.xlu0 14
  %1747 = vperm.xlu0 %1746, %v45
  %v1748 = vpop.permute.xlu0 %1747
  %1750 = vset.pattern.permute.xlu0 14
  %1751 = vperm.xlu0 %1750, %v46
  %v1752 = vpop.permute.xlu0 %1751
  %1754 = vset.pattern.permute.xlu0 14
  %1755 = vperm.xlu0 %1754, %v47
  %v1756 = vpop.permute.xlu0 %1755
  %1758 = vset.pattern.permute.xlu0 14
  %1759 = vperm.xlu0 %1758, %v48
  %v1760 = vpop.permute.xlu0 %1759
  %1762 = vset.pattern.permute.xlu0 14
  %1763 = vperm.xlu0 %1762, %v49
  %v1764 = vpop.permute.xlu0 %1763
  %1766 = vset.pattern.permute.xlu0 14
  %1767 = vperm.xlu0 %1766, %v50
  %v1768 = vpop.permute.xlu0 %1767
  %1770 = vset.pattern.permute.xlu0 14
  %1771 = vperm.xlu0 %1770, %v51
  %v1772 = vpop.permute.xlu0 %1771
  %1774 = vset.pattern.permute.xlu0 14
  %1775 = vperm.xlu0 %1774, %v52
  %v1776 = vpop.permute.xlu0 %1775
  %v1778 = vlaneseq
  %v1779 = vshrl.u32 %v1778, 7
  %v1780 = vsub.s32 6, %v1779
  %v1781 = vrot.slane %v54, %v1780
  %v1782 = vsub.f32 %v1716, %v1781
  %v1783 = vsub.f32 %v1720, %v1781
  %v1784 = vsub.f32 %v1724, %v1781
  %v1785 = vsub.f32 %v1728, %v1781
  %v1786 = vsub.f32 %v1732, %v1781
  %v1787 = vsub.f32 %v1736, %v1781
  %v1788 = vsub.f32 %v1740, %v1781
  %v1789 = vsub.f32 %v1744, %v1781
  %v1790 = vsub.f32 %v1748, %v1781
  %v1791 = vsub.f32 %v1752, %v1781
  %v1792 = vsub.f32 %v1756, %v1781
  %v1793 = vsub.f32 %v1760, %v1781
  %v1794 = vsub.f32 %v1764, %v1781
  %v1795 = vsub.f32 %v1768, %v1781
  %v1796 = vsub.f32 %v1772, %v1781
  %v1797 = vsub.f32 %v1776, %v1781
  %v1798 = vand.u32 2147483647, %v1782
  %v1799 = vand.u32 2147483647, %v1783
  %v1800 = vand.u32 2147483647, %v1784
  %v1801 = vand.u32 2147483647, %v1785
  %v1802 = vand.u32 2147483647, %v1786
  %v1803 = vand.u32 2147483647, %v1787
  %v1804 = vand.u32 2147483647, %v1788
  %v1805 = vand.u32 2147483647, %v1789
  %v1806 = vand.u32 2147483647, %v1790
  %v1807 = vand.u32 2147483647, %v1791
  %v1808 = vand.u32 2147483647, %v1792
  %v1809 = vand.u32 2147483647, %v1793
  %v1810 = vand.u32 2147483647, %v1794
  %v1811 = vand.u32 2147483647, %v1795
  %v1812 = vand.u32 2147483647, %v1796
  %v1813 = vand.u32 2147483647, %v1797
  %v1814 = vadd.f32 %v1698, %v1798
  %v1815 = vadd.f32 %v1699, %v1799
  %v1816 = vadd.f32 %v1700, %v1800
  %v1817 = vadd.f32 %v1701, %v1801
  %v1818 = vadd.f32 %v1702, %v1802
  %v1819 = vadd.f32 %v1703, %v1803
  %v1820 = vadd.f32 %v1704, %v1804
  %v1821 = vadd.f32 %v1705, %v1805
  %v1822 = vadd.f32 %v1706, %v1806
  %v1823 = vadd.f32 %v1707, %v1807
  %v1824 = vadd.f32 %v1708, %v1808
  %v1825 = vadd.f32 %v1709, %v1809
  %v1826 = vadd.f32 %v1710, %v1810
  %v1827 = vadd.f32 %v1711, %v1811
  %v1828 = vadd.f32 %v1712, %v1812
  %v1829 = vadd.f32 %v1713, %v1813
  %1830 = vset.pattern.permute.xlu0 15
  %1831 = vperm.xlu0 %1830, %v37
  %v1832 = vpop.permute.xlu0 %1831
  %1834 = vset.pattern.permute.xlu0 15
  %1835 = vperm.xlu0 %1834, %v38
  %v1836 = vpop.permute.xlu0 %1835
  %1838 = vset.pattern.permute.xlu0 15
  %1839 = vperm.xlu0 %1838, %v39
  %v1840 = vpop.permute.xlu0 %1839
  %1842 = vset.pattern.permute.xlu0 15
  %1843 = vperm.xlu0 %1842, %v40
  %v1844 = vpop.permute.xlu0 %1843
  %1846 = vset.pattern.permute.xlu0 15
  %1847 = vperm.xlu0 %1846, %v41
  %v1848 = vpop.permute.xlu0 %1847
  %1850 = vset.pattern.permute.xlu0 15
  %1851 = vperm.xlu0 %1850, %v42
  %v1852 = vpop.permute.xlu0 %1851
  %1854 = vset.pattern.permute.xlu0 15
  %1855 = vperm.xlu0 %1854, %v43
  %v1856 = vpop.permute.xlu0 %1855
  %1858 = vset.pattern.permute.xlu0 15
  %1859 = vperm.xlu0 %1858, %v44
  %v1860 = vpop.permute.xlu0 %1859
  %1862 = vset.pattern.permute.xlu0 15
  %1863 = vperm.xlu0 %1862, %v45
  %v1864 = vpop.permute.xlu0 %1863
  %1866 = vset.pattern.permute.xlu0 15
  %1867 = vperm.xlu0 %1866, %v46
  %v1868 = vpop.permute.xlu0 %1867
  %1870 = vset.pattern.permute.xlu0 15
  %1871 = vperm.xlu0 %1870, %v47
  %v1872 = vpop.permute.xlu0 %1871
  %1874 = vset.pattern.permute.xlu0 15
  %1875 = vperm.xlu0 %1874, %v48
  %v1876 = vpop.permute.xlu0 %1875
  %1878 = vset.pattern.permute.xlu0 15
  %1879 = vperm.xlu0 %1878, %v49
  %v1880 = vpop.permute.xlu0 %1879
  %1882 = vset.pattern.permute.xlu0 15
  %1883 = vperm.xlu0 %1882, %v50
  %v1884 = vpop.permute.xlu0 %1883
  %1886 = vset.pattern.permute.xlu0 15
  %1887 = vperm.xlu0 %1886, %v51
  %v1888 = vpop.permute.xlu0 %1887
  %1890 = vset.pattern.permute.xlu0 15
  %1891 = vperm.xlu0 %1890, %v52
  %v1892 = vpop.permute.xlu0 %1891
  %v1894 = vlaneseq
  %v1895 = vshrl.u32 %v1894, 7
  %v1896 = vsub.s32 7, %v1895
  %v1897 = vrot.slane %v54, %v1896
  %v1898 = vsub.f32 %v1832, %v1897
  %v1899 = vsub.f32 %v1836, %v1897
  %v1900 = vsub.f32 %v1840, %v1897
  %v1901 = vsub.f32 %v1844, %v1897
  %v1902 = vsub.f32 %v1848, %v1897
  %v1903 = vsub.f32 %v1852, %v1897
  %v1904 = vsub.f32 %v1856, %v1897
  %v1905 = vsub.f32 %v1860, %v1897
  %v1906 = vsub.f32 %v1864, %v1897
  %v1907 = vsub.f32 %v1868, %v1897
  %v1908 = vsub.f32 %v1872, %v1897
  %v1909 = vsub.f32 %v1876, %v1897
  %v1910 = vsub.f32 %v1880, %v1897
  %v1911 = vsub.f32 %v1884, %v1897
  %v1912 = vsub.f32 %v1888, %v1897
  %v1913 = vsub.f32 %v1892, %v1897
  %v1914 = vand.u32 2147483647, %v1898
  %v1915 = vand.u32 2147483647, %v1899
  %v1916 = vand.u32 2147483647, %v1900
  %v1917 = vand.u32 2147483647, %v1901
  %v1918 = vand.u32 2147483647, %v1902
  %v1919 = vand.u32 2147483647, %v1903
  %v1920 = vand.u32 2147483647, %v1904
  %v1921 = vand.u32 2147483647, %v1905
  %v1922 = vand.u32 2147483647, %v1906
  %v1923 = vand.u32 2147483647, %v1907
  %v1924 = vand.u32 2147483647, %v1908
  %v1925 = vand.u32 2147483647, %v1909
  %v1926 = vand.u32 2147483647, %v1910
  %v1927 = vand.u32 2147483647, %v1911
  %v1928 = vand.u32 2147483647, %v1912
  %v1929 = vand.u32 2147483647, %v1913
  %v1930 = vadd.f32 %v1814, %v1914
  %v1931 = vadd.f32 %v1815, %v1915
  %v1932 = vadd.f32 %v1816, %v1916
  %v1933 = vadd.f32 %v1817, %v1917
  %v1934 = vadd.f32 %v1818, %v1918
  %v1935 = vadd.f32 %v1819, %v1919
  %v1936 = vadd.f32 %v1820, %v1920
  %v1937 = vadd.f32 %v1821, %v1921
  %v1938 = vadd.f32 %v1822, %v1922
  %v1939 = vadd.f32 %v1823, %v1923
  %v1940 = vadd.f32 %v1824, %v1924
  %v1941 = vadd.f32 %v1825, %v1925
  %v1942 = vadd.f32 %v1826, %v1926
  %v1943 = vadd.f32 %v1827, %v1927
  %v1944 = vadd.f32 %v1828, %v1928
  %v1945 = vadd.f32 %v1829, %v1929
  %1946 = vset.pattern.permute.xlu0 16
  %1947 = vperm.xlu0 %1946, %v37
  %v1948 = vpop.permute.xlu0 %1947
  %1950 = vset.pattern.permute.xlu0 16
  %1951 = vperm.xlu0 %1950, %v38
  %v1952 = vpop.permute.xlu0 %1951
  %1954 = vset.pattern.permute.xlu0 16
  %1955 = vperm.xlu0 %1954, %v39
  %v1956 = vpop.permute.xlu0 %1955
  %1958 = vset.pattern.permute.xlu0 16
  %1959 = vperm.xlu0 %1958, %v40
  %v1960 = vpop.permute.xlu0 %1959
  %1962 = vset.pattern.permute.xlu0 16
  %1963 = vperm.xlu0 %1962, %v41
  %v1964 = vpop.permute.xlu0 %1963
  %1966 = vset.pattern.permute.xlu0 16
  %1967 = vperm.xlu0 %1966, %v42
  %v1968 = vpop.permute.xlu0 %1967
  %1970 = vset.pattern.permute.xlu0 16
  %1971 = vperm.xlu0 %1970, %v43
  %v1972 = vpop.permute.xlu0 %1971
  %1974 = vset.pattern.permute.xlu0 16
  %1975 = vperm.xlu0 %1974, %v44
  %v1976 = vpop.permute.xlu0 %1975
  %1978 = vset.pattern.permute.xlu0 16
  %1979 = vperm.xlu0 %1978, %v45
  %v1980 = vpop.permute.xlu0 %1979
  %1982 = vset.pattern.permute.xlu0 16
  %1983 = vperm.xlu0 %1982, %v46
  %v1984 = vpop.permute.xlu0 %1983
  %1986 = vset.pattern.permute.xlu0 16
  %1987 = vperm.xlu0 %1986, %v47
  %v1988 = vpop.permute.xlu0 %1987
  %1990 = vset.pattern.permute.xlu0 16
  %1991 = vperm.xlu0 %1990, %v48
  %v1992 = vpop.permute.xlu0 %1991
  %1994 = vset.pattern.permute.xlu0 16
  %1995 = vperm.xlu0 %1994, %v49
  %v1996 = vpop.permute.xlu0 %1995
  %1998 = vset.pattern.permute.xlu0 16
  %1999 = vperm.xlu0 %1998, %v50
  %v2000 = vpop.permute.xlu0 %1999
  %2002 = vset.pattern.permute.xlu0 16
  %2003 = vperm.xlu0 %2002, %v51
  %v2004 = vpop.permute.xlu0 %2003
  %2006 = vset.pattern.permute.xlu0 16
  %2007 = vperm.xlu0 %2006, %v52
  %v2008 = vpop.permute.xlu0 %2007
  %v2010 = vlaneseq
  %v2011 = vshrl.u32 %v2010, 7
  %v2012 = vsub.s32 0, %v2011
  %v2013 = vrot.slane %v55, %v2012
  %v2014 = vsub.f32 %v1948, %v2013
  %v2015 = vsub.f32 %v1952, %v2013
  %v2016 = vsub.f32 %v1956, %v2013
  %v2017 = vsub.f32 %v1960, %v2013
  %v2018 = vsub.f32 %v1964, %v2013
  %v2019 = vsub.f32 %v1968, %v2013
  %v2020 = vsub.f32 %v1972, %v2013
  %v2021 = vsub.f32 %v1976, %v2013
  %v2022 = vsub.f32 %v1980, %v2013
  %v2023 = vsub.f32 %v1984, %v2013
  %v2024 = vsub.f32 %v1988, %v2013
  %v2025 = vsub.f32 %v1992, %v2013
  %v2026 = vsub.f32 %v1996, %v2013
  %v2027 = vsub.f32 %v2000, %v2013
  %v2028 = vsub.f32 %v2004, %v2013
  %v2029 = vsub.f32 %v2008, %v2013
  %v2030 = vand.u32 2147483647, %v2014
  %v2031 = vand.u32 2147483647, %v2015
  %v2032 = vand.u32 2147483647, %v2016
  %v2033 = vand.u32 2147483647, %v2017
  %v2034 = vand.u32 2147483647, %v2018
  %v2035 = vand.u32 2147483647, %v2019
  %v2036 = vand.u32 2147483647, %v2020
  %v2037 = vand.u32 2147483647, %v2021
  %v2038 = vand.u32 2147483647, %v2022
  %v2039 = vand.u32 2147483647, %v2023
  %v2040 = vand.u32 2147483647, %v2024
  %v2041 = vand.u32 2147483647, %v2025
  %v2042 = vand.u32 2147483647, %v2026
  %v2043 = vand.u32 2147483647, %v2027
  %v2044 = vand.u32 2147483647, %v2028
  %v2045 = vand.u32 2147483647, %v2029
  %v2046 = vadd.f32 %v1930, %v2030
  %v2047 = vadd.f32 %v1931, %v2031
  %v2048 = vadd.f32 %v1932, %v2032
  %v2049 = vadd.f32 %v1933, %v2033
  %v2050 = vadd.f32 %v1934, %v2034
  %v2051 = vadd.f32 %v1935, %v2035
  %v2052 = vadd.f32 %v1936, %v2036
  %v2053 = vadd.f32 %v1937, %v2037
  %v2054 = vadd.f32 %v1938, %v2038
  %v2055 = vadd.f32 %v1939, %v2039
  %v2056 = vadd.f32 %v1940, %v2040
  %v2057 = vadd.f32 %v1941, %v2041
  %v2058 = vadd.f32 %v1942, %v2042
  %v2059 = vadd.f32 %v1943, %v2043
  %v2060 = vadd.f32 %v1944, %v2044
  %v2061 = vadd.f32 %v1945, %v2045
  %2062 = vset.pattern.permute.xlu0 17
  %2063 = vperm.xlu0 %2062, %v37
  %v2064 = vpop.permute.xlu0 %2063
  %2066 = vset.pattern.permute.xlu0 17
  %2067 = vperm.xlu0 %2066, %v38
  %v2068 = vpop.permute.xlu0 %2067
  %2070 = vset.pattern.permute.xlu0 17
  %2071 = vperm.xlu0 %2070, %v39
  %v2072 = vpop.permute.xlu0 %2071
  %2074 = vset.pattern.permute.xlu0 17
  %2075 = vperm.xlu0 %2074, %v40
  %v2076 = vpop.permute.xlu0 %2075
  %2078 = vset.pattern.permute.xlu0 17
  %2079 = vperm.xlu0 %2078, %v41
  %v2080 = vpop.permute.xlu0 %2079
  %2082 = vset.pattern.permute.xlu0 17
  %2083 = vperm.xlu0 %2082, %v42
  %v2084 = vpop.permute.xlu0 %2083
  %2086 = vset.pattern.permute.xlu0 17
  %2087 = vperm.xlu0 %2086, %v43
  %v2088 = vpop.permute.xlu0 %2087
  %2090 = vset.pattern.permute.xlu0 17
  %2091 = vperm.xlu0 %2090, %v44
  %v2092 = vpop.permute.xlu0 %2091
  %2094 = vset.pattern.permute.xlu0 17
  %2095 = vperm.xlu0 %2094, %v45
  %v2096 = vpop.permute.xlu0 %2095
  %2098 = vset.pattern.permute.xlu0 17
  %2099 = vperm.xlu0 %2098, %v46
  %v2100 = vpop.permute.xlu0 %2099
  %2102 = vset.pattern.permute.xlu0 17
  %2103 = vperm.xlu0 %2102, %v47
  %v2104 = vpop.permute.xlu0 %2103
  %2106 = vset.pattern.permute.xlu0 17
  %2107 = vperm.xlu0 %2106, %v48
  %v2108 = vpop.permute.xlu0 %2107
  %2110 = vset.pattern.permute.xlu0 17
  %2111 = vperm.xlu0 %2110, %v49
  %v2112 = vpop.permute.xlu0 %2111
  %2114 = vset.pattern.permute.xlu0 17
  %2115 = vperm.xlu0 %2114, %v50
  %v2116 = vpop.permute.xlu0 %2115
  %2118 = vset.pattern.permute.xlu0 17
  %2119 = vperm.xlu0 %2118, %v51
  %v2120 = vpop.permute.xlu0 %2119
  %2122 = vset.pattern.permute.xlu0 17
  %2123 = vperm.xlu0 %2122, %v52
  %v2124 = vpop.permute.xlu0 %2123
  %v2126 = vlaneseq
  %v2127 = vshrl.u32 %v2126, 7
  %v2128 = vsub.s32 1, %v2127
  %v2129 = vrot.slane %v55, %v2128
  %v2130 = vsub.f32 %v2064, %v2129
  %v2131 = vsub.f32 %v2068, %v2129
  %v2132 = vsub.f32 %v2072, %v2129
  %v2133 = vsub.f32 %v2076, %v2129
  %v2134 = vsub.f32 %v2080, %v2129
  %v2135 = vsub.f32 %v2084, %v2129
  %v2136 = vsub.f32 %v2088, %v2129
  %v2137 = vsub.f32 %v2092, %v2129
  %v2138 = vsub.f32 %v2096, %v2129
  %v2139 = vsub.f32 %v2100, %v2129
  %v2140 = vsub.f32 %v2104, %v2129
  %v2141 = vsub.f32 %v2108, %v2129
  %v2142 = vsub.f32 %v2112, %v2129
  %v2143 = vsub.f32 %v2116, %v2129
  %v2144 = vsub.f32 %v2120, %v2129
  %v2145 = vsub.f32 %v2124, %v2129
  %v2146 = vand.u32 2147483647, %v2130
  %v2147 = vand.u32 2147483647, %v2131
  %v2148 = vand.u32 2147483647, %v2132
  %v2149 = vand.u32 2147483647, %v2133
  %v2150 = vand.u32 2147483647, %v2134
  %v2151 = vand.u32 2147483647, %v2135
  %v2152 = vand.u32 2147483647, %v2136
  %v2153 = vand.u32 2147483647, %v2137
  %v2154 = vand.u32 2147483647, %v2138
  %v2155 = vand.u32 2147483647, %v2139
  %v2156 = vand.u32 2147483647, %v2140
  %v2157 = vand.u32 2147483647, %v2141
  %v2158 = vand.u32 2147483647, %v2142
  %v2159 = vand.u32 2147483647, %v2143
  %v2160 = vand.u32 2147483647, %v2144
  %v2161 = vand.u32 2147483647, %v2145
  %v2162 = vadd.f32 %v2046, %v2146
  %v2163 = vadd.f32 %v2047, %v2147
  %v2164 = vadd.f32 %v2048, %v2148
  %v2165 = vadd.f32 %v2049, %v2149
  %v2166 = vadd.f32 %v2050, %v2150
  %v2167 = vadd.f32 %v2051, %v2151
  %v2168 = vadd.f32 %v2052, %v2152
  %v2169 = vadd.f32 %v2053, %v2153
  %v2170 = vadd.f32 %v2054, %v2154
  %v2171 = vadd.f32 %v2055, %v2155
  %v2172 = vadd.f32 %v2056, %v2156
  %v2173 = vadd.f32 %v2057, %v2157
  %v2174 = vadd.f32 %v2058, %v2158
  %v2175 = vadd.f32 %v2059, %v2159
  %v2176 = vadd.f32 %v2060, %v2160
  %v2177 = vadd.f32 %v2061, %v2161
  %2178 = vset.pattern.permute.xlu0 18
  %2179 = vperm.xlu0 %2178, %v37
  %v2180 = vpop.permute.xlu0 %2179
  %2182 = vset.pattern.permute.xlu0 18
  %2183 = vperm.xlu0 %2182, %v38
  %v2184 = vpop.permute.xlu0 %2183
  %2186 = vset.pattern.permute.xlu0 18
  %2187 = vperm.xlu0 %2186, %v39
  %v2188 = vpop.permute.xlu0 %2187
  %2190 = vset.pattern.permute.xlu0 18
  %2191 = vperm.xlu0 %2190, %v40
  %v2192 = vpop.permute.xlu0 %2191
  %2194 = vset.pattern.permute.xlu0 18
  %2195 = vperm.xlu0 %2194, %v41
  %v2196 = vpop.permute.xlu0 %2195
  %2198 = vset.pattern.permute.xlu0 18
  %2199 = vperm.xlu0 %2198, %v42
  %v2200 = vpop.permute.xlu0 %2199
  %2202 = vset.pattern.permute.xlu0 18
  %2203 = vperm.xlu0 %2202, %v43
  %v2204 = vpop.permute.xlu0 %2203
  %2206 = vset.pattern.permute.xlu0 18
  %2207 = vperm.xlu0 %2206, %v44
  %v2208 = vpop.permute.xlu0 %2207
  %2210 = vset.pattern.permute.xlu0 18
  %2211 = vperm.xlu0 %2210, %v45
  %v2212 = vpop.permute.xlu0 %2211
  %2214 = vset.pattern.permute.xlu0 18
  %2215 = vperm.xlu0 %2214, %v46
  %v2216 = vpop.permute.xlu0 %2215
  %2218 = vset.pattern.permute.xlu0 18
  %2219 = vperm.xlu0 %2218, %v47
  %v2220 = vpop.permute.xlu0 %2219
  %2222 = vset.pattern.permute.xlu0 18
  %2223 = vperm.xlu0 %2222, %v48
  %v2224 = vpop.permute.xlu0 %2223
  %2226 = vset.pattern.permute.xlu0 18
  %2227 = vperm.xlu0 %2226, %v49
  %v2228 = vpop.permute.xlu0 %2227
  %2230 = vset.pattern.permute.xlu0 18
  %2231 = vperm.xlu0 %2230, %v50
  %v2232 = vpop.permute.xlu0 %2231
  %2234 = vset.pattern.permute.xlu0 18
  %2235 = vperm.xlu0 %2234, %v51
  %v2236 = vpop.permute.xlu0 %2235
  %2238 = vset.pattern.permute.xlu0 18
  %2239 = vperm.xlu0 %2238, %v52
  %v2240 = vpop.permute.xlu0 %2239
  %v2242 = vlaneseq
  %v2243 = vshrl.u32 %v2242, 7
  %v2244 = vsub.s32 2, %v2243
  %v2245 = vrot.slane %v55, %v2244
  %v2246 = vsub.f32 %v2180, %v2245
  %v2247 = vsub.f32 %v2184, %v2245
  %v2248 = vsub.f32 %v2188, %v2245
  %v2249 = vsub.f32 %v2192, %v2245
  %v2250 = vsub.f32 %v2196, %v2245
  %v2251 = vsub.f32 %v2200, %v2245
  %v2252 = vsub.f32 %v2204, %v2245
  %v2253 = vsub.f32 %v2208, %v2245
  %v2254 = vsub.f32 %v2212, %v2245
  %v2255 = vsub.f32 %v2216, %v2245
  %v2256 = vsub.f32 %v2220, %v2245
  %v2257 = vsub.f32 %v2224, %v2245
  %v2258 = vsub.f32 %v2228, %v2245
  %v2259 = vsub.f32 %v2232, %v2245
  %v2260 = vsub.f32 %v2236, %v2245
  %v2261 = vsub.f32 %v2240, %v2245
  %v2262 = vand.u32 2147483647, %v2246
  %v2263 = vand.u32 2147483647, %v2247
  %v2264 = vand.u32 2147483647, %v2248
  %v2265 = vand.u32 2147483647, %v2249
  %v2266 = vand.u32 2147483647, %v2250
  %v2267 = vand.u32 2147483647, %v2251
  %v2268 = vand.u32 2147483647, %v2252
  %v2269 = vand.u32 2147483647, %v2253
  %v2270 = vand.u32 2147483647, %v2254
  %v2271 = vand.u32 2147483647, %v2255
  %v2272 = vand.u32 2147483647, %v2256
  %v2273 = vand.u32 2147483647, %v2257
  %v2274 = vand.u32 2147483647, %v2258
  %v2275 = vand.u32 2147483647, %v2259
  %v2276 = vand.u32 2147483647, %v2260
  %v2277 = vand.u32 2147483647, %v2261
  %v2278 = vadd.f32 %v2162, %v2262
  %v2279 = vadd.f32 %v2163, %v2263
  %v2280 = vadd.f32 %v2164, %v2264
  %v2281 = vadd.f32 %v2165, %v2265
  %v2282 = vadd.f32 %v2166, %v2266
  %v2283 = vadd.f32 %v2167, %v2267
  %v2284 = vadd.f32 %v2168, %v2268
  %v2285 = vadd.f32 %v2169, %v2269
  %v2286 = vadd.f32 %v2170, %v2270
  %v2287 = vadd.f32 %v2171, %v2271
  %v2288 = vadd.f32 %v2172, %v2272
  %v2289 = vadd.f32 %v2173, %v2273
  %v2290 = vadd.f32 %v2174, %v2274
  %v2291 = vadd.f32 %v2175, %v2275
  %v2292 = vadd.f32 %v2176, %v2276
  %v2293 = vadd.f32 %v2177, %v2277
  %2294 = vset.pattern.permute.xlu0 19
  %2295 = vperm.xlu0 %2294, %v37
  %v2296 = vpop.permute.xlu0 %2295
  %2298 = vset.pattern.permute.xlu0 19
  %2299 = vperm.xlu0 %2298, %v38
  %v2300 = vpop.permute.xlu0 %2299
  %2302 = vset.pattern.permute.xlu0 19
  %2303 = vperm.xlu0 %2302, %v39
  %v2304 = vpop.permute.xlu0 %2303
  %2306 = vset.pattern.permute.xlu0 19
  %2307 = vperm.xlu0 %2306, %v40
  %v2308 = vpop.permute.xlu0 %2307
  %2310 = vset.pattern.permute.xlu0 19
  %2311 = vperm.xlu0 %2310, %v41
  %v2312 = vpop.permute.xlu0 %2311
  %2314 = vset.pattern.permute.xlu0 19
  %2315 = vperm.xlu0 %2314, %v42
  %v2316 = vpop.permute.xlu0 %2315
  %2318 = vset.pattern.permute.xlu0 19
  %2319 = vperm.xlu0 %2318, %v43
  %v2320 = vpop.permute.xlu0 %2319
  %2322 = vset.pattern.permute.xlu0 19
  %2323 = vperm.xlu0 %2322, %v44
  %v2324 = vpop.permute.xlu0 %2323
  %2326 = vset.pattern.permute.xlu0 19
  %2327 = vperm.xlu0 %2326, %v45
  %v2328 = vpop.permute.xlu0 %2327
  %2330 = vset.pattern.permute.xlu0 19
  %2331 = vperm.xlu0 %2330, %v46
  %v2332 = vpop.permute.xlu0 %2331
  %2334 = vset.pattern.permute.xlu0 19
  %2335 = vperm.xlu0 %2334, %v47
  %v2336 = vpop.permute.xlu0 %2335
  %2338 = vset.pattern.permute.xlu0 19
  %2339 = vperm.xlu0 %2338, %v48
  %v2340 = vpop.permute.xlu0 %2339
  %2342 = vset.pattern.permute.xlu0 19
  %2343 = vperm.xlu0 %2342, %v49
  %v2344 = vpop.permute.xlu0 %2343
  %2346 = vset.pattern.permute.xlu0 19
  %2347 = vperm.xlu0 %2346, %v50
  %v2348 = vpop.permute.xlu0 %2347
  %2350 = vset.pattern.permute.xlu0 19
  %2351 = vperm.xlu0 %2350, %v51
  %v2352 = vpop.permute.xlu0 %2351
  %2354 = vset.pattern.permute.xlu0 19
  %2355 = vperm.xlu0 %2354, %v52
  %v2356 = vpop.permute.xlu0 %2355
  %v2358 = vlaneseq
  %v2359 = vshrl.u32 %v2358, 7
  %v2360 = vsub.s32 3, %v2359
  %v2361 = vrot.slane %v55, %v2360
  %v2362 = vsub.f32 %v2296, %v2361
  %v2363 = vsub.f32 %v2300, %v2361
  %v2364 = vsub.f32 %v2304, %v2361
  %v2365 = vsub.f32 %v2308, %v2361
  %v2366 = vsub.f32 %v2312, %v2361
  %v2367 = vsub.f32 %v2316, %v2361
  %v2368 = vsub.f32 %v2320, %v2361
  %v2369 = vsub.f32 %v2324, %v2361
  %v2370 = vsub.f32 %v2328, %v2361
  %v2371 = vsub.f32 %v2332, %v2361
  %v2372 = vsub.f32 %v2336, %v2361
  %v2373 = vsub.f32 %v2340, %v2361
  %v2374 = vsub.f32 %v2344, %v2361
  %v2375 = vsub.f32 %v2348, %v2361
  %v2376 = vsub.f32 %v2352, %v2361
  %v2377 = vsub.f32 %v2356, %v2361
  %v2378 = vand.u32 2147483647, %v2362
  %v2379 = vand.u32 2147483647, %v2363
  %v2380 = vand.u32 2147483647, %v2364
  %v2381 = vand.u32 2147483647, %v2365
  %v2382 = vand.u32 2147483647, %v2366
  %v2383 = vand.u32 2147483647, %v2367
  %v2384 = vand.u32 2147483647, %v2368
  %v2385 = vand.u32 2147483647, %v2369
  %v2386 = vand.u32 2147483647, %v2370
  %v2387 = vand.u32 2147483647, %v2371
  %v2388 = vand.u32 2147483647, %v2372
  %v2389 = vand.u32 2147483647, %v2373
  %v2390 = vand.u32 2147483647, %v2374
  %v2391 = vand.u32 2147483647, %v2375
  %v2392 = vand.u32 2147483647, %v2376
  %v2393 = vand.u32 2147483647, %v2377
  %v2394 = vadd.f32 %v2278, %v2378
  %v2395 = vadd.f32 %v2279, %v2379
  %v2396 = vadd.f32 %v2280, %v2380
  %v2397 = vadd.f32 %v2281, %v2381
  %v2398 = vadd.f32 %v2282, %v2382
  %v2399 = vadd.f32 %v2283, %v2383
  %v2400 = vadd.f32 %v2284, %v2384
  %v2401 = vadd.f32 %v2285, %v2385
  %v2402 = vadd.f32 %v2286, %v2386
  %v2403 = vadd.f32 %v2287, %v2387
  %v2404 = vadd.f32 %v2288, %v2388
  %v2405 = vadd.f32 %v2289, %v2389
  %v2406 = vadd.f32 %v2290, %v2390
  %v2407 = vadd.f32 %v2291, %v2391
  %v2408 = vadd.f32 %v2292, %v2392
  %v2409 = vadd.f32 %v2293, %v2393
  %2410 = vset.pattern.permute.xlu0 20
  %2411 = vperm.xlu0 %2410, %v37
  %v2412 = vpop.permute.xlu0 %2411
  %2414 = vset.pattern.permute.xlu0 20
  %2415 = vperm.xlu0 %2414, %v38
  %v2416 = vpop.permute.xlu0 %2415
  %2418 = vset.pattern.permute.xlu0 20
  %2419 = vperm.xlu0 %2418, %v39
  %v2420 = vpop.permute.xlu0 %2419
  %2422 = vset.pattern.permute.xlu0 20
  %2423 = vperm.xlu0 %2422, %v40
  %v2424 = vpop.permute.xlu0 %2423
  %2426 = vset.pattern.permute.xlu0 20
  %2427 = vperm.xlu0 %2426, %v41
  %v2428 = vpop.permute.xlu0 %2427
  %2430 = vset.pattern.permute.xlu0 20
  %2431 = vperm.xlu0 %2430, %v42
  %v2432 = vpop.permute.xlu0 %2431
  %2434 = vset.pattern.permute.xlu0 20
  %2435 = vperm.xlu0 %2434, %v43
  %v2436 = vpop.permute.xlu0 %2435
  %2438 = vset.pattern.permute.xlu0 20
  %2439 = vperm.xlu0 %2438, %v44
  %v2440 = vpop.permute.xlu0 %2439
  %2442 = vset.pattern.permute.xlu0 20
  %2443 = vperm.xlu0 %2442, %v45
  %v2444 = vpop.permute.xlu0 %2443
  %2446 = vset.pattern.permute.xlu0 20
  %2447 = vperm.xlu0 %2446, %v46
  %v2448 = vpop.permute.xlu0 %2447
  %2450 = vset.pattern.permute.xlu0 20
  %2451 = vperm.xlu0 %2450, %v47
  %v2452 = vpop.permute.xlu0 %2451
  %2454 = vset.pattern.permute.xlu0 20
  %2455 = vperm.xlu0 %2454, %v48
  %v2456 = vpop.permute.xlu0 %2455
  %2458 = vset.pattern.permute.xlu0 20
  %2459 = vperm.xlu0 %2458, %v49
  %v2460 = vpop.permute.xlu0 %2459
  %2462 = vset.pattern.permute.xlu0 20
  %2463 = vperm.xlu0 %2462, %v50
  %v2464 = vpop.permute.xlu0 %2463
  %2466 = vset.pattern.permute.xlu0 20
  %2467 = vperm.xlu0 %2466, %v51
  %v2468 = vpop.permute.xlu0 %2467
  %2470 = vset.pattern.permute.xlu0 20
  %2471 = vperm.xlu0 %2470, %v52
  %v2472 = vpop.permute.xlu0 %2471
  %v2474 = vlaneseq
  %v2475 = vshrl.u32 %v2474, 7
  %v2476 = vsub.s32 4, %v2475
  %v2477 = vrot.slane %v55, %v2476
  %v2478 = vsub.f32 %v2412, %v2477
  %v2479 = vsub.f32 %v2416, %v2477
  %v2480 = vsub.f32 %v2420, %v2477
  %v2481 = vsub.f32 %v2424, %v2477
  %v2482 = vsub.f32 %v2428, %v2477
  %v2483 = vsub.f32 %v2432, %v2477
  %v2484 = vsub.f32 %v2436, %v2477
  %v2485 = vsub.f32 %v2440, %v2477
  %v2486 = vsub.f32 %v2444, %v2477
  %v2487 = vsub.f32 %v2448, %v2477
  %v2488 = vsub.f32 %v2452, %v2477
  %v2489 = vsub.f32 %v2456, %v2477
  %v2490 = vsub.f32 %v2460, %v2477
  %v2491 = vsub.f32 %v2464, %v2477
  %v2492 = vsub.f32 %v2468, %v2477
  %v2493 = vsub.f32 %v2472, %v2477
  %v2494 = vand.u32 2147483647, %v2478
  %v2495 = vand.u32 2147483647, %v2479
  %v2496 = vand.u32 2147483647, %v2480
  %v2497 = vand.u32 2147483647, %v2481
  %v2498 = vand.u32 2147483647, %v2482
  %v2499 = vand.u32 2147483647, %v2483
  %v2500 = vand.u32 2147483647, %v2484
  %v2501 = vand.u32 2147483647, %v2485
  %v2502 = vand.u32 2147483647, %v2486
  %v2503 = vand.u32 2147483647, %v2487
  %v2504 = vand.u32 2147483647, %v2488
  %v2505 = vand.u32 2147483647, %v2489
  %v2506 = vand.u32 2147483647, %v2490
  %v2507 = vand.u32 2147483647, %v2491
  %v2508 = vand.u32 2147483647, %v2492
  %v2509 = vand.u32 2147483647, %v2493
  %v2510 = vadd.f32 %v2394, %v2494
  %v2511 = vadd.f32 %v2395, %v2495
  %v2512 = vadd.f32 %v2396, %v2496
  %v2513 = vadd.f32 %v2397, %v2497
  %v2514 = vadd.f32 %v2398, %v2498
  %v2515 = vadd.f32 %v2399, %v2499
  %v2516 = vadd.f32 %v2400, %v2500
  %v2517 = vadd.f32 %v2401, %v2501
  %v2518 = vadd.f32 %v2402, %v2502
  %v2519 = vadd.f32 %v2403, %v2503
  %v2520 = vadd.f32 %v2404, %v2504
  %v2521 = vadd.f32 %v2405, %v2505
  %v2522 = vadd.f32 %v2406, %v2506
  %v2523 = vadd.f32 %v2407, %v2507
  %v2524 = vadd.f32 %v2408, %v2508
  %v2525 = vadd.f32 %v2409, %v2509
  %2526 = vset.pattern.permute.xlu0 21
  %2527 = vperm.xlu0 %2526, %v37
  %v2528 = vpop.permute.xlu0 %2527
  %2530 = vset.pattern.permute.xlu0 21
  %2531 = vperm.xlu0 %2530, %v38
  %v2532 = vpop.permute.xlu0 %2531
  %2534 = vset.pattern.permute.xlu0 21
  %2535 = vperm.xlu0 %2534, %v39
  %v2536 = vpop.permute.xlu0 %2535
  %2538 = vset.pattern.permute.xlu0 21
  %2539 = vperm.xlu0 %2538, %v40
  %v2540 = vpop.permute.xlu0 %2539
  %2542 = vset.pattern.permute.xlu0 21
  %2543 = vperm.xlu0 %2542, %v41
  %v2544 = vpop.permute.xlu0 %2543
  %2546 = vset.pattern.permute.xlu0 21
  %2547 = vperm.xlu0 %2546, %v42
  %v2548 = vpop.permute.xlu0 %2547
  %2550 = vset.pattern.permute.xlu0 21
  %2551 = vperm.xlu0 %2550, %v43
  %v2552 = vpop.permute.xlu0 %2551
  %2554 = vset.pattern.permute.xlu0 21
  %2555 = vperm.xlu0 %2554, %v44
  %v2556 = vpop.permute.xlu0 %2555
  %2558 = vset.pattern.permute.xlu0 21
  %2559 = vperm.xlu0 %2558, %v45
  %v2560 = vpop.permute.xlu0 %2559
  %2562 = vset.pattern.permute.xlu0 21
  %2563 = vperm.xlu0 %2562, %v46
  %v2564 = vpop.permute.xlu0 %2563
  %2566 = vset.pattern.permute.xlu0 21
  %2567 = vperm.xlu0 %2566, %v47
  %v2568 = vpop.permute.xlu0 %2567
  %2570 = vset.pattern.permute.xlu0 21
  %2571 = vperm.xlu0 %2570, %v48
  %v2572 = vpop.permute.xlu0 %2571
  %2574 = vset.pattern.permute.xlu0 21
  %2575 = vperm.xlu0 %2574, %v49
  %v2576 = vpop.permute.xlu0 %2575
  %2578 = vset.pattern.permute.xlu0 21
  %2579 = vperm.xlu0 %2578, %v50
  %v2580 = vpop.permute.xlu0 %2579
  %2582 = vset.pattern.permute.xlu0 21
  %2583 = vperm.xlu0 %2582, %v51
  %v2584 = vpop.permute.xlu0 %2583
  %2586 = vset.pattern.permute.xlu0 21
  %2587 = vperm.xlu0 %2586, %v52
  %v2588 = vpop.permute.xlu0 %2587
  %v2590 = vlaneseq
  %v2591 = vshrl.u32 %v2590, 7
  %v2592 = vsub.s32 5, %v2591
  %v2593 = vrot.slane %v55, %v2592
  %v2594 = vsub.f32 %v2528, %v2593
  %v2595 = vsub.f32 %v2532, %v2593
  %v2596 = vsub.f32 %v2536, %v2593
  %v2597 = vsub.f32 %v2540, %v2593
  %v2598 = vsub.f32 %v2544, %v2593
  %v2599 = vsub.f32 %v2548, %v2593
  %v2600 = vsub.f32 %v2552, %v2593
  %v2601 = vsub.f32 %v2556, %v2593
  %v2602 = vsub.f32 %v2560, %v2593
  %v2603 = vsub.f32 %v2564, %v2593
  %v2604 = vsub.f32 %v2568, %v2593
  %v2605 = vsub.f32 %v2572, %v2593
  %v2606 = vsub.f32 %v2576, %v2593
  %v2607 = vsub.f32 %v2580, %v2593
  %v2608 = vsub.f32 %v2584, %v2593
  %v2609 = vsub.f32 %v2588, %v2593
  %v2610 = vand.u32 2147483647, %v2594
  %v2611 = vand.u32 2147483647, %v2595
  %v2612 = vand.u32 2147483647, %v2596
  %v2613 = vand.u32 2147483647, %v2597
  %v2614 = vand.u32 2147483647, %v2598
  %v2615 = vand.u32 2147483647, %v2599
  %v2616 = vand.u32 2147483647, %v2600
  %v2617 = vand.u32 2147483647, %v2601
  %v2618 = vand.u32 2147483647, %v2602
  %v2619 = vand.u32 2147483647, %v2603
  %v2620 = vand.u32 2147483647, %v2604
  %v2621 = vand.u32 2147483647, %v2605
  %v2622 = vand.u32 2147483647, %v2606
  %v2623 = vand.u32 2147483647, %v2607
  %v2624 = vand.u32 2147483647, %v2608
  %v2625 = vand.u32 2147483647, %v2609
  %v2626 = vadd.f32 %v2510, %v2610
  %v2627 = vadd.f32 %v2511, %v2611
  %v2628 = vadd.f32 %v2512, %v2612
  %v2629 = vadd.f32 %v2513, %v2613
  %v2630 = vadd.f32 %v2514, %v2614
  %v2631 = vadd.f32 %v2515, %v2615
  %v2632 = vadd.f32 %v2516, %v2616
  %v2633 = vadd.f32 %v2517, %v2617
  %v2634 = vadd.f32 %v2518, %v2618
  %v2635 = vadd.f32 %v2519, %v2619
  %v2636 = vadd.f32 %v2520, %v2620
  %v2637 = vadd.f32 %v2521, %v2621
  %v2638 = vadd.f32 %v2522, %v2622
  %v2639 = vadd.f32 %v2523, %v2623
  %v2640 = vadd.f32 %v2524, %v2624
  %v2641 = vadd.f32 %v2525, %v2625
  %2642 = vset.pattern.permute.xlu0 22
  %2643 = vperm.xlu0 %2642, %v37
  %v2644 = vpop.permute.xlu0 %2643
  %2646 = vset.pattern.permute.xlu0 22
  %2647 = vperm.xlu0 %2646, %v38
  %v2648 = vpop.permute.xlu0 %2647
  %2650 = vset.pattern.permute.xlu0 22
  %2651 = vperm.xlu0 %2650, %v39
  %v2652 = vpop.permute.xlu0 %2651
  %2654 = vset.pattern.permute.xlu0 22
  %2655 = vperm.xlu0 %2654, %v40
  %v2656 = vpop.permute.xlu0 %2655
  %2658 = vset.pattern.permute.xlu0 22
  %2659 = vperm.xlu0 %2658, %v41
  %v2660 = vpop.permute.xlu0 %2659
  %2662 = vset.pattern.permute.xlu0 22
  %2663 = vperm.xlu0 %2662, %v42
  %v2664 = vpop.permute.xlu0 %2663
  %2666 = vset.pattern.permute.xlu0 22
  %2667 = vperm.xlu0 %2666, %v43
  %v2668 = vpop.permute.xlu0 %2667
  %2670 = vset.pattern.permute.xlu0 22
  %2671 = vperm.xlu0 %2670, %v44
  %v2672 = vpop.permute.xlu0 %2671
  %2674 = vset.pattern.permute.xlu0 22
  %2675 = vperm.xlu0 %2674, %v45
  %v2676 = vpop.permute.xlu0 %2675
  %2678 = vset.pattern.permute.xlu0 22
  %2679 = vperm.xlu0 %2678, %v46
  %v2680 = vpop.permute.xlu0 %2679
  %2682 = vset.pattern.permute.xlu0 22
  %2683 = vperm.xlu0 %2682, %v47
  %v2684 = vpop.permute.xlu0 %2683
  %2686 = vset.pattern.permute.xlu0 22
  %2687 = vperm.xlu0 %2686, %v48
  %v2688 = vpop.permute.xlu0 %2687
  %2690 = vset.pattern.permute.xlu0 22
  %2691 = vperm.xlu0 %2690, %v49
  %v2692 = vpop.permute.xlu0 %2691
  %2694 = vset.pattern.permute.xlu0 22
  %2695 = vperm.xlu0 %2694, %v50
  %v2696 = vpop.permute.xlu0 %2695
  %2698 = vset.pattern.permute.xlu0 22
  %2699 = vperm.xlu0 %2698, %v51
  %v2700 = vpop.permute.xlu0 %2699
  %2702 = vset.pattern.permute.xlu0 22
  %2703 = vperm.xlu0 %2702, %v52
  %v2704 = vpop.permute.xlu0 %2703
  %v2706 = vlaneseq
  %v2707 = vshrl.u32 %v2706, 7
  %v2708 = vsub.s32 6, %v2707
  %v2709 = vrot.slane %v55, %v2708
  %v2710 = vsub.f32 %v2644, %v2709
  %v2711 = vsub.f32 %v2648, %v2709
  %v2712 = vsub.f32 %v2652, %v2709
  %v2713 = vsub.f32 %v2656, %v2709
  %v2714 = vsub.f32 %v2660, %v2709
  %v2715 = vsub.f32 %v2664, %v2709
  %v2716 = vsub.f32 %v2668, %v2709
  %v2717 = vsub.f32 %v2672, %v2709
  %v2718 = vsub.f32 %v2676, %v2709
  %v2719 = vsub.f32 %v2680, %v2709
  %v2720 = vsub.f32 %v2684, %v2709
  %v2721 = vsub.f32 %v2688, %v2709
  %v2722 = vsub.f32 %v2692, %v2709
  %v2723 = vsub.f32 %v2696, %v2709
  %v2724 = vsub.f32 %v2700, %v2709
  %v2725 = vsub.f32 %v2704, %v2709
  %v2726 = vand.u32 2147483647, %v2710
  %v2727 = vand.u32 2147483647, %v2711
  %v2728 = vand.u32 2147483647, %v2712
  %v2729 = vand.u32 2147483647, %v2713
  %v2730 = vand.u32 2147483647, %v2714
  %v2731 = vand.u32 2147483647, %v2715
  %v2732 = vand.u32 2147483647, %v2716
  %v2733 = vand.u32 2147483647, %v2717
  %v2734 = vand.u32 2147483647, %v2718
  %v2735 = vand.u32 2147483647, %v2719
  %v2736 = vand.u32 2147483647, %v2720
  %v2737 = vand.u32 2147483647, %v2721
  %v2738 = vand.u32 2147483647, %v2722
  %v2739 = vand.u32 2147483647, %v2723
  %v2740 = vand.u32 2147483647, %v2724
  %v2741 = vand.u32 2147483647, %v2725
  %v2742 = vadd.f32 %v2626, %v2726
  %v2743 = vadd.f32 %v2627, %v2727
  %v2744 = vadd.f32 %v2628, %v2728
  %v2745 = vadd.f32 %v2629, %v2729
  %v2746 = vadd.f32 %v2630, %v2730
  %v2747 = vadd.f32 %v2631, %v2731
  %v2748 = vadd.f32 %v2632, %v2732
  %v2749 = vadd.f32 %v2633, %v2733
  %v2750 = vadd.f32 %v2634, %v2734
  %v2751 = vadd.f32 %v2635, %v2735
  %v2752 = vadd.f32 %v2636, %v2736
  %v2753 = vadd.f32 %v2637, %v2737
  %v2754 = vadd.f32 %v2638, %v2738
  %v2755 = vadd.f32 %v2639, %v2739
  %v2756 = vadd.f32 %v2640, %v2740
  %v2757 = vadd.f32 %v2641, %v2741
  %2758 = vset.pattern.permute.xlu0 23
  %2759 = vperm.xlu0 %2758, %v37
  %v2760 = vpop.permute.xlu0 %2759
  %2762 = vset.pattern.permute.xlu0 23
  %2763 = vperm.xlu0 %2762, %v38
  %v2764 = vpop.permute.xlu0 %2763
  %2766 = vset.pattern.permute.xlu0 23
  %2767 = vperm.xlu0 %2766, %v39
  %v2768 = vpop.permute.xlu0 %2767
  %2770 = vset.pattern.permute.xlu0 23
  %2771 = vperm.xlu0 %2770, %v40
  %v2772 = vpop.permute.xlu0 %2771
  %2774 = vset.pattern.permute.xlu0 23
  %2775 = vperm.xlu0 %2774, %v41
  %v2776 = vpop.permute.xlu0 %2775
  %2778 = vset.pattern.permute.xlu0 23
  %2779 = vperm.xlu0 %2778, %v42
  %v2780 = vpop.permute.xlu0 %2779
  %2782 = vset.pattern.permute.xlu0 23
  %2783 = vperm.xlu0 %2782, %v43
  %v2784 = vpop.permute.xlu0 %2783
  %2786 = vset.pattern.permute.xlu0 23
  %2787 = vperm.xlu0 %2786, %v44
  %v2788 = vpop.permute.xlu0 %2787
  %2790 = vset.pattern.permute.xlu0 23
  %2791 = vperm.xlu0 %2790, %v45
  %v2792 = vpop.permute.xlu0 %2791
  %2794 = vset.pattern.permute.xlu0 23
  %2795 = vperm.xlu0 %2794, %v46
  %v2796 = vpop.permute.xlu0 %2795
  %2798 = vset.pattern.permute.xlu0 23
  %2799 = vperm.xlu0 %2798, %v47
  %v2800 = vpop.permute.xlu0 %2799
  %2802 = vset.pattern.permute.xlu0 23
  %2803 = vperm.xlu0 %2802, %v48
  %v2804 = vpop.permute.xlu0 %2803
  %2806 = vset.pattern.permute.xlu0 23
  %2807 = vperm.xlu0 %2806, %v49
  %v2808 = vpop.permute.xlu0 %2807
  %2810 = vset.pattern.permute.xlu0 23
  %2811 = vperm.xlu0 %2810, %v50
  %v2812 = vpop.permute.xlu0 %2811
  %2814 = vset.pattern.permute.xlu0 23
  %2815 = vperm.xlu0 %2814, %v51
  %v2816 = vpop.permute.xlu0 %2815
  %2818 = vset.pattern.permute.xlu0 23
  %2819 = vperm.xlu0 %2818, %v52
  %v2820 = vpop.permute.xlu0 %2819
  %v2822 = vlaneseq
  %v2823 = vshrl.u32 %v2822, 7
  %v2824 = vsub.s32 7, %v2823
  %v2825 = vrot.slane %v55, %v2824
  %v2826 = vsub.f32 %v2760, %v2825
  %v2827 = vsub.f32 %v2764, %v2825
  %v2828 = vsub.f32 %v2768, %v2825
  %v2829 = vsub.f32 %v2772, %v2825
  %v2830 = vsub.f32 %v2776, %v2825
  %v2831 = vsub.f32 %v2780, %v2825
  %v2832 = vsub.f32 %v2784, %v2825
  %v2833 = vsub.f32 %v2788, %v2825
  %v2834 = vsub.f32 %v2792, %v2825
  %v2835 = vsub.f32 %v2796, %v2825
  %v2836 = vsub.f32 %v2800, %v2825
  %v2837 = vsub.f32 %v2804, %v2825
  %v2838 = vsub.f32 %v2808, %v2825
  %v2839 = vsub.f32 %v2812, %v2825
  %v2840 = vsub.f32 %v2816, %v2825
  %v2841 = vsub.f32 %v2820, %v2825
  %v2842 = vand.u32 2147483647, %v2826
  %v2843 = vand.u32 2147483647, %v2827
  %v2844 = vand.u32 2147483647, %v2828
  %v2845 = vand.u32 2147483647, %v2829
  %v2846 = vand.u32 2147483647, %v2830
  %v2847 = vand.u32 2147483647, %v2831
  %v2848 = vand.u32 2147483647, %v2832
  %v2849 = vand.u32 2147483647, %v2833
  %v2850 = vand.u32 2147483647, %v2834
  %v2851 = vand.u32 2147483647, %v2835
  %v2852 = vand.u32 2147483647, %v2836
  %v2853 = vand.u32 2147483647, %v2837
  %v2854 = vand.u32 2147483647, %v2838
  %v2855 = vand.u32 2147483647, %v2839
  %v2856 = vand.u32 2147483647, %v2840
  %v2857 = vand.u32 2147483647, %v2841
  %v2858 = vadd.f32 %v2742, %v2842
  %v2859 = vadd.f32 %v2743, %v2843
  %v2860 = vadd.f32 %v2744, %v2844
  %v2861 = vadd.f32 %v2745, %v2845
  %v2862 = vadd.f32 %v2746, %v2846
  %v2863 = vadd.f32 %v2747, %v2847
  %v2864 = vadd.f32 %v2748, %v2848
  %v2865 = vadd.f32 %v2749, %v2849
  %v2866 = vadd.f32 %v2750, %v2850
  %v2867 = vadd.f32 %v2751, %v2851
  %v2868 = vadd.f32 %v2752, %v2852
  %v2869 = vadd.f32 %v2753, %v2853
  %v2870 = vadd.f32 %v2754, %v2854
  %v2871 = vadd.f32 %v2755, %v2855
  %v2872 = vadd.f32 %v2756, %v2856
  %v2873 = vadd.f32 %v2757, %v2857
  %2874 = vset.pattern.permute.xlu0 24
  %2875 = vperm.xlu0 %2874, %v37
  %v2876 = vpop.permute.xlu0 %2875
  %2878 = vset.pattern.permute.xlu0 24
  %2879 = vperm.xlu0 %2878, %v38
  %v2880 = vpop.permute.xlu0 %2879
  %2882 = vset.pattern.permute.xlu0 24
  %2883 = vperm.xlu0 %2882, %v39
  %v2884 = vpop.permute.xlu0 %2883
  %2886 = vset.pattern.permute.xlu0 24
  %2887 = vperm.xlu0 %2886, %v40
  %v2888 = vpop.permute.xlu0 %2887
  %2890 = vset.pattern.permute.xlu0 24
  %2891 = vperm.xlu0 %2890, %v41
  %v2892 = vpop.permute.xlu0 %2891
  %2894 = vset.pattern.permute.xlu0 24
  %2895 = vperm.xlu0 %2894, %v42
  %v2896 = vpop.permute.xlu0 %2895
  %2898 = vset.pattern.permute.xlu0 24
  %2899 = vperm.xlu0 %2898, %v43
  %v2900 = vpop.permute.xlu0 %2899
  %2902 = vset.pattern.permute.xlu0 24
  %2903 = vperm.xlu0 %2902, %v44
  %v2904 = vpop.permute.xlu0 %2903
  %2906 = vset.pattern.permute.xlu0 24
  %2907 = vperm.xlu0 %2906, %v45
  %v2908 = vpop.permute.xlu0 %2907
  %2910 = vset.pattern.permute.xlu0 24
  %2911 = vperm.xlu0 %2910, %v46
  %v2912 = vpop.permute.xlu0 %2911
  %2914 = vset.pattern.permute.xlu0 24
  %2915 = vperm.xlu0 %2914, %v47
  %v2916 = vpop.permute.xlu0 %2915
  %2918 = vset.pattern.permute.xlu0 24
  %2919 = vperm.xlu0 %2918, %v48
  %v2920 = vpop.permute.xlu0 %2919
  %2922 = vset.pattern.permute.xlu0 24
  %2923 = vperm.xlu0 %2922, %v49
  %v2924 = vpop.permute.xlu0 %2923
  %2926 = vset.pattern.permute.xlu0 24
  %2927 = vperm.xlu0 %2926, %v50
  %v2928 = vpop.permute.xlu0 %2927
  %2930 = vset.pattern.permute.xlu0 24
  %2931 = vperm.xlu0 %2930, %v51
  %v2932 = vpop.permute.xlu0 %2931
  %2934 = vset.pattern.permute.xlu0 24
  %2935 = vperm.xlu0 %2934, %v52
  %v2936 = vpop.permute.xlu0 %2935
  %v2938 = vlaneseq
  %v2939 = vshrl.u32 %v2938, 7
  %v2940 = vsub.s32 0, %v2939
  %v2941 = vrot.slane %v56, %v2940
  %v2942 = vsub.f32 %v2876, %v2941
  %v2943 = vsub.f32 %v2880, %v2941
  %v2944 = vsub.f32 %v2884, %v2941
  %v2945 = vsub.f32 %v2888, %v2941
  %v2946 = vsub.f32 %v2892, %v2941
  %v2947 = vsub.f32 %v2896, %v2941
  %v2948 = vsub.f32 %v2900, %v2941
  %v2949 = vsub.f32 %v2904, %v2941
  %v2950 = vsub.f32 %v2908, %v2941
  %v2951 = vsub.f32 %v2912, %v2941
  %v2952 = vsub.f32 %v2916, %v2941
  %v2953 = vsub.f32 %v2920, %v2941
  %v2954 = vsub.f32 %v2924, %v2941
  %v2955 = vsub.f32 %v2928, %v2941
  %v2956 = vsub.f32 %v2932, %v2941
  %v2957 = vsub.f32 %v2936, %v2941
  %v2958 = vand.u32 2147483647, %v2942
  %v2959 = vand.u32 2147483647, %v2943
  %v2960 = vand.u32 2147483647, %v2944
  %v2961 = vand.u32 2147483647, %v2945
  %v2962 = vand.u32 2147483647, %v2946
  %v2963 = vand.u32 2147483647, %v2947
  %v2964 = vand.u32 2147483647, %v2948
  %v2965 = vand.u32 2147483647, %v2949
  %v2966 = vand.u32 2147483647, %v2950
  %v2967 = vand.u32 2147483647, %v2951
  %v2968 = vand.u32 2147483647, %v2952
  %v2969 = vand.u32 2147483647, %v2953
  %v2970 = vand.u32 2147483647, %v2954
  %v2971 = vand.u32 2147483647, %v2955
  %v2972 = vand.u32 2147483647, %v2956
  %v2973 = vand.u32 2147483647, %v2957
  %v2974 = vadd.f32 %v2858, %v2958
  %v2975 = vadd.f32 %v2859, %v2959
  %v2976 = vadd.f32 %v2860, %v2960
  %v2977 = vadd.f32 %v2861, %v2961
  %v2978 = vadd.f32 %v2862, %v2962
  %v2979 = vadd.f32 %v2863, %v2963
  %v2980 = vadd.f32 %v2864, %v2964
  %v2981 = vadd.f32 %v2865, %v2965
  %v2982 = vadd.f32 %v2866, %v2966
  %v2983 = vadd.f32 %v2867, %v2967
  %v2984 = vadd.f32 %v2868, %v2968
  %v2985 = vadd.f32 %v2869, %v2969
  %v2986 = vadd.f32 %v2870, %v2970
  %v2987 = vadd.f32 %v2871, %v2971
  %v2988 = vadd.f32 %v2872, %v2972
  %v2989 = vadd.f32 %v2873, %v2973
  %2990 = vset.pattern.permute.xlu0 25
  %2991 = vperm.xlu0 %2990, %v37
  %v2992 = vpop.permute.xlu0 %2991
  %2994 = vset.pattern.permute.xlu0 25
  %2995 = vperm.xlu0 %2994, %v38
  %v2996 = vpop.permute.xlu0 %2995
  %2998 = vset.pattern.permute.xlu0 25
  %2999 = vperm.xlu0 %2998, %v39
  %v3000 = vpop.permute.xlu0 %2999
  %3002 = vset.pattern.permute.xlu0 25
  %3003 = vperm.xlu0 %3002, %v40
  %v3004 = vpop.permute.xlu0 %3003
  %3006 = vset.pattern.permute.xlu0 25
  %3007 = vperm.xlu0 %3006, %v41
  %v3008 = vpop.permute.xlu0 %3007
  %3010 = vset.pattern.permute.xlu0 25
  %3011 = vperm.xlu0 %3010, %v42
  %v3012 = vpop.permute.xlu0 %3011
  %3014 = vset.pattern.permute.xlu0 25
  %3015 = vperm.xlu0 %3014, %v43
  %v3016 = vpop.permute.xlu0 %3015
  %3018 = vset.pattern.permute.xlu0 25
  %3019 = vperm.xlu0 %3018, %v44
  %v3020 = vpop.permute.xlu0 %3019
  %3022 = vset.pattern.permute.xlu0 25
  %3023 = vperm.xlu0 %3022, %v45
  %v3024 = vpop.permute.xlu0 %3023
  %3026 = vset.pattern.permute.xlu0 25
  %3027 = vperm.xlu0 %3026, %v46
  %v3028 = vpop.permute.xlu0 %3027
  %3030 = vset.pattern.permute.xlu0 25
  %3031 = vperm.xlu0 %3030, %v47
  %v3032 = vpop.permute.xlu0 %3031
  %3034 = vset.pattern.permute.xlu0 25
  %3035 = vperm.xlu0 %3034, %v48
  %v3036 = vpop.permute.xlu0 %3035
  %3038 = vset.pattern.permute.xlu0 25
  %3039 = vperm.xlu0 %3038, %v49
  %v3040 = vpop.permute.xlu0 %3039
  %3042 = vset.pattern.permute.xlu0 25
  %3043 = vperm.xlu0 %3042, %v50
  %v3044 = vpop.permute.xlu0 %3043
  %3046 = vset.pattern.permute.xlu0 25
  %3047 = vperm.xlu0 %3046, %v51
  %v3048 = vpop.permute.xlu0 %3047
  %3050 = vset.pattern.permute.xlu0 25
  %3051 = vperm.xlu0 %3050, %v52
  %v3052 = vpop.permute.xlu0 %3051
  %v3054 = vlaneseq
  %v3055 = vshrl.u32 %v3054, 7
  %v3056 = vsub.s32 1, %v3055
  %v3057 = vrot.slane %v56, %v3056
  %v3058 = vsub.f32 %v2992, %v3057
  %v3059 = vsub.f32 %v2996, %v3057
  %v3060 = vsub.f32 %v3000, %v3057
  %v3061 = vsub.f32 %v3004, %v3057
  %v3062 = vsub.f32 %v3008, %v3057
  %v3063 = vsub.f32 %v3012, %v3057
  %v3064 = vsub.f32 %v3016, %v3057
  %v3065 = vsub.f32 %v3020, %v3057
  %v3066 = vsub.f32 %v3024, %v3057
  %v3067 = vsub.f32 %v3028, %v3057
  %v3068 = vsub.f32 %v3032, %v3057
  %v3069 = vsub.f32 %v3036, %v3057
  %v3070 = vsub.f32 %v3040, %v3057
  %v3071 = vsub.f32 %v3044, %v3057
  %v3072 = vsub.f32 %v3048, %v3057
  %v3073 = vsub.f32 %v3052, %v3057
  %v3074 = vand.u32 2147483647, %v3058
  %v3075 = vand.u32 2147483647, %v3059
  %v3076 = vand.u32 2147483647, %v3060
  %v3077 = vand.u32 2147483647, %v3061
  %v3078 = vand.u32 2147483647, %v3062
  %v3079 = vand.u32 2147483647, %v3063
  %v3080 = vand.u32 2147483647, %v3064
  %v3081 = vand.u32 2147483647, %v3065
  %v3082 = vand.u32 2147483647, %v3066
  %v3083 = vand.u32 2147483647, %v3067
  %v3084 = vand.u32 2147483647, %v3068
  %v3085 = vand.u32 2147483647, %v3069
  %v3086 = vand.u32 2147483647, %v3070
  %v3087 = vand.u32 2147483647, %v3071
  %v3088 = vand.u32 2147483647, %v3072
  %v3089 = vand.u32 2147483647, %v3073
  %v3090 = vadd.f32 %v2974, %v3074
  %v3091 = vadd.f32 %v2975, %v3075
  %v3092 = vadd.f32 %v2976, %v3076
  %v3093 = vadd.f32 %v2977, %v3077
  %v3094 = vadd.f32 %v2978, %v3078
  %v3095 = vadd.f32 %v2979, %v3079
  %v3096 = vadd.f32 %v2980, %v3080
  %v3097 = vadd.f32 %v2981, %v3081
  %v3098 = vadd.f32 %v2982, %v3082
  %v3099 = vadd.f32 %v2983, %v3083
  %v3100 = vadd.f32 %v2984, %v3084
  %v3101 = vadd.f32 %v2985, %v3085
  %v3102 = vadd.f32 %v2986, %v3086
  %v3103 = vadd.f32 %v2987, %v3087
  %v3104 = vadd.f32 %v2988, %v3088
  %v3105 = vadd.f32 %v2989, %v3089
  %3106 = vset.pattern.permute.xlu0 26
  %3107 = vperm.xlu0 %3106, %v37
  %v3108 = vpop.permute.xlu0 %3107
  %3110 = vset.pattern.permute.xlu0 26
  %3111 = vperm.xlu0 %3110, %v38
  %v3112 = vpop.permute.xlu0 %3111
  %3114 = vset.pattern.permute.xlu0 26
  %3115 = vperm.xlu0 %3114, %v39
  %v3116 = vpop.permute.xlu0 %3115
  %3118 = vset.pattern.permute.xlu0 26
  %3119 = vperm.xlu0 %3118, %v40
  %v3120 = vpop.permute.xlu0 %3119
  %3122 = vset.pattern.permute.xlu0 26
  %3123 = vperm.xlu0 %3122, %v41
  %v3124 = vpop.permute.xlu0 %3123
  %3126 = vset.pattern.permute.xlu0 26
  %3127 = vperm.xlu0 %3126, %v42
  %v3128 = vpop.permute.xlu0 %3127
  %3130 = vset.pattern.permute.xlu0 26
  %3131 = vperm.xlu0 %3130, %v43
  %v3132 = vpop.permute.xlu0 %3131
  %3134 = vset.pattern.permute.xlu0 26
  %3135 = vperm.xlu0 %3134, %v44
  %v3136 = vpop.permute.xlu0 %3135
  %3138 = vset.pattern.permute.xlu0 26
  %3139 = vperm.xlu0 %3138, %v45
  %v3140 = vpop.permute.xlu0 %3139
  %3142 = vset.pattern.permute.xlu0 26
  %3143 = vperm.xlu0 %3142, %v46
  %v3144 = vpop.permute.xlu0 %3143
  %3146 = vset.pattern.permute.xlu0 26
  %3147 = vperm.xlu0 %3146, %v47
  %v3148 = vpop.permute.xlu0 %3147
  %3150 = vset.pattern.permute.xlu0 26
  %3151 = vperm.xlu0 %3150, %v48
  %v3152 = vpop.permute.xlu0 %3151
  %3154 = vset.pattern.permute.xlu0 26
  %3155 = vperm.xlu0 %3154, %v49
  %v3156 = vpop.permute.xlu0 %3155
  %3158 = vset.pattern.permute.xlu0 26
  %3159 = vperm.xlu0 %3158, %v50
  %v3160 = vpop.permute.xlu0 %3159
  %3162 = vset.pattern.permute.xlu0 26
  %3163 = vperm.xlu0 %3162, %v51
  %v3164 = vpop.permute.xlu0 %3163
  %3166 = vset.pattern.permute.xlu0 26
  %3167 = vperm.xlu0 %3166, %v52
  %v3168 = vpop.permute.xlu0 %3167
  %v3170 = vlaneseq
  %v3171 = vshrl.u32 %v3170, 7
  %v3172 = vsub.s32 2, %v3171
  %v3173 = vrot.slane %v56, %v3172
  %v3174 = vsub.f32 %v3108, %v3173
  %v3175 = vsub.f32 %v3112, %v3173
  %v3176 = vsub.f32 %v3116, %v3173
  %v3177 = vsub.f32 %v3120, %v3173
  %v3178 = vsub.f32 %v3124, %v3173
  %v3179 = vsub.f32 %v3128, %v3173
  %v3180 = vsub.f32 %v3132, %v3173
  %v3181 = vsub.f32 %v3136, %v3173
  %v3182 = vsub.f32 %v3140, %v3173
  %v3183 = vsub.f32 %v3144, %v3173
  %v3184 = vsub.f32 %v3148, %v3173
  %v3185 = vsub.f32 %v3152, %v3173
  %v3186 = vsub.f32 %v3156, %v3173
  %v3187 = vsub.f32 %v3160, %v3173
  %v3188 = vsub.f32 %v3164, %v3173
  %v3189 = vsub.f32 %v3168, %v3173
  %v3190 = vand.u32 2147483647, %v3174
  %v3191 = vand.u32 2147483647, %v3175
  %v3192 = vand.u32 2147483647, %v3176
  %v3193 = vand.u32 2147483647, %v3177
  %v3194 = vand.u32 2147483647, %v3178
  %v3195 = vand.u32 2147483647, %v3179
  %v3196 = vand.u32 2147483647, %v3180
  %v3197 = vand.u32 2147483647, %v3181
  %v3198 = vand.u32 2147483647, %v3182
  %v3199 = vand.u32 2147483647, %v3183
  %v3200 = vand.u32 2147483647, %v3184
  %v3201 = vand.u32 2147483647, %v3185
  %v3202 = vand.u32 2147483647, %v3186
  %v3203 = vand.u32 2147483647, %v3187
  %v3204 = vand.u32 2147483647, %v3188
  %v3205 = vand.u32 2147483647, %v3189
  %v3206 = vadd.f32 %v3090, %v3190
  %v3207 = vadd.f32 %v3091, %v3191
  %v3208 = vadd.f32 %v3092, %v3192
  %v3209 = vadd.f32 %v3093, %v3193
  %v3210 = vadd.f32 %v3094, %v3194
  %v3211 = vadd.f32 %v3095, %v3195
  %v3212 = vadd.f32 %v3096, %v3196
  %v3213 = vadd.f32 %v3097, %v3197
  %v3214 = vadd.f32 %v3098, %v3198
  %v3215 = vadd.f32 %v3099, %v3199
  %v3216 = vadd.f32 %v3100, %v3200
  %v3217 = vadd.f32 %v3101, %v3201
  %v3218 = vadd.f32 %v3102, %v3202
  %v3219 = vadd.f32 %v3103, %v3203
  %v3220 = vadd.f32 %v3104, %v3204
  %v3221 = vadd.f32 %v3105, %v3205
  %3222 = vset.pattern.permute.xlu0 27
  %3223 = vperm.xlu0 %3222, %v37
  %v3224 = vpop.permute.xlu0 %3223
  %3226 = vset.pattern.permute.xlu0 27
  %3227 = vperm.xlu0 %3226, %v38
  %v3228 = vpop.permute.xlu0 %3227
  %3230 = vset.pattern.permute.xlu0 27
  %3231 = vperm.xlu0 %3230, %v39
  %v3232 = vpop.permute.xlu0 %3231
  %3234 = vset.pattern.permute.xlu0 27
  %3235 = vperm.xlu0 %3234, %v40
  %v3236 = vpop.permute.xlu0 %3235
  %3238 = vset.pattern.permute.xlu0 27
  %3239 = vperm.xlu0 %3238, %v41
  %v3240 = vpop.permute.xlu0 %3239
  %3242 = vset.pattern.permute.xlu0 27
  %3243 = vperm.xlu0 %3242, %v42
  %v3244 = vpop.permute.xlu0 %3243
  %3246 = vset.pattern.permute.xlu0 27
  %3247 = vperm.xlu0 %3246, %v43
  %v3248 = vpop.permute.xlu0 %3247
  %3250 = vset.pattern.permute.xlu0 27
  %3251 = vperm.xlu0 %3250, %v44
  %v3252 = vpop.permute.xlu0 %3251
  %3254 = vset.pattern.permute.xlu0 27
  %3255 = vperm.xlu0 %3254, %v45
  %v3256 = vpop.permute.xlu0 %3255
  %3258 = vset.pattern.permute.xlu0 27
  %3259 = vperm.xlu0 %3258, %v46
  %v3260 = vpop.permute.xlu0 %3259
  %3262 = vset.pattern.permute.xlu0 27
  %3263 = vperm.xlu0 %3262, %v47
  %v3264 = vpop.permute.xlu0 %3263
  %3266 = vset.pattern.permute.xlu0 27
  %3267 = vperm.xlu0 %3266, %v48
  %v3268 = vpop.permute.xlu0 %3267
  %3270 = vset.pattern.permute.xlu0 27
  %3271 = vperm.xlu0 %3270, %v49
  %v3272 = vpop.permute.xlu0 %3271
  %3274 = vset.pattern.permute.xlu0 27
  %3275 = vperm.xlu0 %3274, %v50
  %v3276 = vpop.permute.xlu0 %3275
  %3278 = vset.pattern.permute.xlu0 27
  %3279 = vperm.xlu0 %3278, %v51
  %v3280 = vpop.permute.xlu0 %3279
  %3282 = vset.pattern.permute.xlu0 27
  %3283 = vperm.xlu0 %3282, %v52
  %v3284 = vpop.permute.xlu0 %3283
  %v3286 = vlaneseq
  %v3287 = vshrl.u32 %v3286, 7
  %v3288 = vsub.s32 3, %v3287
  %v3289 = vrot.slane %v56, %v3288
  %v3290 = vsub.f32 %v3224, %v3289
  %v3291 = vsub.f32 %v3228, %v3289
  %v3292 = vsub.f32 %v3232, %v3289
  %v3293 = vsub.f32 %v3236, %v3289
  %v3294 = vsub.f32 %v3240, %v3289
  %v3295 = vsub.f32 %v3244, %v3289
  %v3296 = vsub.f32 %v3248, %v3289
  %v3297 = vsub.f32 %v3252, %v3289
  %v3298 = vsub.f32 %v3256, %v3289
  %v3299 = vsub.f32 %v3260, %v3289
  %v3300 = vsub.f32 %v3264, %v3289
  %v3301 = vsub.f32 %v3268, %v3289
  %v3302 = vsub.f32 %v3272, %v3289
  %v3303 = vsub.f32 %v3276, %v3289
  %v3304 = vsub.f32 %v3280, %v3289
  %v3305 = vsub.f32 %v3284, %v3289
  %v3306 = vand.u32 2147483647, %v3290
  %v3307 = vand.u32 2147483647, %v3291
  %v3308 = vand.u32 2147483647, %v3292
  %v3309 = vand.u32 2147483647, %v3293
  %v3310 = vand.u32 2147483647, %v3294
  %v3311 = vand.u32 2147483647, %v3295
  %v3312 = vand.u32 2147483647, %v3296
  %v3313 = vand.u32 2147483647, %v3297
  %v3314 = vand.u32 2147483647, %v3298
  %v3315 = vand.u32 2147483647, %v3299
  %v3316 = vand.u32 2147483647, %v3300
  %v3317 = vand.u32 2147483647, %v3301
  %v3318 = vand.u32 2147483647, %v3302
  %v3319 = vand.u32 2147483647, %v3303
  %v3320 = vand.u32 2147483647, %v3304
  %v3321 = vand.u32 2147483647, %v3305
  %v3322 = vadd.f32 %v3206, %v3306
  %v3323 = vadd.f32 %v3207, %v3307
  %v3324 = vadd.f32 %v3208, %v3308
  %v3325 = vadd.f32 %v3209, %v3309
  %v3326 = vadd.f32 %v3210, %v3310
  %v3327 = vadd.f32 %v3211, %v3311
  %v3328 = vadd.f32 %v3212, %v3312
  %v3329 = vadd.f32 %v3213, %v3313
  %v3330 = vadd.f32 %v3214, %v3314
  %v3331 = vadd.f32 %v3215, %v3315
  %v3332 = vadd.f32 %v3216, %v3316
  %v3333 = vadd.f32 %v3217, %v3317
  %v3334 = vadd.f32 %v3218, %v3318
  %v3335 = vadd.f32 %v3219, %v3319
  %v3336 = vadd.f32 %v3220, %v3320
  %v3337 = vadd.f32 %v3221, %v3321
  %3338 = vset.pattern.permute.xlu0 28
  %3339 = vperm.xlu0 %3338, %v37
  %v3340 = vpop.permute.xlu0 %3339
  %3342 = vset.pattern.permute.xlu0 28
  %3343 = vperm.xlu0 %3342, %v38
  %v3344 = vpop.permute.xlu0 %3343
  %3346 = vset.pattern.permute.xlu0 28
  %3347 = vperm.xlu0 %3346, %v39
  %v3348 = vpop.permute.xlu0 %3347
  %3350 = vset.pattern.permute.xlu0 28
  %3351 = vperm.xlu0 %3350, %v40
  %v3352 = vpop.permute.xlu0 %3351
  %3354 = vset.pattern.permute.xlu0 28
  %3355 = vperm.xlu0 %3354, %v41
  %v3356 = vpop.permute.xlu0 %3355
  %3358 = vset.pattern.permute.xlu0 28
  %3359 = vperm.xlu0 %3358, %v42
  %v3360 = vpop.permute.xlu0 %3359
  %3362 = vset.pattern.permute.xlu0 28
  %3363 = vperm.xlu0 %3362, %v43
  %v3364 = vpop.permute.xlu0 %3363
  %3366 = vset.pattern.permute.xlu0 28
  %3367 = vperm.xlu0 %3366, %v44
  %v3368 = vpop.permute.xlu0 %3367
  %3370 = vset.pattern.permute.xlu0 28
  %3371 = vperm.xlu0 %3370, %v45
  %v3372 = vpop.permute.xlu0 %3371
  %3374 = vset.pattern.permute.xlu0 28
  %3375 = vperm.xlu0 %3374, %v46
  %v3376 = vpop.permute.xlu0 %3375
  %3378 = vset.pattern.permute.xlu0 28
  %3379 = vperm.xlu0 %3378, %v47
  %v3380 = vpop.permute.xlu0 %3379
  %3382 = vset.pattern.permute.xlu0 28
  %3383 = vperm.xlu0 %3382, %v48
  %v3384 = vpop.permute.xlu0 %3383
  %3386 = vset.pattern.permute.xlu0 28
  %3387 = vperm.xlu0 %3386, %v49
  %v3388 = vpop.permute.xlu0 %3387
  %3390 = vset.pattern.permute.xlu0 28
  %3391 = vperm.xlu0 %3390, %v50
  %v3392 = vpop.permute.xlu0 %3391
  %3394 = vset.pattern.permute.xlu0 28
  %3395 = vperm.xlu0 %3394, %v51
  %v3396 = vpop.permute.xlu0 %3395
  %3398 = vset.pattern.permute.xlu0 28
  %3399 = vperm.xlu0 %3398, %v52
  %v3400 = vpop.permute.xlu0 %3399
  %v3402 = vlaneseq
  %v3403 = vshrl.u32 %v3402, 7
  %v3404 = vsub.s32 4, %v3403
  %v3405 = vrot.slane %v56, %v3404
  %v3406 = vsub.f32 %v3340, %v3405
  %v3407 = vsub.f32 %v3344, %v3405
  %v3408 = vsub.f32 %v3348, %v3405
  %v3409 = vsub.f32 %v3352, %v3405
  %v3410 = vsub.f32 %v3356, %v3405
  %v3411 = vsub.f32 %v3360, %v3405
  %v3412 = vsub.f32 %v3364, %v3405
  %v3413 = vsub.f32 %v3368, %v3405
  %v3414 = vsub.f32 %v3372, %v3405
  %v3415 = vsub.f32 %v3376, %v3405
  %v3416 = vsub.f32 %v3380, %v3405
  %v3417 = vsub.f32 %v3384, %v3405
  %v3418 = vsub.f32 %v3388, %v3405
  %v3419 = vsub.f32 %v3392, %v3405
  %v3420 = vsub.f32 %v3396, %v3405
  %v3421 = vsub.f32 %v3400, %v3405
  %v3422 = vand.u32 2147483647, %v3406
  %v3423 = vand.u32 2147483647, %v3407
  %v3424 = vand.u32 2147483647, %v3408
  %v3425 = vand.u32 2147483647, %v3409
  %v3426 = vand.u32 2147483647, %v3410
  %v3427 = vand.u32 2147483647, %v3411
  %v3428 = vand.u32 2147483647, %v3412
  %v3429 = vand.u32 2147483647, %v3413
  %v3430 = vand.u32 2147483647, %v3414
  %v3431 = vand.u32 2147483647, %v3415
  %v3432 = vand.u32 2147483647, %v3416
  %v3433 = vand.u32 2147483647, %v3417
  %v3434 = vand.u32 2147483647, %v3418
  %v3435 = vand.u32 2147483647, %v3419
  %v3436 = vand.u32 2147483647, %v3420
  %v3437 = vand.u32 2147483647, %v3421
  %v3438 = vadd.f32 %v3322, %v3422
  %v3439 = vadd.f32 %v3323, %v3423
  %v3440 = vadd.f32 %v3324, %v3424
  %v3441 = vadd.f32 %v3325, %v3425
  %v3442 = vadd.f32 %v3326, %v3426
  %v3443 = vadd.f32 %v3327, %v3427
  %v3444 = vadd.f32 %v3328, %v3428
  %v3445 = vadd.f32 %v3329, %v3429
  %v3446 = vadd.f32 %v3330, %v3430
  %v3447 = vadd.f32 %v3331, %v3431
  %v3448 = vadd.f32 %v3332, %v3432
  %v3449 = vadd.f32 %v3333, %v3433
  %v3450 = vadd.f32 %v3334, %v3434
  %v3451 = vadd.f32 %v3335, %v3435
  %v3452 = vadd.f32 %v3336, %v3436
  %v3453 = vadd.f32 %v3337, %v3437
  %3454 = vset.pattern.permute.xlu0 29
  %3455 = vperm.xlu0 %3454, %v37
  %v3456 = vpop.permute.xlu0 %3455
  %3458 = vset.pattern.permute.xlu0 29
  %3459 = vperm.xlu0 %3458, %v38
  %v3460 = vpop.permute.xlu0 %3459
  %3462 = vset.pattern.permute.xlu0 29
  %3463 = vperm.xlu0 %3462, %v39
  %v3464 = vpop.permute.xlu0 %3463
  %3466 = vset.pattern.permute.xlu0 29
  %3467 = vperm.xlu0 %3466, %v40
  %v3468 = vpop.permute.xlu0 %3467
  %3470 = vset.pattern.permute.xlu0 29
  %3471 = vperm.xlu0 %3470, %v41
  %v3472 = vpop.permute.xlu0 %3471
  %3474 = vset.pattern.permute.xlu0 29
  %3475 = vperm.xlu0 %3474, %v42
  %v3476 = vpop.permute.xlu0 %3475
  %3478 = vset.pattern.permute.xlu0 29
  %3479 = vperm.xlu0 %3478, %v43
  %v3480 = vpop.permute.xlu0 %3479
  %3482 = vset.pattern.permute.xlu0 29
  %3483 = vperm.xlu0 %3482, %v44
  %v3484 = vpop.permute.xlu0 %3483
  %3486 = vset.pattern.permute.xlu0 29
  %3487 = vperm.xlu0 %3486, %v45
  %v3488 = vpop.permute.xlu0 %3487
  %3490 = vset.pattern.permute.xlu0 29
  %3491 = vperm.xlu0 %3490, %v46
  %v3492 = vpop.permute.xlu0 %3491
  %3494 = vset.pattern.permute.xlu0 29
  %3495 = vperm.xlu0 %3494, %v47
  %v3496 = vpop.permute.xlu0 %3495
  %3498 = vset.pattern.permute.xlu0 29
  %3499 = vperm.xlu0 %3498, %v48
  %v3500 = vpop.permute.xlu0 %3499
  %3502 = vset.pattern.permute.xlu0 29
  %3503 = vperm.xlu0 %3502, %v49
  %v3504 = vpop.permute.xlu0 %3503
  %3506 = vset.pattern.permute.xlu0 29
  %3507 = vperm.xlu0 %3506, %v50
  %v3508 = vpop.permute.xlu0 %3507
  %3510 = vset.pattern.permute.xlu0 29
  %3511 = vperm.xlu0 %3510, %v51
  %v3512 = vpop.permute.xlu0 %3511
  %3514 = vset.pattern.permute.xlu0 29
  %3515 = vperm.xlu0 %3514, %v52
  %v3516 = vpop.permute.xlu0 %3515
  %v3518 = vlaneseq
  %v3519 = vshrl.u32 %v3518, 7
  %v3520 = vsub.s32 5, %v3519
  %v3521 = vrot.slane %v56, %v3520
  %v3522 = vsub.f32 %v3456, %v3521
  %v3523 = vsub.f32 %v3460, %v3521
  %v3524 = vsub.f32 %v3464, %v3521
  %v3525 = vsub.f32 %v3468, %v3521
  %v3526 = vsub.f32 %v3472, %v3521
  %v3527 = vsub.f32 %v3476, %v3521
  %v3528 = vsub.f32 %v3480, %v3521
  %v3529 = vsub.f32 %v3484, %v3521
  %v3530 = vsub.f32 %v3488, %v3521
  %v3531 = vsub.f32 %v3492, %v3521
  %v3532 = vsub.f32 %v3496, %v3521
  %v3533 = vsub.f32 %v3500, %v3521
  %v3534 = vsub.f32 %v3504, %v3521
  %v3535 = vsub.f32 %v3508, %v3521
  %v3536 = vsub.f32 %v3512, %v3521
  %v3537 = vsub.f32 %v3516, %v3521
  %v3538 = vand.u32 2147483647, %v3522
  %v3539 = vand.u32 2147483647, %v3523
  %v3540 = vand.u32 2147483647, %v3524
  %v3541 = vand.u32 2147483647, %v3525
  %v3542 = vand.u32 2147483647, %v3526
  %v3543 = vand.u32 2147483647, %v3527
  %v3544 = vand.u32 2147483647, %v3528
  %v3545 = vand.u32 2147483647, %v3529
  %v3546 = vand.u32 2147483647, %v3530
  %v3547 = vand.u32 2147483647, %v3531
  %v3548 = vand.u32 2147483647, %v3532
  %v3549 = vand.u32 2147483647, %v3533
  %v3550 = vand.u32 2147483647, %v3534
  %v3551 = vand.u32 2147483647, %v3535
  %v3552 = vand.u32 2147483647, %v3536
  %v3553 = vand.u32 2147483647, %v3537
  %v3554 = vadd.f32 %v3438, %v3538
  %v3555 = vadd.f32 %v3439, %v3539
  %v3556 = vadd.f32 %v3440, %v3540
  %v3557 = vadd.f32 %v3441, %v3541
  %v3558 = vadd.f32 %v3442, %v3542
  %v3559 = vadd.f32 %v3443, %v3543
  %v3560 = vadd.f32 %v3444, %v3544
  %v3561 = vadd.f32 %v3445, %v3545
  %v3562 = vadd.f32 %v3446, %v3546
  %v3563 = vadd.f32 %v3447, %v3547
  %v3564 = vadd.f32 %v3448, %v3548
  %v3565 = vadd.f32 %v3449, %v3549
  %v3566 = vadd.f32 %v3450, %v3550
  %v3567 = vadd.f32 %v3451, %v3551
  %v3568 = vadd.f32 %v3452, %v3552
  %v3569 = vadd.f32 %v3453, %v3553
  %3570 = vset.pattern.permute.xlu0 30
  %3571 = vperm.xlu0 %3570, %v37
  %v3572 = vpop.permute.xlu0 %3571
  %3574 = vset.pattern.permute.xlu0 30
  %3575 = vperm.xlu0 %3574, %v38
  %v3576 = vpop.permute.xlu0 %3575
  %3578 = vset.pattern.permute.xlu0 30
  %3579 = vperm.xlu0 %3578, %v39
  %v3580 = vpop.permute.xlu0 %3579
  %3582 = vset.pattern.permute.xlu0 30
  %3583 = vperm.xlu0 %3582, %v40
  %v3584 = vpop.permute.xlu0 %3583
  %3586 = vset.pattern.permute.xlu0 30
  %3587 = vperm.xlu0 %3586, %v41
  %v3588 = vpop.permute.xlu0 %3587
  %3590 = vset.pattern.permute.xlu0 30
  %3591 = vperm.xlu0 %3590, %v42
  %v3592 = vpop.permute.xlu0 %3591
  %3594 = vset.pattern.permute.xlu0 30
  %3595 = vperm.xlu0 %3594, %v43
  %v3596 = vpop.permute.xlu0 %3595
  %3598 = vset.pattern.permute.xlu0 30
  %3599 = vperm.xlu0 %3598, %v44
  %v3600 = vpop.permute.xlu0 %3599
  %3602 = vset.pattern.permute.xlu0 30
  %3603 = vperm.xlu0 %3602, %v45
  %v3604 = vpop.permute.xlu0 %3603
  %3606 = vset.pattern.permute.xlu0 30
  %3607 = vperm.xlu0 %3606, %v46
  %v3608 = vpop.permute.xlu0 %3607
  %3610 = vset.pattern.permute.xlu0 30
  %3611 = vperm.xlu0 %3610, %v47
  %v3612 = vpop.permute.xlu0 %3611
  %3614 = vset.pattern.permute.xlu0 30
  %3615 = vperm.xlu0 %3614, %v48
  %v3616 = vpop.permute.xlu0 %3615
  %3618 = vset.pattern.permute.xlu0 30
  %3619 = vperm.xlu0 %3618, %v49
  %v3620 = vpop.permute.xlu0 %3619
  %3622 = vset.pattern.permute.xlu0 30
  %3623 = vperm.xlu0 %3622, %v50
  %v3624 = vpop.permute.xlu0 %3623
  %3626 = vset.pattern.permute.xlu0 30
  %3627 = vperm.xlu0 %3626, %v51
  %v3628 = vpop.permute.xlu0 %3627
  %3630 = vset.pattern.permute.xlu0 30
  %3631 = vperm.xlu0 %3630, %v52
  %v3632 = vpop.permute.xlu0 %3631
  %v3634 = vlaneseq
  %v3635 = vshrl.u32 %v3634, 7
  %v3636 = vsub.s32 6, %v3635
  %v3637 = vrot.slane %v56, %v3636
  %v3638 = vsub.f32 %v3572, %v3637
  %v3639 = vsub.f32 %v3576, %v3637
  %v3640 = vsub.f32 %v3580, %v3637
  %v3641 = vsub.f32 %v3584, %v3637
  %v3642 = vsub.f32 %v3588, %v3637
  %v3643 = vsub.f32 %v3592, %v3637
  %v3644 = vsub.f32 %v3596, %v3637
  %v3645 = vsub.f32 %v3600, %v3637
  %v3646 = vsub.f32 %v3604, %v3637
  %v3647 = vsub.f32 %v3608, %v3637
  %v3648 = vsub.f32 %v3612, %v3637
  %v3649 = vsub.f32 %v3616, %v3637
  %v3650 = vsub.f32 %v3620, %v3637
  %v3651 = vsub.f32 %v3624, %v3637
  %v3652 = vsub.f32 %v3628, %v3637
  %v3653 = vsub.f32 %v3632, %v3637
  %v3654 = vand.u32 2147483647, %v3638
  %v3655 = vand.u32 2147483647, %v3639
  %v3656 = vand.u32 2147483647, %v3640
  %v3657 = vand.u32 2147483647, %v3641
  %v3658 = vand.u32 2147483647, %v3642
  %v3659 = vand.u32 2147483647, %v3643
  %v3660 = vand.u32 2147483647, %v3644
  %v3661 = vand.u32 2147483647, %v3645
  %v3662 = vand.u32 2147483647, %v3646
  %v3663 = vand.u32 2147483647, %v3647
  %v3664 = vand.u32 2147483647, %v3648
  %v3665 = vand.u32 2147483647, %v3649
  %v3666 = vand.u32 2147483647, %v3650
  %v3667 = vand.u32 2147483647, %v3651
  %v3668 = vand.u32 2147483647, %v3652
  %v3669 = vand.u32 2147483647, %v3653
  %v3670 = vadd.f32 %v3554, %v3654
  %v3671 = vadd.f32 %v3555, %v3655
  %v3672 = vadd.f32 %v3556, %v3656
  %v3673 = vadd.f32 %v3557, %v3657
  %v3674 = vadd.f32 %v3558, %v3658
  %v3675 = vadd.f32 %v3559, %v3659
  %v3676 = vadd.f32 %v3560, %v3660
  %v3677 = vadd.f32 %v3561, %v3661
  %v3678 = vadd.f32 %v3562, %v3662
  %v3679 = vadd.f32 %v3563, %v3663
  %v3680 = vadd.f32 %v3564, %v3664
  %v3681 = vadd.f32 %v3565, %v3665
  %v3682 = vadd.f32 %v3566, %v3666
  %v3683 = vadd.f32 %v3567, %v3667
  %v3684 = vadd.f32 %v3568, %v3668
  %v3685 = vadd.f32 %v3569, %v3669
  %3686 = vset.pattern.permute.xlu0 31
  %3687 = vperm.xlu0 %3686, %v37
  %v3688 = vpop.permute.xlu0 %3687
  %3690 = vset.pattern.permute.xlu0 31
  %3691 = vperm.xlu0 %3690, %v38
  %v3692 = vpop.permute.xlu0 %3691
  %3694 = vset.pattern.permute.xlu0 31
  %3695 = vperm.xlu0 %3694, %v39
  %v3696 = vpop.permute.xlu0 %3695
  %3698 = vset.pattern.permute.xlu0 31
  %3699 = vperm.xlu0 %3698, %v40
  %v3700 = vpop.permute.xlu0 %3699
  %3702 = vset.pattern.permute.xlu0 31
  %3703 = vperm.xlu0 %3702, %v41
  %v3704 = vpop.permute.xlu0 %3703
  %3706 = vset.pattern.permute.xlu0 31
  %3707 = vperm.xlu0 %3706, %v42
  %v3708 = vpop.permute.xlu0 %3707
  %3710 = vset.pattern.permute.xlu0 31
  %3711 = vperm.xlu0 %3710, %v43
  %v3712 = vpop.permute.xlu0 %3711
  %3714 = vset.pattern.permute.xlu0 31
  %3715 = vperm.xlu0 %3714, %v44
  %v3716 = vpop.permute.xlu0 %3715
  %3718 = vset.pattern.permute.xlu0 31
  %3719 = vperm.xlu0 %3718, %v45
  %v3720 = vpop.permute.xlu0 %3719
  %3722 = vset.pattern.permute.xlu0 31
  %3723 = vperm.xlu0 %3722, %v46
  %v3724 = vpop.permute.xlu0 %3723
  %3726 = vset.pattern.permute.xlu0 31
  %3727 = vperm.xlu0 %3726, %v47
  %v3728 = vpop.permute.xlu0 %3727
  %3730 = vset.pattern.permute.xlu0 31
  %3731 = vperm.xlu0 %3730, %v48
  %v3732 = vpop.permute.xlu0 %3731
  %3734 = vset.pattern.permute.xlu0 31
  %3735 = vperm.xlu0 %3734, %v49
  %v3736 = vpop.permute.xlu0 %3735
  %3738 = vset.pattern.permute.xlu0 31
  %3739 = vperm.xlu0 %3738, %v50
  %v3740 = vpop.permute.xlu0 %3739
  %3742 = vset.pattern.permute.xlu0 31
  %3743 = vperm.xlu0 %3742, %v51
  %v3744 = vpop.permute.xlu0 %3743
  %3746 = vset.pattern.permute.xlu0 31
  %3747 = vperm.xlu0 %3746, %v52
  %v3748 = vpop.permute.xlu0 %3747
  %v3750 = vlaneseq
  %v3751 = vshrl.u32 %v3750, 7
  %v3752 = vsub.s32 7, %v3751
  %v3753 = vrot.slane %v56, %v3752
  %v3754 = vsub.f32 %v3688, %v3753
  %v3755 = vsub.f32 %v3692, %v3753
  %v3756 = vsub.f32 %v3696, %v3753
  %v3757 = vsub.f32 %v3700, %v3753
  %v3758 = vsub.f32 %v3704, %v3753
  %v3759 = vsub.f32 %v3708, %v3753
  %v3760 = vsub.f32 %v3712, %v3753
  %v3761 = vsub.f32 %v3716, %v3753
  %v3762 = vsub.f32 %v3720, %v3753
  %v3763 = vsub.f32 %v3724, %v3753
  %v3764 = vsub.f32 %v3728, %v3753
  %v3765 = vsub.f32 %v3732, %v3753
  %v3766 = vsub.f32 %v3736, %v3753
  %v3767 = vsub.f32 %v3740, %v3753
  %v3768 = vsub.f32 %v3744, %v3753
  %v3769 = vsub.f32 %v3748, %v3753
  %v3770 = vand.u32 2147483647, %v3754
  %v3771 = vand.u32 2147483647, %v3755
  %v3772 = vand.u32 2147483647, %v3756
  %v3773 = vand.u32 2147483647, %v3757
  %v3774 = vand.u32 2147483647, %v3758
  %v3775 = vand.u32 2147483647, %v3759
  %v3776 = vand.u32 2147483647, %v3760
  %v3777 = vand.u32 2147483647, %v3761
  %v3778 = vand.u32 2147483647, %v3762
  %v3779 = vand.u32 2147483647, %v3763
  %v3780 = vand.u32 2147483647, %v3764
  %v3781 = vand.u32 2147483647, %v3765
  %v3782 = vand.u32 2147483647, %v3766
  %v3783 = vand.u32 2147483647, %v3767
  %v3784 = vand.u32 2147483647, %v3768
  %v3785 = vand.u32 2147483647, %v3769
  %v3786 = vadd.f32 %v3670, %v3770
  %v3787 = vadd.f32 %v3671, %v3771
  %v3788 = vadd.f32 %v3672, %v3772
  %v3789 = vadd.f32 %v3673, %v3773
  %v3790 = vadd.f32 %v3674, %v3774
  %v3791 = vadd.f32 %v3675, %v3775
  %v3792 = vadd.f32 %v3676, %v3776
  %v3793 = vadd.f32 %v3677, %v3777
  %v3794 = vadd.f32 %v3678, %v3778
  %v3795 = vadd.f32 %v3679, %v3779
  %v3796 = vadd.f32 %v3680, %v3780
  %v3797 = vadd.f32 %v3681, %v3781
  %v3798 = vadd.f32 %v3682, %v3782
  %v3799 = vadd.f32 %v3683, %v3783
  %v3800 = vadd.f32 %v3684, %v3784
  %v3801 = vadd.f32 %v3685, %v3785
  %3802 = vset.pattern.permute.xlu0 32
  %3803 = vperm.xlu0 %3802, %v37
  %v3804 = vpop.permute.xlu0 %3803
  %3806 = vset.pattern.permute.xlu0 32
  %3807 = vperm.xlu0 %3806, %v38
  %v3808 = vpop.permute.xlu0 %3807
  %3810 = vset.pattern.permute.xlu0 32
  %3811 = vperm.xlu0 %3810, %v39
  %v3812 = vpop.permute.xlu0 %3811
  %3814 = vset.pattern.permute.xlu0 32
  %3815 = vperm.xlu0 %3814, %v40
  %v3816 = vpop.permute.xlu0 %3815
  %3818 = vset.pattern.permute.xlu0 32
  %3819 = vperm.xlu0 %3818, %v41
  %v3820 = vpop.permute.xlu0 %3819
  %3822 = vset.pattern.permute.xlu0 32
  %3823 = vperm.xlu0 %3822, %v42
  %v3824 = vpop.permute.xlu0 %3823
  %3826 = vset.pattern.permute.xlu0 32
  %3827 = vperm.xlu0 %3826, %v43
  %v3828 = vpop.permute.xlu0 %3827
  %3830 = vset.pattern.permute.xlu0 32
  %3831 = vperm.xlu0 %3830, %v44
  %v3832 = vpop.permute.xlu0 %3831
  %3834 = vset.pattern.permute.xlu0 32
  %3835 = vperm.xlu0 %3834, %v45
  %v3836 = vpop.permute.xlu0 %3835
  %3838 = vset.pattern.permute.xlu0 32
  %3839 = vperm.xlu0 %3838, %v46
  %v3840 = vpop.permute.xlu0 %3839
  %3842 = vset.pattern.permute.xlu0 32
  %3843 = vperm.xlu0 %3842, %v47
  %v3844 = vpop.permute.xlu0 %3843
  %3846 = vset.pattern.permute.xlu0 32
  %3847 = vperm.xlu0 %3846, %v48
  %v3848 = vpop.permute.xlu0 %3847
  %3850 = vset.pattern.permute.xlu0 32
  %3851 = vperm.xlu0 %3850, %v49
  %v3852 = vpop.permute.xlu0 %3851
  %3854 = vset.pattern.permute.xlu0 32
  %3855 = vperm.xlu0 %3854, %v50
  %v3856 = vpop.permute.xlu0 %3855
  %3858 = vset.pattern.permute.xlu0 32
  %3859 = vperm.xlu0 %3858, %v51
  %v3860 = vpop.permute.xlu0 %3859
  %3862 = vset.pattern.permute.xlu0 32
  %3863 = vperm.xlu0 %3862, %v52
  %v3864 = vpop.permute.xlu0 %3863
  %v3866 = vlaneseq
  %v3867 = vshrl.u32 %v3866, 7
  %v3868 = vsub.s32 0, %v3867
  %v3869 = vrot.slane %v57, %v3868
  %v3870 = vsub.f32 %v3804, %v3869
  %v3871 = vsub.f32 %v3808, %v3869
  %v3872 = vsub.f32 %v3812, %v3869
  %v3873 = vsub.f32 %v3816, %v3869
  %v3874 = vsub.f32 %v3820, %v3869
  %v3875 = vsub.f32 %v3824, %v3869
  %v3876 = vsub.f32 %v3828, %v3869
  %v3877 = vsub.f32 %v3832, %v3869
  %v3878 = vsub.f32 %v3836, %v3869
  %v3879 = vsub.f32 %v3840, %v3869
  %v3880 = vsub.f32 %v3844, %v3869
  %v3881 = vsub.f32 %v3848, %v3869
  %v3882 = vsub.f32 %v3852, %v3869
  %v3883 = vsub.f32 %v3856, %v3869
  %v3884 = vsub.f32 %v3860, %v3869
  %v3885 = vsub.f32 %v3864, %v3869
  %v3886 = vand.u32 2147483647, %v3870
  %v3887 = vand.u32 2147483647, %v3871
  %v3888 = vand.u32 2147483647, %v3872
  %v3889 = vand.u32 2147483647, %v3873
  %v3890 = vand.u32 2147483647, %v3874
  %v3891 = vand.u32 2147483647, %v3875
  %v3892 = vand.u32 2147483647, %v3876
  %v3893 = vand.u32 2147483647, %v3877
  %v3894 = vand.u32 2147483647, %v3878
  %v3895 = vand.u32 2147483647, %v3879
  %v3896 = vand.u32 2147483647, %v3880
  %v3897 = vand.u32 2147483647, %v3881
  %v3898 = vand.u32 2147483647, %v3882
  %v3899 = vand.u32 2147483647, %v3883
  %v3900 = vand.u32 2147483647, %v3884
  %v3901 = vand.u32 2147483647, %v3885
  %v3902 = vadd.f32 %v3786, %v3886
  %v3903 = vadd.f32 %v3787, %v3887
  %v3904 = vadd.f32 %v3788, %v3888
  %v3905 = vadd.f32 %v3789, %v3889
  %v3906 = vadd.f32 %v3790, %v3890
  %v3907 = vadd.f32 %v3791, %v3891
  %v3908 = vadd.f32 %v3792, %v3892
  %v3909 = vadd.f32 %v3793, %v3893
  %v3910 = vadd.f32 %v3794, %v3894
  %v3911 = vadd.f32 %v3795, %v3895
  %v3912 = vadd.f32 %v3796, %v3896
  %v3913 = vadd.f32 %v3797, %v3897
  %v3914 = vadd.f32 %v3798, %v3898
  %v3915 = vadd.f32 %v3799, %v3899
  %v3916 = vadd.f32 %v3800, %v3900
  %v3917 = vadd.f32 %v3801, %v3901
  %3918 = vset.pattern.permute.xlu0 33
  %3919 = vperm.xlu0 %3918, %v37
  %v3920 = vpop.permute.xlu0 %3919
  %3922 = vset.pattern.permute.xlu0 33
  %3923 = vperm.xlu0 %3922, %v38
  %v3924 = vpop.permute.xlu0 %3923
  %3926 = vset.pattern.permute.xlu0 33
  %3927 = vperm.xlu0 %3926, %v39
  %v3928 = vpop.permute.xlu0 %3927
  %3930 = vset.pattern.permute.xlu0 33
  %3931 = vperm.xlu0 %3930, %v40
  %v3932 = vpop.permute.xlu0 %3931
  %3934 = vset.pattern.permute.xlu0 33
  %3935 = vperm.xlu0 %3934, %v41
  %v3936 = vpop.permute.xlu0 %3935
  %3938 = vset.pattern.permute.xlu0 33
  %3939 = vperm.xlu0 %3938, %v42
  %v3940 = vpop.permute.xlu0 %3939
  %3942 = vset.pattern.permute.xlu0 33
  %3943 = vperm.xlu0 %3942, %v43
  %v3944 = vpop.permute.xlu0 %3943
  %3946 = vset.pattern.permute.xlu0 33
  %3947 = vperm.xlu0 %3946, %v44
  %v3948 = vpop.permute.xlu0 %3947
  %3950 = vset.pattern.permute.xlu0 33
  %3951 = vperm.xlu0 %3950, %v45
  %v3952 = vpop.permute.xlu0 %3951
  %3954 = vset.pattern.permute.xlu0 33
  %3955 = vperm.xlu0 %3954, %v46
  %v3956 = vpop.permute.xlu0 %3955
  %3958 = vset.pattern.permute.xlu0 33
  %3959 = vperm.xlu0 %3958, %v47
  %v3960 = vpop.permute.xlu0 %3959
  %3962 = vset.pattern.permute.xlu0 33
  %3963 = vperm.xlu0 %3962, %v48
  %v3964 = vpop.permute.xlu0 %3963
  %3966 = vset.pattern.permute.xlu0 33
  %3967 = vperm.xlu0 %3966, %v49
  %v3968 = vpop.permute.xlu0 %3967
  %3970 = vset.pattern.permute.xlu0 33
  %3971 = vperm.xlu0 %3970, %v50
  %v3972 = vpop.permute.xlu0 %3971
  %3974 = vset.pattern.permute.xlu0 33
  %3975 = vperm.xlu0 %3974, %v51
  %v3976 = vpop.permute.xlu0 %3975
  %3978 = vset.pattern.permute.xlu0 33
  %3979 = vperm.xlu0 %3978, %v52
  %v3980 = vpop.permute.xlu0 %3979
  %v3982 = vlaneseq
  %v3983 = vshrl.u32 %v3982, 7
  %v3984 = vsub.s32 1, %v3983
  %v3985 = vrot.slane %v57, %v3984
  %v3986 = vsub.f32 %v3920, %v3985
  %v3987 = vsub.f32 %v3924, %v3985
  %v3988 = vsub.f32 %v3928, %v3985
  %v3989 = vsub.f32 %v3932, %v3985
  %v3990 = vsub.f32 %v3936, %v3985
  %v3991 = vsub.f32 %v3940, %v3985
  %v3992 = vsub.f32 %v3944, %v3985
  %v3993 = vsub.f32 %v3948, %v3985
  %v3994 = vsub.f32 %v3952, %v3985
  %v3995 = vsub.f32 %v3956, %v3985
  %v3996 = vsub.f32 %v3960, %v3985
  %v3997 = vsub.f32 %v3964, %v3985
  %v3998 = vsub.f32 %v3968, %v3985
  %v3999 = vsub.f32 %v3972, %v3985
  %v4000 = vsub.f32 %v3976, %v3985
  %v4001 = vsub.f32 %v3980, %v3985
  %v4002 = vand.u32 2147483647, %v3986
  %v4003 = vand.u32 2147483647, %v3987
  %v4004 = vand.u32 2147483647, %v3988
  %v4005 = vand.u32 2147483647, %v3989
  %v4006 = vand.u32 2147483647, %v3990
  %v4007 = vand.u32 2147483647, %v3991
  %v4008 = vand.u32 2147483647, %v3992
  %v4009 = vand.u32 2147483647, %v3993
  %v4010 = vand.u32 2147483647, %v3994
  %v4011 = vand.u32 2147483647, %v3995
  %v4012 = vand.u32 2147483647, %v3996
  %v4013 = vand.u32 2147483647, %v3997
  %v4014 = vand.u32 2147483647, %v3998
  %v4015 = vand.u32 2147483647, %v3999
  %v4016 = vand.u32 2147483647, %v4000
  %v4017 = vand.u32 2147483647, %v4001
  %v4018 = vadd.f32 %v3902, %v4002
  %v4019 = vadd.f32 %v3903, %v4003
  %v4020 = vadd.f32 %v3904, %v4004
  %v4021 = vadd.f32 %v3905, %v4005
  %v4022 = vadd.f32 %v3906, %v4006
  %v4023 = vadd.f32 %v3907, %v4007
  %v4024 = vadd.f32 %v3908, %v4008
  %v4025 = vadd.f32 %v3909, %v4009
  %v4026 = vadd.f32 %v3910, %v4010
  %v4027 = vadd.f32 %v3911, %v4011
  %v4028 = vadd.f32 %v3912, %v4012
  %v4029 = vadd.f32 %v3913, %v4013
  %v4030 = vadd.f32 %v3914, %v4014
  %v4031 = vadd.f32 %v3915, %v4015
  %v4032 = vadd.f32 %v3916, %v4016
  %v4033 = vadd.f32 %v3917, %v4017
  %4034 = vset.pattern.permute.xlu0 34
  %4035 = vperm.xlu0 %4034, %v37
  %v4036 = vpop.permute.xlu0 %4035
  %4038 = vset.pattern.permute.xlu0 34
  %4039 = vperm.xlu0 %4038, %v38
  %v4040 = vpop.permute.xlu0 %4039
  %4042 = vset.pattern.permute.xlu0 34
  %4043 = vperm.xlu0 %4042, %v39
  %v4044 = vpop.permute.xlu0 %4043
  %4046 = vset.pattern.permute.xlu0 34
  %4047 = vperm.xlu0 %4046, %v40
  %v4048 = vpop.permute.xlu0 %4047
  %4050 = vset.pattern.permute.xlu0 34
  %4051 = vperm.xlu0 %4050, %v41
  %v4052 = vpop.permute.xlu0 %4051
  %4054 = vset.pattern.permute.xlu0 34
  %4055 = vperm.xlu0 %4054, %v42
  %v4056 = vpop.permute.xlu0 %4055
  %4058 = vset.pattern.permute.xlu0 34
  %4059 = vperm.xlu0 %4058, %v43
  %v4060 = vpop.permute.xlu0 %4059
  %4062 = vset.pattern.permute.xlu0 34
  %4063 = vperm.xlu0 %4062, %v44
  %v4064 = vpop.permute.xlu0 %4063
  %4066 = vset.pattern.permute.xlu0 34
  %4067 = vperm.xlu0 %4066, %v45
  %v4068 = vpop.permute.xlu0 %4067
  %4070 = vset.pattern.permute.xlu0 34
  %4071 = vperm.xlu0 %4070, %v46
  %v4072 = vpop.permute.xlu0 %4071
  %4074 = vset.pattern.permute.xlu0 34
  %4075 = vperm.xlu0 %4074, %v47
  %v4076 = vpop.permute.xlu0 %4075
  %4078 = vset.pattern.permute.xlu0 34
  %4079 = vperm.xlu0 %4078, %v48
  %v4080 = vpop.permute.xlu0 %4079
  %4082 = vset.pattern.permute.xlu0 34
  %4083 = vperm.xlu0 %4082, %v49
  %v4084 = vpop.permute.xlu0 %4083
  %4086 = vset.pattern.permute.xlu0 34
  %4087 = vperm.xlu0 %4086, %v50
  %v4088 = vpop.permute.xlu0 %4087
  %4090 = vset.pattern.permute.xlu0 34
  %4091 = vperm.xlu0 %4090, %v51
  %v4092 = vpop.permute.xlu0 %4091
  %4094 = vset.pattern.permute.xlu0 34
  %4095 = vperm.xlu0 %4094, %v52
  %v4096 = vpop.permute.xlu0 %4095
  %v4098 = vlaneseq
  %v4099 = vshrl.u32 %v4098, 7
  %v4100 = vsub.s32 2, %v4099
  %v4101 = vrot.slane %v57, %v4100
  %v4102 = vsub.f32 %v4036, %v4101
  %v4103 = vsub.f32 %v4040, %v4101
  %v4104 = vsub.f32 %v4044, %v4101
  %v4105 = vsub.f32 %v4048, %v4101
  %v4106 = vsub.f32 %v4052, %v4101
  %v4107 = vsub.f32 %v4056, %v4101
  %v4108 = vsub.f32 %v4060, %v4101
  %v4109 = vsub.f32 %v4064, %v4101
  %v4110 = vsub.f32 %v4068, %v4101
  %v4111 = vsub.f32 %v4072, %v4101
  %v4112 = vsub.f32 %v4076, %v4101
  %v4113 = vsub.f32 %v4080, %v4101
  %v4114 = vsub.f32 %v4084, %v4101
  %v4115 = vsub.f32 %v4088, %v4101
  %v4116 = vsub.f32 %v4092, %v4101
  %v4117 = vsub.f32 %v4096, %v4101
  %v4118 = vand.u32 2147483647, %v4102
  %v4119 = vand.u32 2147483647, %v4103
  %v4120 = vand.u32 2147483647, %v4104
  %v4121 = vand.u32 2147483647, %v4105
  %v4122 = vand.u32 2147483647, %v4106
  %v4123 = vand.u32 2147483647, %v4107
  %v4124 = vand.u32 2147483647, %v4108
  %v4125 = vand.u32 2147483647, %v4109
  %v4126 = vand.u32 2147483647, %v4110
  %v4127 = vand.u32 2147483647, %v4111
  %v4128 = vand.u32 2147483647, %v4112
  %v4129 = vand.u32 2147483647, %v4113
  %v4130 = vand.u32 2147483647, %v4114
  %v4131 = vand.u32 2147483647, %v4115
  %v4132 = vand.u32 2147483647, %v4116
  %v4133 = vand.u32 2147483647, %v4117
  %v4134 = vadd.f32 %v4018, %v4118
  %v4135 = vadd.f32 %v4019, %v4119
  %v4136 = vadd.f32 %v4020, %v4120
  %v4137 = vadd.f32 %v4021, %v4121
  %v4138 = vadd.f32 %v4022, %v4122
  %v4139 = vadd.f32 %v4023, %v4123
  %v4140 = vadd.f32 %v4024, %v4124
  %v4141 = vadd.f32 %v4025, %v4125
  %v4142 = vadd.f32 %v4026, %v4126
  %v4143 = vadd.f32 %v4027, %v4127
  %v4144 = vadd.f32 %v4028, %v4128
  %v4145 = vadd.f32 %v4029, %v4129
  %v4146 = vadd.f32 %v4030, %v4130
  %v4147 = vadd.f32 %v4031, %v4131
  %v4148 = vadd.f32 %v4032, %v4132
  %v4149 = vadd.f32 %v4033, %v4133
  %4150 = vset.pattern.permute.xlu0 35
  %4151 = vperm.xlu0 %4150, %v37
  %v4152 = vpop.permute.xlu0 %4151
  %4154 = vset.pattern.permute.xlu0 35
  %4155 = vperm.xlu0 %4154, %v38
  %v4156 = vpop.permute.xlu0 %4155
  %4158 = vset.pattern.permute.xlu0 35
  %4159 = vperm.xlu0 %4158, %v39
  %v4160 = vpop.permute.xlu0 %4159
  %4162 = vset.pattern.permute.xlu0 35
  %4163 = vperm.xlu0 %4162, %v40
  %v4164 = vpop.permute.xlu0 %4163
  %4166 = vset.pattern.permute.xlu0 35
  %4167 = vperm.xlu0 %4166, %v41
  %v4168 = vpop.permute.xlu0 %4167
  %4170 = vset.pattern.permute.xlu0 35
  %4171 = vperm.xlu0 %4170, %v42
  %v4172 = vpop.permute.xlu0 %4171
  %4174 = vset.pattern.permute.xlu0 35
  %4175 = vperm.xlu0 %4174, %v43
  %v4176 = vpop.permute.xlu0 %4175
  %4178 = vset.pattern.permute.xlu0 35
  %4179 = vperm.xlu0 %4178, %v44
  %v4180 = vpop.permute.xlu0 %4179
  %4182 = vset.pattern.permute.xlu0 35
  %4183 = vperm.xlu0 %4182, %v45
  %v4184 = vpop.permute.xlu0 %4183
  %4186 = vset.pattern.permute.xlu0 35
  %4187 = vperm.xlu0 %4186, %v46
  %v4188 = vpop.permute.xlu0 %4187
  %4190 = vset.pattern.permute.xlu0 35
  %4191 = vperm.xlu0 %4190, %v47
  %v4192 = vpop.permute.xlu0 %4191
  %4194 = vset.pattern.permute.xlu0 35
  %4195 = vperm.xlu0 %4194, %v48
  %v4196 = vpop.permute.xlu0 %4195
  %4198 = vset.pattern.permute.xlu0 35
  %4199 = vperm.xlu0 %4198, %v49
  %v4200 = vpop.permute.xlu0 %4199
  %4202 = vset.pattern.permute.xlu0 35
  %4203 = vperm.xlu0 %4202, %v50
  %v4204 = vpop.permute.xlu0 %4203
  %4206 = vset.pattern.permute.xlu0 35
  %4207 = vperm.xlu0 %4206, %v51
  %v4208 = vpop.permute.xlu0 %4207
  %4210 = vset.pattern.permute.xlu0 35
  %4211 = vperm.xlu0 %4210, %v52
  %v4212 = vpop.permute.xlu0 %4211
  %v4214 = vlaneseq
  %v4215 = vshrl.u32 %v4214, 7
  %v4216 = vsub.s32 3, %v4215
  %v4217 = vrot.slane %v57, %v4216
  %v4218 = vsub.f32 %v4152, %v4217
  %v4219 = vsub.f32 %v4156, %v4217
  %v4220 = vsub.f32 %v4160, %v4217
  %v4221 = vsub.f32 %v4164, %v4217
  %v4222 = vsub.f32 %v4168, %v4217
  %v4223 = vsub.f32 %v4172, %v4217
  %v4224 = vsub.f32 %v4176, %v4217
  %v4225 = vsub.f32 %v4180, %v4217
  %v4226 = vsub.f32 %v4184, %v4217
  %v4227 = vsub.f32 %v4188, %v4217
  %v4228 = vsub.f32 %v4192, %v4217
  %v4229 = vsub.f32 %v4196, %v4217
  %v4230 = vsub.f32 %v4200, %v4217
  %v4231 = vsub.f32 %v4204, %v4217
  %v4232 = vsub.f32 %v4208, %v4217
  %v4233 = vsub.f32 %v4212, %v4217
  %v4234 = vand.u32 2147483647, %v4218
  %v4235 = vand.u32 2147483647, %v4219
  %v4236 = vand.u32 2147483647, %v4220
  %v4237 = vand.u32 2147483647, %v4221
  %v4238 = vand.u32 2147483647, %v4222
  %v4239 = vand.u32 2147483647, %v4223
  %v4240 = vand.u32 2147483647, %v4224
  %v4241 = vand.u32 2147483647, %v4225
  %v4242 = vand.u32 2147483647, %v4226
  %v4243 = vand.u32 2147483647, %v4227
  %v4244 = vand.u32 2147483647, %v4228
  %v4245 = vand.u32 2147483647, %v4229
  %v4246 = vand.u32 2147483647, %v4230
  %v4247 = vand.u32 2147483647, %v4231
  %v4248 = vand.u32 2147483647, %v4232
  %v4249 = vand.u32 2147483647, %v4233
  %v4250 = vadd.f32 %v4134, %v4234
  %v4251 = vadd.f32 %v4135, %v4235
  %v4252 = vadd.f32 %v4136, %v4236
  %v4253 = vadd.f32 %v4137, %v4237
  %v4254 = vadd.f32 %v4138, %v4238
  %v4255 = vadd.f32 %v4139, %v4239
  %v4256 = vadd.f32 %v4140, %v4240
  %v4257 = vadd.f32 %v4141, %v4241
  %v4258 = vadd.f32 %v4142, %v4242
  %v4259 = vadd.f32 %v4143, %v4243
  %v4260 = vadd.f32 %v4144, %v4244
  %v4261 = vadd.f32 %v4145, %v4245
  %v4262 = vadd.f32 %v4146, %v4246
  %v4263 = vadd.f32 %v4147, %v4247
  %v4264 = vadd.f32 %v4148, %v4248
  %v4265 = vadd.f32 %v4149, %v4249
  %4266 = vset.pattern.permute.xlu0 36
  %4267 = vperm.xlu0 %4266, %v37
  %v4268 = vpop.permute.xlu0 %4267
  %4270 = vset.pattern.permute.xlu0 36
  %4271 = vperm.xlu0 %4270, %v38
  %v4272 = vpop.permute.xlu0 %4271
  %4274 = vset.pattern.permute.xlu0 36
  %4275 = vperm.xlu0 %4274, %v39
  %v4276 = vpop.permute.xlu0 %4275
  %4278 = vset.pattern.permute.xlu0 36
  %4279 = vperm.xlu0 %4278, %v40
  %v4280 = vpop.permute.xlu0 %4279
  %4282 = vset.pattern.permute.xlu0 36
  %4283 = vperm.xlu0 %4282, %v41
  %v4284 = vpop.permute.xlu0 %4283
  %4286 = vset.pattern.permute.xlu0 36
  %4287 = vperm.xlu0 %4286, %v42
  %v4288 = vpop.permute.xlu0 %4287
  %4290 = vset.pattern.permute.xlu0 36
  %4291 = vperm.xlu0 %4290, %v43
  %v4292 = vpop.permute.xlu0 %4291
  %4294 = vset.pattern.permute.xlu0 36
  %4295 = vperm.xlu0 %4294, %v44
  %v4296 = vpop.permute.xlu0 %4295
  %4298 = vset.pattern.permute.xlu0 36
  %4299 = vperm.xlu0 %4298, %v45
  %v4300 = vpop.permute.xlu0 %4299
  %4302 = vset.pattern.permute.xlu0 36
  %4303 = vperm.xlu0 %4302, %v46
  %v4304 = vpop.permute.xlu0 %4303
  %4306 = vset.pattern.permute.xlu0 36
  %4307 = vperm.xlu0 %4306, %v47
  %v4308 = vpop.permute.xlu0 %4307
  %4310 = vset.pattern.permute.xlu0 36
  %4311 = vperm.xlu0 %4310, %v48
  %v4312 = vpop.permute.xlu0 %4311
  %4314 = vset.pattern.permute.xlu0 36
  %4315 = vperm.xlu0 %4314, %v49
  %v4316 = vpop.permute.xlu0 %4315
  %4318 = vset.pattern.permute.xlu0 36
  %4319 = vperm.xlu0 %4318, %v50
  %v4320 = vpop.permute.xlu0 %4319
  %4322 = vset.pattern.permute.xlu0 36
  %4323 = vperm.xlu0 %4322, %v51
  %v4324 = vpop.permute.xlu0 %4323
  %4326 = vset.pattern.permute.xlu0 36
  %4327 = vperm.xlu0 %4326, %v52
  %v4328 = vpop.permute.xlu0 %4327
  %v4330 = vlaneseq
  %v4331 = vshrl.u32 %v4330, 7
  %v4332 = vsub.s32 4, %v4331
  %v4333 = vrot.slane %v57, %v4332
  %v4334 = vsub.f32 %v4268, %v4333
  %v4335 = vsub.f32 %v4272, %v4333
  %v4336 = vsub.f32 %v4276, %v4333
  %v4337 = vsub.f32 %v4280, %v4333
  %v4338 = vsub.f32 %v4284, %v4333
  %v4339 = vsub.f32 %v4288, %v4333
  %v4340 = vsub.f32 %v4292, %v4333
  %v4341 = vsub.f32 %v4296, %v4333
  %v4342 = vsub.f32 %v4300, %v4333
  %v4343 = vsub.f32 %v4304, %v4333
  %v4344 = vsub.f32 %v4308, %v4333
  %v4345 = vsub.f32 %v4312, %v4333
  %v4346 = vsub.f32 %v4316, %v4333
  %v4347 = vsub.f32 %v4320, %v4333
  %v4348 = vsub.f32 %v4324, %v4333
  %v4349 = vsub.f32 %v4328, %v4333
  %v4350 = vand.u32 2147483647, %v4334
  %v4351 = vand.u32 2147483647, %v4335
  %v4352 = vand.u32 2147483647, %v4336
  %v4353 = vand.u32 2147483647, %v4337
  %v4354 = vand.u32 2147483647, %v4338
  %v4355 = vand.u32 2147483647, %v4339
  %v4356 = vand.u32 2147483647, %v4340
  %v4357 = vand.u32 2147483647, %v4341
  %v4358 = vand.u32 2147483647, %v4342
  %v4359 = vand.u32 2147483647, %v4343
  %v4360 = vand.u32 2147483647, %v4344
  %v4361 = vand.u32 2147483647, %v4345
  %v4362 = vand.u32 2147483647, %v4346
  %v4363 = vand.u32 2147483647, %v4347
  %v4364 = vand.u32 2147483647, %v4348
  %v4365 = vand.u32 2147483647, %v4349
  %v4366 = vadd.f32 %v4250, %v4350
  %v4367 = vadd.f32 %v4251, %v4351
  %v4368 = vadd.f32 %v4252, %v4352
  %v4369 = vadd.f32 %v4253, %v4353
  %v4370 = vadd.f32 %v4254, %v4354
  %v4371 = vadd.f32 %v4255, %v4355
  %v4372 = vadd.f32 %v4256, %v4356
  %v4373 = vadd.f32 %v4257, %v4357
  %v4374 = vadd.f32 %v4258, %v4358
  %v4375 = vadd.f32 %v4259, %v4359
  %v4376 = vadd.f32 %v4260, %v4360
  %v4377 = vadd.f32 %v4261, %v4361
  %v4378 = vadd.f32 %v4262, %v4362
  %v4379 = vadd.f32 %v4263, %v4363
  %v4380 = vadd.f32 %v4264, %v4364
  %v4381 = vadd.f32 %v4265, %v4365
  %4382 = vset.pattern.permute.xlu0 37
  %4383 = vperm.xlu0 %4382, %v37
  %v4384 = vpop.permute.xlu0 %4383
  %4386 = vset.pattern.permute.xlu0 37
  %4387 = vperm.xlu0 %4386, %v38
  %v4388 = vpop.permute.xlu0 %4387
  %4390 = vset.pattern.permute.xlu0 37
  %4391 = vperm.xlu0 %4390, %v39
  %v4392 = vpop.permute.xlu0 %4391
  %4394 = vset.pattern.permute.xlu0 37
  %4395 = vperm.xlu0 %4394, %v40
  %v4396 = vpop.permute.xlu0 %4395
  %4398 = vset.pattern.permute.xlu0 37
  %4399 = vperm.xlu0 %4398, %v41
  %v4400 = vpop.permute.xlu0 %4399
  %4402 = vset.pattern.permute.xlu0 37
  %4403 = vperm.xlu0 %4402, %v42
  %v4404 = vpop.permute.xlu0 %4403
  %4406 = vset.pattern.permute.xlu0 37
  %4407 = vperm.xlu0 %4406, %v43
  %v4408 = vpop.permute.xlu0 %4407
  %4410 = vset.pattern.permute.xlu0 37
  %4411 = vperm.xlu0 %4410, %v44
  %v4412 = vpop.permute.xlu0 %4411
  %4414 = vset.pattern.permute.xlu0 37
  %4415 = vperm.xlu0 %4414, %v45
  %v4416 = vpop.permute.xlu0 %4415
  %4418 = vset.pattern.permute.xlu0 37
  %4419 = vperm.xlu0 %4418, %v46
  %v4420 = vpop.permute.xlu0 %4419
  %4422 = vset.pattern.permute.xlu0 37
  %4423 = vperm.xlu0 %4422, %v47
  %v4424 = vpop.permute.xlu0 %4423
  %4426 = vset.pattern.permute.xlu0 37
  %4427 = vperm.xlu0 %4426, %v48
  %v4428 = vpop.permute.xlu0 %4427
  %4430 = vset.pattern.permute.xlu0 37
  %4431 = vperm.xlu0 %4430, %v49
  %v4432 = vpop.permute.xlu0 %4431
  %4434 = vset.pattern.permute.xlu0 37
  %4435 = vperm.xlu0 %4434, %v50
  %v4436 = vpop.permute.xlu0 %4435
  %4438 = vset.pattern.permute.xlu0 37
  %4439 = vperm.xlu0 %4438, %v51
  %v4440 = vpop.permute.xlu0 %4439
  %4442 = vset.pattern.permute.xlu0 37
  %4443 = vperm.xlu0 %4442, %v52
  %v4444 = vpop.permute.xlu0 %4443
  %v4446 = vlaneseq
  %v4447 = vshrl.u32 %v4446, 7
  %v4448 = vsub.s32 5, %v4447
  %v4449 = vrot.slane %v57, %v4448
  %v4450 = vsub.f32 %v4384, %v4449
  %v4451 = vsub.f32 %v4388, %v4449
  %v4452 = vsub.f32 %v4392, %v4449
  %v4453 = vsub.f32 %v4396, %v4449
  %v4454 = vsub.f32 %v4400, %v4449
  %v4455 = vsub.f32 %v4404, %v4449
  %v4456 = vsub.f32 %v4408, %v4449
  %v4457 = vsub.f32 %v4412, %v4449
  %v4458 = vsub.f32 %v4416, %v4449
  %v4459 = vsub.f32 %v4420, %v4449
  %v4460 = vsub.f32 %v4424, %v4449
  %v4461 = vsub.f32 %v4428, %v4449
  %v4462 = vsub.f32 %v4432, %v4449
  %v4463 = vsub.f32 %v4436, %v4449
  %v4464 = vsub.f32 %v4440, %v4449
  %v4465 = vsub.f32 %v4444, %v4449
  %v4466 = vand.u32 2147483647, %v4450
  %v4467 = vand.u32 2147483647, %v4451
  %v4468 = vand.u32 2147483647, %v4452
  %v4469 = vand.u32 2147483647, %v4453
  %v4470 = vand.u32 2147483647, %v4454
  %v4471 = vand.u32 2147483647, %v4455
  %v4472 = vand.u32 2147483647, %v4456
  %v4473 = vand.u32 2147483647, %v4457
  %v4474 = vand.u32 2147483647, %v4458
  %v4475 = vand.u32 2147483647, %v4459
  %v4476 = vand.u32 2147483647, %v4460
  %v4477 = vand.u32 2147483647, %v4461
  %v4478 = vand.u32 2147483647, %v4462
  %v4479 = vand.u32 2147483647, %v4463
  %v4480 = vand.u32 2147483647, %v4464
  %v4481 = vand.u32 2147483647, %v4465
  %v4482 = vadd.f32 %v4366, %v4466
  %v4483 = vadd.f32 %v4367, %v4467
  %v4484 = vadd.f32 %v4368, %v4468
  %v4485 = vadd.f32 %v4369, %v4469
  %v4486 = vadd.f32 %v4370, %v4470
  %v4487 = vadd.f32 %v4371, %v4471
  %v4488 = vadd.f32 %v4372, %v4472
  %v4489 = vadd.f32 %v4373, %v4473
  %v4490 = vadd.f32 %v4374, %v4474
  %v4491 = vadd.f32 %v4375, %v4475
  %v4492 = vadd.f32 %v4376, %v4476
  %v4493 = vadd.f32 %v4377, %v4477
  %v4494 = vadd.f32 %v4378, %v4478
  %v4495 = vadd.f32 %v4379, %v4479
  %v4496 = vadd.f32 %v4380, %v4480
  %v4497 = vadd.f32 %v4381, %v4481
  %4498 = vset.pattern.permute.xlu0 38
  %4499 = vperm.xlu0 %4498, %v37
  %v4500 = vpop.permute.xlu0 %4499
  %4502 = vset.pattern.permute.xlu0 38
  %4503 = vperm.xlu0 %4502, %v38
  %v4504 = vpop.permute.xlu0 %4503
  %4506 = vset.pattern.permute.xlu0 38
  %4507 = vperm.xlu0 %4506, %v39
  %v4508 = vpop.permute.xlu0 %4507
  %4510 = vset.pattern.permute.xlu0 38
  %4511 = vperm.xlu0 %4510, %v40
  %v4512 = vpop.permute.xlu0 %4511
  %4514 = vset.pattern.permute.xlu0 38
  %4515 = vperm.xlu0 %4514, %v41
  %v4516 = vpop.permute.xlu0 %4515
  %4518 = vset.pattern.permute.xlu0 38
  %4519 = vperm.xlu0 %4518, %v42
  %v4520 = vpop.permute.xlu0 %4519
  %4522 = vset.pattern.permute.xlu0 38
  %4523 = vperm.xlu0 %4522, %v43
  %v4524 = vpop.permute.xlu0 %4523
  %4526 = vset.pattern.permute.xlu0 38
  %4527 = vperm.xlu0 %4526, %v44
  %v4528 = vpop.permute.xlu0 %4527
  %4530 = vset.pattern.permute.xlu0 38
  %4531 = vperm.xlu0 %4530, %v45
  %v4532 = vpop.permute.xlu0 %4531
  %4534 = vset.pattern.permute.xlu0 38
  %4535 = vperm.xlu0 %4534, %v46
  %v4536 = vpop.permute.xlu0 %4535
  %4538 = vset.pattern.permute.xlu0 38
  %4539 = vperm.xlu0 %4538, %v47
  %v4540 = vpop.permute.xlu0 %4539
  %4542 = vset.pattern.permute.xlu0 38
  %4543 = vperm.xlu0 %4542, %v48
  %v4544 = vpop.permute.xlu0 %4543
  %4546 = vset.pattern.permute.xlu0 38
  %4547 = vperm.xlu0 %4546, %v49
  %v4548 = vpop.permute.xlu0 %4547
  %4550 = vset.pattern.permute.xlu0 38
  %4551 = vperm.xlu0 %4550, %v50
  %v4552 = vpop.permute.xlu0 %4551
  %4554 = vset.pattern.permute.xlu0 38
  %4555 = vperm.xlu0 %4554, %v51
  %v4556 = vpop.permute.xlu0 %4555
  %4558 = vset.pattern.permute.xlu0 38
  %4559 = vperm.xlu0 %4558, %v52
  %v4560 = vpop.permute.xlu0 %4559
  %v4562 = vlaneseq
  %v4563 = vshrl.u32 %v4562, 7
  %v4564 = vsub.s32 6, %v4563
  %v4565 = vrot.slane %v57, %v4564
  %v4566 = vsub.f32 %v4500, %v4565
  %v4567 = vsub.f32 %v4504, %v4565
  %v4568 = vsub.f32 %v4508, %v4565
  %v4569 = vsub.f32 %v4512, %v4565
  %v4570 = vsub.f32 %v4516, %v4565
  %v4571 = vsub.f32 %v4520, %v4565
  %v4572 = vsub.f32 %v4524, %v4565
  %v4573 = vsub.f32 %v4528, %v4565
  %v4574 = vsub.f32 %v4532, %v4565
  %v4575 = vsub.f32 %v4536, %v4565
  %v4576 = vsub.f32 %v4540, %v4565
  %v4577 = vsub.f32 %v4544, %v4565
  %v4578 = vsub.f32 %v4548, %v4565
  %v4579 = vsub.f32 %v4552, %v4565
  %v4580 = vsub.f32 %v4556, %v4565
  %v4581 = vsub.f32 %v4560, %v4565
  %v4582 = vand.u32 2147483647, %v4566
  %v4583 = vand.u32 2147483647, %v4567
  %v4584 = vand.u32 2147483647, %v4568
  %v4585 = vand.u32 2147483647, %v4569
  %v4586 = vand.u32 2147483647, %v4570
  %v4587 = vand.u32 2147483647, %v4571
  %v4588 = vand.u32 2147483647, %v4572
  %v4589 = vand.u32 2147483647, %v4573
  %v4590 = vand.u32 2147483647, %v4574
  %v4591 = vand.u32 2147483647, %v4575
  %v4592 = vand.u32 2147483647, %v4576
  %v4593 = vand.u32 2147483647, %v4577
  %v4594 = vand.u32 2147483647, %v4578
  %v4595 = vand.u32 2147483647, %v4579
  %v4596 = vand.u32 2147483647, %v4580
  %v4597 = vand.u32 2147483647, %v4581
  %v4598 = vadd.f32 %v4482, %v4582
  %v4599 = vadd.f32 %v4483, %v4583
  %v4600 = vadd.f32 %v4484, %v4584
  %v4601 = vadd.f32 %v4485, %v4585
  %v4602 = vadd.f32 %v4486, %v4586
  %v4603 = vadd.f32 %v4487, %v4587
  %v4604 = vadd.f32 %v4488, %v4588
  %v4605 = vadd.f32 %v4489, %v4589
  %v4606 = vadd.f32 %v4490, %v4590
  %v4607 = vadd.f32 %v4491, %v4591
  %v4608 = vadd.f32 %v4492, %v4592
  %v4609 = vadd.f32 %v4493, %v4593
  %v4610 = vadd.f32 %v4494, %v4594
  %v4611 = vadd.f32 %v4495, %v4595
  %v4612 = vadd.f32 %v4496, %v4596
  %v4613 = vadd.f32 %v4497, %v4597
  %4614 = vset.pattern.permute.xlu0 39
  %4615 = vperm.xlu0 %4614, %v37
  %v4616 = vpop.permute.xlu0 %4615
  %4618 = vset.pattern.permute.xlu0 39
  %4619 = vperm.xlu0 %4618, %v38
  %v4620 = vpop.permute.xlu0 %4619
  %4622 = vset.pattern.permute.xlu0 39
  %4623 = vperm.xlu0 %4622, %v39
  %v4624 = vpop.permute.xlu0 %4623
  %4626 = vset.pattern.permute.xlu0 39
  %4627 = vperm.xlu0 %4626, %v40
  %v4628 = vpop.permute.xlu0 %4627
  %4630 = vset.pattern.permute.xlu0 39
  %4631 = vperm.xlu0 %4630, %v41
  %v4632 = vpop.permute.xlu0 %4631
  %4634 = vset.pattern.permute.xlu0 39
  %4635 = vperm.xlu0 %4634, %v42
  %v4636 = vpop.permute.xlu0 %4635
  %4638 = vset.pattern.permute.xlu0 39
  %4639 = vperm.xlu0 %4638, %v43
  %v4640 = vpop.permute.xlu0 %4639
  %4642 = vset.pattern.permute.xlu0 39
  %4643 = vperm.xlu0 %4642, %v44
  %v4644 = vpop.permute.xlu0 %4643
  %4646 = vset.pattern.permute.xlu0 39
  %4647 = vperm.xlu0 %4646, %v45
  %v4648 = vpop.permute.xlu0 %4647
  %4650 = vset.pattern.permute.xlu0 39
  %4651 = vperm.xlu0 %4650, %v46
  %v4652 = vpop.permute.xlu0 %4651
  %4654 = vset.pattern.permute.xlu0 39
  %4655 = vperm.xlu0 %4654, %v47
  %v4656 = vpop.permute.xlu0 %4655
  %4658 = vset.pattern.permute.xlu0 39
  %4659 = vperm.xlu0 %4658, %v48
  %v4660 = vpop.permute.xlu0 %4659
  %4662 = vset.pattern.permute.xlu0 39
  %4663 = vperm.xlu0 %4662, %v49
  %v4664 = vpop.permute.xlu0 %4663
  %4666 = vset.pattern.permute.xlu0 39
  %4667 = vperm.xlu0 %4666, %v50
  %v4668 = vpop.permute.xlu0 %4667
  %4670 = vset.pattern.permute.xlu0 39
  %4671 = vperm.xlu0 %4670, %v51
  %v4672 = vpop.permute.xlu0 %4671
  %4674 = vset.pattern.permute.xlu0 39
  %4675 = vperm.xlu0 %4674, %v52
  %v4676 = vpop.permute.xlu0 %4675
  %v4678 = vlaneseq
  %v4679 = vshrl.u32 %v4678, 7
  %v4680 = vsub.s32 7, %v4679
  %v4681 = vrot.slane %v57, %v4680
  %v4682 = vsub.f32 %v4616, %v4681
  %v4683 = vsub.f32 %v4620, %v4681
  %v4684 = vsub.f32 %v4624, %v4681
  %v4685 = vsub.f32 %v4628, %v4681
  %v4686 = vsub.f32 %v4632, %v4681
  %v4687 = vsub.f32 %v4636, %v4681
  %v4688 = vsub.f32 %v4640, %v4681
  %v4689 = vsub.f32 %v4644, %v4681
  %v4690 = vsub.f32 %v4648, %v4681
  %v4691 = vsub.f32 %v4652, %v4681
  %v4692 = vsub.f32 %v4656, %v4681
  %v4693 = vsub.f32 %v4660, %v4681
  %v4694 = vsub.f32 %v4664, %v4681
  %v4695 = vsub.f32 %v4668, %v4681
  %v4696 = vsub.f32 %v4672, %v4681
  %v4697 = vsub.f32 %v4676, %v4681
  %v4698 = vand.u32 2147483647, %v4682
  %v4699 = vand.u32 2147483647, %v4683
  %v4700 = vand.u32 2147483647, %v4684
  %v4701 = vand.u32 2147483647, %v4685
  %v4702 = vand.u32 2147483647, %v4686
  %v4703 = vand.u32 2147483647, %v4687
  %v4704 = vand.u32 2147483647, %v4688
  %v4705 = vand.u32 2147483647, %v4689
  %v4706 = vand.u32 2147483647, %v4690
  %v4707 = vand.u32 2147483647, %v4691
  %v4708 = vand.u32 2147483647, %v4692
  %v4709 = vand.u32 2147483647, %v4693
  %v4710 = vand.u32 2147483647, %v4694
  %v4711 = vand.u32 2147483647, %v4695
  %v4712 = vand.u32 2147483647, %v4696
  %v4713 = vand.u32 2147483647, %v4697
  %v4714 = vadd.f32 %v4598, %v4698
  %v4715 = vadd.f32 %v4599, %v4699
  %v4716 = vadd.f32 %v4600, %v4700
  %v4717 = vadd.f32 %v4601, %v4701
  %v4718 = vadd.f32 %v4602, %v4702
  %v4719 = vadd.f32 %v4603, %v4703
  %v4720 = vadd.f32 %v4604, %v4704
  %v4721 = vadd.f32 %v4605, %v4705
  %v4722 = vadd.f32 %v4606, %v4706
  %v4723 = vadd.f32 %v4607, %v4707
  %v4724 = vadd.f32 %v4608, %v4708
  %v4725 = vadd.f32 %v4609, %v4709
  %v4726 = vadd.f32 %v4610, %v4710
  %v4727 = vadd.f32 %v4611, %v4711
  %v4728 = vadd.f32 %v4612, %v4712
  %v4729 = vadd.f32 %v4613, %v4713
  %4730 = vst [vmem:[#allocation2] sm:$0xff] %v4714
  %4731 = vst [vmem:[#allocation2 + $0x8] sm:$0xff] %v4715
  %4732 = vst [vmem:[#allocation2 + $0x10] sm:$0xff] %v4716
  %4733 = vst [vmem:[#allocation2 + $0x18] sm:$0xff] %v4717
  %4734 = vst [vmem:[#allocation2 + $0x20] sm:$0xff] %v4718
  %4735 = vst [vmem:[#allocation2 + $0x28] sm:$0xff] %v4719
  %4736 = vst [vmem:[#allocation2 + $0x30] sm:$0xff] %v4720
  %4737 = vst [vmem:[#allocation2 + $0x38] sm:$0xff] %v4721
  %4738 = vst [vmem:[#allocation2 + $0x40] sm:$0xff] %v4722
  %4739 = vst [vmem:[#allocation2 + $0x48] sm:$0xff] %v4723
  %4740 = vst [vmem:[#allocation2 + $0x50] sm:$0xff] %v4724
  %4741 = vst [vmem:[#allocation2 + $0x58] sm:$0xff] %v4725
  %4742 = vst [vmem:[#allocation2 + $0x60] sm:$0xff] %v4726
  %4743 = vst [vmem:[#allocation2 + $0x68] sm:$0xff] %v4727
  %4744 = vst [vmem:[#allocation2 + $0x70] sm:$0xff] %v4728
  %4745 = vst [vmem:[#allocation2 + $0x78] sm:$0xff] %v4729
  // Predicated region
  $region22: #{bottleneck_forward.4} parent=0 // pred_check
    %p4746 = pneg %p17
  $region23: #{bottleneck_forward.4} parent=0 // pred_check_branch
    %4748 = sbr.rel (%p4746) target = $region25
  $region24: #{bottleneck_forward.4} parent=0 // pred_region
    %v4749 = vld [vmem:[#allocation2] sm:$0xff]
    %v4750 = vld [vmem:[#allocation2 + $0x8] sm:$0xff]
    %v4751 = vld [vmem:[#allocation2 + $0x10] sm:$0xff]
    %v4752 = vld [vmem:[#allocation2 + $0x18] sm:$0xff]
    %v4753 = vld [vmem:[#allocation2 + $0x20] sm:$0xff]
    %v4754 = vld [vmem:[#allocation2 + $0x28] sm:$0xff]
    %v4755 = vld [vmem:[#allocation2 + $0x30] sm:$0xff]
    %v4756 = vld [vmem:[#allocation2 + $0x38] sm:$0xff]
    %v4757 = vld [vmem:[#allocation2 + $0x40] sm:$0xff]
    %v4758 = vld [vmem:[#allocation2 + $0x48] sm:$0xff]
    %v4759 = vld [vmem:[#allocation2 + $0x50] sm:$0xff]
    %v4760 = vld [vmem:[#allocation2 + $0x58] sm:$0xff]
    %v4761 = vld [vmem:[#allocation2 + $0x60] sm:$0xff]
    %v4762 = vld [vmem:[#allocation2 + $0x68] sm:$0xff]
    %v4763 = vld [vmem:[#allocation2 + $0x70] sm:$0xff]
    %v4764 = vld [vmem:[#allocation2 + $0x78] sm:$0xff]
    %v4765 = vsub.f32 0.0, %v4749
    %v4766 = vsub.f32 0.0, %v4750
    %v4767 = vsub.f32 0.0, %v4751
    %v4768 = vsub.f32 0.0, %v4752
    %v4769 = vsub.f32 0.0, %v4753
    %v4770 = vsub.f32 0.0, %v4754
    %v4771 = vsub.f32 0.0, %v4755
    %v4772 = vsub.f32 0.0, %v4756
    %v4773 = vsub.f32 0.0, %v4757
    %v4774 = vsub.f32 0.0, %v4758
    %v4775 = vsub.f32 0.0, %v4759
    %v4776 = vsub.f32 0.0, %v4760
    %v4777 = vsub.f32 0.0, %v4761
    %v4778 = vsub.f32 0.0, %v4762
    %v4779 = vsub.f32 0.0, %v4763
    %v4780 = vsub.f32 0.0, %v4764
    %v4781 = vld [vmem:[%s2] sm:$0x1]
    %v4783 = vlaneseq
    %v4784 = vshrl.u32 %v4783, 7
    %v4785 = vsub.s32 0, %v4784
    %v4786 = vrot.slane %v4781, %v4785
    %v4788 = vmul.f32 %v4765, %v4786
    %v4789 = vmul.f32 %v4766, %v4786
    %v4790 = vmul.f32 %v4767, %v4786
    %v4791 = vmul.f32 %v4768, %v4786
    %v4792 = vmul.f32 %v4769, %v4786
    %v4793 = vmul.f32 %v4770, %v4786
    %v4794 = vmul.f32 %v4771, %v4786
    %v4795 = vmul.f32 %v4772, %v4786
    %v4796 = vmul.f32 %v4773, %v4786
    %v4797 = vmul.f32 %v4774, %v4786
    %v4798 = vmul.f32 %v4775, %v4786
    %v4799 = vmul.f32 %v4776, %v4786
    %v4800 = vmul.f32 %v4777, %v4786
    %v4801 = vmul.f32 %v4778, %v4786
    %v4802 = vmul.f32 %v4779, %v4786
    %v4803 = vmul.f32 %v4780, %v4786
    %v4804 = vld [vmem:[%s3] sm:$0x1]
    %v4806 = vlaneseq
    %v4807 = vshrl.u32 %v4806, 7
    %v4808 = vsub.s32 0, %v4807
    %v4809 = vrot.slane %v4804, %v4808
    %v4811 = vadd.f32 %v4788, %v4809
    %v4812 = vadd.f32 %v4789, %v4809
    %v4813 = vadd.f32 %v4790, %v4809
    %v4814 = vadd.f32 %v4791, %v4809
    %v4815 = vadd.f32 %v4792, %v4809
    %v4816 = vadd.f32 %v4793, %v4809
    %v4817 = vadd.f32 %v4794, %v4809
    %v4818 = vadd.f32 %v4795, %v4809
    %v4819 = vadd.f32 %v4796, %v4809
    %v4820 = vadd.f32 %v4797, %v4809
    %v4821 = vadd.f32 %v4798, %v4809
    %v4822 = vadd.f32 %v4799, %v4809
    %v4823 = vadd.f32 %v4800, %v4809
    %v4824 = vadd.f32 %v4801, %v4809
    %v4825 = vadd.f32 %v4802, %v4809
    %v4826 = vadd.f32 %v4803, %v4809
    %v4827 = vmax.f32 %v4811, 0.0
    %v4828 = vmax.f32 %v4812, 0.0
    %v4829 = vmax.f32 %v4813, 0.0
    %v4830 = vmax.f32 %v4814, 0.0
    %v4831 = vmax.f32 %v4815, 0.0
    %v4832 = vmax.f32 %v4816, 0.0
    %v4833 = vmax.f32 %v4817, 0.0
    %v4834 = vmax.f32 %v4818, 0.0
    %v4835 = vmax.f32 %v4819, 0.0
    %v4836 = vmax.f32 %v4820, 0.0
    %v4837 = vmax.f32 %v4821, 0.0
    %v4838 = vmax.f32 %v4822, 0.0
    %v4839 = vmax.f32 %v4823, 0.0
    %v4840 = vmax.f32 %v4824, 0.0
    %v4841 = vmax.f32 %v4825, 0.0
    %v4842 = vmax.f32 %v4826, 0.0
    %4843 = vst [vmem:[%s4] sm:$0xff] %v4827
    %4844 = vst [vmem:[%s4 + $0x8] sm:$0xff] %v4828
    %4845 = vst [vmem:[%s4 + $0x10] sm:$0xff] %v4829
    %4846 = vst [vmem:[%s4 + $0x18] sm:$0xff] %v4830
    %4847 = vst [vmem:[%s4 + $0x20] sm:$0xff] %v4831
    %4848 = vst [vmem:[%s4 + $0x28] sm:$0xff] %v4832
    %4849 = vst [vmem:[%s4 + $0x30] sm:$0xff] %v4833
    %4850 = vst [vmem:[%s4 + $0x38] sm:$0xff] %v4834
    %4851 = vst [vmem:[%s4 + $0x40] sm:$0xff] %v4835
    %4852 = vst [vmem:[%s4 + $0x48] sm:$0xff] %v4836
    %4853 = vst [vmem:[%s4 + $0x50] sm:$0xff] %v4837
    %4854 = vst [vmem:[%s4 + $0x58] sm:$0xff] %v4838
    %4855 = vst [vmem:[%s4 + $0x60] sm:$0xff] %v4839
    %4856 = vst [vmem:[%s4 + $0x68] sm:$0xff] %v4840
    %4857 = vst [vmem:[%s4 + $0x70] sm:$0xff] %v4841
    %4858 = vst [vmem:[%s4 + $0x78] sm:$0xff] %v4842
  $region25: #{bottleneck_forward.4} parent=0 // pred_fallthru
    _
  // Predicated region
  $region26: #{bottleneck_forward.4} parent=0 // pred_check
    _
  $region27: #{bottleneck_forward.4} parent=0 // pred_check_branch
    %4860 = sbr.rel (0) target = $region29
  $region28: #{bottleneck_forward.4} parent=0 // pred_region
    _
  $region29: #{bottleneck_forward.4} parent=0 // pred_fallthru
    _
  // Predicated region
  $region30: #{bottleneck_forward.4} parent=0 // pred_check
    _
  $region31: #{bottleneck_forward.4} parent=0 // pred_check_branch
    %4862 = sbr.rel (0) target = $region33
  $region32: #{bottleneck_forward.4} parent=0 // pred_region
    _
  $region33: #{bottleneck_forward.4} parent=0 // pred_fallthru
    _

</llo_original>
